<compile_context>
chip_gen: v6e
topology: v6e:2x2x1
jax: 0.10.0
libtpu: 0.0.40
codegen_flags: <defaults>
</compile_context>

<pallas_src>
import jax
import jax.numpy as jnp
from jax.experimental import pallas as pl
from jax.experimental.pallas import tpu as pltpu

C1, C2 = 48, 96            # NaiveCNN: 3 -> 48 -> 96
HIDDEN, OUT_DIM = 64, 21   # PoseRegress(192, 21)
OUT_PAD = 128              # lane-dense padded output width


# -----------------------------------------------------------------------------
# Parameter init (torch-like layouts) and kernel-layout preparation
# -----------------------------------------------------------------------------
def init_params(key):
    ks = jax.random.split(key, 4)

    def w_init(k, shape, fan_in):
        return jax.random.normal(k, shape, jnp.float32) / jnp.sqrt(jnp.float32(fan_in))

    return {
        "conv1_w": w_init(ks[0], (3, 3, 3, C1), 3 * 9),       # HWIO
        "conv1_b": jnp.zeros((1, C1), jnp.float32),
        "conv2_w": w_init(ks[1], (3, 3, C1, C2), C1 * 9),
        "conv2_b": jnp.zeros((1, C2), jnp.float32),
        # fc1 rows follow the torch feature order (x_0, y_0, x_1, y_1, ...)
        "fc1_w": w_init(ks[2], (2 * C2, HIDDEN), 2 * C2),
        "fc1_b": jnp.zeros((1, HIDDEN), jnp.float32),
        "fc2_w": w_init(ks[3], (HIDDEN, OUT_DIM), HIDDEN),
        "fc2_b": jnp.zeros((1, OUT_DIM), jnp.float32),
    }


def prepare_params(params, H, W):
    """Re-lay the torch-convention params out for the fused kernel (one-time)."""
    Wp = W + 2
    # im2col weights: row index (kh*3+kw)*Cin + cin matches the col-slab layout.
    w1col = params["conv1_w"].reshape(9 * 3, C1).astype(jnp.bfloat16)
    w2col = params["conv2_w"].reshape(9 * C1, C2).astype(jnp.bfloat16)
    # coordinate grids over the width-padded (H, W+2) layout; the 2 pad columns
    # get coordinate 0 (their softmax weight is exactly 0 anyway).
    xs = jnp.linspace(-1.0, 1.0, W)
    ys = jnp.linspace(-1.0, 1.0, H)
    px, py = jnp.meshgrid(xs, ys)                                    # (H, W) each
    posw = jnp.stack([jnp.pad(px, ((0, 0), (0, 2))).reshape(H * Wp),
                      jnp.pad(py, ((0, 0), (0, 2))).reshape(H * Wp)]
                     ).astype(jnp.float32)                           # (2, H*Wp)
    maskw = jnp.pad(jnp.ones((H, W), jnp.float32),
                    ((0, 0), (0, 2))).reshape(H * Wp, 1)             # (H*Wp, 1)
    # De-interleave fc1 rows: the kernel builds features as [all x | all y].
    fc1w = params["fc1_w"]
    fc1w_d = jnp.concatenate([fc1w[0::2], fc1w[1::2]], axis=0)       # (192, 64)
    # Pad the 21-wide head to a lane-dense 128-wide block (sliced in wrapper).
    fc2w_p = jnp.pad(params["fc2_w"], ((0, 0), (0, OUT_PAD - OUT_DIM)))
    fc2b_p = jnp.pad(params["fc2_b"], ((0, 0), (0, OUT_PAD - OUT_DIM)))
    return {
        "w1col": w1col, "b1": params["conv1_b"],
        "w2col": w2col, "b2": params["conv2_b"],
        "posw": posw, "maskw": maskw,
        "fc1w": fc1w_d, "fc1b": params["fc1_b"],
        "fc2w": fc2w_p, "fc2b": fc2b_p,
    }


# -----------------------------------------------------------------------------
# Fused forward
# -----------------------------------------------------------------------------
def attention2d_forward(prep, x_nchw):
    N, Cin, H, W = x_nchw.shape
    Wp = W + 2
    HWP = H * Wp
    # padded flat-image rows: must cover the deepest tap slice (offset 2*Wp+2).
    R1 = ((HWP + 2 * Wp + 2 + 7) // 8) * 8

    def kernel(x_ref, w1_ref, b1_ref, w2_ref, b2_ref, pos_ref, mask_ref,
               fc1w_ref, fc1b_ref, fc2w_ref, fc2b_ref, o_ref, xf1, xf2):
        maskf = mask_ref[...]                                       # (HWP, 1)

        # ---- conv1 + ReLU: zero-padded flat image -> im2col -> one MXU dot
        xf1[...] = jnp.zeros_like(xf1)
        xf1[Wp:Wp + HWP, :] = x_ref[0]
        col1 = jnp.concatenate(
            [xf1[kh * Wp + kw: kh * Wp + kw + HWP, :]
             for kh in range(3) for kw in range(3)], axis=1)        # (HWP, 27)
        h1 = jnp.dot(col1.astype(jnp.bfloat16), w1_ref[...],
                     preferred_element_type=jnp.float32) + b1_ref[...]
        h1 = jnp.maximum(h1, 0.0) * maskf                           # zero wrap cols

        # ---- conv2 + ReLU
        xf2[...] = jnp.zeros_like(xf2)
        xf2[Wp + 1:Wp + 1 + HWP, :] = h1
        col2 = jnp.concatenate(
            [xf2[kh * Wp + kw: kh * Wp + kw + HWP, :]
             for kh in range(3) for kw in range(3)], axis=1)        # (HWP, 432)
        h2 = jnp.dot(col2.astype(jnp.bfloat16), w2_ref[...],
                     preferred_element_type=jnp.float32) + b2_ref[...]
        h2 = jnp.maximum(h2, 0.0)                                   # (HWP, C2)

        # ---- spatial softmax: channels on lanes, reduce over sublanes
        fm = h2 - (1.0 - maskf) * 1e30                              # mask wrap rows
        m = jnp.max(fm, axis=0, keepdims=True)                      # (1, C2)
        e = jnp.exp(fm - m)                                         # masked rows -> 0
        denom = jnp.sum(e, axis=0, keepdims=True)                   # (1, C2)
        ecoord = jnp.dot(pos_ref[...], e,
                         preferred_element_type=jnp.float32)        # (2, C2)
        exy = ecoord * pl.reciprocal(denom, approx=True)            # (2, C2)

        # ---- pose regressor (fc1 rows pre-split into [x-rows | y-rows])
        h = (jnp.dot(exy[0:1, :], fc1w_ref[0:C2, :],
                     preferred_element_type=jnp.float32)
             + jnp.dot(exy[1:2, :], fc1w_ref[C2:2 * C2, :],
                       preferred_element_type=jnp.float32)
             + fc1b_ref[...])
        h = jnp.maximum(h, 0.0)
        o_ref[0] = jnp.dot(h, fc2w_ref[...],
                           preferred_element_type=jnp.float32) + fc2b_ref[...]

    # NCHW -> NHWC, pad width by 1 each side, flatten (H, W+2) row-major.
    x = jnp.transpose(x_nchw, (0, 2, 3, 1)).astype(jnp.float32)
    x = jnp.pad(x, ((0, 0), (0, 0), (1, 1), (0, 0))).reshape(N, HWP, Cin)

    out = pl.pallas_call(
        kernel,
        out_shape=jax.ShapeDtypeStruct((N, 1, OUT_PAD), jnp.float32),
        grid=(N,),
        in_specs=[
            pl.BlockSpec((1, HWP, Cin), lambda n: (n, 0, 0)),
            pl.BlockSpec((9 * Cin, C1), lambda n: (0, 0)),
            pl.BlockSpec((1, C1), lambda n: (0, 0)),
            pl.BlockSpec((9 * C1, C2), lambda n: (0, 0)),
            pl.BlockSpec((1, C2), lambda n: (0, 0)),
            pl.BlockSpec((2, HWP), lambda n: (0, 0)),
            pl.BlockSpec((HWP, 1), lambda n: (0, 0)),
            pl.BlockSpec((2 * C2, HIDDEN), lambda n: (0, 0)),
            pl.BlockSpec((1, HIDDEN), lambda n: (0, 0)),
            pl.BlockSpec((HIDDEN, OUT_PAD), lambda n: (0, 0)),
            pl.BlockSpec((1, OUT_PAD), lambda n: (0, 0)),
        ],
        out_specs=pl.BlockSpec((1, 1, OUT_PAD), lambda n: (n, 0, 0)),
        scratch_shapes=[
            pltpu.VMEM((R1, Cin), jnp.float32),   # zero-padded flat image
            pltpu.VMEM((R1, C1), jnp.float32),    # zero-padded flat conv1 output
        ],
        compiler_params=pltpu.CompilerParams(dimension_semantics=("parallel",)),
    )(x, prep["w1col"], prep["b1"], prep["w2col"], prep["b2"],
      prep["posw"], prep["maskw"], prep["fc1w"], prep["fc1b"],
      prep["fc2w"], prep["fc2b"])

    return out.reshape(N, OUT_PAD)[:, :OUT_DIM]


# -----------------------------------------------------------------------------
# Pure-JAX reference (same reconstructed semantics) for a correctness check
# -----------------------------------------------------------------------------
def reference_forward(params, x_nchw):
    N, Cin, H, W = x_nchw.shape
    x = jnp.transpose(x_nchw, (0, 2, 3, 1)).astype(jnp.float32)

    def conv(h, w, b):
        y = jax.lax.conv_general_dilated(
            h, w, window_strides=(1, 1), padding="SAME",
            dimension_numbers=("NHWC", "HWIO", "NHWC"))
        return jax.nn.relu(y + b.reshape(1, 1, 1, -1))

    h = conv(x, params["conv1_w"], params["conv1_b"])
    h = conv(h, params["conv2_w"], params["conv2_b"])
    feat = jnp.transpose(h, (0, 3, 1, 2)).reshape(N, C2, H * W)
    xs = jnp.linspace(-1.0, 1.0, W)
    ys = jnp.linspace(-1.0, 1.0, H)
    px, py = jnp.meshgrid(xs, ys)
    p = jax.nn.softmax(feat, axis=-1)
    ex = jnp.sum(p * px.reshape(1, 1, -1), axis=-1)
    ey = jnp.sum(p * py.reshape(1, 1, -1), axis=-1)
    kp = jnp.stack([ex, ey], axis=-1).reshape(N, 2 * C2)   # (x0, y0, x1, y1, ...)
    hfc = jax.nn.relu(kp @ params["fc1_w"] + params["fc1_b"])
    return hfc @ params["fc2_w"] + params["fc2_b"]


if __name__ == "__main__":
    key = jax.random.PRNGKey(0)
    k_params, k_x = jax.random.split(key)

    H_IMG, W_IMG = 31, 21          # module defaults: spatial_height=31, spatial_weight=21
    params = init_params(k_params)
    prep = prepare_params(params, H_IMG, W_IMG)
    x = jax.random.normal(k_x, (2, 3, H_IMG, W_IMG), jnp.float32)

    fwd = jax.jit(attention2d_forward)
    out = jax.block_until_ready(fwd(prep, x))

    assert out.shape == (2, OUT_DIM), out.shape
    assert bool(jnp.all(jnp.isfinite(out)))

    ref = reference_forward(params, x)
    assert bool(jnp.allclose(out, ref, rtol=1e-1, atol=1e-1)), (
        float(jnp.max(jnp.abs(out - ref))))
    print("KERNEL_OK")
</pallas_src>

<mosaic_0001>
module attributes {stable_mosaic.version = 11 : i64} {
  func.func @kernel(%arg0: i32, %arg1: memref<1x713x3xf32, #tpu.memory_space<vmem>>, %arg2: memref<27x48xbf16, #tpu.memory_space<vmem>>, %arg3: memref<1x48xf32, #tpu.memory_space<vmem>>, %arg4: memref<432x96xbf16, #tpu.memory_space<vmem>>, %arg5: memref<1x96xf32, #tpu.memory_space<vmem>>, %arg6: memref<2x713xf32, #tpu.memory_space<vmem>>, %arg7: memref<713x1xf32, #tpu.memory_space<vmem>>, %arg8: memref<192x64xf32, #tpu.memory_space<vmem>>, %arg9: memref<1x64xf32, #tpu.memory_space<vmem>>, %arg10: memref<64x128xf32, #tpu.memory_space<vmem>>, %arg11: memref<1x128xf32, #tpu.memory_space<vmem>>, %arg12: memref<1x1x128xf32, #tpu.memory_space<vmem>>, %arg13: memref<768x3xf32, #tpu.memory_space<vmem>>, %arg14: memref<768x48xf32, #tpu.memory_space<vmem>>) attributes {dimension_semantics = [#tpu.dimension_semantics<parallel>], iteration_bounds = array<i64: 2>, scalar_prefetch = 0 : i64, scratch_operands = 2 : i64, tpu.core_type = #tpu.core_type<tc>, window_params = [{transform_indices = @transform_0, window_bounds = array<i64: 1, 713, 3>}, {pipeline_mode = #tpu.pipeline_mode<synchronous>, transform_indices = @transform_1, window_bounds = array<i64: 27, 48>}, {pipeline_mode = #tpu.pipeline_mode<synchronous>, transform_indices = @transform_2, window_bounds = array<i64: 1, 48>}, {pipeline_mode = #tpu.pipeline_mode<synchronous>, transform_indices = @transform_3, window_bounds = array<i64: 432, 96>}, {pipeline_mode = #tpu.pipeline_mode<synchronous>, transform_indices = @transform_4, window_bounds = array<i64: 1, 96>}, {pipeline_mode = #tpu.pipeline_mode<synchronous>, transform_indices = @transform_5, window_bounds = array<i64: 2, 713>}, {pipeline_mode = #tpu.pipeline_mode<synchronous>, transform_indices = @transform_6, window_bounds = array<i64: 713, 1>}, {pipeline_mode = #tpu.pipeline_mode<synchronous>, transform_indices = @transform_7, window_bounds = array<i64: 192, 64>}, {pipeline_mode = #tpu.pipeline_mode<synchronous>, transform_indices = @transform_8, window_bounds = array<i64: 1, 64>}, {pipeline_mode = #tpu.pipeline_mode<synchronous>, transform_indices = @transform_9, window_bounds = array<i64: 64, 128>}, {pipeline_mode = #tpu.pipeline_mode<synchronous>, transform_indices = @transform_10, window_bounds = array<i64: 1, 128>}, {transform_indices = @transform_11, window_bounds = array<i64: 1, 1, 128>}]} {
    %c0 = arith.constant 0 : index
    %c0_0 = arith.constant 0 : index
    %0 = vector.load %arg7[%c0, %c0_0] : memref<713x1xf32, #tpu.memory_space<vmem>>, vector<713x1xf32>
    %cst = arith.constant 0.000000e+00 : f32
    %1 = vector.broadcast %cst : f32 to vector<768x3xf32>
    %c0_1 = arith.constant 0 : index
    %c0_2 = arith.constant 0 : index
    %2 = vector.load %arg13[%c0_1, %c0_2] : memref<768x3xf32, #tpu.memory_space<vmem>>, vector<768x3xf32>
    tpu.vector_store %arg13[%c0_1, %c0_2], %1 {strides = array<i32>} : memref<768x3xf32, #tpu.memory_space<vmem>>, vector<768x3xf32>,
    %c0_3 = arith.constant 0 : index
    %c0_4 = arith.constant 0 : index
    %c0_5 = arith.constant 0 : index
    %3 = vector.load %arg1[%c0_3, %c0_4, %c0_5] : memref<1x713x3xf32, #tpu.memory_space<vmem>>, vector<1x713x3xf32>
    %4 = vector.shape_cast %3 : vector<1x713x3xf32> to vector<713x3xf32>
    %c23 = arith.constant 23 : index
    %c0_6 = arith.constant 0 : index
    %5 = vector.load %arg13[%c23, %c0_6] : memref<768x3xf32, #tpu.memory_space<vmem>>, vector<713x3xf32>
    tpu.vector_store %arg13[%c23, %c0_6], %4 {strides = array<i32>} : memref<768x3xf32, #tpu.memory_space<vmem>>, vector<713x3xf32>,
    %c0_7 = arith.constant 0 : index
    %c0_8 = arith.constant 0 : index
    %6 = vector.load %arg13[%c0_7, %c0_8] : memref<768x3xf32, #tpu.memory_space<vmem>>, vector<713x3xf32>
    %c1 = arith.constant 1 : index
    %c0_9 = arith.constant 0 : index
    %7 = vector.load %arg13[%c1, %c0_9] : memref<768x3xf32, #tpu.memory_space<vmem>>, vector<713x3xf32>
    %c2 = arith.constant 2 : index
    %c0_10 = arith.constant 0 : index
    %8 = vector.load %arg13[%c2, %c0_10] : memref<768x3xf32, #tpu.memory_space<vmem>>, vector<713x3xf32>
    %c23_11 = arith.constant 23 : index
    %c0_12 = arith.constant 0 : index
    %9 = vector.load %arg13[%c23_11, %c0_12] : memref<768x3xf32, #tpu.memory_space<vmem>>, vector<713x3xf32>
    %c24 = arith.constant 24 : index
    %c0_13 = arith.constant 0 : index
    %10 = vector.load %arg13[%c24, %c0_13] : memref<768x3xf32, #tpu.memory_space<vmem>>, vector<713x3xf32>
    %c25 = arith.constant 25 : index
    %c0_14 = arith.constant 0 : index
    %11 = vector.load %arg13[%c25, %c0_14] : memref<768x3xf32, #tpu.memory_space<vmem>>, vector<713x3xf32>
    %c46 = arith.constant 46 : index
    %c0_15 = arith.constant 0 : index
    %12 = vector.load %arg13[%c46, %c0_15] : memref<768x3xf32, #tpu.memory_space<vmem>>, vector<713x3xf32>
    %c47 = arith.constant 47 : index
    %c0_16 = arith.constant 0 : index
    %13 = vector.load %arg13[%c47, %c0_16] : memref<768x3xf32, #tpu.memory_space<vmem>>, vector<713x3xf32>
    %c48 = arith.constant 48 : index
    %c0_17 = arith.constant 0 : index
    %14 = vector.load %arg13[%c48, %c0_17] : memref<768x3xf32, #tpu.memory_space<vmem>>, vector<713x3xf32>
    %15 = tpu.concatenate %6, %7, %8, %9, %10, %11, %12, %13, %14 in 1 : vector<713x3xf32>, vector<713x3xf32>, vector<713x3xf32>, vector<713x3xf32>, vector<713x3xf32>, vector<713x3xf32>, vector<713x3xf32>, vector<713x3xf32>, vector<713x3xf32> -> vector<713x27xf32>
    %16 = arith.truncf %15 : vector<713x27xf32> to vector<713x27xbf16>
    %c0_18 = arith.constant 0 : index
    %c0_19 = arith.constant 0 : index
    %17 = vector.load %arg2[%c0_18, %c0_19] : memref<27x48xbf16, #tpu.memory_space<vmem>>, vector<27x48xbf16>
    %cst_20 = arith.constant dense<0.000000e+00> : vector<713x48xf32>
    %18 = tpu.matmul %16, %17, %cst_20 {dimension_numbers = #tpu.dot_dimension_numbers<[1], [0], [0], [1], [0, 0, 1, 1], [], []>} : vector<713x27xbf16>, vector<27x48xbf16>, vector<713x48xf32> -> vector<713x48xf32>
    %c0_21 = arith.constant 0 : index
    %c0_22 = arith.constant 0 : index
    %19 = vector.load %arg3[%c0_21, %c0_22] : memref<1x48xf32, #tpu.memory_space<vmem>>, vector<1x48xf32>
    %20 = vector.broadcast %19 : vector<1x48xf32> to vector<713x48xf32>
    %21 = arith.addf %18, %20 : vector<713x48xf32>
    %cst_23 = arith.constant 0.000000e+00 : f32
    %22 = vector.broadcast %cst_23 : f32 to vector<713x48xf32>
    %23 = arith.maximumf %21, %22 : vector<713x48xf32>
    %24 = vector.broadcast %0 : vector<713x1xf32> to vector<713x48xf32>
    %25 = arith.mulf %23, %24 : vector<713x48xf32>
    %cst_24 = arith.constant 0.000000e+00 : f32
    %26 = vector.broadcast %cst_24 : f32 to vector<768x48xf32>
    %c0_25 = arith.constant 0 : index
    %c0_26 = arith.constant 0 : index
    %27 = vector.load %arg14[%c0_25, %c0_26] : memref<768x48xf32, #tpu.memory_space<vmem>>, vector<768x48xf32>
    tpu.vector_store %arg14[%c0_25, %c0_26], %26 {strides = array<i32>} : memref<768x48xf32, #tpu.memory_space<vmem>>, vector<768x48xf32>,
    %c24_27 = arith.constant 24 : index
    %c0_28 = arith.constant 0 : index
    %28 = vector.load %arg14[%c24_27, %c0_28] : memref<768x48xf32, #tpu.memory_space<vmem>>, vector<713x48xf32>
    tpu.vector_store %arg14[%c24_27, %c0_28], %25 {strides = array<i32>} : memref<768x48xf32, #tpu.memory_space<vmem>>, vector<713x48xf32>,
    %c0_29 = arith.constant 0 : index
    %c0_30 = arith.constant 0 : index
    %29 = vector.load %arg14[%c0_29, %c0_30] : memref<768x48xf32, #tpu.memory_space<vmem>>, vector<713x48xf32>
    %c1_31 = arith.constant 1 : index
    %c0_32 = arith.constant 0 : index
    %30 = vector.load %arg14[%c1_31, %c0_32] : memref<768x48xf32, #tpu.memory_space<vmem>>, vector<713x48xf32>
    %c2_33 = arith.constant 2 : index
    %c0_34 = arith.constant 0 : index
    %31 = vector.load %arg14[%c2_33, %c0_34] : memref<768x48xf32, #tpu.memory_space<vmem>>, vector<713x48xf32>
    %c23_35 = arith.constant 23 : index
    %c0_36 = arith.constant 0 : index
    %32 = vector.load %arg14[%c23_35, %c0_36] : memref<768x48xf32, #tpu.memory_space<vmem>>, vector<713x48xf32>
    %c24_37 = arith.constant 24 : index
    %c0_38 = arith.constant 0 : index
    %33 = vector.load %arg14[%c24_37, %c0_38] : memref<768x48xf32, #tpu.memory_space<vmem>>, vector<713x48xf32>
    %c25_39 = arith.constant 25 : index
    %c0_40 = arith.constant 0 : index
    %34 = vector.load %arg14[%c25_39, %c0_40] : memref<768x48xf32, #tpu.memory_space<vmem>>, vector<713x48xf32>
    %c46_41 = arith.constant 46 : index
    %c0_42 = arith.constant 0 : index
    %35 = vector.load %arg14[%c46_41, %c0_42] : memref<768x48xf32, #tpu.memory_space<vmem>>, vector<713x48xf32>
    %c47_43 = arith.constant 47 : index
    %c0_44 = arith.constant 0 : index
    %36 = vector.load %arg14[%c47_43, %c0_44] : memref<768x48xf32, #tpu.memory_space<vmem>>, vector<713x48xf32>
    %c48_45 = arith.constant 48 : index
    %c0_46 = arith.constant 0 : index
    %37 = vector.load %arg14[%c48_45, %c0_46] : memref<768x48xf32, #tpu.memory_space<vmem>>, vector<713x48xf32>
    %38 = tpu.concatenate %29, %30, %31, %32, %33, %34, %35, %36, %37 in 1 : vector<713x48xf32>, vector<713x48xf32>, vector<713x48xf32>, vector<713x48xf32>, vector<713x48xf32>, vector<713x48xf32>, vector<713x48xf32>, vector<713x48xf32>, vector<713x48xf32> -> vector<713x432xf32>
    %39 = arith.truncf %38 : vector<713x432xf32> to vector<713x432xbf16>
    %c0_47 = arith.constant 0 : index
    %c0_48 = arith.constant 0 : index
    %40 = vector.load %arg4[%c0_47, %c0_48] : memref<432x96xbf16, #tpu.memory_space<vmem>>, vector<432x96xbf16>
    %cst_49 = arith.constant dense<0.000000e+00> : vector<713x96xf32>
    %41 = tpu.matmul %39, %40, %cst_49 {dimension_numbers = #tpu.dot_dimension_numbers<[1], [0], [0], [1], [0, 0, 1, 1], [], []>} : vector<713x432xbf16>, vector<432x96xbf16>, vector<713x96xf32> -> vector<713x96xf32>
    %c0_50 = arith.constant 0 : index
    %c0_51 = arith.constant 0 : index
    %42 = vector.load %arg5[%c0_50, %c0_51] : memref<1x96xf32, #tpu.memory_space<vmem>>, vector<1x96xf32>
    %43 = vector.broadcast %42 : vector<1x96xf32> to vector<713x96xf32>
    %44 = arith.addf %41, %43 : vector<713x96xf32>
    %cst_52 = arith.constant 0.000000e+00 : f32
    %45 = vector.broadcast %cst_52 : f32 to vector<713x96xf32>
    %46 = arith.maximumf %44, %45 : vector<713x96xf32>
    %cst_53 = arith.constant 1.000000e+00 : f32
    %47 = vector.broadcast %cst_53 : f32 to vector<713x1xf32>
    %48 = arith.subf %47, %0 : vector<713x1xf32>
    %cst_54 = arith.constant 1.000000e+30 : f32
    %49 = vector.broadcast %cst_54 : f32 to vector<713x1xf32>
    %50 = arith.mulf %48, %49 : vector<713x1xf32>
    %51 = vector.broadcast %50 : vector<713x1xf32> to vector<713x96xf32>
    %52 = arith.subf %46, %51 : vector<713x96xf32>
    %cst_55 = arith.constant dense<0xFF800000> : vector<96xf32>
    %53 = vector.multi_reduction <maximumf>, %52, %cst_55 [0] : vector<713x96xf32> to vector<96xf32>
    %54 = vector.shape_cast %53 : vector<96xf32> to vector<1x96xf32>
    %55 = vector.broadcast %54 : vector<1x96xf32> to vector<713x96xf32>
    %56 = arith.subf %52, %55 : vector<713x96xf32>
    %57 = math.exp %56 : vector<713x96xf32>
    %cst_56 = arith.constant dense<0.000000e+00> : vector<96xf32>
    %58 = vector.multi_reduction <add>, %57, %cst_56 [0] : vector<713x96xf32> to vector<96xf32>
    %59 = vector.shape_cast %58 : vector<96xf32> to vector<1x96xf32>
    %c0_57 = arith.constant 0 : index
    %c0_58 = arith.constant 0 : index
    %60 = vector.load %arg6[%c0_57, %c0_58] : memref<2x713xf32, #tpu.memory_space<vmem>>, vector<2x713xf32>
    %cst_59 = arith.constant dense<0.000000e+00> : vector<2x96xf32>
    %61 = tpu.matmul %60, %57, %cst_59 {dimension_numbers = #tpu.dot_dimension_numbers<[1], [0], [0], [1], [0, 0, 1, 1], [], []>} : vector<2x713xf32>, vector<713x96xf32>, vector<2x96xf32> -> vector<2x96xf32>
    %62 = tpu.reciprocal %59 {approx = true} : vector<1x96xf32> -> vector<1x96xf32>
    %63 = vector.broadcast %62 : vector<1x96xf32> to vector<2x96xf32>
    %64 = arith.mulf %61, %63 : vector<2x96xf32>
    %65 = vector.extract_strided_slice %64 {offsets = [0, 0], sizes = [1, 96], strides = [1, 1]} : vector<2x96xf32> to vector<1x96xf32>
    %c0_60 = arith.constant 0 : index
    %c0_61 = arith.constant 0 : index
    %66 = vector.load %arg8[%c0_60, %c0_61] : memref<192x64xf32, #tpu.memory_space<vmem>>, vector<96x64xf32>
    %cst_62 = arith.constant dense<0.000000e+00> : vector<1x64xf32>
    %67 = tpu.matmul %65, %66, %cst_62 {dimension_numbers = #tpu.dot_dimension_numbers<[1], [0], [0], [1], [0, 0, 1, 1], [], []>} : vector<1x96xf32>, vector<96x64xf32>, vector<1x64xf32> -> vector<1x64xf32>
    %68 = vector.extract_strided_slice %64 {offsets = [1, 0], sizes = [1, 96], strides = [1, 1]} : vector<2x96xf32> to vector<1x96xf32>
    %c96 = arith.constant 96 : index
    %c0_63 = arith.constant 0 : index
    %69 = vector.load %arg8[%c96, %c0_63] : memref<192x64xf32, #tpu.memory_space<vmem>>, vector<96x64xf32>
    %cst_64 = arith.constant dense<0.000000e+00> : vector<1x64xf32>
    %70 = tpu.matmul %68, %69, %cst_64 {dimension_numbers = #tpu.dot_dimension_numbers<[1], [0], [0], [1], [0, 0, 1, 1], [], []>} : vector<1x96xf32>, vector<96x64xf32>, vector<1x64xf32> -> vector<1x64xf32>
    %71 = arith.addf %67, %70 : vector<1x64xf32>
    %c0_65 = arith.constant 0 : index
    %c0_66 = arith.constant 0 : index
    %72 = vector.load %arg9[%c0_65, %c0_66] : memref<1x64xf32, #tpu.memory_space<vmem>>, vector<1x64xf32>
    %73 = arith.addf %71, %72 : vector<1x64xf32>
    %cst_67 = arith.constant 0.000000e+00 : f32
    %74 = vector.broadcast %cst_67 : f32 to vector<1x64xf32>
    %75 = arith.maximumf %73, %74 : vector<1x64xf32>
    %c0_68 = arith.constant 0 : index
    %c0_69 = arith.constant 0 : index
    %76 = vector.load %arg10[%c0_68, %c0_69] : memref<64x128xf32, #tpu.memory_space<vmem>>, vector<64x128xf32>
    %cst_70 = arith.constant dense<0.000000e+00> : vector<1x128xf32>
    %77 = tpu.matmul %75, %76, %cst_70 {dimension_numbers = #tpu.dot_dimension_numbers<[1], [0], [0], [1], [0, 0, 1, 1], [], []>} : vector<1x64xf32>, vector<64x128xf32>, vector<1x128xf32> -> vector<1x128xf32>
    %c0_71 = arith.constant 0 : index
    %c0_72 = arith.constant 0 : index
    %78 = vector.load %arg11[%c0_71, %c0_72] : memref<1x128xf32, #tpu.memory_space<vmem>>, vector<1x128xf32>
    %79 = arith.addf %77, %78 : vector<1x128xf32>
    %c0_73 = arith.constant 0 : index
    %c0_74 = arith.constant 0 : index
    %c0_75 = arith.constant 0 : index
    %80 = vector.load %arg12[%c0_73, %c0_74, %c0_75] : memref<1x1x128xf32, #tpu.memory_space<vmem>>, vector<1x1x128xf32>
    %81 = vector.shape_cast %80 : vector<1x1x128xf32> to vector<1x128xf32>
    %82 = vector.shape_cast %79 : vector<1x128xf32> to vector<1x1x128xf32>
    tpu.vector_store %arg12[%c0_73, %c0_74, %c0_75], %82 {strides = array<i32>} : memref<1x1x128xf32, #tpu.memory_space<vmem>>, vector<1x1x128xf32>,
    return
  }
  func.func @transform_0(%arg0: i32) -> (i32, i32, i32) {
    %c0_i32 = arith.constant 0 : i32
    %c0_i32_0 = arith.constant 0 : i32
    %c0_i32_1 = arith.constant 0 : i32
    return %arg0, %c0_i32, %c0_i32_0 : i32, i32, i32
  }
  func.func @transform_1(%arg0: i32) -> (i32, i32) {
    %c0_i32 = arith.constant 0 : i32
    %c0_i32_0 = arith.constant 0 : i32
    %c0_i32_1 = arith.constant 0 : i32
    return %c0_i32, %c0_i32_0 : i32, i32
  }
  func.func @transform_2(%arg0: i32) -> (i32, i32) {
    %c0_i32 = arith.constant 0 : i32
    %c0_i32_0 = arith.constant 0 : i32
    %c0_i32_1 = arith.constant 0 : i32
    return %c0_i32, %c0_i32_0 : i32, i32
  }
  func.func @transform_3(%arg0: i32) -> (i32, i32) {
    %c0_i32 = arith.constant 0 : i32
    %c0_i32_0 = arith.constant 0 : i32
    %c0_i32_1 = arith.constant 0 : i32
    return %c0_i32, %c0_i32_0 : i32, i32
  }
  func.func @transform_4(%arg0: i32) -> (i32, i32) {
    %c0_i32 = arith.constant 0 : i32
    %c0_i32_0 = arith.constant 0 : i32
    %c0_i32_1 = arith.constant 0 : i32
    return %c0_i32, %c0_i32_0 : i32, i32
  }
  func.func @transform_5(%arg0: i32) -> (i32, i32) {
    %c0_i32 = arith.constant 0 : i32
    %c0_i32_0 = arith.constant 0 : i32
    %c0_i32_1 = arith.constant 0 : i32
    return %c0_i32, %c0_i32_0 : i32, i32
  }
  func.func @transform_6(%arg0: i32) -> (i32, i32) {
    %c0_i32 = arith.constant 0 : i32
    %c0_i32_0 = arith.constant 0 : i32
    %c0_i32_1 = arith.constant 0 : i32
    return %c0_i32, %c0_i32_0 : i32, i32
  }
  func.func @transform_7(%arg0: i32) -> (i32, i32) {
    %c0_i32 = arith.constant 0 : i32
    %c0_i32_0 = arith.constant 0 : i32
    %c0_i32_1 = arith.constant 0 : i32
    return %c0_i32, %c0_i32_0 : i32, i32
  }
  func.func @transform_8(%arg0: i32) -> (i32, i32) {
    %c0_i32 = arith.constant 0 : i32
    %c0_i32_0 = arith.constant 0 : i32
    %c0_i32_1 = arith.constant 0 : i32
    return %c0_i32, %c0_i32_0 : i32, i32
  }
  func.func @transform_9(%arg0: i32) -> (i32, i32) {
    %c0_i32 = arith.constant 0 : i32
    %c0_i32_0 = arith.constant 0 : i32
    %c0_i32_1 = arith.constant 0 : i32
    return %c0_i32, %c0_i32_0 : i32, i32
  }
  func.func @transform_10(%arg0: i32) -> (i32, i32) {
    %c0_i32 = arith.constant 0 : i32
    %c0_i32_0 = arith.constant 0 : i32
    %c0_i32_1 = arith.constant 0 : i32
    return %c0_i32, %c0_i32_0 : i32, i32
  }
  func.func @transform_11(%arg0: i32) -> (i32, i32, i32) {
    %c0_i32 = arith.constant 0 : i32
    %c0_i32_0 = arith.constant 0 : i32
    %c0_i32_1 = arith.constant 0 : i32
    return %arg0, %c0_i32, %c0_i32_0 : i32, i32, i32
  }
}

</mosaic_0001>

<llo_original>
// kernel: attention2d_forward.1
$region0: #{attention2d_forward.1}
  #allocation0 [shape = 'u32[]', space=smem, size = 0x4, offset = 0x4, fixed_abs, tag = 'smem constant byte address 0x4 - core index']
  #allocation1 [shape = 'u32[144,128]{1,0:T(1,128)}', space=vmem, size = 0x12000, scoped, tag = 'internal scratch']
  #allocation2 [shape = 'f32[768,3]{1,0:T(8,128)}', space=vmem, size = 0x60000, scoped, tag = 'scratch operand']
  #allocation3 [shape = 'f32[768,48]{1,0:T(8,128)}', space=vmem, size = 0x60000, scoped, tag = 'scratch operand']
  %s0 = inlined_call_operand.vmem [shape: f32[2,713,3], index: 0, kind: input, shape index: {}]
  %s1 = inlined_call_operand.vmem [shape: bf16[27,48], index: 1, kind: input, shape index: {}]
  %s2 = inlined_call_operand.vmem [shape: f32[1,48], index: 2, kind: input, shape index: {}]
  %s3 = inlined_call_operand.vmem [shape: bf16[432,96], index: 3, kind: input, shape index: {}]
  %s4 = inlined_call_operand.vmem [shape: f32[1,96], index: 4, kind: input, shape index: {}]
  %s5 = inlined_call_operand.vmem [shape: f32[2,713], index: 5, kind: input, shape index: {}]
  %s6 = inlined_call_operand.vmem [shape: f32[713,1], index: 6, kind: input, shape index: {}]
  %s7 = inlined_call_operand.vmem [shape: f32[192,64], index: 7, kind: input, shape index: {}]
  %s8 = inlined_call_operand.vmem [shape: f32[1,64], index: 8, kind: input, shape index: {}]
  %s9 = inlined_call_operand.vmem [shape: f32[64,128], index: 9, kind: input, shape index: {}]
  %s10 = inlined_call_operand.vmem [shape: f32[1,128], index: 10, kind: input, shape index: {}]
  %s11 = inlined_call_operand.hbm [shape: f32[2,1,128], index: 11, kind: output, shape index: {}]
  %s12 = sld [smem:[#allocation0]]
  $region77: #{attention2d_forward.1} parent=0
    _
  %s14 = ssub.s32 1, %s12
  %s15 = scalar_select 0, %s14, %s12
  $region1: #{attention2d_forward.1} parent=0
    #allocation4 [shape = 'u8[1024]{0}', space=vmem, size = 0x400, scoped, tag = 'output window, operand 0']
    #allocation5 [shape = 's32[2]{0}', space=sflag, size = 0x8, scoped, tag = 'scoped memory for attention2d_forward.1']
    %16 = vsyncpa [#allocation5], 0
    %s17 = scalar_lea.sflag [#allocation5], 1
    %18 = vsyncpa %s17, 0
    loop: start=0, step=1, limit=4
    $region2: #{attention2d_forward.1} parent=1 // loop_pre_header
      _
    $region3: #{attention2d_forward.1} parent=1 // loop_header
      %s20 = sphi 0, %s24
      %p21 = scmp.ge.s32.totalorder %s20, 4
      %s30 = sphi 0, %s32
      %s33 = sphi 0, %s30
      %s34 = sphi 0, %s33
      %s50 = sphi 0, %s34
      %s54 = sphi 0, %s54
      %s56 = sphi 0, %s54
      %s57 = sphi 0, %s56
      %s71 = sphi 0, %s57
      %s75 = sphi 0, %s75
      %s77 = sphi 0, %s75
      %s78 = sphi 0, %s77
      %s92 = sphi 0, %s78
      %s96 = sphi 0, %s96
      %s98 = sphi 0, %s96
      %s99 = sphi 0, %s98
      %s113 = sphi 0, %s99
      %s117 = sphi 0, %s117
      %s119 = sphi 0, %s117
      %s120 = sphi 0, %s119
      %s134 = sphi 0, %s120
      %s138 = sphi 0, %s138
      %s140 = sphi 0, %s138
      %s141 = sphi 0, %s140
      %s155 = sphi 0, %s141
      %s159 = sphi 0, %s159
      %s161 = sphi 0, %s159
      %s162 = sphi 0, %s161
      %s176 = sphi 0, %s162
      %s180 = sphi 0, %s180
      %s182 = sphi 0, %s180
      %s183 = sphi 0, %s182
      %s197 = sphi 0, %s183
      %s201 = sphi 0, %s201
      %s203 = sphi 0, %s201
      %s204 = sphi 0, %s203
      %s218 = sphi 0, %s204
      %s222 = sphi 0, %s222
      %s224 = sphi 0, %s222
      %s225 = sphi 0, %s224
      %s239 = sphi 0, %s225
      %s243 = sphi 0, %s243
      %s245 = sphi 0, %s243
      %s246 = sphi 0, %s245
      %s260 = sphi 0, %s246
      %s266 = sphi 0, %s268
      %s269 = sphi 0, %s266
      %s270 = sphi 0, %s269
      %s286 = sphi 0, %s270
    $region4: #{attention2d_forward.1} parent=1 // loop_header_branch
      %23 = sbr.rel (%p21) target = $region8
    $region5: #{attention2d_forward.1} parent=1 // loop_body
      %s25 = ssub.s32 %s20, 1
      %s26 = ssub.s32 %s20, 2
      %s27 = sadd.s32 %s20, 1
      %s28 = ssub.s32 %s20, %s27
      %p29 = scmp.eq.s32.totalorder %s28, 0
      %s31 = sadd.s32 %s30, 1
      %s32 = scalar_select %p29, %s30, %s31
      %p35 = pneg %p29
      %p36 = scmp.eq.s32.totalorder %s20, 1
      %p37 = por %p35, %p36
      %p38 = scmp.ne.s32.totalorder %s30, %s33
      %p39 = scmp.eq.s32.totalorder %s20, 0
      %p40 = por %p38, %p39
      %p41 = scmp.ne.s32.totalorder %s30, %s33
      %p42 = scmp.eq.s32.totalorder %s25, 1
      %p43 = por %p41, %p42
      %p44 = scmp.ne.s32.totalorder %s33, %s34
      %p45 = scmp.eq.s32.totalorder %s25, 0
      %p46 = por %p44, %p45
      %p47 = scmp.ne.s32.totalorder %s33, %s34
      %p48 = scmp.eq.s32.totalorder %s26, 1
      %p49 = por %p47, %p48
      %p51 = scmp.ne.s32.totalorder %s34, %s50
      %p52 = scmp.eq.s32.totalorder %s26, 0
      %p53 = por %p51, %p52
      %s55 = sadd.s32 %s54, 1
      %p58 = scmp.eq.s32.totalorder %s20, 1
      %p59 = scmp.ne.s32.totalorder %s54, %s56
      %p60 = scmp.eq.s32.totalorder %s20, 0
      %p61 = por %p59, %p60
      %p62 = scmp.ne.s32.totalorder %s54, %s56
      %p63 = scmp.eq.s32.totalorder %s25, 1
      %p64 = por %p62, %p63
      %p65 = scmp.ne.s32.totalorder %s56, %s57
      %p66 = scmp.eq.s32.totalorder %s25, 0
      %p67 = por %p65, %p66
      %p68 = scmp.ne.s32.totalorder %s56, %s57
      %p69 = scmp.eq.s32.totalorder %s26, 1
      %p70 = por %p68, %p69
      %p72 = scmp.ne.s32.totalorder %s57, %s71
      %p73 = scmp.eq.s32.totalorder %s26, 0
      %p74 = por %p72, %p73
      %s76 = sadd.s32 %s75, 1
      %p79 = scmp.eq.s32.totalorder %s20, 1
      %p80 = scmp.ne.s32.totalorder %s75, %s77
      %p81 = scmp.eq.s32.totalorder %s20, 0
      %p82 = por %p80, %p81
      %p83 = scmp.ne.s32.totalorder %s75, %s77
      %p84 = scmp.eq.s32.totalorder %s25, 1
      %p85 = por %p83, %p84
      %p86 = scmp.ne.s32.totalorder %s77, %s78
      %p87 = scmp.eq.s32.totalorder %s25, 0
      %p88 = por %p86, %p87
      %p89 = scmp.ne.s32.totalorder %s77, %s78
      %p90 = scmp.eq.s32.totalorder %s26, 1
      %p91 = por %p89, %p90
      %p93 = scmp.ne.s32.totalorder %s78, %s92
      %p94 = scmp.eq.s32.totalorder %s26, 0
      %p95 = por %p93, %p94
      %s97 = sadd.s32 %s96, 1
      %p100 = scmp.eq.s32.totalorder %s20, 1
      %p101 = scmp.ne.s32.totalorder %s96, %s98
      %p102 = scmp.eq.s32.totalorder %s20, 0
      %p103 = por %p101, %p102
      %p104 = scmp.ne.s32.totalorder %s96, %s98
      %p105 = scmp.eq.s32.totalorder %s25, 1
      %p106 = por %p104, %p105
      %p107 = scmp.ne.s32.totalorder %s98, %s99
      %p108 = scmp.eq.s32.totalorder %s25, 0
      %p109 = por %p107, %p108
      %p110 = scmp.ne.s32.totalorder %s98, %s99
      %p111 = scmp.eq.s32.totalorder %s26, 1
      %p112 = por %p110, %p111
      %p114 = scmp.ne.s32.totalorder %s99, %s113
      %p115 = scmp.eq.s32.totalorder %s26, 0
      %p116 = por %p114, %p115
      %s118 = sadd.s32 %s117, 1
      %p121 = scmp.eq.s32.totalorder %s20, 1
      %p122 = scmp.ne.s32.totalorder %s117, %s119
      %p123 = scmp.eq.s32.totalorder %s20, 0
      %p124 = por %p122, %p123
      %p125 = scmp.ne.s32.totalorder %s117, %s119
      %p126 = scmp.eq.s32.totalorder %s25, 1
      %p127 = por %p125, %p126
      %p128 = scmp.ne.s32.totalorder %s119, %s120
      %p129 = scmp.eq.s32.totalorder %s25, 0
      %p130 = por %p128, %p129
      %p131 = scmp.ne.s32.totalorder %s119, %s120
      %p132 = scmp.eq.s32.totalorder %s26, 1
      %p133 = por %p131, %p132
      %p135 = scmp.ne.s32.totalorder %s120, %s134
      %p136 = scmp.eq.s32.totalorder %s26, 0
      %p137 = por %p135, %p136
      %s139 = sadd.s32 %s138, 1
      %p142 = scmp.eq.s32.totalorder %s20, 1
      %p143 = scmp.ne.s32.totalorder %s138, %s140
      %p144 = scmp.eq.s32.totalorder %s20, 0
      %p145 = por %p143, %p144
      %p146 = scmp.ne.s32.totalorder %s138, %s140
      %p147 = scmp.eq.s32.totalorder %s25, 1
      %p148 = por %p146, %p147
      %p149 = scmp.ne.s32.totalorder %s140, %s141
      %p150 = scmp.eq.s32.totalorder %s25, 0
      %p151 = por %p149, %p150
      %p152 = scmp.ne.s32.totalorder %s140, %s141
      %p153 = scmp.eq.s32.totalorder %s26, 1
      %p154 = por %p152, %p153
      %p156 = scmp.ne.s32.totalorder %s141, %s155
      %p157 = scmp.eq.s32.totalorder %s26, 0
      %p158 = por %p156, %p157
      %s160 = sadd.s32 %s159, 1
      %p163 = scmp.eq.s32.totalorder %s20, 1
      %p164 = scmp.ne.s32.totalorder %s159, %s161
      %p165 = scmp.eq.s32.totalorder %s20, 0
      %p166 = por %p164, %p165
      %p167 = scmp.ne.s32.totalorder %s159, %s161
      %p168 = scmp.eq.s32.totalorder %s25, 1
      %p169 = por %p167, %p168
      %p170 = scmp.ne.s32.totalorder %s161, %s162
      %p171 = scmp.eq.s32.totalorder %s25, 0
      %p172 = por %p170, %p171
      %p173 = scmp.ne.s32.totalorder %s161, %s162
      %p174 = scmp.eq.s32.totalorder %s26, 1
      %p175 = por %p173, %p174
      %p177 = scmp.ne.s32.totalorder %s162, %s176
      %p178 = scmp.eq.s32.totalorder %s26, 0
      %p179 = por %p177, %p178
      %s181 = sadd.s32 %s180, 1
      %p184 = scmp.eq.s32.totalorder %s20, 1
      %p185 = scmp.ne.s32.totalorder %s180, %s182
      %p186 = scmp.eq.s32.totalorder %s20, 0
      %p187 = por %p185, %p186
      %p188 = scmp.ne.s32.totalorder %s180, %s182
      %p189 = scmp.eq.s32.totalorder %s25, 1
      %p190 = por %p188, %p189
      %p191 = scmp.ne.s32.totalorder %s182, %s183
      %p192 = scmp.eq.s32.totalorder %s25, 0
      %p193 = por %p191, %p192
      %p194 = scmp.ne.s32.totalorder %s182, %s183
      %p195 = scmp.eq.s32.totalorder %s26, 1
      %p196 = por %p194, %p195
      %p198 = scmp.ne.s32.totalorder %s183, %s197
      %p199 = scmp.eq.s32.totalorder %s26, 0
      %p200 = por %p198, %p199
      %s202 = sadd.s32 %s201, 1
      %p205 = scmp.eq.s32.totalorder %s20, 1
      %p206 = scmp.ne.s32.totalorder %s201, %s203
      %p207 = scmp.eq.s32.totalorder %s20, 0
      %p208 = por %p206, %p207
      %p209 = scmp.ne.s32.totalorder %s201, %s203
      %p210 = scmp.eq.s32.totalorder %s25, 1
      %p211 = por %p209, %p210
      %p212 = scmp.ne.s32.totalorder %s203, %s204
      %p213 = scmp.eq.s32.totalorder %s25, 0
      %p214 = por %p212, %p213
      %p215 = scmp.ne.s32.totalorder %s203, %s204
      %p216 = scmp.eq.s32.totalorder %s26, 1
      %p217 = por %p215, %p216
      %p219 = scmp.ne.s32.totalorder %s204, %s218
      %p220 = scmp.eq.s32.totalorder %s26, 0
      %p221 = por %p219, %p220
      %s223 = sadd.s32 %s222, 1
      %p226 = scmp.eq.s32.totalorder %s20, 1
      %p227 = scmp.ne.s32.totalorder %s222, %s224
      %p228 = scmp.eq.s32.totalorder %s20, 0
      %p229 = por %p227, %p228
      %p230 = scmp.ne.s32.totalorder %s222, %s224
      %p231 = scmp.eq.s32.totalorder %s25, 1
      %p232 = por %p230, %p231
      %p233 = scmp.ne.s32.totalorder %s224, %s225
      %p234 = scmp.eq.s32.totalorder %s25, 0
      %p235 = por %p233, %p234
      %p236 = scmp.ne.s32.totalorder %s224, %s225
      %p237 = scmp.eq.s32.totalorder %s26, 1
      %p238 = por %p236, %p237
      %p240 = scmp.ne.s32.totalorder %s225, %s239
      %p241 = scmp.eq.s32.totalorder %s26, 0
      %p242 = por %p240, %p241
      %s244 = sadd.s32 %s243, 1
      %p247 = scmp.eq.s32.totalorder %s20, 1
      %p248 = scmp.ne.s32.totalorder %s243, %s245
      %p249 = scmp.eq.s32.totalorder %s20, 0
      %p250 = por %p248, %p249
      %p251 = scmp.ne.s32.totalorder %s243, %s245
      %p252 = scmp.eq.s32.totalorder %s25, 1
      %p253 = por %p251, %p252
      %p254 = scmp.ne.s32.totalorder %s245, %s246
      %p255 = scmp.eq.s32.totalorder %s25, 0
      %p256 = por %p254, %p255
      %p257 = scmp.ne.s32.totalorder %s245, %s246
      %p258 = scmp.eq.s32.totalorder %s26, 1
      %p259 = por %p257, %p258
      %p261 = scmp.ne.s32.totalorder %s246, %s260
      %p262 = scmp.eq.s32.totalorder %s26, 0
      %p263 = por %p261, %p262
      %s264 = ssub.s32 %s20, %s27
      %p265 = scmp.eq.s32.totalorder %s264, 0
      %s267 = sadd.s32 %s266, 1
      %s268 = scalar_select %p265, %s266, %s267
      %p271 = pneg %p265
      %p272 = scmp.eq.s32.totalorder %s20, 1
      %p273 = por %p271, %p272
      %p274 = scmp.ne.s32.totalorder %s266, %s269
      %p275 = scmp.eq.s32.totalorder %s20, 0
      %p276 = por %p274, %p275
      %p277 = scmp.ne.s32.totalorder %s266, %s269
      %p278 = scmp.eq.s32.totalorder %s25, 1
      %p279 = por %p277, %p278
      %p280 = scmp.ne.s32.totalorder %s269, %s270
      %p281 = scmp.eq.s32.totalorder %s25, 0
      %p282 = por %p280, %p281
      %p283 = scmp.ne.s32.totalorder %s269, %s270
      %p284 = scmp.eq.s32.totalorder %s26, 1
      %p285 = por %p283, %p284
      %p287 = scmp.ne.s32.totalorder %s270, %s286
      %p288 = scmp.eq.s32.totalorder %s26, 0
      %p289 = por %p287, %p288
      %p290 = scmp.le.s32.totalorder 1, %s20
      %p291 = scmp.lt.s32.totalorder %s20, 3
      %p292 = pnand %p290, %p291
      %p293 = pneg %p292
      // Predicated region
      $region9: #{attention2d_forward.1} parent=5 // pred_check
        _
      $region10: #{attention2d_forward.1} parent=5 // pred_check_branch
        %295 = sbr.rel (%p292) target = $region12
      $region11: #{attention2d_forward.1} parent=5 // pred_region
        %s296 = ssub.s32 %s20, 1
        // Predicated region
        $region13: #{attention2d_forward.1} parent=11 // pred_check
          %p297 = pneg %p67
        $region14: #{attention2d_forward.1} parent=11 // pred_check_branch
          %299 = sbr.rel (%p297) target = $region16
        $region15: #{attention2d_forward.1} parent=11 // pred_region
          _
        $region16: #{attention2d_forward.1} parent=11 // pred_fallthru
          _
        // Predicated region
        $region17: #{attention2d_forward.1} parent=11 // pred_check
          %p300 = pneg %p88
        $region18: #{attention2d_forward.1} parent=11 // pred_check_branch
          %302 = sbr.rel (%p300) target = $region20
        $region19: #{attention2d_forward.1} parent=11 // pred_region
          _
        $region20: #{attention2d_forward.1} parent=11 // pred_fallthru
          _
        // Predicated region
        $region21: #{attention2d_forward.1} parent=11 // pred_check
          %p303 = pneg %p109
        $region22: #{attention2d_forward.1} parent=11 // pred_check_branch
          %305 = sbr.rel (%p303) target = $region24
        $region23: #{attention2d_forward.1} parent=11 // pred_region
          _
        $region24: #{attention2d_forward.1} parent=11 // pred_fallthru
          _
        // Predicated region
        $region25: #{attention2d_forward.1} parent=11 // pred_check
          %p306 = pneg %p130
        $region26: #{attention2d_forward.1} parent=11 // pred_check_branch
          %308 = sbr.rel (%p306) target = $region28
        $region27: #{attention2d_forward.1} parent=11 // pred_region
          _
        $region28: #{attention2d_forward.1} parent=11 // pred_fallthru
          _
        // Predicated region
        $region29: #{attention2d_forward.1} parent=11 // pred_check
          %p309 = pneg %p151
        $region30: #{attention2d_forward.1} parent=11 // pred_check_branch
          %311 = sbr.rel (%p309) target = $region32
        $region31: #{attention2d_forward.1} parent=11 // pred_region
          _
        $region32: #{attention2d_forward.1} parent=11 // pred_fallthru
          _
        // Predicated region
        $region33: #{attention2d_forward.1} parent=11 // pred_check
          %p312 = pneg %p172
        $region34: #{attention2d_forward.1} parent=11 // pred_check_branch
          %314 = sbr.rel (%p312) target = $region36
        $region35: #{attention2d_forward.1} parent=11 // pred_region
          _
        $region36: #{attention2d_forward.1} parent=11 // pred_fallthru
          _
        // Predicated region
        $region37: #{attention2d_forward.1} parent=11 // pred_check
          %p315 = pneg %p193
        $region38: #{attention2d_forward.1} parent=11 // pred_check_branch
          %317 = sbr.rel (%p315) target = $region40
        $region39: #{attention2d_forward.1} parent=11 // pred_region
          _
        $region40: #{attention2d_forward.1} parent=11 // pred_fallthru
          _
        // Predicated region
        $region41: #{attention2d_forward.1} parent=11 // pred_check
          %p318 = pneg %p214
        $region42: #{attention2d_forward.1} parent=11 // pred_check_branch
          %320 = sbr.rel (%p318) target = $region44
        $region43: #{attention2d_forward.1} parent=11 // pred_region
          _
        $region44: #{attention2d_forward.1} parent=11 // pred_fallthru
          _
        // Predicated region
        $region45: #{attention2d_forward.1} parent=11 // pred_check
          %p321 = pneg %p235
        $region46: #{attention2d_forward.1} parent=11 // pred_check_branch
          %323 = sbr.rel (%p321) target = $region48
        $region47: #{attention2d_forward.1} parent=11 // pred_region
          _
        $region48: #{attention2d_forward.1} parent=11 // pred_fallthru
          _
        // Predicated region
        $region49: #{attention2d_forward.1} parent=11 // pred_check
          %p324 = pneg %p256
        $region50: #{attention2d_forward.1} parent=11 // pred_check_branch
          %326 = sbr.rel (%p324) target = $region52
        $region51: #{attention2d_forward.1} parent=11 // pred_region
          _
        $region52: #{attention2d_forward.1} parent=11 // pred_fallthru
          _
      $region12: #{attention2d_forward.1} parent=5 // pred_fallthru
        _
      %p327 = scmp.lt.s32.totalorder %s20, 2
      // Predicated region
      $region53: #{attention2d_forward.1} parent=5 // pred_check
        %p328 = pneg %p327
      $region54: #{attention2d_forward.1} parent=5 // pred_check_branch
        %330 = sbr.rel (%p328) target = $region56
      $region55: #{attention2d_forward.1} parent=5 // pred_region
        // Predicated region
        $region57: #{attention2d_forward.1} parent=55 // pred_check
          %p331 = pneg %p40
        $region58: #{attention2d_forward.1} parent=55 // pred_check_branch
          %333 = sbr.rel (%p331) target = $region60
        $region59: #{attention2d_forward.1} parent=55 // pred_region
          %p334 = scmp.lt.s32.totalorder %s20, 1
          %s335 = scalar_select %p334, %s20, 1
          %s336 = smul.addr %s335, 90
          %s337 = smul.addr %s336, 8
          %s338 = scalar_lea.vmem %s0, %s337
        $region60: #{attention2d_forward.1} parent=55 // pred_fallthru
          _
      $region56: #{attention2d_forward.1} parent=5 // pred_fallthru
        _
      %p339 = scmp.le.s32.totalorder 1, %s20
      %p340 = scmp.lt.s32.totalorder %s20, 3
      %p341 = pnand %p339, %p340
      %p342 = pneg %p341
      // Predicated region
      $region61: #{attention2d_forward.1} parent=5 // pred_check
        _
      $region62: #{attention2d_forward.1} parent=5 // pred_check_branch
        %344 = sbr.rel (%p341) target = $region64
      $region63: #{attention2d_forward.1} parent=5 // pred_region
        %s345 = ssub.s32 %s20, 1
        %p346 = scmp.lt.s32.totalorder %s25, 1
        %s347 = scalar_select %p346, %s25, 1
        %s348 = smul.addr %s347, 90
        %s349 = smul.addr %s348, 8
        %s350 = scalar_lea.vmem %s0, %s349
        %p351 = pneg %p46
        %p352 = pneg %p43
        %p353 = pneg %p67
        %p354 = pneg %p64
        %p355 = pneg %p88
        %p356 = pneg %p85
        %p357 = pneg %p109
        %p358 = pneg %p106
        %p359 = pneg %p130
        %p360 = pneg %p127
        %p361 = pneg %p151
        %p362 = pneg %p148
        %p363 = pneg %p172
        %p364 = pneg %p169
        %p365 = pneg %p193
        %p366 = pneg %p190
        %p367 = pneg %p214
        %p368 = pneg %p211
        %p369 = pneg %p235
        %p370 = pneg %p232
        %p371 = pneg %p256
        %p372 = pneg %p253
        %p373 = pneg %p282
        %p374 = pneg %p279
        %s375 = sand.u32 %s269, 1
        %s376 = scalar_lea.sflag [#allocation5], %s375
        %s377 = sand.u32 %s269, 1
        %s378 = scalar_lea.vmem [#allocation4], %s377
        %p379 = scmp.lt.s32.totalorder %s25, 1
        %s380 = scalar_select %p379, %s25, 1
        %s381 = smul.addr %s380, 90
        %s382 = smul.addr %s381, 8
        %s383 = scalar_lea.vmem %s0, %s382
        %v385 = vld [vmem:[%s6] sm:$0xff]
        %v386 = vld [vmem:[%s6 + $0x8] sm:$0xff]
        %v387 = vld [vmem:[%s6 + $0x10] sm:$0xff]
        %v388 = vld [vmem:[%s6 + $0x18] sm:$0xff]
        %v389 = vld [vmem:[%s6 + $0x20] sm:$0xff]
        %v390 = vld [vmem:[%s6 + $0x28] sm:$0xff]
        %v391 = vld [vmem:[%s6 + $0x30] sm:$0xff]
        %v392 = vld [vmem:[%s6 + $0x38] sm:$0xff]
        %v393 = vld [vmem:[%s6 + $0x40] sm:$0xff]
        %v394 = vld [vmem:[%s6 + $0x48] sm:$0xff]
        %v395 = vld [vmem:[%s6 + $0x50] sm:$0xff]
        %v396 = vld [vmem:[%s6 + $0x58] sm:$0xff]
        %v397 = vld [vmem:[%s6 + $0x60] sm:$0xff]
        %v398 = vld [vmem:[%s6 + $0x68] sm:$0xff]
        %v399 = vld [vmem:[%s6 + $0x70] sm:$0xff]
        %v400 = vld [vmem:[%s6 + $0x78] sm:$0xff]
        %v401 = vld [vmem:[%s6 + $0x80] sm:$0xff]
        %v402 = vld [vmem:[%s6 + $0x88] sm:$0xff]
        %v403 = vld [vmem:[%s6 + $0x90] sm:$0xff]
        %v404 = vld [vmem:[%s6 + $0x98] sm:$0xff]
        %v405 = vld [vmem:[%s6 + $0xa0] sm:$0xff]
        %v406 = vld [vmem:[%s6 + $0xa8] sm:$0xff]
        %v407 = vld [vmem:[%s6 + $0xb0] sm:$0xff]
        %v408 = vld [vmem:[%s6 + $0xb8] sm:$0xff]
        %v409 = vld [vmem:[%s6 + $0xc0] sm:$0xff]
        %v410 = vld [vmem:[%s6 + $0xc8] sm:$0xff]
        %v411 = vld [vmem:[%s6 + $0xd0] sm:$0xff]
        %v412 = vld [vmem:[%s6 + $0xd8] sm:$0xff]
        %v413 = vld [vmem:[%s6 + $0xe0] sm:$0xff]
        %v414 = vld [vmem:[%s6 + $0xe8] sm:$0xff]
        %v415 = vld [vmem:[%s6 + $0xf0] sm:$0xff]
        %v416 = vld [vmem:[%s6 + $0xf8] sm:$0xff]
        %v417 = vld [vmem:[%s6 + $0x100] sm:$0xff]
        %v418 = vld [vmem:[%s6 + $0x108] sm:$0xff]
        %v419 = vld [vmem:[%s6 + $0x110] sm:$0xff]
        %v420 = vld [vmem:[%s6 + $0x118] sm:$0xff]
        %v421 = vld [vmem:[%s6 + $0x120] sm:$0xff]
        %v422 = vld [vmem:[%s6 + $0x128] sm:$0xff]
        %v423 = vld [vmem:[%s6 + $0x130] sm:$0xff]
        %v424 = vld [vmem:[%s6 + $0x138] sm:$0xff]
        %v425 = vld [vmem:[%s6 + $0x140] sm:$0xff]
        %v426 = vld [vmem:[%s6 + $0x148] sm:$0xff]
        %v427 = vld [vmem:[%s6 + $0x150] sm:$0xff]
        %v428 = vld [vmem:[%s6 + $0x158] sm:$0xff]
        %v429 = vld [vmem:[%s6 + $0x160] sm:$0xff]
        %v430 = vld [vmem:[%s6 + $0x168] sm:$0xff]
        %v431 = vld [vmem:[%s6 + $0x170] sm:$0xff]
        %v432 = vld [vmem:[%s6 + $0x178] sm:$0xff]
        %v433 = vld [vmem:[%s6 + $0x180] sm:$0xff]
        %v434 = vld [vmem:[%s6 + $0x188] sm:$0xff]
        %v435 = vld [vmem:[%s6 + $0x190] sm:$0xff]
        %v436 = vld [vmem:[%s6 + $0x198] sm:$0xff]
        %v437 = vld [vmem:[%s6 + $0x1a0] sm:$0xff]
        %v438 = vld [vmem:[%s6 + $0x1a8] sm:$0xff]
        %v439 = vld [vmem:[%s6 + $0x1b0] sm:$0xff]
        %v440 = vld [vmem:[%s6 + $0x1b8] sm:$0xff]
        %v441 = vld [vmem:[%s6 + $0x1c0] sm:$0xff]
        %v442 = vld [vmem:[%s6 + $0x1c8] sm:$0xff]
        %v443 = vld [vmem:[%s6 + $0x1d0] sm:$0xff]
        %v444 = vld [vmem:[%s6 + $0x1d8] sm:$0xff]
        %v445 = vld [vmem:[%s6 + $0x1e0] sm:$0xff]
        %v446 = vld [vmem:[%s6 + $0x1e8] sm:$0xff]
        %v447 = vld [vmem:[%s6 + $0x1f0] sm:$0xff]
        %v448 = vld [vmem:[%s6 + $0x1f8] sm:$0xff]
        %v449 = vld [vmem:[%s6 + $0x200] sm:$0xff]
        %v450 = vld [vmem:[%s6 + $0x208] sm:$0xff]
        %v451 = vld [vmem:[%s6 + $0x210] sm:$0xff]
        %v452 = vld [vmem:[%s6 + $0x218] sm:$0xff]
        %v453 = vld [vmem:[%s6 + $0x220] sm:$0xff]
        %v454 = vld [vmem:[%s6 + $0x228] sm:$0xff]
        %v455 = vld [vmem:[%s6 + $0x230] sm:$0xff]
        %v456 = vld [vmem:[%s6 + $0x238] sm:$0xff]
        %v457 = vld [vmem:[%s6 + $0x240] sm:$0xff]
        %v458 = vld [vmem:[%s6 + $0x248] sm:$0xff]
        %v459 = vld [vmem:[%s6 + $0x250] sm:$0xff]
        %v460 = vld [vmem:[%s6 + $0x258] sm:$0xff]
        %v461 = vld [vmem:[%s6 + $0x260] sm:$0xff]
        %v462 = vld [vmem:[%s6 + $0x268] sm:$0xff]
        %v463 = vld [vmem:[%s6 + $0x270] sm:$0xff]
        %v464 = vld [vmem:[%s6 + $0x278] sm:$0xff]
        %v465 = vld [vmem:[%s6 + $0x280] sm:$0xff]
        %v466 = vld [vmem:[%s6 + $0x288] sm:$0xff]
        %v467 = vld [vmem:[%s6 + $0x290] sm:$0xff]
        %v468 = vld [vmem:[%s6 + $0x298] sm:$0xff]
        %v469 = vld [vmem:[%s6 + $0x2a0] sm:$0xff]
        %v470 = vld [vmem:[%s6 + $0x2a8] sm:$0xff]
        %v471 = vld [vmem:[%s6 + $0x2b0] sm:$0xff]
        %v472 = vld [vmem:[%s6 + $0x2b8] sm:$0xff]
        %v473 = vld [vmem:[%s6 + $0x2c0] sm:$0xff]
        %v474 = vld [vmem:[%s6 + $0x2c8] sm:$0x1]
        %vm475 = vcmask 23552
        %476 = vst.msk [vmem:[#allocation2] sm:$0xff] %vm475, 0.0
        %477 = vst.msk [vmem:[#allocation2 + $0x8] sm:$0xff] %vm475, 0.0
        %478 = vst.msk [vmem:[#allocation2 + $0x10] sm:$0xff] %vm475, 0.0
        %479 = vst.msk [vmem:[#allocation2 + $0x18] sm:$0xff] %vm475, 0.0
        %480 = vst.msk [vmem:[#allocation2 + $0x20] sm:$0xff] %vm475, 0.0
        %481 = vst.msk [vmem:[#allocation2 + $0x28] sm:$0xff] %vm475, 0.0
        %482 = vst.msk [vmem:[#allocation2 + $0x30] sm:$0xff] %vm475, 0.0
        %483 = vst.msk [vmem:[#allocation2 + $0x38] sm:$0xff] %vm475, 0.0
        %484 = vst.msk [vmem:[#allocation2 + $0x40] sm:$0xff] %vm475, 0.0
        %485 = vst.msk [vmem:[#allocation2 + $0x48] sm:$0xff] %vm475, 0.0
        %486 = vst.msk [vmem:[#allocation2 + $0x50] sm:$0xff] %vm475, 0.0
        %487 = vst.msk [vmem:[#allocation2 + $0x58] sm:$0xff] %vm475, 0.0
        %488 = vst.msk [vmem:[#allocation2 + $0x60] sm:$0xff] %vm475, 0.0
        %489 = vst.msk [vmem:[#allocation2 + $0x68] sm:$0xff] %vm475, 0.0
        %490 = vst.msk [vmem:[#allocation2 + $0x70] sm:$0xff] %vm475, 0.0
        %491 = vst.msk [vmem:[#allocation2 + $0x78] sm:$0xff] %vm475, 0.0
        %492 = vst.msk [vmem:[#allocation2 + $0x80] sm:$0xff] %vm475, 0.0
        %493 = vst.msk [vmem:[#allocation2 + $0x88] sm:$0xff] %vm475, 0.0
        %494 = vst.msk [vmem:[#allocation2 + $0x90] sm:$0xff] %vm475, 0.0
        %495 = vst.msk [vmem:[#allocation2 + $0x98] sm:$0xff] %vm475, 0.0
        %496 = vst.msk [vmem:[#allocation2 + $0xa0] sm:$0xff] %vm475, 0.0
        %497 = vst.msk [vmem:[#allocation2 + $0xa8] sm:$0xff] %vm475, 0.0
        %498 = vst.msk [vmem:[#allocation2 + $0xb0] sm:$0xff] %vm475, 0.0
        %499 = vst.msk [vmem:[#allocation2 + $0xb8] sm:$0xff] %vm475, 0.0
        %500 = vst.msk [vmem:[#allocation2 + $0xc0] sm:$0xff] %vm475, 0.0
        %501 = vst.msk [vmem:[#allocation2 + $0xc8] sm:$0xff] %vm475, 0.0
        %502 = vst.msk [vmem:[#allocation2 + $0xd0] sm:$0xff] %vm475, 0.0
        %503 = vst.msk [vmem:[#allocation2 + $0xd8] sm:$0xff] %vm475, 0.0
        %504 = vst.msk [vmem:[#allocation2 + $0xe0] sm:$0xff] %vm475, 0.0
        %505 = vst.msk [vmem:[#allocation2 + $0xe8] sm:$0xff] %vm475, 0.0
        %506 = vst.msk [vmem:[#allocation2 + $0xf0] sm:$0xff] %vm475, 0.0
        %507 = vst.msk [vmem:[#allocation2 + $0xf8] sm:$0xff] %vm475, 0.0
        %508 = vst.msk [vmem:[#allocation2 + $0x100] sm:$0xff] %vm475, 0.0
        %509 = vst.msk [vmem:[#allocation2 + $0x108] sm:$0xff] %vm475, 0.0
        %510 = vst.msk [vmem:[#allocation2 + $0x110] sm:$0xff] %vm475, 0.0
        %511 = vst.msk [vmem:[#allocation2 + $0x118] sm:$0xff] %vm475, 0.0
        %512 = vst.msk [vmem:[#allocation2 + $0x120] sm:$0xff] %vm475, 0.0
        %513 = vst.msk [vmem:[#allocation2 + $0x128] sm:$0xff] %vm475, 0.0
        %514 = vst.msk [vmem:[#allocation2 + $0x130] sm:$0xff] %vm475, 0.0
        %515 = vst.msk [vmem:[#allocation2 + $0x138] sm:$0xff] %vm475, 0.0
        %516 = vst.msk [vmem:[#allocation2 + $0x140] sm:$0xff] %vm475, 0.0
        %517 = vst.msk [vmem:[#allocation2 + $0x148] sm:$0xff] %vm475, 0.0
        %518 = vst.msk [vmem:[#allocation2 + $0x150] sm:$0xff] %vm475, 0.0
        %519 = vst.msk [vmem:[#allocation2 + $0x158] sm:$0xff] %vm475, 0.0
        %520 = vst.msk [vmem:[#allocation2 + $0x160] sm:$0xff] %vm475, 0.0
        %521 = vst.msk [vmem:[#allocation2 + $0x168] sm:$0xff] %vm475, 0.0
        %522 = vst.msk [vmem:[#allocation2 + $0x170] sm:$0xff] %vm475, 0.0
        %523 = vst.msk [vmem:[#allocation2 + $0x178] sm:$0xff] %vm475, 0.0
        %524 = vst.msk [vmem:[#allocation2 + $0x180] sm:$0xff] %vm475, 0.0
        %525 = vst.msk [vmem:[#allocation2 + $0x188] sm:$0xff] %vm475, 0.0
        %526 = vst.msk [vmem:[#allocation2 + $0x190] sm:$0xff] %vm475, 0.0
        %527 = vst.msk [vmem:[#allocation2 + $0x198] sm:$0xff] %vm475, 0.0
        %528 = vst.msk [vmem:[#allocation2 + $0x1a0] sm:$0xff] %vm475, 0.0
        %529 = vst.msk [vmem:[#allocation2 + $0x1a8] sm:$0xff] %vm475, 0.0
        %530 = vst.msk [vmem:[#allocation2 + $0x1b0] sm:$0xff] %vm475, 0.0
        %531 = vst.msk [vmem:[#allocation2 + $0x1b8] sm:$0xff] %vm475, 0.0
        %532 = vst.msk [vmem:[#allocation2 + $0x1c0] sm:$0xff] %vm475, 0.0
        %533 = vst.msk [vmem:[#allocation2 + $0x1c8] sm:$0xff] %vm475, 0.0
        %534 = vst.msk [vmem:[#allocation2 + $0x1d0] sm:$0xff] %vm475, 0.0
        %535 = vst.msk [vmem:[#allocation2 + $0x1d8] sm:$0xff] %vm475, 0.0
        %536 = vst.msk [vmem:[#allocation2 + $0x1e0] sm:$0xff] %vm475, 0.0
        %537 = vst.msk [vmem:[#allocation2 + $0x1e8] sm:$0xff] %vm475, 0.0
        %538 = vst.msk [vmem:[#allocation2 + $0x1f0] sm:$0xff] %vm475, 0.0
        %539 = vst.msk [vmem:[#allocation2 + $0x1f8] sm:$0xff] %vm475, 0.0
        %540 = vst.msk [vmem:[#allocation2 + $0x200] sm:$0xff] %vm475, 0.0
        %541 = vst.msk [vmem:[#allocation2 + $0x208] sm:$0xff] %vm475, 0.0
        %542 = vst.msk [vmem:[#allocation2 + $0x210] sm:$0xff] %vm475, 0.0
        %543 = vst.msk [vmem:[#allocation2 + $0x218] sm:$0xff] %vm475, 0.0
        %544 = vst.msk [vmem:[#allocation2 + $0x220] sm:$0xff] %vm475, 0.0
        %545 = vst.msk [vmem:[#allocation2 + $0x228] sm:$0xff] %vm475, 0.0
        %546 = vst.msk [vmem:[#allocation2 + $0x230] sm:$0xff] %vm475, 0.0
        %547 = vst.msk [vmem:[#allocation2 + $0x238] sm:$0xff] %vm475, 0.0
        %548 = vst.msk [vmem:[#allocation2 + $0x240] sm:$0xff] %vm475, 0.0
        %549 = vst.msk [vmem:[#allocation2 + $0x248] sm:$0xff] %vm475, 0.0
        %550 = vst.msk [vmem:[#allocation2 + $0x250] sm:$0xff] %vm475, 0.0
        %551 = vst.msk [vmem:[#allocation2 + $0x258] sm:$0xff] %vm475, 0.0
        %552 = vst.msk [vmem:[#allocation2 + $0x260] sm:$0xff] %vm475, 0.0
        %553 = vst.msk [vmem:[#allocation2 + $0x268] sm:$0xff] %vm475, 0.0
        %554 = vst.msk [vmem:[#allocation2 + $0x270] sm:$0xff] %vm475, 0.0
        %555 = vst.msk [vmem:[#allocation2 + $0x278] sm:$0xff] %vm475, 0.0
        %556 = vst.msk [vmem:[#allocation2 + $0x280] sm:$0xff] %vm475, 0.0
        %557 = vst.msk [vmem:[#allocation2 + $0x288] sm:$0xff] %vm475, 0.0
        %558 = vst.msk [vmem:[#allocation2 + $0x290] sm:$0xff] %vm475, 0.0
        %559 = vst.msk [vmem:[#allocation2 + $0x298] sm:$0xff] %vm475, 0.0
        %560 = vst.msk [vmem:[#allocation2 + $0x2a0] sm:$0xff] %vm475, 0.0
        %561 = vst.msk [vmem:[#allocation2 + $0x2a8] sm:$0xff] %vm475, 0.0
        %562 = vst.msk [vmem:[#allocation2 + $0x2b0] sm:$0xff] %vm475, 0.0
        %563 = vst.msk [vmem:[#allocation2 + $0x2b8] sm:$0xff] %vm475, 0.0
        %564 = vst.msk [vmem:[#allocation2 + $0x2c0] sm:$0xff] %vm475, 0.0
        %565 = vst.msk [vmem:[#allocation2 + $0x2c8] sm:$0xff] %vm475, 0.0
        %566 = vst.msk [vmem:[#allocation2 + $0x2d0] sm:$0xff] %vm475, 0.0
        %567 = vst.msk [vmem:[#allocation2 + $0x2d8] sm:$0xff] %vm475, 0.0
        %568 = vst.msk [vmem:[#allocation2 + $0x2e0] sm:$0xff] %vm475, 0.0
        %569 = vst.msk [vmem:[#allocation2 + $0x2e8] sm:$0xff] %vm475, 0.0
        %570 = vst.msk [vmem:[#allocation2 + $0x2f0] sm:$0xff] %vm475, 0.0
        %571 = vst.msk [vmem:[#allocation2 + $0x2f8] sm:$0xff] %vm475, 0.0
        %v572 = vld [vmem:[%s383] sm:$0xff]
        %v573 = vld [vmem:[%s383 + $0x8] sm:$0xff]
        %v574 = vld [vmem:[%s383 + $0x10] sm:$0xff]
        %v575 = vld [vmem:[%s383 + $0x18] sm:$0xff]
        %v576 = vld [vmem:[%s383 + $0x20] sm:$0xff]
        %v577 = vld [vmem:[%s383 + $0x28] sm:$0xff]
        %v578 = vld [vmem:[%s383 + $0x30] sm:$0xff]
        %v579 = vld [vmem:[%s383 + $0x38] sm:$0xff]
        %v580 = vld [vmem:[%s383 + $0x40] sm:$0xff]
        %v581 = vld [vmem:[%s383 + $0x48] sm:$0xff]
        %v582 = vld [vmem:[%s383 + $0x50] sm:$0xff]
        %v583 = vld [vmem:[%s383 + $0x58] sm:$0xff]
        %v584 = vld [vmem:[%s383 + $0x60] sm:$0xff]
        %v585 = vld [vmem:[%s383 + $0x68] sm:$0xff]
        %v586 = vld [vmem:[%s383 + $0x70] sm:$0xff]
        %v587 = vld [vmem:[%s383 + $0x78] sm:$0xff]
        %v588 = vld [vmem:[%s383 + $0x80] sm:$0xff]
        %v589 = vld [vmem:[%s383 + $0x88] sm:$0xff]
        %v590 = vld [vmem:[%s383 + $0x90] sm:$0xff]
        %v591 = vld [vmem:[%s383 + $0x98] sm:$0xff]
        %v592 = vld [vmem:[%s383 + $0xa0] sm:$0xff]
        %v593 = vld [vmem:[%s383 + $0xa8] sm:$0xff]
        %v594 = vld [vmem:[%s383 + $0xb0] sm:$0xff]
        %v595 = vld [vmem:[%s383 + $0xb8] sm:$0xff]
        %v596 = vld [vmem:[%s383 + $0xc0] sm:$0xff]
        %v597 = vld [vmem:[%s383 + $0xc8] sm:$0xff]
        %v598 = vld [vmem:[%s383 + $0xd0] sm:$0xff]
        %v599 = vld [vmem:[%s383 + $0xd8] sm:$0xff]
        %v600 = vld [vmem:[%s383 + $0xe0] sm:$0xff]
        %v601 = vld [vmem:[%s383 + $0xe8] sm:$0xff]
        %v602 = vld [vmem:[%s383 + $0xf0] sm:$0xff]
        %v603 = vld [vmem:[%s383 + $0xf8] sm:$0xff]
        %v604 = vld [vmem:[%s383 + $0x100] sm:$0xff]
        %v605 = vld [vmem:[%s383 + $0x108] sm:$0xff]
        %v606 = vld [vmem:[%s383 + $0x110] sm:$0xff]
        %v607 = vld [vmem:[%s383 + $0x118] sm:$0xff]
        %v608 = vld [vmem:[%s383 + $0x120] sm:$0xff]
        %v609 = vld [vmem:[%s383 + $0x128] sm:$0xff]
        %v610 = vld [vmem:[%s383 + $0x130] sm:$0xff]
        %v611 = vld [vmem:[%s383 + $0x138] sm:$0xff]
        %v612 = vld [vmem:[%s383 + $0x140] sm:$0xff]
        %v613 = vld [vmem:[%s383 + $0x148] sm:$0xff]
        %v614 = vld [vmem:[%s383 + $0x150] sm:$0xff]
        %v615 = vld [vmem:[%s383 + $0x158] sm:$0xff]
        %v616 = vld [vmem:[%s383 + $0x160] sm:$0xff]
        %v617 = vld [vmem:[%s383 + $0x168] sm:$0xff]
        %v618 = vld [vmem:[%s383 + $0x170] sm:$0xff]
        %v619 = vld [vmem:[%s383 + $0x178] sm:$0xff]
        %v620 = vld [vmem:[%s383 + $0x180] sm:$0xff]
        %v621 = vld [vmem:[%s383 + $0x188] sm:$0xff]
        %v622 = vld [vmem:[%s383 + $0x190] sm:$0xff]
        %v623 = vld [vmem:[%s383 + $0x198] sm:$0xff]
        %v624 = vld [vmem:[%s383 + $0x1a0] sm:$0xff]
        %v625 = vld [vmem:[%s383 + $0x1a8] sm:$0xff]
        %v626 = vld [vmem:[%s383 + $0x1b0] sm:$0xff]
        %v627 = vld [vmem:[%s383 + $0x1b8] sm:$0xff]
        %v628 = vld [vmem:[%s383 + $0x1c0] sm:$0xff]
        %v629 = vld [vmem:[%s383 + $0x1c8] sm:$0xff]
        %v630 = vld [vmem:[%s383 + $0x1d0] sm:$0xff]
        %v631 = vld [vmem:[%s383 + $0x1d8] sm:$0xff]
        %v632 = vld [vmem:[%s383 + $0x1e0] sm:$0xff]
        %v633 = vld [vmem:[%s383 + $0x1e8] sm:$0xff]
        %v634 = vld [vmem:[%s383 + $0x1f0] sm:$0xff]
        %v635 = vld [vmem:[%s383 + $0x1f8] sm:$0xff]
        %v636 = vld [vmem:[%s383 + $0x200] sm:$0xff]
        %v637 = vld [vmem:[%s383 + $0x208] sm:$0xff]
        %v638 = vld [vmem:[%s383 + $0x210] sm:$0xff]
        %v639 = vld [vmem:[%s383 + $0x218] sm:$0xff]
        %v640 = vld [vmem:[%s383 + $0x220] sm:$0xff]
        %v641 = vld [vmem:[%s383 + $0x228] sm:$0xff]
        %v642 = vld [vmem:[%s383 + $0x230] sm:$0xff]
        %v643 = vld [vmem:[%s383 + $0x238] sm:$0xff]
        %v644 = vld [vmem:[%s383 + $0x240] sm:$0xff]
        %v645 = vld [vmem:[%s383 + $0x248] sm:$0xff]
        %v646 = vld [vmem:[%s383 + $0x250] sm:$0xff]
        %v647 = vld [vmem:[%s383 + $0x258] sm:$0xff]
        %v648 = vld [vmem:[%s383 + $0x260] sm:$0xff]
        %v649 = vld [vmem:[%s383 + $0x268] sm:$0xff]
        %v650 = vld [vmem:[%s383 + $0x270] sm:$0xff]
        %v651 = vld [vmem:[%s383 + $0x278] sm:$0xff]
        %v652 = vld [vmem:[%s383 + $0x280] sm:$0xff]
        %v653 = vld [vmem:[%s383 + $0x288] sm:$0xff]
        %v654 = vld [vmem:[%s383 + $0x290] sm:$0xff]
        %v655 = vld [vmem:[%s383 + $0x298] sm:$0xff]
        %v656 = vld [vmem:[%s383 + $0x2a0] sm:$0xff]
        %v657 = vld [vmem:[%s383 + $0x2a8] sm:$0xff]
        %v658 = vld [vmem:[%s383 + $0x2b0] sm:$0xff]
        %v659 = vld [vmem:[%s383 + $0x2b8] sm:$0xff]
        %v660 = vld [vmem:[%s383 + $0x2c0] sm:$0xff]
        %v661 = vld [vmem:[%s383 + $0x2c8] sm:$0x1]
        %662 = vst.msk [vmem:[#allocation2 + $0x17] sm:$0xff] %vm475, %v572
        %663 = vst.msk [vmem:[#allocation2 + $0x1f] sm:$0xff] %vm475, %v573
        %664 = vst.msk [vmem:[#allocation2 + $0x27] sm:$0xff] %vm475, %v574
        %665 = vst.msk [vmem:[#allocation2 + $0x2f] sm:$0xff] %vm475, %v575
        %666 = vst.msk [vmem:[#allocation2 + $0x37] sm:$0xff] %vm475, %v576
        %667 = vst.msk [vmem:[#allocation2 + $0x3f] sm:$0xff] %vm475, %v577
        %668 = vst.msk [vmem:[#allocation2 + $0x47] sm:$0xff] %vm475, %v578
        %669 = vst.msk [vmem:[#allocation2 + $0x4f] sm:$0xff] %vm475, %v579
        %670 = vst.msk [vmem:[#allocation2 + $0x57] sm:$0xff] %vm475, %v580
        %671 = vst.msk [vmem:[#allocation2 + $0x5f] sm:$0xff] %vm475, %v581
        %672 = vst.msk [vmem:[#allocation2 + $0x67] sm:$0xff] %vm475, %v582
        %673 = vst.msk [vmem:[#allocation2 + $0x6f] sm:$0xff] %vm475, %v583
        %674 = vst.msk [vmem:[#allocation2 + $0x77] sm:$0xff] %vm475, %v584
        %675 = vst.msk [vmem:[#allocation2 + $0x7f] sm:$0xff] %vm475, %v585
        %676 = vst.msk [vmem:[#allocation2 + $0x87] sm:$0xff] %vm475, %v586
        %677 = vst.msk [vmem:[#allocation2 + $0x8f] sm:$0xff] %vm475, %v587
        %678 = vst.msk [vmem:[#allocation2 + $0x97] sm:$0xff] %vm475, %v588
        %679 = vst.msk [vmem:[#allocation2 + $0x9f] sm:$0xff] %vm475, %v589
        %680 = vst.msk [vmem:[#allocation2 + $0xa7] sm:$0xff] %vm475, %v590
        %681 = vst.msk [vmem:[#allocation2 + $0xaf] sm:$0xff] %vm475, %v591
        %682 = vst.msk [vmem:[#allocation2 + $0xb7] sm:$0xff] %vm475, %v592
        %683 = vst.msk [vmem:[#allocation2 + $0xbf] sm:$0xff] %vm475, %v593
        %684 = vst.msk [vmem:[#allocation2 + $0xc7] sm:$0xff] %vm475, %v594
        %685 = vst.msk [vmem:[#allocation2 + $0xcf] sm:$0xff] %vm475, %v595
        %686 = vst.msk [vmem:[#allocation2 + $0xd7] sm:$0xff] %vm475, %v596
        %687 = vst.msk [vmem:[#allocation2 + $0xdf] sm:$0xff] %vm475, %v597
        %688 = vst.msk [vmem:[#allocation2 + $0xe7] sm:$0xff] %vm475, %v598
        %689 = vst.msk [vmem:[#allocation2 + $0xef] sm:$0xff] %vm475, %v599
        %690 = vst.msk [vmem:[#allocation2 + $0xf7] sm:$0xff] %vm475, %v600
        %691 = vst.msk [vmem:[#allocation2 + $0xff] sm:$0xff] %vm475, %v601
        %692 = vst.msk [vmem:[#allocation2 + $0x107] sm:$0xff] %vm475, %v602
        %693 = vst.msk [vmem:[#allocation2 + $0x10f] sm:$0xff] %vm475, %v603
        %694 = vst.msk [vmem:[#allocation2 + $0x117] sm:$0xff] %vm475, %v604
        %695 = vst.msk [vmem:[#allocation2 + $0x11f] sm:$0xff] %vm475, %v605
        %696 = vst.msk [vmem:[#allocation2 + $0x127] sm:$0xff] %vm475, %v606
        %697 = vst.msk [vmem:[#allocation2 + $0x12f] sm:$0xff] %vm475, %v607
        %698 = vst.msk [vmem:[#allocation2 + $0x137] sm:$0xff] %vm475, %v608
        %699 = vst.msk [vmem:[#allocation2 + $0x13f] sm:$0xff] %vm475, %v609
        %700 = vst.msk [vmem:[#allocation2 + $0x147] sm:$0xff] %vm475, %v610
        %701 = vst.msk [vmem:[#allocation2 + $0x14f] sm:$0xff] %vm475, %v611
        %702 = vst.msk [vmem:[#allocation2 + $0x157] sm:$0xff] %vm475, %v612
        %703 = vst.msk [vmem:[#allocation2 + $0x15f] sm:$0xff] %vm475, %v613
        %704 = vst.msk [vmem:[#allocation2 + $0x167] sm:$0xff] %vm475, %v614
        %705 = vst.msk [vmem:[#allocation2 + $0x16f] sm:$0xff] %vm475, %v615
        %706 = vst.msk [vmem:[#allocation2 + $0x177] sm:$0xff] %vm475, %v616
        %707 = vst.msk [vmem:[#allocation2 + $0x17f] sm:$0xff] %vm475, %v617
        %708 = vst.msk [vmem:[#allocation2 + $0x187] sm:$0xff] %vm475, %v618
        %709 = vst.msk [vmem:[#allocation2 + $0x18f] sm:$0xff] %vm475, %v619
        %710 = vst.msk [vmem:[#allocation2 + $0x197] sm:$0xff] %vm475, %v620
        %711 = vst.msk [vmem:[#allocation2 + $0x19f] sm:$0xff] %vm475, %v621
        %712 = vst.msk [vmem:[#allocation2 + $0x1a7] sm:$0xff] %vm475, %v622
        %713 = vst.msk [vmem:[#allocation2 + $0x1af] sm:$0xff] %vm475, %v623
        %714 = vst.msk [vmem:[#allocation2 + $0x1b7] sm:$0xff] %vm475, %v624
        %715 = vst.msk [vmem:[#allocation2 + $0x1bf] sm:$0xff] %vm475, %v625
        %716 = vst.msk [vmem:[#allocation2 + $0x1c7] sm:$0xff] %vm475, %v626
        %717 = vst.msk [vmem:[#allocation2 + $0x1cf] sm:$0xff] %vm475, %v627
        %718 = vst.msk [vmem:[#allocation2 + $0x1d7] sm:$0xff] %vm475, %v628
        %719 = vst.msk [vmem:[#allocation2 + $0x1df] sm:$0xff] %vm475, %v629
        %720 = vst.msk [vmem:[#allocation2 + $0x1e7] sm:$0xff] %vm475, %v630
        %721 = vst.msk [vmem:[#allocation2 + $0x1ef] sm:$0xff] %vm475, %v631
        %722 = vst.msk [vmem:[#allocation2 + $0x1f7] sm:$0xff] %vm475, %v632
        %723 = vst.msk [vmem:[#allocation2 + $0x1ff] sm:$0xff] %vm475, %v633
        %724 = vst.msk [vmem:[#allocation2 + $0x207] sm:$0xff] %vm475, %v634
        %725 = vst.msk [vmem:[#allocation2 + $0x20f] sm:$0xff] %vm475, %v635
        %726 = vst.msk [vmem:[#allocation2 + $0x217] sm:$0xff] %vm475, %v636
        %727 = vst.msk [vmem:[#allocation2 + $0x21f] sm:$0xff] %vm475, %v637
        %728 = vst.msk [vmem:[#allocation2 + $0x227] sm:$0xff] %vm475, %v638
        %729 = vst.msk [vmem:[#allocation2 + $0x22f] sm:$0xff] %vm475, %v639
        %730 = vst.msk [vmem:[#allocation2 + $0x237] sm:$0xff] %vm475, %v640
        %731 = vst.msk [vmem:[#allocation2 + $0x23f] sm:$0xff] %vm475, %v641
        %732 = vst.msk [vmem:[#allocation2 + $0x247] sm:$0xff] %vm475, %v642
        %733 = vst.msk [vmem:[#allocation2 + $0x24f] sm:$0xff] %vm475, %v643
        %734 = vst.msk [vmem:[#allocation2 + $0x257] sm:$0xff] %vm475, %v644
        %735 = vst.msk [vmem:[#allocation2 + $0x25f] sm:$0xff] %vm475, %v645
        %736 = vst.msk [vmem:[#allocation2 + $0x267] sm:$0xff] %vm475, %v646
        %737 = vst.msk [vmem:[#allocation2 + $0x26f] sm:$0xff] %vm475, %v647
        %738 = vst.msk [vmem:[#allocation2 + $0x277] sm:$0xff] %vm475, %v648
        %739 = vst.msk [vmem:[#allocation2 + $0x27f] sm:$0xff] %vm475, %v649
        %740 = vst.msk [vmem:[#allocation2 + $0x287] sm:$0xff] %vm475, %v650
        %741 = vst.msk [vmem:[#allocation2 + $0x28f] sm:$0xff] %vm475, %v651
        %742 = vst.msk [vmem:[#allocation2 + $0x297] sm:$0xff] %vm475, %v652
        %743 = vst.msk [vmem:[#allocation2 + $0x29f] sm:$0xff] %vm475, %v653
        %744 = vst.msk [vmem:[#allocation2 + $0x2a7] sm:$0xff] %vm475, %v654
        %745 = vst.msk [vmem:[#allocation2 + $0x2af] sm:$0xff] %vm475, %v655
        %746 = vst.msk [vmem:[#allocation2 + $0x2b7] sm:$0xff] %vm475, %v656
        %747 = vst.msk [vmem:[#allocation2 + $0x2bf] sm:$0xff] %vm475, %v657
        %748 = vst.msk [vmem:[#allocation2 + $0x2c7] sm:$0xff] %vm475, %v658
        %749 = vst.msk [vmem:[#allocation2 + $0x2cf] sm:$0xff] %vm475, %v659
        %750 = vst.msk [vmem:[#allocation2 + $0x2d7] sm:$0xff] %vm475, %v660
        %vm751 = vcmask 16384
        %752 = vst.msk [vmem:[#allocation2 + $0x2df] sm:$0x1] %vm751, %v661
        %v753 = vld [vmem:[#allocation2] sm:$0xff]
        %v754 = vld [vmem:[#allocation2 + $0x8] sm:$0xff]
        %v755 = vld [vmem:[#allocation2 + $0x10] sm:$0xff]
        %v756 = vld [vmem:[#allocation2 + $0x18] sm:$0xff]
        %v757 = vld [vmem:[#allocation2 + $0x20] sm:$0xff]
        %v758 = vld [vmem:[#allocation2 + $0x28] sm:$0xff]
        %v759 = vld [vmem:[#allocation2 + $0x30] sm:$0xff]
        %v760 = vld [vmem:[#allocation2 + $0x38] sm:$0xff]
        %v761 = vld [vmem:[#allocation2 + $0x40] sm:$0xff]
        %v762 = vld [vmem:[#allocation2 + $0x48] sm:$0xff]
        %v763 = vld [vmem:[#allocation2 + $0x50] sm:$0xff]
        %v764 = vld [vmem:[#allocation2 + $0x58] sm:$0xff]
        %v765 = vld [vmem:[#allocation2 + $0x60] sm:$0xff]
        %v766 = vld [vmem:[#allocation2 + $0x68] sm:$0xff]
        %v767 = vld [vmem:[#allocation2 + $0x70] sm:$0xff]
        %v768 = vld [vmem:[#allocation2 + $0x78] sm:$0xff]
        %v769 = vld [vmem:[#allocation2 + $0x80] sm:$0xff]
        %v770 = vld [vmem:[#allocation2 + $0x88] sm:$0xff]
        %v771 = vld [vmem:[#allocation2 + $0x90] sm:$0xff]
        %v772 = vld [vmem:[#allocation2 + $0x98] sm:$0xff]
        %v773 = vld [vmem:[#allocation2 + $0xa0] sm:$0xff]
        %v774 = vld [vmem:[#allocation2 + $0xa8] sm:$0xff]
        %v775 = vld [vmem:[#allocation2 + $0xb0] sm:$0xff]
        %v776 = vld [vmem:[#allocation2 + $0xb8] sm:$0xff]
        %v777 = vld [vmem:[#allocation2 + $0xc0] sm:$0xff]
        %v778 = vld [vmem:[#allocation2 + $0xc8] sm:$0xff]
        %v779 = vld [vmem:[#allocation2 + $0xd0] sm:$0xff]
        %v780 = vld [vmem:[#allocation2 + $0xd8] sm:$0xff]
        %v781 = vld [vmem:[#allocation2 + $0xe0] sm:$0xff]
        %v782 = vld [vmem:[#allocation2 + $0xe8] sm:$0xff]
        %v783 = vld [vmem:[#allocation2 + $0xf0] sm:$0xff]
        %v784 = vld [vmem:[#allocation2 + $0xf8] sm:$0xff]
        %v785 = vld [vmem:[#allocation2 + $0x100] sm:$0xff]
        %v786 = vld [vmem:[#allocation2 + $0x108] sm:$0xff]
        %v787 = vld [vmem:[#allocation2 + $0x110] sm:$0xff]
        %v788 = vld [vmem:[#allocation2 + $0x118] sm:$0xff]
        %v789 = vld [vmem:[#allocation2 + $0x120] sm:$0xff]
        %v790 = vld [vmem:[#allocation2 + $0x128] sm:$0xff]
        %v791 = vld [vmem:[#allocation2 + $0x130] sm:$0xff]
        %v792 = vld [vmem:[#allocation2 + $0x138] sm:$0xff]
        %v793 = vld [vmem:[#allocation2 + $0x140] sm:$0xff]
        %v794 = vld [vmem:[#allocation2 + $0x148] sm:$0xff]
        %v795 = vld [vmem:[#allocation2 + $0x150] sm:$0xff]
        %v796 = vld [vmem:[#allocation2 + $0x158] sm:$0xff]
        %v797 = vld [vmem:[#allocation2 + $0x160] sm:$0xff]
        %v798 = vld [vmem:[#allocation2 + $0x168] sm:$0xff]
        %v799 = vld [vmem:[#allocation2 + $0x170] sm:$0xff]
        %v800 = vld [vmem:[#allocation2 + $0x178] sm:$0xff]
        %v801 = vld [vmem:[#allocation2 + $0x180] sm:$0xff]
        %v802 = vld [vmem:[#allocation2 + $0x188] sm:$0xff]
        %v803 = vld [vmem:[#allocation2 + $0x190] sm:$0xff]
        %v804 = vld [vmem:[#allocation2 + $0x198] sm:$0xff]
        %v805 = vld [vmem:[#allocation2 + $0x1a0] sm:$0xff]
        %v806 = vld [vmem:[#allocation2 + $0x1a8] sm:$0xff]
        %v807 = vld [vmem:[#allocation2 + $0x1b0] sm:$0xff]
        %v808 = vld [vmem:[#allocation2 + $0x1b8] sm:$0xff]
        %v809 = vld [vmem:[#allocation2 + $0x1c0] sm:$0xff]
        %v810 = vld [vmem:[#allocation2 + $0x1c8] sm:$0xff]
        %v811 = vld [vmem:[#allocation2 + $0x1d0] sm:$0xff]
        %v812 = vld [vmem:[#allocation2 + $0x1d8] sm:$0xff]
        %v813 = vld [vmem:[#allocation2 + $0x1e0] sm:$0xff]
        %v814 = vld [vmem:[#allocation2 + $0x1e8] sm:$0xff]
        %v815 = vld [vmem:[#allocation2 + $0x1f0] sm:$0xff]
        %v816 = vld [vmem:[#allocation2 + $0x1f8] sm:$0xff]
        %v817 = vld [vmem:[#allocation2 + $0x200] sm:$0xff]
        %v818 = vld [vmem:[#allocation2 + $0x208] sm:$0xff]
        %v819 = vld [vmem:[#allocation2 + $0x210] sm:$0xff]
        %v820 = vld [vmem:[#allocation2 + $0x218] sm:$0xff]
        %v821 = vld [vmem:[#allocation2 + $0x220] sm:$0xff]
        %v822 = vld [vmem:[#allocation2 + $0x228] sm:$0xff]
        %v823 = vld [vmem:[#allocation2 + $0x230] sm:$0xff]
        %v824 = vld [vmem:[#allocation2 + $0x238] sm:$0xff]
        %v825 = vld [vmem:[#allocation2 + $0x240] sm:$0xff]
        %v826 = vld [vmem:[#allocation2 + $0x248] sm:$0xff]
        %v827 = vld [vmem:[#allocation2 + $0x250] sm:$0xff]
        %v828 = vld [vmem:[#allocation2 + $0x258] sm:$0xff]
        %v829 = vld [vmem:[#allocation2 + $0x260] sm:$0xff]
        %v830 = vld [vmem:[#allocation2 + $0x268] sm:$0xff]
        %v831 = vld [vmem:[#allocation2 + $0x270] sm:$0xff]
        %v832 = vld [vmem:[#allocation2 + $0x278] sm:$0xff]
        %v833 = vld [vmem:[#allocation2 + $0x280] sm:$0xff]
        %v834 = vld [vmem:[#allocation2 + $0x288] sm:$0xff]
        %v835 = vld [vmem:[#allocation2 + $0x290] sm:$0xff]
        %v836 = vld [vmem:[#allocation2 + $0x298] sm:$0xff]
        %v837 = vld [vmem:[#allocation2 + $0x2a0] sm:$0xff]
        %v838 = vld [vmem:[#allocation2 + $0x2a8] sm:$0xff]
        %v839 = vld [vmem:[#allocation2 + $0x2b0] sm:$0xff]
        %v840 = vld [vmem:[#allocation2 + $0x2b8] sm:$0xff]
        %v841 = vld [vmem:[#allocation2 + $0x2c0] sm:$0xff]
        %v842 = vld [vmem:[#allocation2 + $0x2c8] sm:$0x1]
        %v843 = vld [vmem:[#allocation2 + $0x1] sm:$0xff]
        %v844 = vld [vmem:[#allocation2 + $0x9] sm:$0xff]
        %v845 = vld [vmem:[#allocation2 + $0x11] sm:$0xff]
        %v846 = vld [vmem:[#allocation2 + $0x19] sm:$0xff]
        %v847 = vld [vmem:[#allocation2 + $0x21] sm:$0xff]
        %v848 = vld [vmem:[#allocation2 + $0x29] sm:$0xff]
        %v849 = vld [vmem:[#allocation2 + $0x31] sm:$0xff]
        %v850 = vld [vmem:[#allocation2 + $0x39] sm:$0xff]
        %v851 = vld [vmem:[#allocation2 + $0x41] sm:$0xff]
        %v852 = vld [vmem:[#allocation2 + $0x49] sm:$0xff]
        %v853 = vld [vmem:[#allocation2 + $0x51] sm:$0xff]
        %v854 = vld [vmem:[#allocation2 + $0x59] sm:$0xff]
        %v855 = vld [vmem:[#allocation2 + $0x61] sm:$0xff]
        %v856 = vld [vmem:[#allocation2 + $0x69] sm:$0xff]
        %v857 = vld [vmem:[#allocation2 + $0x71] sm:$0xff]
        %v858 = vld [vmem:[#allocation2 + $0x79] sm:$0xff]
        %v859 = vld [vmem:[#allocation2 + $0x81] sm:$0xff]
        %v860 = vld [vmem:[#allocation2 + $0x89] sm:$0xff]
        %v861 = vld [vmem:[#allocation2 + $0x91] sm:$0xff]
        %v862 = vld [vmem:[#allocation2 + $0x99] sm:$0xff]
        %v863 = vld [vmem:[#allocation2 + $0xa1] sm:$0xff]
        %v864 = vld [vmem:[#allocation2 + $0xa9] sm:$0xff]
        %v865 = vld [vmem:[#allocation2 + $0xb1] sm:$0xff]
        %v866 = vld [vmem:[#allocation2 + $0xb9] sm:$0xff]
        %v867 = vld [vmem:[#allocation2 + $0xc1] sm:$0xff]
        %v868 = vld [vmem:[#allocation2 + $0xc9] sm:$0xff]
        %v869 = vld [vmem:[#allocation2 + $0xd1] sm:$0xff]
        %v870 = vld [vmem:[#allocation2 + $0xd9] sm:$0xff]
        %v871 = vld [vmem:[#allocation2 + $0xe1] sm:$0xff]
        %v872 = vld [vmem:[#allocation2 + $0xe9] sm:$0xff]
        %v873 = vld [vmem:[#allocation2 + $0xf1] sm:$0xff]
        %v874 = vld [vmem:[#allocation2 + $0xf9] sm:$0xff]
        %v875 = vld [vmem:[#allocation2 + $0x101] sm:$0xff]
        %v876 = vld [vmem:[#allocation2 + $0x109] sm:$0xff]
        %v877 = vld [vmem:[#allocation2 + $0x111] sm:$0xff]
        %v878 = vld [vmem:[#allocation2 + $0x119] sm:$0xff]
        %v879 = vld [vmem:[#allocation2 + $0x121] sm:$0xff]
        %v880 = vld [vmem:[#allocation2 + $0x129] sm:$0xff]
        %v881 = vld [vmem:[#allocation2 + $0x131] sm:$0xff]
        %v882 = vld [vmem:[#allocation2 + $0x139] sm:$0xff]
        %v883 = vld [vmem:[#allocation2 + $0x141] sm:$0xff]
        %v884 = vld [vmem:[#allocation2 + $0x149] sm:$0xff]
        %v885 = vld [vmem:[#allocation2 + $0x151] sm:$0xff]
        %v886 = vld [vmem:[#allocation2 + $0x159] sm:$0xff]
        %v887 = vld [vmem:[#allocation2 + $0x161] sm:$0xff]
        %v888 = vld [vmem:[#allocation2 + $0x169] sm:$0xff]
        %v889 = vld [vmem:[#allocation2 + $0x171] sm:$0xff]
        %v890 = vld [vmem:[#allocation2 + $0x179] sm:$0xff]
        %v891 = vld [vmem:[#allocation2 + $0x181] sm:$0xff]
        %v892 = vld [vmem:[#allocation2 + $0x189] sm:$0xff]
        %v893 = vld [vmem:[#allocation2 + $0x191] sm:$0xff]
        %v894 = vld [vmem:[#allocation2 + $0x199] sm:$0xff]
        %v895 = vld [vmem:[#allocation2 + $0x1a1] sm:$0xff]
        %v896 = vld [vmem:[#allocation2 + $0x1a9] sm:$0xff]
        %v897 = vld [vmem:[#allocation2 + $0x1b1] sm:$0xff]
        %v898 = vld [vmem:[#allocation2 + $0x1b9] sm:$0xff]
        %v899 = vld [vmem:[#allocation2 + $0x1c1] sm:$0xff]
        %v900 = vld [vmem:[#allocation2 + $0x1c9] sm:$0xff]
        %v901 = vld [vmem:[#allocation2 + $0x1d1] sm:$0xff]
        %v902 = vld [vmem:[#allocation2 + $0x1d9] sm:$0xff]
        %v903 = vld [vmem:[#allocation2 + $0x1e1] sm:$0xff]
        %v904 = vld [vmem:[#allocation2 + $0x1e9] sm:$0xff]
        %v905 = vld [vmem:[#allocation2 + $0x1f1] sm:$0xff]
        %v906 = vld [vmem:[#allocation2 + $0x1f9] sm:$0xff]
        %v907 = vld [vmem:[#allocation2 + $0x201] sm:$0xff]
        %v908 = vld [vmem:[#allocation2 + $0x209] sm:$0xff]
        %v909 = vld [vmem:[#allocation2 + $0x211] sm:$0xff]
        %v910 = vld [vmem:[#allocation2 + $0x219] sm:$0xff]
        %v911 = vld [vmem:[#allocation2 + $0x221] sm:$0xff]
        %v912 = vld [vmem:[#allocation2 + $0x229] sm:$0xff]
        %v913 = vld [vmem:[#allocation2 + $0x231] sm:$0xff]
        %v914 = vld [vmem:[#allocation2 + $0x239] sm:$0xff]
        %v915 = vld [vmem:[#allocation2 + $0x241] sm:$0xff]
        %v916 = vld [vmem:[#allocation2 + $0x249] sm:$0xff]
        %v917 = vld [vmem:[#allocation2 + $0x251] sm:$0xff]
        %v918 = vld [vmem:[#allocation2 + $0x259] sm:$0xff]
        %v919 = vld [vmem:[#allocation2 + $0x261] sm:$0xff]
        %v920 = vld [vmem:[#allocation2 + $0x269] sm:$0xff]
        %v921 = vld [vmem:[#allocation2 + $0x271] sm:$0xff]
        %v922 = vld [vmem:[#allocation2 + $0x279] sm:$0xff]
        %v923 = vld [vmem:[#allocation2 + $0x281] sm:$0xff]
        %v924 = vld [vmem:[#allocation2 + $0x289] sm:$0xff]
        %v925 = vld [vmem:[#allocation2 + $0x291] sm:$0xff]
        %v926 = vld [vmem:[#allocation2 + $0x299] sm:$0xff]
        %v927 = vld [vmem:[#allocation2 + $0x2a1] sm:$0xff]
        %v928 = vld [vmem:[#allocation2 + $0x2a9] sm:$0xff]
        %v929 = vld [vmem:[#allocation2 + $0x2b1] sm:$0xff]
        %v930 = vld [vmem:[#allocation2 + $0x2b9] sm:$0xff]
        %v931 = vld [vmem:[#allocation2 + $0x2c1] sm:$0xff]
        %v932 = vld [vmem:[#allocation2 + $0x2c9] sm:$0x1]
        %v933 = vld [vmem:[#allocation2 + $0x2] sm:$0xff]
        %v934 = vld [vmem:[#allocation2 + $0xa] sm:$0xff]
        %v935 = vld [vmem:[#allocation2 + $0x12] sm:$0xff]
        %v936 = vld [vmem:[#allocation2 + $0x1a] sm:$0xff]
        %v937 = vld [vmem:[#allocation2 + $0x22] sm:$0xff]
        %v938 = vld [vmem:[#allocation2 + $0x2a] sm:$0xff]
        %v939 = vld [vmem:[#allocation2 + $0x32] sm:$0xff]
        %v940 = vld [vmem:[#allocation2 + $0x3a] sm:$0xff]
        %v941 = vld [vmem:[#allocation2 + $0x42] sm:$0xff]
        %v942 = vld [vmem:[#allocation2 + $0x4a] sm:$0xff]
        %v943 = vld [vmem:[#allocation2 + $0x52] sm:$0xff]
        %v944 = vld [vmem:[#allocation2 + $0x5a] sm:$0xff]
        %v945 = vld [vmem:[#allocation2 + $0x62] sm:$0xff]
        %v946 = vld [vmem:[#allocation2 + $0x6a] sm:$0xff]
        %v947 = vld [vmem:[#allocation2 + $0x72] sm:$0xff]
        %v948 = vld [vmem:[#allocation2 + $0x7a] sm:$0xff]
        %v949 = vld [vmem:[#allocation2 + $0x82] sm:$0xff]
        %v950 = vld [vmem:[#allocation2 + $0x8a] sm:$0xff]
        %v951 = vld [vmem:[#allocation2 + $0x92] sm:$0xff]
        %v952 = vld [vmem:[#allocation2 + $0x9a] sm:$0xff]
        %v953 = vld [vmem:[#allocation2 + $0xa2] sm:$0xff]
        %v954 = vld [vmem:[#allocation2 + $0xaa] sm:$0xff]
        %v955 = vld [vmem:[#allocation2 + $0xb2] sm:$0xff]
        %v956 = vld [vmem:[#allocation2 + $0xba] sm:$0xff]
        %v957 = vld [vmem:[#allocation2 + $0xc2] sm:$0xff]
        %v958 = vld [vmem:[#allocation2 + $0xca] sm:$0xff]
        %v959 = vld [vmem:[#allocation2 + $0xd2] sm:$0xff]
        %v960 = vld [vmem:[#allocation2 + $0xda] sm:$0xff]
        %v961 = vld [vmem:[#allocation2 + $0xe2] sm:$0xff]
        %v962 = vld [vmem:[#allocation2 + $0xea] sm:$0xff]
        %v963 = vld [vmem:[#allocation2 + $0xf2] sm:$0xff]
        %v964 = vld [vmem:[#allocation2 + $0xfa] sm:$0xff]
        %v965 = vld [vmem:[#allocation2 + $0x102] sm:$0xff]
        %v966 = vld [vmem:[#allocation2 + $0x10a] sm:$0xff]
        %v967 = vld [vmem:[#allocation2 + $0x112] sm:$0xff]
        %v968 = vld [vmem:[#allocation2 + $0x11a] sm:$0xff]
        %v969 = vld [vmem:[#allocation2 + $0x122] sm:$0xff]
        %v970 = vld [vmem:[#allocation2 + $0x12a] sm:$0xff]
        %v971 = vld [vmem:[#allocation2 + $0x132] sm:$0xff]
        %v972 = vld [vmem:[#allocation2 + $0x13a] sm:$0xff]
        %v973 = vld [vmem:[#allocation2 + $0x142] sm:$0xff]
        %v974 = vld [vmem:[#allocation2 + $0x14a] sm:$0xff]
        %v975 = vld [vmem:[#allocation2 + $0x152] sm:$0xff]
        %v976 = vld [vmem:[#allocation2 + $0x15a] sm:$0xff]
        %v977 = vld [vmem:[#allocation2 + $0x162] sm:$0xff]
        %v978 = vld [vmem:[#allocation2 + $0x16a] sm:$0xff]
        %v979 = vld [vmem:[#allocation2 + $0x172] sm:$0xff]
        %v980 = vld [vmem:[#allocation2 + $0x17a] sm:$0xff]
        %v981 = vld [vmem:[#allocation2 + $0x182] sm:$0xff]
        %v982 = vld [vmem:[#allocation2 + $0x18a] sm:$0xff]
        %v983 = vld [vmem:[#allocation2 + $0x192] sm:$0xff]
        %v984 = vld [vmem:[#allocation2 + $0x19a] sm:$0xff]
        %v985 = vld [vmem:[#allocation2 + $0x1a2] sm:$0xff]
        %v986 = vld [vmem:[#allocation2 + $0x1aa] sm:$0xff]
        %v987 = vld [vmem:[#allocation2 + $0x1b2] sm:$0xff]
        %v988 = vld [vmem:[#allocation2 + $0x1ba] sm:$0xff]
        %v989 = vld [vmem:[#allocation2 + $0x1c2] sm:$0xff]
        %v990 = vld [vmem:[#allocation2 + $0x1ca] sm:$0xff]
        %v991 = vld [vmem:[#allocation2 + $0x1d2] sm:$0xff]
        %v992 = vld [vmem:[#allocation2 + $0x1da] sm:$0xff]
        %v993 = vld [vmem:[#allocation2 + $0x1e2] sm:$0xff]
        %v994 = vld [vmem:[#allocation2 + $0x1ea] sm:$0xff]
        %v995 = vld [vmem:[#allocation2 + $0x1f2] sm:$0xff]
        %v996 = vld [vmem:[#allocation2 + $0x1fa] sm:$0xff]
        %v997 = vld [vmem:[#allocation2 + $0x202] sm:$0xff]
        %v998 = vld [vmem:[#allocation2 + $0x20a] sm:$0xff]
        %v999 = vld [vmem:[#allocation2 + $0x212] sm:$0xff]
        %v1000 = vld [vmem:[#allocation2 + $0x21a] sm:$0xff]
        %v1001 = vld [vmem:[#allocation2 + $0x222] sm:$0xff]
        %v1002 = vld [vmem:[#allocation2 + $0x22a] sm:$0xff]
        %v1003 = vld [vmem:[#allocation2 + $0x232] sm:$0xff]
        %v1004 = vld [vmem:[#allocation2 + $0x23a] sm:$0xff]
        %v1005 = vld [vmem:[#allocation2 + $0x242] sm:$0xff]
        %v1006 = vld [vmem:[#allocation2 + $0x24a] sm:$0xff]
        %v1007 = vld [vmem:[#allocation2 + $0x252] sm:$0xff]
        %v1008 = vld [vmem:[#allocation2 + $0x25a] sm:$0xff]
        %v1009 = vld [vmem:[#allocation2 + $0x262] sm:$0xff]
        %v1010 = vld [vmem:[#allocation2 + $0x26a] sm:$0xff]
        %v1011 = vld [vmem:[#allocation2 + $0x272] sm:$0xff]
        %v1012 = vld [vmem:[#allocation2 + $0x27a] sm:$0xff]
        %v1013 = vld [vmem:[#allocation2 + $0x282] sm:$0xff]
        %v1014 = vld [vmem:[#allocation2 + $0x28a] sm:$0xff]
        %v1015 = vld [vmem:[#allocation2 + $0x292] sm:$0xff]
        %v1016 = vld [vmem:[#allocation2 + $0x29a] sm:$0xff]
        %v1017 = vld [vmem:[#allocation2 + $0x2a2] sm:$0xff]
        %v1018 = vld [vmem:[#allocation2 + $0x2aa] sm:$0xff]
        %v1019 = vld [vmem:[#allocation2 + $0x2b2] sm:$0xff]
        %v1020 = vld [vmem:[#allocation2 + $0x2ba] sm:$0xff]
        %v1021 = vld [vmem:[#allocation2 + $0x2c2] sm:$0xff]
        %v1022 = vld [vmem:[#allocation2 + $0x2ca] sm:$0x1]
        %v1023 = vld [vmem:[#allocation2 + $0x17] sm:$0xff]
        %v1024 = vld [vmem:[#allocation2 + $0x1f] sm:$0xff]
        %v1025 = vld [vmem:[#allocation2 + $0x27] sm:$0xff]
        %v1026 = vld [vmem:[#allocation2 + $0x2f] sm:$0xff]
        %v1027 = vld [vmem:[#allocation2 + $0x37] sm:$0xff]
        %v1028 = vld [vmem:[#allocation2 + $0x3f] sm:$0xff]
        %v1029 = vld [vmem:[#allocation2 + $0x47] sm:$0xff]
        %v1030 = vld [vmem:[#allocation2 + $0x4f] sm:$0xff]
        %v1031 = vld [vmem:[#allocation2 + $0x57] sm:$0xff]
        %v1032 = vld [vmem:[#allocation2 + $0x5f] sm:$0xff]
        %v1033 = vld [vmem:[#allocation2 + $0x67] sm:$0xff]
        %v1034 = vld [vmem:[#allocation2 + $0x6f] sm:$0xff]
        %v1035 = vld [vmem:[#allocation2 + $0x77] sm:$0xff]
        %v1036 = vld [vmem:[#allocation2 + $0x7f] sm:$0xff]
        %v1037 = vld [vmem:[#allocation2 + $0x87] sm:$0xff]
        %v1038 = vld [vmem:[#allocation2 + $0x8f] sm:$0xff]
        %v1039 = vld [vmem:[#allocation2 + $0x97] sm:$0xff]
        %v1040 = vld [vmem:[#allocation2 + $0x9f] sm:$0xff]
        %v1041 = vld [vmem:[#allocation2 + $0xa7] sm:$0xff]
        %v1042 = vld [vmem:[#allocation2 + $0xaf] sm:$0xff]
        %v1043 = vld [vmem:[#allocation2 + $0xb7] sm:$0xff]
        %v1044 = vld [vmem:[#allocation2 + $0xbf] sm:$0xff]
        %v1045 = vld [vmem:[#allocation2 + $0xc7] sm:$0xff]
        %v1046 = vld [vmem:[#allocation2 + $0xcf] sm:$0xff]
        %v1047 = vld [vmem:[#allocation2 + $0xd7] sm:$0xff]
        %v1048 = vld [vmem:[#allocation2 + $0xdf] sm:$0xff]
        %v1049 = vld [vmem:[#allocation2 + $0xe7] sm:$0xff]
        %v1050 = vld [vmem:[#allocation2 + $0xef] sm:$0xff]
        %v1051 = vld [vmem:[#allocation2 + $0xf7] sm:$0xff]
        %v1052 = vld [vmem:[#allocation2 + $0xff] sm:$0xff]
        %v1053 = vld [vmem:[#allocation2 + $0x107] sm:$0xff]
        %v1054 = vld [vmem:[#allocation2 + $0x10f] sm:$0xff]
        %v1055 = vld [vmem:[#allocation2 + $0x117] sm:$0xff]
        %v1056 = vld [vmem:[#allocation2 + $0x11f] sm:$0xff]
        %v1057 = vld [vmem:[#allocation2 + $0x127] sm:$0xff]
        %v1058 = vld [vmem:[#allocation2 + $0x12f] sm:$0xff]
        %v1059 = vld [vmem:[#allocation2 + $0x137] sm:$0xff]
        %v1060 = vld [vmem:[#allocation2 + $0x13f] sm:$0xff]
        %v1061 = vld [vmem:[#allocation2 + $0x147] sm:$0xff]
        %v1062 = vld [vmem:[#allocation2 + $0x14f] sm:$0xff]
        %v1063 = vld [vmem:[#allocation2 + $0x157] sm:$0xff]
        %v1064 = vld [vmem:[#allocation2 + $0x15f] sm:$0xff]
        %v1065 = vld [vmem:[#allocation2 + $0x167] sm:$0xff]
        %v1066 = vld [vmem:[#allocation2 + $0x16f] sm:$0xff]
        %v1067 = vld [vmem:[#allocation2 + $0x177] sm:$0xff]
        %v1068 = vld [vmem:[#allocation2 + $0x17f] sm:$0xff]
        %v1069 = vld [vmem:[#allocation2 + $0x187] sm:$0xff]
        %v1070 = vld [vmem:[#allocation2 + $0x18f] sm:$0xff]
        %v1071 = vld [vmem:[#allocation2 + $0x197] sm:$0xff]
        %v1072 = vld [vmem:[#allocation2 + $0x19f] sm:$0xff]
        %v1073 = vld [vmem:[#allocation2 + $0x1a7] sm:$0xff]
        %v1074 = vld [vmem:[#allocation2 + $0x1af] sm:$0xff]
        %v1075 = vld [vmem:[#allocation2 + $0x1b7] sm:$0xff]
        %v1076 = vld [vmem:[#allocation2 + $0x1bf] sm:$0xff]
        %v1077 = vld [vmem:[#allocation2 + $0x1c7] sm:$0xff]
        %v1078 = vld [vmem:[#allocation2 + $0x1cf] sm:$0xff]
        %v1079 = vld [vmem:[#allocation2 + $0x1d7] sm:$0xff]
        %v1080 = vld [vmem:[#allocation2 + $0x1df] sm:$0xff]
        %v1081 = vld [vmem:[#allocation2 + $0x1e7] sm:$0xff]
        %v1082 = vld [vmem:[#allocation2 + $0x1ef] sm:$0xff]
        %v1083 = vld [vmem:[#allocation2 + $0x1f7] sm:$0xff]
        %v1084 = vld [vmem:[#allocation2 + $0x1ff] sm:$0xff]
        %v1085 = vld [vmem:[#allocation2 + $0x207] sm:$0xff]
        %v1086 = vld [vmem:[#allocation2 + $0x20f] sm:$0xff]
        %v1087 = vld [vmem:[#allocation2 + $0x217] sm:$0xff]
        %v1088 = vld [vmem:[#allocation2 + $0x21f] sm:$0xff]
        %v1089 = vld [vmem:[#allocation2 + $0x227] sm:$0xff]
        %v1090 = vld [vmem:[#allocation2 + $0x22f] sm:$0xff]
        %v1091 = vld [vmem:[#allocation2 + $0x237] sm:$0xff]
        %v1092 = vld [vmem:[#allocation2 + $0x23f] sm:$0xff]
        %v1093 = vld [vmem:[#allocation2 + $0x247] sm:$0xff]
        %v1094 = vld [vmem:[#allocation2 + $0x24f] sm:$0xff]
        %v1095 = vld [vmem:[#allocation2 + $0x257] sm:$0xff]
        %v1096 = vld [vmem:[#allocation2 + $0x25f] sm:$0xff]
        %v1097 = vld [vmem:[#allocation2 + $0x267] sm:$0xff]
        %v1098 = vld [vmem:[#allocation2 + $0x26f] sm:$0xff]
        %v1099 = vld [vmem:[#allocation2 + $0x277] sm:$0xff]
        %v1100 = vld [vmem:[#allocation2 + $0x27f] sm:$0xff]
        %v1101 = vld [vmem:[#allocation2 + $0x287] sm:$0xff]
        %v1102 = vld [vmem:[#allocation2 + $0x28f] sm:$0xff]
        %v1103 = vld [vmem:[#allocation2 + $0x297] sm:$0xff]
        %v1104 = vld [vmem:[#allocation2 + $0x29f] sm:$0xff]
        %v1105 = vld [vmem:[#allocation2 + $0x2a7] sm:$0xff]
        %v1106 = vld [vmem:[#allocation2 + $0x2af] sm:$0xff]
        %v1107 = vld [vmem:[#allocation2 + $0x2b7] sm:$0xff]
        %v1108 = vld [vmem:[#allocation2 + $0x2bf] sm:$0xff]
        %v1109 = vld [vmem:[#allocation2 + $0x2c7] sm:$0xff]
        %v1110 = vld [vmem:[#allocation2 + $0x2cf] sm:$0xff]
        %v1111 = vld [vmem:[#allocation2 + $0x2d7] sm:$0xff]
        %v1112 = vld [vmem:[#allocation2 + $0x2df] sm:$0x1]
        %v1113 = vld [vmem:[#allocation2 + $0x2c8] sm:$0xff]
        %v1114 = vld [vmem:[#allocation2 + $0x2d0] sm:$0xff]
        %v1115 = vld [vmem:[#allocation2 + $0x2d8] sm:$0xff]
        %v1116 = vld [vmem:[#allocation2 + $0x2e0] sm:$0x1]
        %v1117 = vld [vmem:[#allocation2 + $0x2c9] sm:$0xff]
        %v1118 = vld [vmem:[#allocation2 + $0x2d1] sm:$0xff]
        %v1119 = vld [vmem:[#allocation2 + $0x2d9] sm:$0xff]
        %v1120 = vld [vmem:[#allocation2 + $0x2e1] sm:$0x1]
        %v1121 = vld [vmem:[#allocation2 + $0x2e] sm:$0xff]
        %v1122 = vld [vmem:[#allocation2 + $0x36] sm:$0xff]
        %v1123 = vld [vmem:[#allocation2 + $0x3e] sm:$0xff]
        %v1124 = vld [vmem:[#allocation2 + $0x46] sm:$0xff]
        %v1125 = vld [vmem:[#allocation2 + $0x4e] sm:$0xff]
        %v1126 = vld [vmem:[#allocation2 + $0x56] sm:$0xff]
        %v1127 = vld [vmem:[#allocation2 + $0x5e] sm:$0xff]
        %v1128 = vld [vmem:[#allocation2 + $0x66] sm:$0xff]
        %v1129 = vld [vmem:[#allocation2 + $0x6e] sm:$0xff]
        %v1130 = vld [vmem:[#allocation2 + $0x76] sm:$0xff]
        %v1131 = vld [vmem:[#allocation2 + $0x7e] sm:$0xff]
        %v1132 = vld [vmem:[#allocation2 + $0x86] sm:$0xff]
        %v1133 = vld [vmem:[#allocation2 + $0x8e] sm:$0xff]
        %v1134 = vld [vmem:[#allocation2 + $0x96] sm:$0xff]
        %v1135 = vld [vmem:[#allocation2 + $0x9e] sm:$0xff]
        %v1136 = vld [vmem:[#allocation2 + $0xa6] sm:$0xff]
        %v1137 = vld [vmem:[#allocation2 + $0xae] sm:$0xff]
        %v1138 = vld [vmem:[#allocation2 + $0xb6] sm:$0xff]
        %v1139 = vld [vmem:[#allocation2 + $0xbe] sm:$0xff]
        %v1140 = vld [vmem:[#allocation2 + $0xc6] sm:$0xff]
        %v1141 = vld [vmem:[#allocation2 + $0xce] sm:$0xff]
        %v1142 = vld [vmem:[#allocation2 + $0xd6] sm:$0xff]
        %v1143 = vld [vmem:[#allocation2 + $0xde] sm:$0xff]
        %v1144 = vld [vmem:[#allocation2 + $0xe6] sm:$0xff]
        %v1145 = vld [vmem:[#allocation2 + $0xee] sm:$0xff]
        %v1146 = vld [vmem:[#allocation2 + $0xf6] sm:$0xff]
        %v1147 = vld [vmem:[#allocation2 + $0xfe] sm:$0xff]
        %v1148 = vld [vmem:[#allocation2 + $0x106] sm:$0xff]
        %v1149 = vld [vmem:[#allocation2 + $0x10e] sm:$0xff]
        %v1150 = vld [vmem:[#allocation2 + $0x116] sm:$0xff]
        %v1151 = vld [vmem:[#allocation2 + $0x11e] sm:$0xff]
        %v1152 = vld [vmem:[#allocation2 + $0x126] sm:$0xff]
        %v1153 = vld [vmem:[#allocation2 + $0x12e] sm:$0xff]
        %v1154 = vld [vmem:[#allocation2 + $0x136] sm:$0xff]
        %v1155 = vld [vmem:[#allocation2 + $0x13e] sm:$0xff]
        %v1156 = vld [vmem:[#allocation2 + $0x146] sm:$0xff]
        %v1157 = vld [vmem:[#allocation2 + $0x14e] sm:$0xff]
        %v1158 = vld [vmem:[#allocation2 + $0x156] sm:$0xff]
        %v1159 = vld [vmem:[#allocation2 + $0x15e] sm:$0xff]
        %v1160 = vld [vmem:[#allocation2 + $0x166] sm:$0xff]
        %v1161 = vld [vmem:[#allocation2 + $0x16e] sm:$0xff]
        %v1162 = vld [vmem:[#allocation2 + $0x176] sm:$0xff]
        %v1163 = vld [vmem:[#allocation2 + $0x17e] sm:$0xff]
        %v1164 = vld [vmem:[#allocation2 + $0x186] sm:$0xff]
        %v1165 = vld [vmem:[#allocation2 + $0x18e] sm:$0xff]
        %v1166 = vld [vmem:[#allocation2 + $0x196] sm:$0xff]
        %v1167 = vld [vmem:[#allocation2 + $0x19e] sm:$0xff]
        %v1168 = vld [vmem:[#allocation2 + $0x1a6] sm:$0xff]
        %v1169 = vld [vmem:[#allocation2 + $0x1ae] sm:$0xff]
        %v1170 = vld [vmem:[#allocation2 + $0x1b6] sm:$0xff]
        %v1171 = vld [vmem:[#allocation2 + $0x1be] sm:$0xff]
        %v1172 = vld [vmem:[#allocation2 + $0x1c6] sm:$0xff]
        %v1173 = vld [vmem:[#allocation2 + $0x1ce] sm:$0xff]
        %v1174 = vld [vmem:[#allocation2 + $0x1d6] sm:$0xff]
        %v1175 = vld [vmem:[#allocation2 + $0x1de] sm:$0xff]
        %v1176 = vld [vmem:[#allocation2 + $0x1e6] sm:$0xff]
        %v1177 = vld [vmem:[#allocation2 + $0x1ee] sm:$0xff]
        %v1178 = vld [vmem:[#allocation2 + $0x1f6] sm:$0xff]
        %v1179 = vld [vmem:[#allocation2 + $0x1fe] sm:$0xff]
        %v1180 = vld [vmem:[#allocation2 + $0x206] sm:$0xff]
        %v1181 = vld [vmem:[#allocation2 + $0x20e] sm:$0xff]
        %v1182 = vld [vmem:[#allocation2 + $0x216] sm:$0xff]
        %v1183 = vld [vmem:[#allocation2 + $0x21e] sm:$0xff]
        %v1184 = vld [vmem:[#allocation2 + $0x226] sm:$0xff]
        %v1185 = vld [vmem:[#allocation2 + $0x22e] sm:$0xff]
        %v1186 = vld [vmem:[#allocation2 + $0x236] sm:$0xff]
        %v1187 = vld [vmem:[#allocation2 + $0x23e] sm:$0xff]
        %v1188 = vld [vmem:[#allocation2 + $0x246] sm:$0xff]
        %v1189 = vld [vmem:[#allocation2 + $0x24e] sm:$0xff]
        %v1190 = vld [vmem:[#allocation2 + $0x256] sm:$0xff]
        %v1191 = vld [vmem:[#allocation2 + $0x25e] sm:$0xff]
        %v1192 = vld [vmem:[#allocation2 + $0x266] sm:$0xff]
        %v1193 = vld [vmem:[#allocation2 + $0x26e] sm:$0xff]
        %v1194 = vld [vmem:[#allocation2 + $0x276] sm:$0xff]
        %v1195 = vld [vmem:[#allocation2 + $0x27e] sm:$0xff]
        %v1196 = vld [vmem:[#allocation2 + $0x286] sm:$0xff]
        %v1197 = vld [vmem:[#allocation2 + $0x28e] sm:$0xff]
        %v1198 = vld [vmem:[#allocation2 + $0x296] sm:$0xff]
        %v1199 = vld [vmem:[#allocation2 + $0x29e] sm:$0xff]
        %v1200 = vld [vmem:[#allocation2 + $0x2a6] sm:$0xff]
        %v1201 = vld [vmem:[#allocation2 + $0x2ae] sm:$0xff]
        %v1202 = vld [vmem:[#allocation2 + $0x2b6] sm:$0xff]
        %v1203 = vld [vmem:[#allocation2 + $0x2be] sm:$0xff]
        %v1204 = vld [vmem:[#allocation2 + $0x2c6] sm:$0xff]
        %v1205 = vld [vmem:[#allocation2 + $0x2ce] sm:$0xff]
        %v1206 = vld [vmem:[#allocation2 + $0x2d6] sm:$0xff]
        %v1207 = vld [vmem:[#allocation2 + $0x2de] sm:$0xff]
        %v1208 = vld [vmem:[#allocation2 + $0x2e6] sm:$0xff]
        %v1209 = vld [vmem:[#allocation2 + $0x2ee] sm:$0xff]
        %v1210 = vld [vmem:[#allocation2 + $0x2f6] sm:$0x1]
        %v1211 = vld [vmem:[#allocation2 + $0x2df] sm:$0xff]
        %v1212 = vld [vmem:[#allocation2 + $0x2e7] sm:$0xff]
        %v1213 = vld [vmem:[#allocation2 + $0x2ef] sm:$0xff]
        %v1214 = vld [vmem:[#allocation2 + $0x2f7] sm:$0x1]
        %v1215 = vld [vmem:[#allocation2 + $0x2e0] sm:$0xff]
        %v1216 = vld [vmem:[#allocation2 + $0x2e8] sm:$0xff]
        %v1217 = vld [vmem:[#allocation2 + $0x2f0] sm:$0xff]
        %v1218 = vld [vmem:[#allocation2 + $0x2f8] sm:$0x1]
        %1309 = vrot.lane.b32.xlu0 %v843, 3
        %v1310 = vpop.permute.xlu0 %1309
        %1311 = vrot.lane.b32.xlu0 %v844, 3
        %v1312 = vpop.permute.xlu0 %1311
        %1313 = vrot.lane.b32.xlu0 %v845, 3
        %v1314 = vpop.permute.xlu0 %1313
        %1315 = vrot.lane.b32.xlu0 %v846, 3
        %v1316 = vpop.permute.xlu0 %1315
        %1317 = vrot.lane.b32.xlu0 %v847, 3
        %v1318 = vpop.permute.xlu0 %1317
        %1319 = vrot.lane.b32.xlu0 %v848, 3
        %v1320 = vpop.permute.xlu0 %1319
        %1321 = vrot.lane.b32.xlu0 %v849, 3
        %v1322 = vpop.permute.xlu0 %1321
        %1323 = vrot.lane.b32.xlu0 %v850, 3
        %v1324 = vpop.permute.xlu0 %1323
        %1325 = vrot.lane.b32.xlu0 %v851, 3
        %v1326 = vpop.permute.xlu0 %1325
        %1327 = vrot.lane.b32.xlu0 %v852, 3
        %v1328 = vpop.permute.xlu0 %1327
        %1329 = vrot.lane.b32.xlu0 %v853, 3
        %v1330 = vpop.permute.xlu0 %1329
        %1331 = vrot.lane.b32.xlu0 %v854, 3
        %v1332 = vpop.permute.xlu0 %1331
        %1333 = vrot.lane.b32.xlu0 %v855, 3
        %v1334 = vpop.permute.xlu0 %1333
        %1335 = vrot.lane.b32.xlu0 %v856, 3
        %v1336 = vpop.permute.xlu0 %1335
        %1337 = vrot.lane.b32.xlu0 %v857, 3
        %v1338 = vpop.permute.xlu0 %1337
        %1339 = vrot.lane.b32.xlu0 %v858, 3
        %v1340 = vpop.permute.xlu0 %1339
        %1341 = vrot.lane.b32.xlu0 %v859, 3
        %v1342 = vpop.permute.xlu0 %1341
        %1343 = vrot.lane.b32.xlu0 %v860, 3
        %v1344 = vpop.permute.xlu0 %1343
        %1345 = vrot.lane.b32.xlu0 %v861, 3
        %v1346 = vpop.permute.xlu0 %1345
        %1347 = vrot.lane.b32.xlu0 %v862, 3
        %v1348 = vpop.permute.xlu0 %1347
        %1349 = vrot.lane.b32.xlu0 %v863, 3
        %v1350 = vpop.permute.xlu0 %1349
        %1351 = vrot.lane.b32.xlu0 %v864, 3
        %v1352 = vpop.permute.xlu0 %1351
        %1353 = vrot.lane.b32.xlu0 %v865, 3
        %v1354 = vpop.permute.xlu0 %1353
        %1355 = vrot.lane.b32.xlu0 %v866, 3
        %v1356 = vpop.permute.xlu0 %1355
        %1357 = vrot.lane.b32.xlu0 %v867, 3
        %v1358 = vpop.permute.xlu0 %1357
        %1359 = vrot.lane.b32.xlu0 %v868, 3
        %v1360 = vpop.permute.xlu0 %1359
        %1361 = vrot.lane.b32.xlu0 %v869, 3
        %v1362 = vpop.permute.xlu0 %1361
        %1363 = vrot.lane.b32.xlu0 %v870, 3
        %v1364 = vpop.permute.xlu0 %1363
        %1365 = vrot.lane.b32.xlu0 %v871, 3
        %v1366 = vpop.permute.xlu0 %1365
        %1367 = vrot.lane.b32.xlu0 %v872, 3
        %v1368 = vpop.permute.xlu0 %1367
        %1369 = vrot.lane.b32.xlu0 %v873, 3
        %v1370 = vpop.permute.xlu0 %1369
        %1371 = vrot.lane.b32.xlu0 %v874, 3
        %v1372 = vpop.permute.xlu0 %1371
        %1373 = vrot.lane.b32.xlu0 %v875, 3
        %v1374 = vpop.permute.xlu0 %1373
        %1375 = vrot.lane.b32.xlu0 %v876, 3
        %v1376 = vpop.permute.xlu0 %1375
        %1377 = vrot.lane.b32.xlu0 %v877, 3
        %v1378 = vpop.permute.xlu0 %1377
        %1379 = vrot.lane.b32.xlu0 %v878, 3
        %v1380 = vpop.permute.xlu0 %1379
        %1381 = vrot.lane.b32.xlu0 %v879, 3
        %v1382 = vpop.permute.xlu0 %1381
        %1383 = vrot.lane.b32.xlu0 %v880, 3
        %v1384 = vpop.permute.xlu0 %1383
        %1385 = vrot.lane.b32.xlu0 %v881, 3
        %v1386 = vpop.permute.xlu0 %1385
        %1387 = vrot.lane.b32.xlu0 %v882, 3
        %v1388 = vpop.permute.xlu0 %1387
        %1389 = vrot.lane.b32.xlu0 %v883, 3
        %v1390 = vpop.permute.xlu0 %1389
        %1391 = vrot.lane.b32.xlu0 %v884, 3
        %v1392 = vpop.permute.xlu0 %1391
        %1393 = vrot.lane.b32.xlu0 %v885, 3
        %v1394 = vpop.permute.xlu0 %1393
        %1395 = vrot.lane.b32.xlu0 %v886, 3
        %v1396 = vpop.permute.xlu0 %1395
        %1397 = vrot.lane.b32.xlu0 %v887, 3
        %v1398 = vpop.permute.xlu0 %1397
        %1399 = vrot.lane.b32.xlu0 %v888, 3
        %v1400 = vpop.permute.xlu0 %1399
        %1401 = vrot.lane.b32.xlu0 %v889, 3
        %v1402 = vpop.permute.xlu0 %1401
        %1403 = vrot.lane.b32.xlu0 %v890, 3
        %v1404 = vpop.permute.xlu0 %1403
        %1405 = vrot.lane.b32.xlu0 %v891, 3
        %v1406 = vpop.permute.xlu0 %1405
        %1407 = vrot.lane.b32.xlu0 %v892, 3
        %v1408 = vpop.permute.xlu0 %1407
        %1409 = vrot.lane.b32.xlu0 %v893, 3
        %v1410 = vpop.permute.xlu0 %1409
        %1411 = vrot.lane.b32.xlu0 %v894, 3
        %v1412 = vpop.permute.xlu0 %1411
        %1413 = vrot.lane.b32.xlu0 %v895, 3
        %v1414 = vpop.permute.xlu0 %1413
        %1415 = vrot.lane.b32.xlu0 %v896, 3
        %v1416 = vpop.permute.xlu0 %1415
        %1417 = vrot.lane.b32.xlu0 %v897, 3
        %v1418 = vpop.permute.xlu0 %1417
        %1419 = vrot.lane.b32.xlu0 %v898, 3
        %v1420 = vpop.permute.xlu0 %1419
        %1421 = vrot.lane.b32.xlu0 %v899, 3
        %v1422 = vpop.permute.xlu0 %1421
        %1423 = vrot.lane.b32.xlu0 %v900, 3
        %v1424 = vpop.permute.xlu0 %1423
        %1425 = vrot.lane.b32.xlu0 %v901, 3
        %v1426 = vpop.permute.xlu0 %1425
        %1427 = vrot.lane.b32.xlu0 %v902, 3
        %v1428 = vpop.permute.xlu0 %1427
        %1429 = vrot.lane.b32.xlu0 %v903, 3
        %v1430 = vpop.permute.xlu0 %1429
        %1431 = vrot.lane.b32.xlu0 %v904, 3
        %v1432 = vpop.permute.xlu0 %1431
        %1433 = vrot.lane.b32.xlu0 %v905, 3
        %v1434 = vpop.permute.xlu0 %1433
        %1435 = vrot.lane.b32.xlu0 %v906, 3
        %v1436 = vpop.permute.xlu0 %1435
        %1437 = vrot.lane.b32.xlu0 %v907, 3
        %v1438 = vpop.permute.xlu0 %1437
        %1439 = vrot.lane.b32.xlu0 %v908, 3
        %v1440 = vpop.permute.xlu0 %1439
        %1441 = vrot.lane.b32.xlu0 %v909, 3
        %v1442 = vpop.permute.xlu0 %1441
        %1443 = vrot.lane.b32.xlu0 %v910, 3
        %v1444 = vpop.permute.xlu0 %1443
        %1445 = vrot.lane.b32.xlu0 %v911, 3
        %v1446 = vpop.permute.xlu0 %1445
        %1447 = vrot.lane.b32.xlu0 %v912, 3
        %v1448 = vpop.permute.xlu0 %1447
        %1449 = vrot.lane.b32.xlu0 %v913, 3
        %v1450 = vpop.permute.xlu0 %1449
        %1451 = vrot.lane.b32.xlu0 %v914, 3
        %v1452 = vpop.permute.xlu0 %1451
        %1453 = vrot.lane.b32.xlu0 %v915, 3
        %v1454 = vpop.permute.xlu0 %1453
        %1455 = vrot.lane.b32.xlu0 %v916, 3
        %v1456 = vpop.permute.xlu0 %1455
        %1457 = vrot.lane.b32.xlu0 %v917, 3
        %v1458 = vpop.permute.xlu0 %1457
        %1459 = vrot.lane.b32.xlu0 %v918, 3
        %v1460 = vpop.permute.xlu0 %1459
        %1461 = vrot.lane.b32.xlu0 %v919, 3
        %v1462 = vpop.permute.xlu0 %1461
        %1463 = vrot.lane.b32.xlu0 %v920, 3
        %v1464 = vpop.permute.xlu0 %1463
        %1465 = vrot.lane.b32.xlu0 %v921, 3
        %v1466 = vpop.permute.xlu0 %1465
        %1467 = vrot.lane.b32.xlu0 %v922, 3
        %v1468 = vpop.permute.xlu0 %1467
        %1469 = vrot.lane.b32.xlu0 %v923, 3
        %v1470 = vpop.permute.xlu0 %1469
        %1471 = vrot.lane.b32.xlu0 %v924, 3
        %v1472 = vpop.permute.xlu0 %1471
        %1473 = vrot.lane.b32.xlu0 %v925, 3
        %v1474 = vpop.permute.xlu0 %1473
        %1475 = vrot.lane.b32.xlu0 %v926, 3
        %v1476 = vpop.permute.xlu0 %1475
        %1477 = vrot.lane.b32.xlu0 %v927, 3
        %v1478 = vpop.permute.xlu0 %1477
        %1479 = vrot.lane.b32.xlu0 %v928, 3
        %v1480 = vpop.permute.xlu0 %1479
        %1481 = vrot.lane.b32.xlu0 %v929, 3
        %v1482 = vpop.permute.xlu0 %1481
        %1483 = vrot.lane.b32.xlu0 %v930, 3
        %v1484 = vpop.permute.xlu0 %1483
        %1485 = vrot.lane.b32.xlu0 %v931, 3
        %v1486 = vpop.permute.xlu0 %1485
        %1487 = vrot.lane.b32.xlu0 %v932, 3
        %v1488 = vpop.permute.xlu0 %1487
        %1669 = vrot.lane.b32.xlu0 %v933, 6
        %v1670 = vpop.permute.xlu0 %1669
        %1671 = vrot.lane.b32.xlu0 %v934, 6
        %v1672 = vpop.permute.xlu0 %1671
        %1673 = vrot.lane.b32.xlu0 %v935, 6
        %v1674 = vpop.permute.xlu0 %1673
        %1675 = vrot.lane.b32.xlu0 %v936, 6
        %v1676 = vpop.permute.xlu0 %1675
        %1677 = vrot.lane.b32.xlu0 %v937, 6
        %v1678 = vpop.permute.xlu0 %1677
        %1679 = vrot.lane.b32.xlu0 %v938, 6
        %v1680 = vpop.permute.xlu0 %1679
        %1681 = vrot.lane.b32.xlu0 %v939, 6
        %v1682 = vpop.permute.xlu0 %1681
        %1683 = vrot.lane.b32.xlu0 %v940, 6
        %v1684 = vpop.permute.xlu0 %1683
        %1685 = vrot.lane.b32.xlu0 %v941, 6
        %v1686 = vpop.permute.xlu0 %1685
        %1687 = vrot.lane.b32.xlu0 %v942, 6
        %v1688 = vpop.permute.xlu0 %1687
        %1689 = vrot.lane.b32.xlu0 %v943, 6
        %v1690 = vpop.permute.xlu0 %1689
        %1691 = vrot.lane.b32.xlu0 %v944, 6
        %v1692 = vpop.permute.xlu0 %1691
        %1693 = vrot.lane.b32.xlu0 %v945, 6
        %v1694 = vpop.permute.xlu0 %1693
        %1695 = vrot.lane.b32.xlu0 %v946, 6
        %v1696 = vpop.permute.xlu0 %1695
        %1697 = vrot.lane.b32.xlu0 %v947, 6
        %v1698 = vpop.permute.xlu0 %1697
        %1699 = vrot.lane.b32.xlu0 %v948, 6
        %v1700 = vpop.permute.xlu0 %1699
        %1701 = vrot.lane.b32.xlu0 %v949, 6
        %v1702 = vpop.permute.xlu0 %1701
        %1703 = vrot.lane.b32.xlu0 %v950, 6
        %v1704 = vpop.permute.xlu0 %1703
        %1705 = vrot.lane.b32.xlu0 %v951, 6
        %v1706 = vpop.permute.xlu0 %1705
        %1707 = vrot.lane.b32.xlu0 %v952, 6
        %v1708 = vpop.permute.xlu0 %1707
        %1709 = vrot.lane.b32.xlu0 %v953, 6
        %v1710 = vpop.permute.xlu0 %1709
        %1711 = vrot.lane.b32.xlu0 %v954, 6
        %v1712 = vpop.permute.xlu0 %1711
        %1713 = vrot.lane.b32.xlu0 %v955, 6
        %v1714 = vpop.permute.xlu0 %1713
        %1715 = vrot.lane.b32.xlu0 %v956, 6
        %v1716 = vpop.permute.xlu0 %1715
        %1717 = vrot.lane.b32.xlu0 %v957, 6
        %v1718 = vpop.permute.xlu0 %1717
        %1719 = vrot.lane.b32.xlu0 %v958, 6
        %v1720 = vpop.permute.xlu0 %1719
        %1721 = vrot.lane.b32.xlu0 %v959, 6
        %v1722 = vpop.permute.xlu0 %1721
        %1723 = vrot.lane.b32.xlu0 %v960, 6
        %v1724 = vpop.permute.xlu0 %1723
        %1725 = vrot.lane.b32.xlu0 %v961, 6
        %v1726 = vpop.permute.xlu0 %1725
        %1727 = vrot.lane.b32.xlu0 %v962, 6
        %v1728 = vpop.permute.xlu0 %1727
        %1729 = vrot.lane.b32.xlu0 %v963, 6
        %v1730 = vpop.permute.xlu0 %1729
        %1731 = vrot.lane.b32.xlu0 %v964, 6
        %v1732 = vpop.permute.xlu0 %1731
        %1733 = vrot.lane.b32.xlu0 %v965, 6
        %v1734 = vpop.permute.xlu0 %1733
        %1735 = vrot.lane.b32.xlu0 %v966, 6
        %v1736 = vpop.permute.xlu0 %1735
        %1737 = vrot.lane.b32.xlu0 %v967, 6
        %v1738 = vpop.permute.xlu0 %1737
        %1739 = vrot.lane.b32.xlu0 %v968, 6
        %v1740 = vpop.permute.xlu0 %1739
        %1741 = vrot.lane.b32.xlu0 %v969, 6
        %v1742 = vpop.permute.xlu0 %1741
        %1743 = vrot.lane.b32.xlu0 %v970, 6
        %v1744 = vpop.permute.xlu0 %1743
        %1745 = vrot.lane.b32.xlu0 %v971, 6
        %v1746 = vpop.permute.xlu0 %1745
        %1747 = vrot.lane.b32.xlu0 %v972, 6
        %v1748 = vpop.permute.xlu0 %1747
        %1749 = vrot.lane.b32.xlu0 %v973, 6
        %v1750 = vpop.permute.xlu0 %1749
        %1751 = vrot.lane.b32.xlu0 %v974, 6
        %v1752 = vpop.permute.xlu0 %1751
        %1753 = vrot.lane.b32.xlu0 %v975, 6
        %v1754 = vpop.permute.xlu0 %1753
        %1755 = vrot.lane.b32.xlu0 %v976, 6
        %v1756 = vpop.permute.xlu0 %1755
        %1757 = vrot.lane.b32.xlu0 %v977, 6
        %v1758 = vpop.permute.xlu0 %1757
        %1759 = vrot.lane.b32.xlu0 %v978, 6
        %v1760 = vpop.permute.xlu0 %1759
        %1761 = vrot.lane.b32.xlu0 %v979, 6
        %v1762 = vpop.permute.xlu0 %1761
        %1763 = vrot.lane.b32.xlu0 %v980, 6
        %v1764 = vpop.permute.xlu0 %1763
        %1765 = vrot.lane.b32.xlu0 %v981, 6
        %v1766 = vpop.permute.xlu0 %1765
        %1767 = vrot.lane.b32.xlu0 %v982, 6
        %v1768 = vpop.permute.xlu0 %1767
        %1769 = vrot.lane.b32.xlu0 %v983, 6
        %v1770 = vpop.permute.xlu0 %1769
        %1771 = vrot.lane.b32.xlu0 %v984, 6
        %v1772 = vpop.permute.xlu0 %1771
        %1773 = vrot.lane.b32.xlu0 %v985, 6
        %v1774 = vpop.permute.xlu0 %1773
        %1775 = vrot.lane.b32.xlu0 %v986, 6
        %v1776 = vpop.permute.xlu0 %1775
        %1777 = vrot.lane.b32.xlu0 %v987, 6
        %v1778 = vpop.permute.xlu0 %1777
        %1779 = vrot.lane.b32.xlu0 %v988, 6
        %v1780 = vpop.permute.xlu0 %1779
        %1781 = vrot.lane.b32.xlu0 %v989, 6
        %v1782 = vpop.permute.xlu0 %1781
        %1783 = vrot.lane.b32.xlu0 %v990, 6
        %v1784 = vpop.permute.xlu0 %1783
        %1785 = vrot.lane.b32.xlu0 %v991, 6
        %v1786 = vpop.permute.xlu0 %1785
        %1787 = vrot.lane.b32.xlu0 %v992, 6
        %v1788 = vpop.permute.xlu0 %1787
        %1789 = vrot.lane.b32.xlu0 %v993, 6
        %v1790 = vpop.permute.xlu0 %1789
        %1791 = vrot.lane.b32.xlu0 %v994, 6
        %v1792 = vpop.permute.xlu0 %1791
        %1793 = vrot.lane.b32.xlu0 %v995, 6
        %v1794 = vpop.permute.xlu0 %1793
        %1795 = vrot.lane.b32.xlu0 %v996, 6
        %v1796 = vpop.permute.xlu0 %1795
        %1797 = vrot.lane.b32.xlu0 %v997, 6
        %v1798 = vpop.permute.xlu0 %1797
        %1799 = vrot.lane.b32.xlu0 %v998, 6
        %v1800 = vpop.permute.xlu0 %1799
        %1801 = vrot.lane.b32.xlu0 %v999, 6
        %v1802 = vpop.permute.xlu0 %1801
        %1803 = vrot.lane.b32.xlu0 %v1000, 6
        %v1804 = vpop.permute.xlu0 %1803
        %1805 = vrot.lane.b32.xlu0 %v1001, 6
        %v1806 = vpop.permute.xlu0 %1805
        %1807 = vrot.lane.b32.xlu0 %v1002, 6
        %v1808 = vpop.permute.xlu0 %1807
        %1809 = vrot.lane.b32.xlu0 %v1003, 6
        %v1810 = vpop.permute.xlu0 %1809
        %1811 = vrot.lane.b32.xlu0 %v1004, 6
        %v1812 = vpop.permute.xlu0 %1811
        %1813 = vrot.lane.b32.xlu0 %v1005, 6
        %v1814 = vpop.permute.xlu0 %1813
        %1815 = vrot.lane.b32.xlu0 %v1006, 6
        %v1816 = vpop.permute.xlu0 %1815
        %1817 = vrot.lane.b32.xlu0 %v1007, 6
        %v1818 = vpop.permute.xlu0 %1817
        %1819 = vrot.lane.b32.xlu0 %v1008, 6
        %v1820 = vpop.permute.xlu0 %1819
        %1821 = vrot.lane.b32.xlu0 %v1009, 6
        %v1822 = vpop.permute.xlu0 %1821
        %1823 = vrot.lane.b32.xlu0 %v1010, 6
        %v1824 = vpop.permute.xlu0 %1823
        %1825 = vrot.lane.b32.xlu0 %v1011, 6
        %v1826 = vpop.permute.xlu0 %1825
        %1827 = vrot.lane.b32.xlu0 %v1012, 6
        %v1828 = vpop.permute.xlu0 %1827
        %1829 = vrot.lane.b32.xlu0 %v1013, 6
        %v1830 = vpop.permute.xlu0 %1829
        %1831 = vrot.lane.b32.xlu0 %v1014, 6
        %v1832 = vpop.permute.xlu0 %1831
        %1833 = vrot.lane.b32.xlu0 %v1015, 6
        %v1834 = vpop.permute.xlu0 %1833
        %1835 = vrot.lane.b32.xlu0 %v1016, 6
        %v1836 = vpop.permute.xlu0 %1835
        %1837 = vrot.lane.b32.xlu0 %v1017, 6
        %v1838 = vpop.permute.xlu0 %1837
        %1839 = vrot.lane.b32.xlu0 %v1018, 6
        %v1840 = vpop.permute.xlu0 %1839
        %1841 = vrot.lane.b32.xlu0 %v1019, 6
        %v1842 = vpop.permute.xlu0 %1841
        %1843 = vrot.lane.b32.xlu0 %v1020, 6
        %v1844 = vpop.permute.xlu0 %1843
        %1845 = vrot.lane.b32.xlu0 %v1021, 6
        %v1846 = vpop.permute.xlu0 %1845
        %1847 = vrot.lane.b32.xlu0 %v1022, 6
        %v1848 = vpop.permute.xlu0 %1847
        %2029 = vrot.lane.b32.xlu0 %v1023, 9
        %v2030 = vpop.permute.xlu0 %2029
        %2031 = vrot.lane.b32.xlu0 %v1024, 9
        %v2032 = vpop.permute.xlu0 %2031
        %2033 = vrot.lane.b32.xlu0 %v1025, 9
        %v2034 = vpop.permute.xlu0 %2033
        %2035 = vrot.lane.b32.xlu0 %v1026, 9
        %v2036 = vpop.permute.xlu0 %2035
        %2037 = vrot.lane.b32.xlu0 %v1027, 9
        %v2038 = vpop.permute.xlu0 %2037
        %2039 = vrot.lane.b32.xlu0 %v1028, 9
        %v2040 = vpop.permute.xlu0 %2039
        %2041 = vrot.lane.b32.xlu0 %v1029, 9
        %v2042 = vpop.permute.xlu0 %2041
        %2043 = vrot.lane.b32.xlu0 %v1030, 9
        %v2044 = vpop.permute.xlu0 %2043
        %2045 = vrot.lane.b32.xlu0 %v1031, 9
        %v2046 = vpop.permute.xlu0 %2045
        %2047 = vrot.lane.b32.xlu0 %v1032, 9
        %v2048 = vpop.permute.xlu0 %2047
        %2049 = vrot.lane.b32.xlu0 %v1033, 9
        %v2050 = vpop.permute.xlu0 %2049
        %2051 = vrot.lane.b32.xlu0 %v1034, 9
        %v2052 = vpop.permute.xlu0 %2051
        %2053 = vrot.lane.b32.xlu0 %v1035, 9
        %v2054 = vpop.permute.xlu0 %2053
        %2055 = vrot.lane.b32.xlu0 %v1036, 9
        %v2056 = vpop.permute.xlu0 %2055
        %2057 = vrot.lane.b32.xlu0 %v1037, 9
        %v2058 = vpop.permute.xlu0 %2057
        %2059 = vrot.lane.b32.xlu0 %v1038, 9
        %v2060 = vpop.permute.xlu0 %2059
        %2061 = vrot.lane.b32.xlu0 %v1039, 9
        %v2062 = vpop.permute.xlu0 %2061
        %2063 = vrot.lane.b32.xlu0 %v1040, 9
        %v2064 = vpop.permute.xlu0 %2063
        %2065 = vrot.lane.b32.xlu0 %v1041, 9
        %v2066 = vpop.permute.xlu0 %2065
        %2067 = vrot.lane.b32.xlu0 %v1042, 9
        %v2068 = vpop.permute.xlu0 %2067
        %2069 = vrot.lane.b32.xlu0 %v1043, 9
        %v2070 = vpop.permute.xlu0 %2069
        %2071 = vrot.lane.b32.xlu0 %v1044, 9
        %v2072 = vpop.permute.xlu0 %2071
        %2073 = vrot.lane.b32.xlu0 %v1045, 9
        %v2074 = vpop.permute.xlu0 %2073
        %2075 = vrot.lane.b32.xlu0 %v1046, 9
        %v2076 = vpop.permute.xlu0 %2075
        %2077 = vrot.lane.b32.xlu0 %v1047, 9
        %v2078 = vpop.permute.xlu0 %2077
        %2079 = vrot.lane.b32.xlu0 %v1048, 9
        %v2080 = vpop.permute.xlu0 %2079
        %2081 = vrot.lane.b32.xlu0 %v1049, 9
        %v2082 = vpop.permute.xlu0 %2081
        %2083 = vrot.lane.b32.xlu0 %v1050, 9
        %v2084 = vpop.permute.xlu0 %2083
        %2085 = vrot.lane.b32.xlu0 %v1051, 9
        %v2086 = vpop.permute.xlu0 %2085
        %2087 = vrot.lane.b32.xlu0 %v1052, 9
        %v2088 = vpop.permute.xlu0 %2087
        %2089 = vrot.lane.b32.xlu0 %v1053, 9
        %v2090 = vpop.permute.xlu0 %2089
        %2091 = vrot.lane.b32.xlu0 %v1054, 9
        %v2092 = vpop.permute.xlu0 %2091
        %2093 = vrot.lane.b32.xlu0 %v1055, 9
        %v2094 = vpop.permute.xlu0 %2093
        %2095 = vrot.lane.b32.xlu0 %v1056, 9
        %v2096 = vpop.permute.xlu0 %2095
        %2097 = vrot.lane.b32.xlu0 %v1057, 9
        %v2098 = vpop.permute.xlu0 %2097
        %2099 = vrot.lane.b32.xlu0 %v1058, 9
        %v2100 = vpop.permute.xlu0 %2099
        %2101 = vrot.lane.b32.xlu0 %v1059, 9
        %v2102 = vpop.permute.xlu0 %2101
        %2103 = vrot.lane.b32.xlu0 %v1060, 9
        %v2104 = vpop.permute.xlu0 %2103
        %2105 = vrot.lane.b32.xlu0 %v1061, 9
        %v2106 = vpop.permute.xlu0 %2105
        %2107 = vrot.lane.b32.xlu0 %v1062, 9
        %v2108 = vpop.permute.xlu0 %2107
        %2109 = vrot.lane.b32.xlu0 %v1063, 9
        %v2110 = vpop.permute.xlu0 %2109
        %2111 = vrot.lane.b32.xlu0 %v1064, 9
        %v2112 = vpop.permute.xlu0 %2111
        %2113 = vrot.lane.b32.xlu0 %v1065, 9
        %v2114 = vpop.permute.xlu0 %2113
        %2115 = vrot.lane.b32.xlu0 %v1066, 9
        %v2116 = vpop.permute.xlu0 %2115
        %2117 = vrot.lane.b32.xlu0 %v1067, 9
        %v2118 = vpop.permute.xlu0 %2117
        %2119 = vrot.lane.b32.xlu0 %v1068, 9
        %v2120 = vpop.permute.xlu0 %2119
        %2121 = vrot.lane.b32.xlu0 %v1069, 9
        %v2122 = vpop.permute.xlu0 %2121
        %2123 = vrot.lane.b32.xlu0 %v1070, 9
        %v2124 = vpop.permute.xlu0 %2123
        %2125 = vrot.lane.b32.xlu0 %v1071, 9
        %v2126 = vpop.permute.xlu0 %2125
        %2127 = vrot.lane.b32.xlu0 %v1072, 9
        %v2128 = vpop.permute.xlu0 %2127
        %2129 = vrot.lane.b32.xlu0 %v1073, 9
        %v2130 = vpop.permute.xlu0 %2129
        %2131 = vrot.lane.b32.xlu0 %v1074, 9
        %v2132 = vpop.permute.xlu0 %2131
        %2133 = vrot.lane.b32.xlu0 %v1075, 9
        %v2134 = vpop.permute.xlu0 %2133
        %2135 = vrot.lane.b32.xlu0 %v1076, 9
        %v2136 = vpop.permute.xlu0 %2135
        %2137 = vrot.lane.b32.xlu0 %v1077, 9
        %v2138 = vpop.permute.xlu0 %2137
        %2139 = vrot.lane.b32.xlu0 %v1078, 9
        %v2140 = vpop.permute.xlu0 %2139
        %2141 = vrot.lane.b32.xlu0 %v1079, 9
        %v2142 = vpop.permute.xlu0 %2141
        %2143 = vrot.lane.b32.xlu0 %v1080, 9
        %v2144 = vpop.permute.xlu0 %2143
        %2145 = vrot.lane.b32.xlu0 %v1081, 9
        %v2146 = vpop.permute.xlu0 %2145
        %2147 = vrot.lane.b32.xlu0 %v1082, 9
        %v2148 = vpop.permute.xlu0 %2147
        %2149 = vrot.lane.b32.xlu0 %v1083, 9
        %v2150 = vpop.permute.xlu0 %2149
        %2151 = vrot.lane.b32.xlu0 %v1084, 9
        %v2152 = vpop.permute.xlu0 %2151
        %2153 = vrot.lane.b32.xlu0 %v1085, 9
        %v2154 = vpop.permute.xlu0 %2153
        %2155 = vrot.lane.b32.xlu0 %v1086, 9
        %v2156 = vpop.permute.xlu0 %2155
        %2157 = vrot.lane.b32.xlu0 %v1087, 9
        %v2158 = vpop.permute.xlu0 %2157
        %2159 = vrot.lane.b32.xlu0 %v1088, 9
        %v2160 = vpop.permute.xlu0 %2159
        %2161 = vrot.lane.b32.xlu0 %v1089, 9
        %v2162 = vpop.permute.xlu0 %2161
        %2163 = vrot.lane.b32.xlu0 %v1090, 9
        %v2164 = vpop.permute.xlu0 %2163
        %2165 = vrot.lane.b32.xlu0 %v1091, 9
        %v2166 = vpop.permute.xlu0 %2165
        %2167 = vrot.lane.b32.xlu0 %v1092, 9
        %v2168 = vpop.permute.xlu0 %2167
        %2169 = vrot.lane.b32.xlu0 %v1093, 9
        %v2170 = vpop.permute.xlu0 %2169
        %2171 = vrot.lane.b32.xlu0 %v1094, 9
        %v2172 = vpop.permute.xlu0 %2171
        %2173 = vrot.lane.b32.xlu0 %v1095, 9
        %v2174 = vpop.permute.xlu0 %2173
        %2175 = vrot.lane.b32.xlu0 %v1096, 9
        %v2176 = vpop.permute.xlu0 %2175
        %2177 = vrot.lane.b32.xlu0 %v1097, 9
        %v2178 = vpop.permute.xlu0 %2177
        %2179 = vrot.lane.b32.xlu0 %v1098, 9
        %v2180 = vpop.permute.xlu0 %2179
        %2181 = vrot.lane.b32.xlu0 %v1099, 9
        %v2182 = vpop.permute.xlu0 %2181
        %2183 = vrot.lane.b32.xlu0 %v1100, 9
        %v2184 = vpop.permute.xlu0 %2183
        %2185 = vrot.lane.b32.xlu0 %v1101, 9
        %v2186 = vpop.permute.xlu0 %2185
        %2187 = vrot.lane.b32.xlu0 %v1102, 9
        %v2188 = vpop.permute.xlu0 %2187
        %2189 = vrot.lane.b32.xlu0 %v1103, 9
        %v2190 = vpop.permute.xlu0 %2189
        %2191 = vrot.lane.b32.xlu0 %v1104, 9
        %v2192 = vpop.permute.xlu0 %2191
        %2193 = vrot.lane.b32.xlu0 %v1105, 9
        %v2194 = vpop.permute.xlu0 %2193
        %2195 = vrot.lane.b32.xlu0 %v1106, 9
        %v2196 = vpop.permute.xlu0 %2195
        %2197 = vrot.lane.b32.xlu0 %v1107, 9
        %v2198 = vpop.permute.xlu0 %2197
        %2199 = vrot.lane.b32.xlu0 %v1108, 9
        %v2200 = vpop.permute.xlu0 %2199
        %2201 = vrot.lane.b32.xlu0 %v1109, 9
        %v2202 = vpop.permute.xlu0 %2201
        %2203 = vrot.lane.b32.xlu0 %v1110, 9
        %v2204 = vpop.permute.xlu0 %2203
        %2205 = vrot.lane.b32.xlu0 %v1111, 9
        %v2206 = vpop.permute.xlu0 %2205
        %2207 = vrot.lane.b32.xlu0 %v1112, 9
        %v2208 = vpop.permute.xlu0 %2207
        %2389 = vrot.lane.b32.xlu0 %v756, 12
        %v2390 = vpop.permute.xlu0 %2389
        %2391 = vrot.lane.b32.xlu0 %v757, 12
        %v2392 = vpop.permute.xlu0 %2391
        %2393 = vrot.lane.b32.xlu0 %v758, 12
        %v2394 = vpop.permute.xlu0 %2393
        %2395 = vrot.lane.b32.xlu0 %v759, 12
        %v2396 = vpop.permute.xlu0 %2395
        %2397 = vrot.lane.b32.xlu0 %v760, 12
        %v2398 = vpop.permute.xlu0 %2397
        %2399 = vrot.lane.b32.xlu0 %v761, 12
        %v2400 = vpop.permute.xlu0 %2399
        %2401 = vrot.lane.b32.xlu0 %v762, 12
        %v2402 = vpop.permute.xlu0 %2401
        %2403 = vrot.lane.b32.xlu0 %v763, 12
        %v2404 = vpop.permute.xlu0 %2403
        %2405 = vrot.lane.b32.xlu0 %v764, 12
        %v2406 = vpop.permute.xlu0 %2405
        %2407 = vrot.lane.b32.xlu0 %v765, 12
        %v2408 = vpop.permute.xlu0 %2407
        %2409 = vrot.lane.b32.xlu0 %v766, 12
        %v2410 = vpop.permute.xlu0 %2409
        %2411 = vrot.lane.b32.xlu0 %v767, 12
        %v2412 = vpop.permute.xlu0 %2411
        %2413 = vrot.lane.b32.xlu0 %v768, 12
        %v2414 = vpop.permute.xlu0 %2413
        %2415 = vrot.lane.b32.xlu0 %v769, 12
        %v2416 = vpop.permute.xlu0 %2415
        %2417 = vrot.lane.b32.xlu0 %v770, 12
        %v2418 = vpop.permute.xlu0 %2417
        %2419 = vrot.lane.b32.xlu0 %v771, 12
        %v2420 = vpop.permute.xlu0 %2419
        %2421 = vrot.lane.b32.xlu0 %v772, 12
        %v2422 = vpop.permute.xlu0 %2421
        %2423 = vrot.lane.b32.xlu0 %v773, 12
        %v2424 = vpop.permute.xlu0 %2423
        %2425 = vrot.lane.b32.xlu0 %v774, 12
        %v2426 = vpop.permute.xlu0 %2425
        %2427 = vrot.lane.b32.xlu0 %v775, 12
        %v2428 = vpop.permute.xlu0 %2427
        %2429 = vrot.lane.b32.xlu0 %v776, 12
        %v2430 = vpop.permute.xlu0 %2429
        %2431 = vrot.lane.b32.xlu0 %v777, 12
        %v2432 = vpop.permute.xlu0 %2431
        %2433 = vrot.lane.b32.xlu0 %v778, 12
        %v2434 = vpop.permute.xlu0 %2433
        %2435 = vrot.lane.b32.xlu0 %v779, 12
        %v2436 = vpop.permute.xlu0 %2435
        %2437 = vrot.lane.b32.xlu0 %v780, 12
        %v2438 = vpop.permute.xlu0 %2437
        %2439 = vrot.lane.b32.xlu0 %v781, 12
        %v2440 = vpop.permute.xlu0 %2439
        %2441 = vrot.lane.b32.xlu0 %v782, 12
        %v2442 = vpop.permute.xlu0 %2441
        %2443 = vrot.lane.b32.xlu0 %v783, 12
        %v2444 = vpop.permute.xlu0 %2443
        %2445 = vrot.lane.b32.xlu0 %v784, 12
        %v2446 = vpop.permute.xlu0 %2445
        %2447 = vrot.lane.b32.xlu0 %v785, 12
        %v2448 = vpop.permute.xlu0 %2447
        %2449 = vrot.lane.b32.xlu0 %v786, 12
        %v2450 = vpop.permute.xlu0 %2449
        %2451 = vrot.lane.b32.xlu0 %v787, 12
        %v2452 = vpop.permute.xlu0 %2451
        %2453 = vrot.lane.b32.xlu0 %v788, 12
        %v2454 = vpop.permute.xlu0 %2453
        %2455 = vrot.lane.b32.xlu0 %v789, 12
        %v2456 = vpop.permute.xlu0 %2455
        %2457 = vrot.lane.b32.xlu0 %v790, 12
        %v2458 = vpop.permute.xlu0 %2457
        %2459 = vrot.lane.b32.xlu0 %v791, 12
        %v2460 = vpop.permute.xlu0 %2459
        %2461 = vrot.lane.b32.xlu0 %v792, 12
        %v2462 = vpop.permute.xlu0 %2461
        %2463 = vrot.lane.b32.xlu0 %v793, 12
        %v2464 = vpop.permute.xlu0 %2463
        %2465 = vrot.lane.b32.xlu0 %v794, 12
        %v2466 = vpop.permute.xlu0 %2465
        %2467 = vrot.lane.b32.xlu0 %v795, 12
        %v2468 = vpop.permute.xlu0 %2467
        %2469 = vrot.lane.b32.xlu0 %v796, 12
        %v2470 = vpop.permute.xlu0 %2469
        %2471 = vrot.lane.b32.xlu0 %v797, 12
        %v2472 = vpop.permute.xlu0 %2471
        %2473 = vrot.lane.b32.xlu0 %v798, 12
        %v2474 = vpop.permute.xlu0 %2473
        %2475 = vrot.lane.b32.xlu0 %v799, 12
        %v2476 = vpop.permute.xlu0 %2475
        %2477 = vrot.lane.b32.xlu0 %v800, 12
        %v2478 = vpop.permute.xlu0 %2477
        %2479 = vrot.lane.b32.xlu0 %v801, 12
        %v2480 = vpop.permute.xlu0 %2479
        %2481 = vrot.lane.b32.xlu0 %v802, 12
        %v2482 = vpop.permute.xlu0 %2481
        %2483 = vrot.lane.b32.xlu0 %v803, 12
        %v2484 = vpop.permute.xlu0 %2483
        %2485 = vrot.lane.b32.xlu0 %v804, 12
        %v2486 = vpop.permute.xlu0 %2485
        %2487 = vrot.lane.b32.xlu0 %v805, 12
        %v2488 = vpop.permute.xlu0 %2487
        %2489 = vrot.lane.b32.xlu0 %v806, 12
        %v2490 = vpop.permute.xlu0 %2489
        %2491 = vrot.lane.b32.xlu0 %v807, 12
        %v2492 = vpop.permute.xlu0 %2491
        %2493 = vrot.lane.b32.xlu0 %v808, 12
        %v2494 = vpop.permute.xlu0 %2493
        %2495 = vrot.lane.b32.xlu0 %v809, 12
        %v2496 = vpop.permute.xlu0 %2495
        %2497 = vrot.lane.b32.xlu0 %v810, 12
        %v2498 = vpop.permute.xlu0 %2497
        %2499 = vrot.lane.b32.xlu0 %v811, 12
        %v2500 = vpop.permute.xlu0 %2499
        %2501 = vrot.lane.b32.xlu0 %v812, 12
        %v2502 = vpop.permute.xlu0 %2501
        %2503 = vrot.lane.b32.xlu0 %v813, 12
        %v2504 = vpop.permute.xlu0 %2503
        %2505 = vrot.lane.b32.xlu0 %v814, 12
        %v2506 = vpop.permute.xlu0 %2505
        %2507 = vrot.lane.b32.xlu0 %v815, 12
        %v2508 = vpop.permute.xlu0 %2507
        %2509 = vrot.lane.b32.xlu0 %v816, 12
        %v2510 = vpop.permute.xlu0 %2509
        %2511 = vrot.lane.b32.xlu0 %v817, 12
        %v2512 = vpop.permute.xlu0 %2511
        %2513 = vrot.lane.b32.xlu0 %v818, 12
        %v2514 = vpop.permute.xlu0 %2513
        %2515 = vrot.lane.b32.xlu0 %v819, 12
        %v2516 = vpop.permute.xlu0 %2515
        %2517 = vrot.lane.b32.xlu0 %v820, 12
        %v2518 = vpop.permute.xlu0 %2517
        %2519 = vrot.lane.b32.xlu0 %v821, 12
        %v2520 = vpop.permute.xlu0 %2519
        %2521 = vrot.lane.b32.xlu0 %v822, 12
        %v2522 = vpop.permute.xlu0 %2521
        %2523 = vrot.lane.b32.xlu0 %v823, 12
        %v2524 = vpop.permute.xlu0 %2523
        %2525 = vrot.lane.b32.xlu0 %v824, 12
        %v2526 = vpop.permute.xlu0 %2525
        %2527 = vrot.lane.b32.xlu0 %v825, 12
        %v2528 = vpop.permute.xlu0 %2527
        %2529 = vrot.lane.b32.xlu0 %v826, 12
        %v2530 = vpop.permute.xlu0 %2529
        %2531 = vrot.lane.b32.xlu0 %v827, 12
        %v2532 = vpop.permute.xlu0 %2531
        %2533 = vrot.lane.b32.xlu0 %v828, 12
        %v2534 = vpop.permute.xlu0 %2533
        %2535 = vrot.lane.b32.xlu0 %v829, 12
        %v2536 = vpop.permute.xlu0 %2535
        %2537 = vrot.lane.b32.xlu0 %v830, 12
        %v2538 = vpop.permute.xlu0 %2537
        %2539 = vrot.lane.b32.xlu0 %v831, 12
        %v2540 = vpop.permute.xlu0 %2539
        %2541 = vrot.lane.b32.xlu0 %v832, 12
        %v2542 = vpop.permute.xlu0 %2541
        %2543 = vrot.lane.b32.xlu0 %v833, 12
        %v2544 = vpop.permute.xlu0 %2543
        %2545 = vrot.lane.b32.xlu0 %v834, 12
        %v2546 = vpop.permute.xlu0 %2545
        %2547 = vrot.lane.b32.xlu0 %v835, 12
        %v2548 = vpop.permute.xlu0 %2547
        %2549 = vrot.lane.b32.xlu0 %v836, 12
        %v2550 = vpop.permute.xlu0 %2549
        %2551 = vrot.lane.b32.xlu0 %v837, 12
        %v2552 = vpop.permute.xlu0 %2551
        %2553 = vrot.lane.b32.xlu0 %v838, 12
        %v2554 = vpop.permute.xlu0 %2553
        %2555 = vrot.lane.b32.xlu0 %v839, 12
        %v2556 = vpop.permute.xlu0 %2555
        %2557 = vrot.lane.b32.xlu0 %v840, 12
        %v2558 = vpop.permute.xlu0 %2557
        %2559 = vrot.lane.b32.xlu0 %v841, 12
        %v2560 = vpop.permute.xlu0 %2559
        %2561 = vrot.lane.b32.xlu0 %v1113, 12
        %v2562 = vpop.permute.xlu0 %2561
        %2563 = vrot.lane.b32.xlu0 %v1114, 12
        %v2564 = vpop.permute.xlu0 %2563
        %2565 = vrot.lane.b32.xlu0 %v1115, 12
        %v2566 = vpop.permute.xlu0 %2565
        %2567 = vrot.lane.b32.xlu0 %v1116, 12
        %v2568 = vpop.permute.xlu0 %2567
        %2663 = vrot.lane.b32.xlu0 %v846, 15
        %v2664 = vpop.permute.xlu0 %2663
        %2665 = vrot.lane.b32.xlu0 %v847, 15
        %v2666 = vpop.permute.xlu0 %2665
        %2667 = vrot.lane.b32.xlu0 %v848, 15
        %v2668 = vpop.permute.xlu0 %2667
        %2669 = vrot.lane.b32.xlu0 %v849, 15
        %v2670 = vpop.permute.xlu0 %2669
        %2671 = vrot.lane.b32.xlu0 %v850, 15
        %v2672 = vpop.permute.xlu0 %2671
        %2673 = vrot.lane.b32.xlu0 %v851, 15
        %v2674 = vpop.permute.xlu0 %2673
        %2675 = vrot.lane.b32.xlu0 %v852, 15
        %v2676 = vpop.permute.xlu0 %2675
        %2677 = vrot.lane.b32.xlu0 %v853, 15
        %v2678 = vpop.permute.xlu0 %2677
        %2679 = vrot.lane.b32.xlu0 %v854, 15
        %v2680 = vpop.permute.xlu0 %2679
        %2681 = vrot.lane.b32.xlu0 %v855, 15
        %v2682 = vpop.permute.xlu0 %2681
        %2683 = vrot.lane.b32.xlu0 %v856, 15
        %v2684 = vpop.permute.xlu0 %2683
        %2685 = vrot.lane.b32.xlu0 %v857, 15
        %v2686 = vpop.permute.xlu0 %2685
        %2687 = vrot.lane.b32.xlu0 %v858, 15
        %v2688 = vpop.permute.xlu0 %2687
        %2689 = vrot.lane.b32.xlu0 %v859, 15
        %v2690 = vpop.permute.xlu0 %2689
        %2691 = vrot.lane.b32.xlu0 %v860, 15
        %v2692 = vpop.permute.xlu0 %2691
        %2693 = vrot.lane.b32.xlu0 %v861, 15
        %v2694 = vpop.permute.xlu0 %2693
        %2695 = vrot.lane.b32.xlu0 %v862, 15
        %v2696 = vpop.permute.xlu0 %2695
        %2697 = vrot.lane.b32.xlu0 %v863, 15
        %v2698 = vpop.permute.xlu0 %2697
        %2699 = vrot.lane.b32.xlu0 %v864, 15
        %v2700 = vpop.permute.xlu0 %2699
        %2701 = vrot.lane.b32.xlu0 %v865, 15
        %v2702 = vpop.permute.xlu0 %2701
        %2703 = vrot.lane.b32.xlu0 %v866, 15
        %v2704 = vpop.permute.xlu0 %2703
        %2705 = vrot.lane.b32.xlu0 %v867, 15
        %v2706 = vpop.permute.xlu0 %2705
        %2707 = vrot.lane.b32.xlu0 %v868, 15
        %v2708 = vpop.permute.xlu0 %2707
        %2709 = vrot.lane.b32.xlu0 %v869, 15
        %v2710 = vpop.permute.xlu0 %2709
        %2711 = vrot.lane.b32.xlu0 %v870, 15
        %v2712 = vpop.permute.xlu0 %2711
        %2713 = vrot.lane.b32.xlu0 %v871, 15
        %v2714 = vpop.permute.xlu0 %2713
        %2715 = vrot.lane.b32.xlu0 %v872, 15
        %v2716 = vpop.permute.xlu0 %2715
        %2717 = vrot.lane.b32.xlu0 %v873, 15
        %v2718 = vpop.permute.xlu0 %2717
        %2719 = vrot.lane.b32.xlu0 %v874, 15
        %v2720 = vpop.permute.xlu0 %2719
        %2721 = vrot.lane.b32.xlu0 %v875, 15
        %v2722 = vpop.permute.xlu0 %2721
        %2723 = vrot.lane.b32.xlu0 %v876, 15
        %v2724 = vpop.permute.xlu0 %2723
        %2725 = vrot.lane.b32.xlu0 %v877, 15
        %v2726 = vpop.permute.xlu0 %2725
        %2727 = vrot.lane.b32.xlu0 %v878, 15
        %v2728 = vpop.permute.xlu0 %2727
        %2729 = vrot.lane.b32.xlu0 %v879, 15
        %v2730 = vpop.permute.xlu0 %2729
        %2731 = vrot.lane.b32.xlu0 %v880, 15
        %v2732 = vpop.permute.xlu0 %2731
        %2733 = vrot.lane.b32.xlu0 %v881, 15
        %v2734 = vpop.permute.xlu0 %2733
        %2735 = vrot.lane.b32.xlu0 %v882, 15
        %v2736 = vpop.permute.xlu0 %2735
        %2737 = vrot.lane.b32.xlu0 %v883, 15
        %v2738 = vpop.permute.xlu0 %2737
        %2739 = vrot.lane.b32.xlu0 %v884, 15
        %v2740 = vpop.permute.xlu0 %2739
        %2741 = vrot.lane.b32.xlu0 %v885, 15
        %v2742 = vpop.permute.xlu0 %2741
        %2743 = vrot.lane.b32.xlu0 %v886, 15
        %v2744 = vpop.permute.xlu0 %2743
        %2745 = vrot.lane.b32.xlu0 %v887, 15
        %v2746 = vpop.permute.xlu0 %2745
        %2747 = vrot.lane.b32.xlu0 %v888, 15
        %v2748 = vpop.permute.xlu0 %2747
        %2749 = vrot.lane.b32.xlu0 %v889, 15
        %v2750 = vpop.permute.xlu0 %2749
        %2751 = vrot.lane.b32.xlu0 %v890, 15
        %v2752 = vpop.permute.xlu0 %2751
        %2753 = vrot.lane.b32.xlu0 %v891, 15
        %v2754 = vpop.permute.xlu0 %2753
        %2755 = vrot.lane.b32.xlu0 %v892, 15
        %v2756 = vpop.permute.xlu0 %2755
        %2757 = vrot.lane.b32.xlu0 %v893, 15
        %v2758 = vpop.permute.xlu0 %2757
        %2759 = vrot.lane.b32.xlu0 %v894, 15
        %v2760 = vpop.permute.xlu0 %2759
        %2761 = vrot.lane.b32.xlu0 %v895, 15
        %v2762 = vpop.permute.xlu0 %2761
        %2763 = vrot.lane.b32.xlu0 %v896, 15
        %v2764 = vpop.permute.xlu0 %2763
        %2765 = vrot.lane.b32.xlu0 %v897, 15
        %v2766 = vpop.permute.xlu0 %2765
        %2767 = vrot.lane.b32.xlu0 %v898, 15
        %v2768 = vpop.permute.xlu0 %2767
        %2769 = vrot.lane.b32.xlu0 %v899, 15
        %v2770 = vpop.permute.xlu0 %2769
        %2771 = vrot.lane.b32.xlu0 %v900, 15
        %v2772 = vpop.permute.xlu0 %2771
        %2773 = vrot.lane.b32.xlu0 %v901, 15
        %v2774 = vpop.permute.xlu0 %2773
        %2775 = vrot.lane.b32.xlu0 %v902, 15
        %v2776 = vpop.permute.xlu0 %2775
        %2777 = vrot.lane.b32.xlu0 %v903, 15
        %v2778 = vpop.permute.xlu0 %2777
        %2779 = vrot.lane.b32.xlu0 %v904, 15
        %v2780 = vpop.permute.xlu0 %2779
        %2781 = vrot.lane.b32.xlu0 %v905, 15
        %v2782 = vpop.permute.xlu0 %2781
        %2783 = vrot.lane.b32.xlu0 %v906, 15
        %v2784 = vpop.permute.xlu0 %2783
        %2785 = vrot.lane.b32.xlu0 %v907, 15
        %v2786 = vpop.permute.xlu0 %2785
        %2787 = vrot.lane.b32.xlu0 %v908, 15
        %v2788 = vpop.permute.xlu0 %2787
        %2789 = vrot.lane.b32.xlu0 %v909, 15
        %v2790 = vpop.permute.xlu0 %2789
        %2791 = vrot.lane.b32.xlu0 %v910, 15
        %v2792 = vpop.permute.xlu0 %2791
        %2793 = vrot.lane.b32.xlu0 %v911, 15
        %v2794 = vpop.permute.xlu0 %2793
        %2795 = vrot.lane.b32.xlu0 %v912, 15
        %v2796 = vpop.permute.xlu0 %2795
        %2797 = vrot.lane.b32.xlu0 %v913, 15
        %v2798 = vpop.permute.xlu0 %2797
        %2799 = vrot.lane.b32.xlu0 %v914, 15
        %v2800 = vpop.permute.xlu0 %2799
        %2801 = vrot.lane.b32.xlu0 %v915, 15
        %v2802 = vpop.permute.xlu0 %2801
        %2803 = vrot.lane.b32.xlu0 %v916, 15
        %v2804 = vpop.permute.xlu0 %2803
        %2805 = vrot.lane.b32.xlu0 %v917, 15
        %v2806 = vpop.permute.xlu0 %2805
        %2807 = vrot.lane.b32.xlu0 %v918, 15
        %v2808 = vpop.permute.xlu0 %2807
        %2809 = vrot.lane.b32.xlu0 %v919, 15
        %v2810 = vpop.permute.xlu0 %2809
        %2811 = vrot.lane.b32.xlu0 %v920, 15
        %v2812 = vpop.permute.xlu0 %2811
        %2813 = vrot.lane.b32.xlu0 %v921, 15
        %v2814 = vpop.permute.xlu0 %2813
        %2815 = vrot.lane.b32.xlu0 %v922, 15
        %v2816 = vpop.permute.xlu0 %2815
        %2817 = vrot.lane.b32.xlu0 %v923, 15
        %v2818 = vpop.permute.xlu0 %2817
        %2819 = vrot.lane.b32.xlu0 %v924, 15
        %v2820 = vpop.permute.xlu0 %2819
        %2821 = vrot.lane.b32.xlu0 %v925, 15
        %v2822 = vpop.permute.xlu0 %2821
        %2823 = vrot.lane.b32.xlu0 %v926, 15
        %v2824 = vpop.permute.xlu0 %2823
        %2825 = vrot.lane.b32.xlu0 %v927, 15
        %v2826 = vpop.permute.xlu0 %2825
        %2827 = vrot.lane.b32.xlu0 %v928, 15
        %v2828 = vpop.permute.xlu0 %2827
        %2829 = vrot.lane.b32.xlu0 %v929, 15
        %v2830 = vpop.permute.xlu0 %2829
        %2831 = vrot.lane.b32.xlu0 %v930, 15
        %v2832 = vpop.permute.xlu0 %2831
        %2833 = vrot.lane.b32.xlu0 %v931, 15
        %v2834 = vpop.permute.xlu0 %2833
        %2835 = vrot.lane.b32.xlu0 %v1117, 15
        %v2836 = vpop.permute.xlu0 %2835
        %2837 = vrot.lane.b32.xlu0 %v1118, 15
        %v2838 = vpop.permute.xlu0 %2837
        %2839 = vrot.lane.b32.xlu0 %v1119, 15
        %v2840 = vpop.permute.xlu0 %2839
        %2841 = vrot.lane.b32.xlu0 %v1120, 15
        %v2842 = vpop.permute.xlu0 %2841
        %3023 = vrot.lane.b32.xlu0 %v1121, 18
        %v3024 = vpop.permute.xlu0 %3023
        %3025 = vrot.lane.b32.xlu0 %v1122, 18
        %v3026 = vpop.permute.xlu0 %3025
        %3027 = vrot.lane.b32.xlu0 %v1123, 18
        %v3028 = vpop.permute.xlu0 %3027
        %3029 = vrot.lane.b32.xlu0 %v1124, 18
        %v3030 = vpop.permute.xlu0 %3029
        %3031 = vrot.lane.b32.xlu0 %v1125, 18
        %v3032 = vpop.permute.xlu0 %3031
        %3033 = vrot.lane.b32.xlu0 %v1126, 18
        %v3034 = vpop.permute.xlu0 %3033
        %3035 = vrot.lane.b32.xlu0 %v1127, 18
        %v3036 = vpop.permute.xlu0 %3035
        %3037 = vrot.lane.b32.xlu0 %v1128, 18
        %v3038 = vpop.permute.xlu0 %3037
        %3039 = vrot.lane.b32.xlu0 %v1129, 18
        %v3040 = vpop.permute.xlu0 %3039
        %3041 = vrot.lane.b32.xlu0 %v1130, 18
        %v3042 = vpop.permute.xlu0 %3041
        %3043 = vrot.lane.b32.xlu0 %v1131, 18
        %v3044 = vpop.permute.xlu0 %3043
        %3045 = vrot.lane.b32.xlu0 %v1132, 18
        %v3046 = vpop.permute.xlu0 %3045
        %3047 = vrot.lane.b32.xlu0 %v1133, 18
        %v3048 = vpop.permute.xlu0 %3047
        %3049 = vrot.lane.b32.xlu0 %v1134, 18
        %v3050 = vpop.permute.xlu0 %3049
        %3051 = vrot.lane.b32.xlu0 %v1135, 18
        %v3052 = vpop.permute.xlu0 %3051
        %3053 = vrot.lane.b32.xlu0 %v1136, 18
        %v3054 = vpop.permute.xlu0 %3053
        %3055 = vrot.lane.b32.xlu0 %v1137, 18
        %v3056 = vpop.permute.xlu0 %3055
        %3057 = vrot.lane.b32.xlu0 %v1138, 18
        %v3058 = vpop.permute.xlu0 %3057
        %3059 = vrot.lane.b32.xlu0 %v1139, 18
        %v3060 = vpop.permute.xlu0 %3059
        %3061 = vrot.lane.b32.xlu0 %v1140, 18
        %v3062 = vpop.permute.xlu0 %3061
        %3063 = vrot.lane.b32.xlu0 %v1141, 18
        %v3064 = vpop.permute.xlu0 %3063
        %3065 = vrot.lane.b32.xlu0 %v1142, 18
        %v3066 = vpop.permute.xlu0 %3065
        %3067 = vrot.lane.b32.xlu0 %v1143, 18
        %v3068 = vpop.permute.xlu0 %3067
        %3069 = vrot.lane.b32.xlu0 %v1144, 18
        %v3070 = vpop.permute.xlu0 %3069
        %3071 = vrot.lane.b32.xlu0 %v1145, 18
        %v3072 = vpop.permute.xlu0 %3071
        %3073 = vrot.lane.b32.xlu0 %v1146, 18
        %v3074 = vpop.permute.xlu0 %3073
        %3075 = vrot.lane.b32.xlu0 %v1147, 18
        %v3076 = vpop.permute.xlu0 %3075
        %3077 = vrot.lane.b32.xlu0 %v1148, 18
        %v3078 = vpop.permute.xlu0 %3077
        %3079 = vrot.lane.b32.xlu0 %v1149, 18
        %v3080 = vpop.permute.xlu0 %3079
        %3081 = vrot.lane.b32.xlu0 %v1150, 18
        %v3082 = vpop.permute.xlu0 %3081
        %3083 = vrot.lane.b32.xlu0 %v1151, 18
        %v3084 = vpop.permute.xlu0 %3083
        %3085 = vrot.lane.b32.xlu0 %v1152, 18
        %v3086 = vpop.permute.xlu0 %3085
        %3087 = vrot.lane.b32.xlu0 %v1153, 18
        %v3088 = vpop.permute.xlu0 %3087
        %3089 = vrot.lane.b32.xlu0 %v1154, 18
        %v3090 = vpop.permute.xlu0 %3089
        %3091 = vrot.lane.b32.xlu0 %v1155, 18
        %v3092 = vpop.permute.xlu0 %3091
        %3093 = vrot.lane.b32.xlu0 %v1156, 18
        %v3094 = vpop.permute.xlu0 %3093
        %3095 = vrot.lane.b32.xlu0 %v1157, 18
        %v3096 = vpop.permute.xlu0 %3095
        %3097 = vrot.lane.b32.xlu0 %v1158, 18
        %v3098 = vpop.permute.xlu0 %3097
        %3099 = vrot.lane.b32.xlu0 %v1159, 18
        %v3100 = vpop.permute.xlu0 %3099
        %3101 = vrot.lane.b32.xlu0 %v1160, 18
        %v3102 = vpop.permute.xlu0 %3101
        %3103 = vrot.lane.b32.xlu0 %v1161, 18
        %v3104 = vpop.permute.xlu0 %3103
        %3105 = vrot.lane.b32.xlu0 %v1162, 18
        %v3106 = vpop.permute.xlu0 %3105
        %3107 = vrot.lane.b32.xlu0 %v1163, 18
        %v3108 = vpop.permute.xlu0 %3107
        %3109 = vrot.lane.b32.xlu0 %v1164, 18
        %v3110 = vpop.permute.xlu0 %3109
        %3111 = vrot.lane.b32.xlu0 %v1165, 18
        %v3112 = vpop.permute.xlu0 %3111
        %3113 = vrot.lane.b32.xlu0 %v1166, 18
        %v3114 = vpop.permute.xlu0 %3113
        %3115 = vrot.lane.b32.xlu0 %v1167, 18
        %v3116 = vpop.permute.xlu0 %3115
        %3117 = vrot.lane.b32.xlu0 %v1168, 18
        %v3118 = vpop.permute.xlu0 %3117
        %3119 = vrot.lane.b32.xlu0 %v1169, 18
        %v3120 = vpop.permute.xlu0 %3119
        %3121 = vrot.lane.b32.xlu0 %v1170, 18
        %v3122 = vpop.permute.xlu0 %3121
        %3123 = vrot.lane.b32.xlu0 %v1171, 18
        %v3124 = vpop.permute.xlu0 %3123
        %3125 = vrot.lane.b32.xlu0 %v1172, 18
        %v3126 = vpop.permute.xlu0 %3125
        %3127 = vrot.lane.b32.xlu0 %v1173, 18
        %v3128 = vpop.permute.xlu0 %3127
        %3129 = vrot.lane.b32.xlu0 %v1174, 18
        %v3130 = vpop.permute.xlu0 %3129
        %3131 = vrot.lane.b32.xlu0 %v1175, 18
        %v3132 = vpop.permute.xlu0 %3131
        %3133 = vrot.lane.b32.xlu0 %v1176, 18
        %v3134 = vpop.permute.xlu0 %3133
        %3135 = vrot.lane.b32.xlu0 %v1177, 18
        %v3136 = vpop.permute.xlu0 %3135
        %3137 = vrot.lane.b32.xlu0 %v1178, 18
        %v3138 = vpop.permute.xlu0 %3137
        %3139 = vrot.lane.b32.xlu0 %v1179, 18
        %v3140 = vpop.permute.xlu0 %3139
        %3141 = vrot.lane.b32.xlu0 %v1180, 18
        %v3142 = vpop.permute.xlu0 %3141
        %3143 = vrot.lane.b32.xlu0 %v1181, 18
        %v3144 = vpop.permute.xlu0 %3143
        %3145 = vrot.lane.b32.xlu0 %v1182, 18
        %v3146 = vpop.permute.xlu0 %3145
        %3147 = vrot.lane.b32.xlu0 %v1183, 18
        %v3148 = vpop.permute.xlu0 %3147
        %3149 = vrot.lane.b32.xlu0 %v1184, 18
        %v3150 = vpop.permute.xlu0 %3149
        %3151 = vrot.lane.b32.xlu0 %v1185, 18
        %v3152 = vpop.permute.xlu0 %3151
        %3153 = vrot.lane.b32.xlu0 %v1186, 18
        %v3154 = vpop.permute.xlu0 %3153
        %3155 = vrot.lane.b32.xlu0 %v1187, 18
        %v3156 = vpop.permute.xlu0 %3155
        %3157 = vrot.lane.b32.xlu0 %v1188, 18
        %v3158 = vpop.permute.xlu0 %3157
        %3159 = vrot.lane.b32.xlu0 %v1189, 18
        %v3160 = vpop.permute.xlu0 %3159
        %3161 = vrot.lane.b32.xlu0 %v1190, 18
        %v3162 = vpop.permute.xlu0 %3161
        %3163 = vrot.lane.b32.xlu0 %v1191, 18
        %v3164 = vpop.permute.xlu0 %3163
        %3165 = vrot.lane.b32.xlu0 %v1192, 18
        %v3166 = vpop.permute.xlu0 %3165
        %3167 = vrot.lane.b32.xlu0 %v1193, 18
        %v3168 = vpop.permute.xlu0 %3167
        %3169 = vrot.lane.b32.xlu0 %v1194, 18
        %v3170 = vpop.permute.xlu0 %3169
        %3171 = vrot.lane.b32.xlu0 %v1195, 18
        %v3172 = vpop.permute.xlu0 %3171
        %3173 = vrot.lane.b32.xlu0 %v1196, 18
        %v3174 = vpop.permute.xlu0 %3173
        %3175 = vrot.lane.b32.xlu0 %v1197, 18
        %v3176 = vpop.permute.xlu0 %3175
        %3177 = vrot.lane.b32.xlu0 %v1198, 18
        %v3178 = vpop.permute.xlu0 %3177
        %3179 = vrot.lane.b32.xlu0 %v1199, 18
        %v3180 = vpop.permute.xlu0 %3179
        %3181 = vrot.lane.b32.xlu0 %v1200, 18
        %v3182 = vpop.permute.xlu0 %3181
        %3183 = vrot.lane.b32.xlu0 %v1201, 18
        %v3184 = vpop.permute.xlu0 %3183
        %3185 = vrot.lane.b32.xlu0 %v1202, 18
        %v3186 = vpop.permute.xlu0 %3185
        %3187 = vrot.lane.b32.xlu0 %v1203, 18
        %v3188 = vpop.permute.xlu0 %3187
        %3189 = vrot.lane.b32.xlu0 %v1204, 18
        %v3190 = vpop.permute.xlu0 %3189
        %3191 = vrot.lane.b32.xlu0 %v1205, 18
        %v3192 = vpop.permute.xlu0 %3191
        %3193 = vrot.lane.b32.xlu0 %v1206, 18
        %v3194 = vpop.permute.xlu0 %3193
        %3195 = vrot.lane.b32.xlu0 %v1207, 18
        %v3196 = vpop.permute.xlu0 %3195
        %3197 = vrot.lane.b32.xlu0 %v1208, 18
        %v3198 = vpop.permute.xlu0 %3197
        %3199 = vrot.lane.b32.xlu0 %v1209, 18
        %v3200 = vpop.permute.xlu0 %3199
        %3201 = vrot.lane.b32.xlu0 %v1210, 18
        %v3202 = vpop.permute.xlu0 %3201
        %3297 = vrot.lane.b32.xlu0 %v1026, 21
        %v3298 = vpop.permute.xlu0 %3297
        %3299 = vrot.lane.b32.xlu0 %v1027, 21
        %v3300 = vpop.permute.xlu0 %3299
        %3301 = vrot.lane.b32.xlu0 %v1028, 21
        %v3302 = vpop.permute.xlu0 %3301
        %3303 = vrot.lane.b32.xlu0 %v1029, 21
        %v3304 = vpop.permute.xlu0 %3303
        %3305 = vrot.lane.b32.xlu0 %v1030, 21
        %v3306 = vpop.permute.xlu0 %3305
        %3307 = vrot.lane.b32.xlu0 %v1031, 21
        %v3308 = vpop.permute.xlu0 %3307
        %3309 = vrot.lane.b32.xlu0 %v1032, 21
        %v3310 = vpop.permute.xlu0 %3309
        %3311 = vrot.lane.b32.xlu0 %v1033, 21
        %v3312 = vpop.permute.xlu0 %3311
        %3313 = vrot.lane.b32.xlu0 %v1034, 21
        %v3314 = vpop.permute.xlu0 %3313
        %3315 = vrot.lane.b32.xlu0 %v1035, 21
        %v3316 = vpop.permute.xlu0 %3315
        %3317 = vrot.lane.b32.xlu0 %v1036, 21
        %v3318 = vpop.permute.xlu0 %3317
        %3319 = vrot.lane.b32.xlu0 %v1037, 21
        %v3320 = vpop.permute.xlu0 %3319
        %3321 = vrot.lane.b32.xlu0 %v1038, 21
        %v3322 = vpop.permute.xlu0 %3321
        %3323 = vrot.lane.b32.xlu0 %v1039, 21
        %v3324 = vpop.permute.xlu0 %3323
        %3325 = vrot.lane.b32.xlu0 %v1040, 21
        %v3326 = vpop.permute.xlu0 %3325
        %3327 = vrot.lane.b32.xlu0 %v1041, 21
        %v3328 = vpop.permute.xlu0 %3327
        %3329 = vrot.lane.b32.xlu0 %v1042, 21
        %v3330 = vpop.permute.xlu0 %3329
        %3331 = vrot.lane.b32.xlu0 %v1043, 21
        %v3332 = vpop.permute.xlu0 %3331
        %3333 = vrot.lane.b32.xlu0 %v1044, 21
        %v3334 = vpop.permute.xlu0 %3333
        %3335 = vrot.lane.b32.xlu0 %v1045, 21
        %v3336 = vpop.permute.xlu0 %3335
        %3337 = vrot.lane.b32.xlu0 %v1046, 21
        %v3338 = vpop.permute.xlu0 %3337
        %3339 = vrot.lane.b32.xlu0 %v1047, 21
        %v3340 = vpop.permute.xlu0 %3339
        %3341 = vrot.lane.b32.xlu0 %v1048, 21
        %v3342 = vpop.permute.xlu0 %3341
        %3343 = vrot.lane.b32.xlu0 %v1049, 21
        %v3344 = vpop.permute.xlu0 %3343
        %3345 = vrot.lane.b32.xlu0 %v1050, 21
        %v3346 = vpop.permute.xlu0 %3345
        %3347 = vrot.lane.b32.xlu0 %v1051, 21
        %v3348 = vpop.permute.xlu0 %3347
        %3349 = vrot.lane.b32.xlu0 %v1052, 21
        %v3350 = vpop.permute.xlu0 %3349
        %3351 = vrot.lane.b32.xlu0 %v1053, 21
        %v3352 = vpop.permute.xlu0 %3351
        %3353 = vrot.lane.b32.xlu0 %v1054, 21
        %v3354 = vpop.permute.xlu0 %3353
        %3355 = vrot.lane.b32.xlu0 %v1055, 21
        %v3356 = vpop.permute.xlu0 %3355
        %3357 = vrot.lane.b32.xlu0 %v1056, 21
        %v3358 = vpop.permute.xlu0 %3357
        %3359 = vrot.lane.b32.xlu0 %v1057, 21
        %v3360 = vpop.permute.xlu0 %3359
        %3361 = vrot.lane.b32.xlu0 %v1058, 21
        %v3362 = vpop.permute.xlu0 %3361
        %3363 = vrot.lane.b32.xlu0 %v1059, 21
        %v3364 = vpop.permute.xlu0 %3363
        %3365 = vrot.lane.b32.xlu0 %v1060, 21
        %v3366 = vpop.permute.xlu0 %3365
        %3367 = vrot.lane.b32.xlu0 %v1061, 21
        %v3368 = vpop.permute.xlu0 %3367
        %3369 = vrot.lane.b32.xlu0 %v1062, 21
        %v3370 = vpop.permute.xlu0 %3369
        %3371 = vrot.lane.b32.xlu0 %v1063, 21
        %v3372 = vpop.permute.xlu0 %3371
        %3373 = vrot.lane.b32.xlu0 %v1064, 21
        %v3374 = vpop.permute.xlu0 %3373
        %3375 = vrot.lane.b32.xlu0 %v1065, 21
        %v3376 = vpop.permute.xlu0 %3375
        %3377 = vrot.lane.b32.xlu0 %v1066, 21
        %v3378 = vpop.permute.xlu0 %3377
        %3379 = vrot.lane.b32.xlu0 %v1067, 21
        %v3380 = vpop.permute.xlu0 %3379
        %3381 = vrot.lane.b32.xlu0 %v1068, 21
        %v3382 = vpop.permute.xlu0 %3381
        %3383 = vrot.lane.b32.xlu0 %v1069, 21
        %v3384 = vpop.permute.xlu0 %3383
        %3385 = vrot.lane.b32.xlu0 %v1070, 21
        %v3386 = vpop.permute.xlu0 %3385
        %3387 = vrot.lane.b32.xlu0 %v1071, 21
        %v3388 = vpop.permute.xlu0 %3387
        %3389 = vrot.lane.b32.xlu0 %v1072, 21
        %v3390 = vpop.permute.xlu0 %3389
        %3391 = vrot.lane.b32.xlu0 %v1073, 21
        %v3392 = vpop.permute.xlu0 %3391
        %3393 = vrot.lane.b32.xlu0 %v1074, 21
        %v3394 = vpop.permute.xlu0 %3393
        %3395 = vrot.lane.b32.xlu0 %v1075, 21
        %v3396 = vpop.permute.xlu0 %3395
        %3397 = vrot.lane.b32.xlu0 %v1076, 21
        %v3398 = vpop.permute.xlu0 %3397
        %3399 = vrot.lane.b32.xlu0 %v1077, 21
        %v3400 = vpop.permute.xlu0 %3399
        %3401 = vrot.lane.b32.xlu0 %v1078, 21
        %v3402 = vpop.permute.xlu0 %3401
        %3403 = vrot.lane.b32.xlu0 %v1079, 21
        %v3404 = vpop.permute.xlu0 %3403
        %3405 = vrot.lane.b32.xlu0 %v1080, 21
        %v3406 = vpop.permute.xlu0 %3405
        %3407 = vrot.lane.b32.xlu0 %v1081, 21
        %v3408 = vpop.permute.xlu0 %3407
        %3409 = vrot.lane.b32.xlu0 %v1082, 21
        %v3410 = vpop.permute.xlu0 %3409
        %3411 = vrot.lane.b32.xlu0 %v1083, 21
        %v3412 = vpop.permute.xlu0 %3411
        %3413 = vrot.lane.b32.xlu0 %v1084, 21
        %v3414 = vpop.permute.xlu0 %3413
        %3415 = vrot.lane.b32.xlu0 %v1085, 21
        %v3416 = vpop.permute.xlu0 %3415
        %3417 = vrot.lane.b32.xlu0 %v1086, 21
        %v3418 = vpop.permute.xlu0 %3417
        %3419 = vrot.lane.b32.xlu0 %v1087, 21
        %v3420 = vpop.permute.xlu0 %3419
        %3421 = vrot.lane.b32.xlu0 %v1088, 21
        %v3422 = vpop.permute.xlu0 %3421
        %3423 = vrot.lane.b32.xlu0 %v1089, 21
        %v3424 = vpop.permute.xlu0 %3423
        %3425 = vrot.lane.b32.xlu0 %v1090, 21
        %v3426 = vpop.permute.xlu0 %3425
        %3427 = vrot.lane.b32.xlu0 %v1091, 21
        %v3428 = vpop.permute.xlu0 %3427
        %3429 = vrot.lane.b32.xlu0 %v1092, 21
        %v3430 = vpop.permute.xlu0 %3429
        %3431 = vrot.lane.b32.xlu0 %v1093, 21
        %v3432 = vpop.permute.xlu0 %3431
        %3433 = vrot.lane.b32.xlu0 %v1094, 21
        %v3434 = vpop.permute.xlu0 %3433
        %3435 = vrot.lane.b32.xlu0 %v1095, 21
        %v3436 = vpop.permute.xlu0 %3435
        %3437 = vrot.lane.b32.xlu0 %v1096, 21
        %v3438 = vpop.permute.xlu0 %3437
        %3439 = vrot.lane.b32.xlu0 %v1097, 21
        %v3440 = vpop.permute.xlu0 %3439
        %3441 = vrot.lane.b32.xlu0 %v1098, 21
        %v3442 = vpop.permute.xlu0 %3441
        %3443 = vrot.lane.b32.xlu0 %v1099, 21
        %v3444 = vpop.permute.xlu0 %3443
        %3445 = vrot.lane.b32.xlu0 %v1100, 21
        %v3446 = vpop.permute.xlu0 %3445
        %3447 = vrot.lane.b32.xlu0 %v1101, 21
        %v3448 = vpop.permute.xlu0 %3447
        %3449 = vrot.lane.b32.xlu0 %v1102, 21
        %v3450 = vpop.permute.xlu0 %3449
        %3451 = vrot.lane.b32.xlu0 %v1103, 21
        %v3452 = vpop.permute.xlu0 %3451
        %3453 = vrot.lane.b32.xlu0 %v1104, 21
        %v3454 = vpop.permute.xlu0 %3453
        %3455 = vrot.lane.b32.xlu0 %v1105, 21
        %v3456 = vpop.permute.xlu0 %3455
        %3457 = vrot.lane.b32.xlu0 %v1106, 21
        %v3458 = vpop.permute.xlu0 %3457
        %3459 = vrot.lane.b32.xlu0 %v1107, 21
        %v3460 = vpop.permute.xlu0 %3459
        %3461 = vrot.lane.b32.xlu0 %v1108, 21
        %v3462 = vpop.permute.xlu0 %3461
        %3463 = vrot.lane.b32.xlu0 %v1109, 21
        %v3464 = vpop.permute.xlu0 %3463
        %3465 = vrot.lane.b32.xlu0 %v1110, 21
        %v3466 = vpop.permute.xlu0 %3465
        %3467 = vrot.lane.b32.xlu0 %v1111, 21
        %v3468 = vpop.permute.xlu0 %3467
        %3469 = vrot.lane.b32.xlu0 %v1211, 21
        %v3470 = vpop.permute.xlu0 %3469
        %3471 = vrot.lane.b32.xlu0 %v1212, 21
        %v3472 = vpop.permute.xlu0 %3471
        %3473 = vrot.lane.b32.xlu0 %v1213, 21
        %v3474 = vpop.permute.xlu0 %3473
        %3475 = vrot.lane.b32.xlu0 %v1214, 21
        %v3476 = vpop.permute.xlu0 %3475
        %3571 = vrot.lane.b32.xlu0 %v759, 24
        %v3572 = vpop.permute.xlu0 %3571
        %3573 = vrot.lane.b32.xlu0 %v760, 24
        %v3574 = vpop.permute.xlu0 %3573
        %3575 = vrot.lane.b32.xlu0 %v761, 24
        %v3576 = vpop.permute.xlu0 %3575
        %3577 = vrot.lane.b32.xlu0 %v762, 24
        %v3578 = vpop.permute.xlu0 %3577
        %3579 = vrot.lane.b32.xlu0 %v763, 24
        %v3580 = vpop.permute.xlu0 %3579
        %3581 = vrot.lane.b32.xlu0 %v764, 24
        %v3582 = vpop.permute.xlu0 %3581
        %3583 = vrot.lane.b32.xlu0 %v765, 24
        %v3584 = vpop.permute.xlu0 %3583
        %3585 = vrot.lane.b32.xlu0 %v766, 24
        %v3586 = vpop.permute.xlu0 %3585
        %3587 = vrot.lane.b32.xlu0 %v767, 24
        %v3588 = vpop.permute.xlu0 %3587
        %3589 = vrot.lane.b32.xlu0 %v768, 24
        %v3590 = vpop.permute.xlu0 %3589
        %3591 = vrot.lane.b32.xlu0 %v769, 24
        %v3592 = vpop.permute.xlu0 %3591
        %3593 = vrot.lane.b32.xlu0 %v770, 24
        %v3594 = vpop.permute.xlu0 %3593
        %3595 = vrot.lane.b32.xlu0 %v771, 24
        %v3596 = vpop.permute.xlu0 %3595
        %3597 = vrot.lane.b32.xlu0 %v772, 24
        %v3598 = vpop.permute.xlu0 %3597
        %3599 = vrot.lane.b32.xlu0 %v773, 24
        %v3600 = vpop.permute.xlu0 %3599
        %3601 = vrot.lane.b32.xlu0 %v774, 24
        %v3602 = vpop.permute.xlu0 %3601
        %3603 = vrot.lane.b32.xlu0 %v775, 24
        %v3604 = vpop.permute.xlu0 %3603
        %3605 = vrot.lane.b32.xlu0 %v776, 24
        %v3606 = vpop.permute.xlu0 %3605
        %3607 = vrot.lane.b32.xlu0 %v777, 24
        %v3608 = vpop.permute.xlu0 %3607
        %3609 = vrot.lane.b32.xlu0 %v778, 24
        %v3610 = vpop.permute.xlu0 %3609
        %3611 = vrot.lane.b32.xlu0 %v779, 24
        %v3612 = vpop.permute.xlu0 %3611
        %3613 = vrot.lane.b32.xlu0 %v780, 24
        %v3614 = vpop.permute.xlu0 %3613
        %3615 = vrot.lane.b32.xlu0 %v781, 24
        %v3616 = vpop.permute.xlu0 %3615
        %3617 = vrot.lane.b32.xlu0 %v782, 24
        %v3618 = vpop.permute.xlu0 %3617
        %3619 = vrot.lane.b32.xlu0 %v783, 24
        %v3620 = vpop.permute.xlu0 %3619
        %3621 = vrot.lane.b32.xlu0 %v784, 24
        %v3622 = vpop.permute.xlu0 %3621
        %3623 = vrot.lane.b32.xlu0 %v785, 24
        %v3624 = vpop.permute.xlu0 %3623
        %3625 = vrot.lane.b32.xlu0 %v786, 24
        %v3626 = vpop.permute.xlu0 %3625
        %3627 = vrot.lane.b32.xlu0 %v787, 24
        %v3628 = vpop.permute.xlu0 %3627
        %3629 = vrot.lane.b32.xlu0 %v788, 24
        %v3630 = vpop.permute.xlu0 %3629
        %3631 = vrot.lane.b32.xlu0 %v789, 24
        %v3632 = vpop.permute.xlu0 %3631
        %3633 = vrot.lane.b32.xlu0 %v790, 24
        %v3634 = vpop.permute.xlu0 %3633
        %3635 = vrot.lane.b32.xlu0 %v791, 24
        %v3636 = vpop.permute.xlu0 %3635
        %3637 = vrot.lane.b32.xlu0 %v792, 24
        %v3638 = vpop.permute.xlu0 %3637
        %3639 = vrot.lane.b32.xlu0 %v793, 24
        %v3640 = vpop.permute.xlu0 %3639
        %3641 = vrot.lane.b32.xlu0 %v794, 24
        %v3642 = vpop.permute.xlu0 %3641
        %3643 = vrot.lane.b32.xlu0 %v795, 24
        %v3644 = vpop.permute.xlu0 %3643
        %3645 = vrot.lane.b32.xlu0 %v796, 24
        %v3646 = vpop.permute.xlu0 %3645
        %3647 = vrot.lane.b32.xlu0 %v797, 24
        %v3648 = vpop.permute.xlu0 %3647
        %3649 = vrot.lane.b32.xlu0 %v798, 24
        %v3650 = vpop.permute.xlu0 %3649
        %3651 = vrot.lane.b32.xlu0 %v799, 24
        %v3652 = vpop.permute.xlu0 %3651
        %3653 = vrot.lane.b32.xlu0 %v800, 24
        %v3654 = vpop.permute.xlu0 %3653
        %3655 = vrot.lane.b32.xlu0 %v801, 24
        %v3656 = vpop.permute.xlu0 %3655
        %3657 = vrot.lane.b32.xlu0 %v802, 24
        %v3658 = vpop.permute.xlu0 %3657
        %3659 = vrot.lane.b32.xlu0 %v803, 24
        %v3660 = vpop.permute.xlu0 %3659
        %3661 = vrot.lane.b32.xlu0 %v804, 24
        %v3662 = vpop.permute.xlu0 %3661
        %3663 = vrot.lane.b32.xlu0 %v805, 24
        %v3664 = vpop.permute.xlu0 %3663
        %3665 = vrot.lane.b32.xlu0 %v806, 24
        %v3666 = vpop.permute.xlu0 %3665
        %3667 = vrot.lane.b32.xlu0 %v807, 24
        %v3668 = vpop.permute.xlu0 %3667
        %3669 = vrot.lane.b32.xlu0 %v808, 24
        %v3670 = vpop.permute.xlu0 %3669
        %3671 = vrot.lane.b32.xlu0 %v809, 24
        %v3672 = vpop.permute.xlu0 %3671
        %3673 = vrot.lane.b32.xlu0 %v810, 24
        %v3674 = vpop.permute.xlu0 %3673
        %3675 = vrot.lane.b32.xlu0 %v811, 24
        %v3676 = vpop.permute.xlu0 %3675
        %3677 = vrot.lane.b32.xlu0 %v812, 24
        %v3678 = vpop.permute.xlu0 %3677
        %3679 = vrot.lane.b32.xlu0 %v813, 24
        %v3680 = vpop.permute.xlu0 %3679
        %3681 = vrot.lane.b32.xlu0 %v814, 24
        %v3682 = vpop.permute.xlu0 %3681
        %3683 = vrot.lane.b32.xlu0 %v815, 24
        %v3684 = vpop.permute.xlu0 %3683
        %3685 = vrot.lane.b32.xlu0 %v816, 24
        %v3686 = vpop.permute.xlu0 %3685
        %3687 = vrot.lane.b32.xlu0 %v817, 24
        %v3688 = vpop.permute.xlu0 %3687
        %3689 = vrot.lane.b32.xlu0 %v818, 24
        %v3690 = vpop.permute.xlu0 %3689
        %3691 = vrot.lane.b32.xlu0 %v819, 24
        %v3692 = vpop.permute.xlu0 %3691
        %3693 = vrot.lane.b32.xlu0 %v820, 24
        %v3694 = vpop.permute.xlu0 %3693
        %3695 = vrot.lane.b32.xlu0 %v821, 24
        %v3696 = vpop.permute.xlu0 %3695
        %3697 = vrot.lane.b32.xlu0 %v822, 24
        %v3698 = vpop.permute.xlu0 %3697
        %3699 = vrot.lane.b32.xlu0 %v823, 24
        %v3700 = vpop.permute.xlu0 %3699
        %3701 = vrot.lane.b32.xlu0 %v824, 24
        %v3702 = vpop.permute.xlu0 %3701
        %3703 = vrot.lane.b32.xlu0 %v825, 24
        %v3704 = vpop.permute.xlu0 %3703
        %3705 = vrot.lane.b32.xlu0 %v826, 24
        %v3706 = vpop.permute.xlu0 %3705
        %3707 = vrot.lane.b32.xlu0 %v827, 24
        %v3708 = vpop.permute.xlu0 %3707
        %3709 = vrot.lane.b32.xlu0 %v828, 24
        %v3710 = vpop.permute.xlu0 %3709
        %3711 = vrot.lane.b32.xlu0 %v829, 24
        %v3712 = vpop.permute.xlu0 %3711
        %3713 = vrot.lane.b32.xlu0 %v830, 24
        %v3714 = vpop.permute.xlu0 %3713
        %3715 = vrot.lane.b32.xlu0 %v831, 24
        %v3716 = vpop.permute.xlu0 %3715
        %3717 = vrot.lane.b32.xlu0 %v832, 24
        %v3718 = vpop.permute.xlu0 %3717
        %3719 = vrot.lane.b32.xlu0 %v833, 24
        %v3720 = vpop.permute.xlu0 %3719
        %3721 = vrot.lane.b32.xlu0 %v834, 24
        %v3722 = vpop.permute.xlu0 %3721
        %3723 = vrot.lane.b32.xlu0 %v835, 24
        %v3724 = vpop.permute.xlu0 %3723
        %3725 = vrot.lane.b32.xlu0 %v836, 24
        %v3726 = vpop.permute.xlu0 %3725
        %3727 = vrot.lane.b32.xlu0 %v837, 24
        %v3728 = vpop.permute.xlu0 %3727
        %3729 = vrot.lane.b32.xlu0 %v838, 24
        %v3730 = vpop.permute.xlu0 %3729
        %3731 = vrot.lane.b32.xlu0 %v839, 24
        %v3732 = vpop.permute.xlu0 %3731
        %3733 = vrot.lane.b32.xlu0 %v840, 24
        %v3734 = vpop.permute.xlu0 %3733
        %3735 = vrot.lane.b32.xlu0 %v841, 24
        %v3736 = vpop.permute.xlu0 %3735
        %3737 = vrot.lane.b32.xlu0 %v1113, 24
        %v3738 = vpop.permute.xlu0 %3737
        %3739 = vrot.lane.b32.xlu0 %v1114, 24
        %v3740 = vpop.permute.xlu0 %3739
        %3741 = vrot.lane.b32.xlu0 %v1115, 24
        %v3742 = vpop.permute.xlu0 %3741
        %3743 = vrot.lane.b32.xlu0 %v1215, 24
        %v3744 = vpop.permute.xlu0 %3743
        %3745 = vrot.lane.b32.xlu0 %v1216, 24
        %v3746 = vpop.permute.xlu0 %3745
        %3747 = vrot.lane.b32.xlu0 %v1217, 24
        %v3748 = vpop.permute.xlu0 %3747
        %3749 = vrot.lane.b32.xlu0 %v1218, 24
        %v3750 = vpop.permute.xlu0 %3749
        %v3841 = vsel %vm475, %v753, %v1310
        %v3842 = vsel %vm475, %v754, %v1312
        %v3843 = vsel %vm475, %v755, %v1314
        %v3844 = vsel %vm475, %v756, %v1316
        %v3845 = vsel %vm475, %v757, %v1318
        %v3846 = vsel %vm475, %v758, %v1320
        %v3847 = vsel %vm475, %v759, %v1322
        %v3848 = vsel %vm475, %v760, %v1324
        %v3849 = vsel %vm475, %v761, %v1326
        %v3850 = vsel %vm475, %v762, %v1328
        %v3851 = vsel %vm475, %v763, %v1330
        %v3852 = vsel %vm475, %v764, %v1332
        %v3853 = vsel %vm475, %v765, %v1334
        %v3854 = vsel %vm475, %v766, %v1336
        %v3855 = vsel %vm475, %v767, %v1338
        %v3856 = vsel %vm475, %v768, %v1340
        %v3857 = vsel %vm475, %v769, %v1342
        %v3858 = vsel %vm475, %v770, %v1344
        %v3859 = vsel %vm475, %v771, %v1346
        %v3860 = vsel %vm475, %v772, %v1348
        %v3861 = vsel %vm475, %v773, %v1350
        %v3862 = vsel %vm475, %v774, %v1352
        %v3863 = vsel %vm475, %v775, %v1354
        %v3864 = vsel %vm475, %v776, %v1356
        %v3865 = vsel %vm475, %v777, %v1358
        %v3866 = vsel %vm475, %v778, %v1360
        %v3867 = vsel %vm475, %v779, %v1362
        %v3868 = vsel %vm475, %v780, %v1364
        %v3869 = vsel %vm475, %v781, %v1366
        %v3870 = vsel %vm475, %v782, %v1368
        %v3871 = vsel %vm475, %v783, %v1370
        %v3872 = vsel %vm475, %v784, %v1372
        %v3873 = vsel %vm475, %v785, %v1374
        %v3874 = vsel %vm475, %v786, %v1376
        %v3875 = vsel %vm475, %v787, %v1378
        %v3876 = vsel %vm475, %v788, %v1380
        %v3877 = vsel %vm475, %v789, %v1382
        %v3878 = vsel %vm475, %v790, %v1384
        %v3879 = vsel %vm475, %v791, %v1386
        %v3880 = vsel %vm475, %v792, %v1388
        %v3881 = vsel %vm475, %v793, %v1390
        %v3882 = vsel %vm475, %v794, %v1392
        %v3883 = vsel %vm475, %v795, %v1394
        %v3884 = vsel %vm475, %v796, %v1396
        %v3885 = vsel %vm475, %v797, %v1398
        %v3886 = vsel %vm475, %v798, %v1400
        %v3887 = vsel %vm475, %v799, %v1402
        %v3888 = vsel %vm475, %v800, %v1404
        %v3889 = vsel %vm475, %v801, %v1406
        %v3890 = vsel %vm475, %v802, %v1408
        %v3891 = vsel %vm475, %v803, %v1410
        %v3892 = vsel %vm475, %v804, %v1412
        %v3893 = vsel %vm475, %v805, %v1414
        %v3894 = vsel %vm475, %v806, %v1416
        %v3895 = vsel %vm475, %v807, %v1418
        %v3896 = vsel %vm475, %v808, %v1420
        %v3897 = vsel %vm475, %v809, %v1422
        %v3898 = vsel %vm475, %v810, %v1424
        %v3899 = vsel %vm475, %v811, %v1426
        %v3900 = vsel %vm475, %v812, %v1428
        %v3901 = vsel %vm475, %v813, %v1430
        %v3902 = vsel %vm475, %v814, %v1432
        %v3903 = vsel %vm475, %v815, %v1434
        %v3904 = vsel %vm475, %v816, %v1436
        %v3905 = vsel %vm475, %v817, %v1438
        %v3906 = vsel %vm475, %v818, %v1440
        %v3907 = vsel %vm475, %v819, %v1442
        %v3908 = vsel %vm475, %v820, %v1444
        %v3909 = vsel %vm475, %v821, %v1446
        %v3910 = vsel %vm475, %v822, %v1448
        %v3911 = vsel %vm475, %v823, %v1450
        %v3912 = vsel %vm475, %v824, %v1452
        %v3913 = vsel %vm475, %v825, %v1454
        %v3914 = vsel %vm475, %v826, %v1456
        %v3915 = vsel %vm475, %v827, %v1458
        %v3916 = vsel %vm475, %v828, %v1460
        %v3917 = vsel %vm475, %v829, %v1462
        %v3918 = vsel %vm475, %v830, %v1464
        %v3919 = vsel %vm475, %v831, %v1466
        %v3920 = vsel %vm475, %v832, %v1468
        %v3921 = vsel %vm475, %v833, %v1470
        %v3922 = vsel %vm475, %v834, %v1472
        %v3923 = vsel %vm475, %v835, %v1474
        %v3924 = vsel %vm475, %v836, %v1476
        %v3925 = vsel %vm475, %v837, %v1478
        %v3926 = vsel %vm475, %v838, %v1480
        %v3927 = vsel %vm475, %v839, %v1482
        %v3928 = vsel %vm475, %v840, %v1484
        %v3929 = vsel %vm475, %v841, %v1486
        %v3930 = vsel %vm475, %v842, %v1488
        %vm3931 = vcmask 48128
        %v3932 = vsel %vm3931, %v3841, %v1670
        %v3933 = vsel %vm3931, %v3842, %v1672
        %v3934 = vsel %vm3931, %v3843, %v1674
        %v3935 = vsel %vm3931, %v3844, %v1676
        %v3936 = vsel %vm3931, %v3845, %v1678
        %v3937 = vsel %vm3931, %v3846, %v1680
        %v3938 = vsel %vm3931, %v3847, %v1682
        %v3939 = vsel %vm3931, %v3848, %v1684
        %v3940 = vsel %vm3931, %v3849, %v1686
        %v3941 = vsel %vm3931, %v3850, %v1688
        %v3942 = vsel %vm3931, %v3851, %v1690
        %v3943 = vsel %vm3931, %v3852, %v1692
        %v3944 = vsel %vm3931, %v3853, %v1694
        %v3945 = vsel %vm3931, %v3854, %v1696
        %v3946 = vsel %vm3931, %v3855, %v1698
        %v3947 = vsel %vm3931, %v3856, %v1700
        %v3948 = vsel %vm3931, %v3857, %v1702
        %v3949 = vsel %vm3931, %v3858, %v1704
        %v3950 = vsel %vm3931, %v3859, %v1706
        %v3951 = vsel %vm3931, %v3860, %v1708
        %v3952 = vsel %vm3931, %v3861, %v1710
        %v3953 = vsel %vm3931, %v3862, %v1712
        %v3954 = vsel %vm3931, %v3863, %v1714
        %v3955 = vsel %vm3931, %v3864, %v1716
        %v3956 = vsel %vm3931, %v3865, %v1718
        %v3957 = vsel %vm3931, %v3866, %v1720
        %v3958 = vsel %vm3931, %v3867, %v1722
        %v3959 = vsel %vm3931, %v3868, %v1724
        %v3960 = vsel %vm3931, %v3869, %v1726
        %v3961 = vsel %vm3931, %v3870, %v1728
        %v3962 = vsel %vm3931, %v3871, %v1730
        %v3963 = vsel %vm3931, %v3872, %v1732
        %v3964 = vsel %vm3931, %v3873, %v1734
        %v3965 = vsel %vm3931, %v3874, %v1736
        %v3966 = vsel %vm3931, %v3875, %v1738
        %v3967 = vsel %vm3931, %v3876, %v1740
        %v3968 = vsel %vm3931, %v3877, %v1742
        %v3969 = vsel %vm3931, %v3878, %v1744
        %v3970 = vsel %vm3931, %v3879, %v1746
        %v3971 = vsel %vm3931, %v3880, %v1748
        %v3972 = vsel %vm3931, %v3881, %v1750
        %v3973 = vsel %vm3931, %v3882, %v1752
        %v3974 = vsel %vm3931, %v3883, %v1754
        %v3975 = vsel %vm3931, %v3884, %v1756
        %v3976 = vsel %vm3931, %v3885, %v1758
        %v3977 = vsel %vm3931, %v3886, %v1760
        %v3978 = vsel %vm3931, %v3887, %v1762
        %v3979 = vsel %vm3931, %v3888, %v1764
        %v3980 = vsel %vm3931, %v3889, %v1766
        %v3981 = vsel %vm3931, %v3890, %v1768
        %v3982 = vsel %vm3931, %v3891, %v1770
        %v3983 = vsel %vm3931, %v3892, %v1772
        %v3984 = vsel %vm3931, %v3893, %v1774
        %v3985 = vsel %vm3931, %v3894, %v1776
        %v3986 = vsel %vm3931, %v3895, %v1778
        %v3987 = vsel %vm3931, %v3896, %v1780
        %v3988 = vsel %vm3931, %v3897, %v1782
        %v3989 = vsel %vm3931, %v3898, %v1784
        %v3990 = vsel %vm3931, %v3899, %v1786
        %v3991 = vsel %vm3931, %v3900, %v1788
        %v3992 = vsel %vm3931, %v3901, %v1790
        %v3993 = vsel %vm3931, %v3902, %v1792
        %v3994 = vsel %vm3931, %v3903, %v1794
        %v3995 = vsel %vm3931, %v3904, %v1796
        %v3996 = vsel %vm3931, %v3905, %v1798
        %v3997 = vsel %vm3931, %v3906, %v1800
        %v3998 = vsel %vm3931, %v3907, %v1802
        %v3999 = vsel %vm3931, %v3908, %v1804
        %v4000 = vsel %vm3931, %v3909, %v1806
        %v4001 = vsel %vm3931, %v3910, %v1808
        %v4002 = vsel %vm3931, %v3911, %v1810
        %v4003 = vsel %vm3931, %v3912, %v1812
        %v4004 = vsel %vm3931, %v3913, %v1814
        %v4005 = vsel %vm3931, %v3914, %v1816
        %v4006 = vsel %vm3931, %v3915, %v1818
        %v4007 = vsel %vm3931, %v3916, %v1820
        %v4008 = vsel %vm3931, %v3917, %v1822
        %v4009 = vsel %vm3931, %v3918, %v1824
        %v4010 = vsel %vm3931, %v3919, %v1826
        %v4011 = vsel %vm3931, %v3920, %v1828
        %v4012 = vsel %vm3931, %v3921, %v1830
        %v4013 = vsel %vm3931, %v3922, %v1832
        %v4014 = vsel %vm3931, %v3923, %v1834
        %v4015 = vsel %vm3931, %v3924, %v1836
        %v4016 = vsel %vm3931, %v3925, %v1838
        %v4017 = vsel %vm3931, %v3926, %v1840
        %v4018 = vsel %vm3931, %v3927, %v1842
        %v4019 = vsel %vm3931, %v3928, %v1844
        %v4020 = vsel %vm3931, %v3929, %v1846
        %v4021 = vsel %vm3931, %v3930, %v1848
        %vm4022 = vcmask 72704
        %v4023 = vsel %vm4022, %v3932, %v2030
        %v4024 = vsel %vm4022, %v3933, %v2032
        %v4025 = vsel %vm4022, %v3934, %v2034
        %v4026 = vsel %vm4022, %v3935, %v2036
        %v4027 = vsel %vm4022, %v3936, %v2038
        %v4028 = vsel %vm4022, %v3937, %v2040
        %v4029 = vsel %vm4022, %v3938, %v2042
        %v4030 = vsel %vm4022, %v3939, %v2044
        %v4031 = vsel %vm4022, %v3940, %v2046
        %v4032 = vsel %vm4022, %v3941, %v2048
        %v4033 = vsel %vm4022, %v3942, %v2050
        %v4034 = vsel %vm4022, %v3943, %v2052
        %v4035 = vsel %vm4022, %v3944, %v2054
        %v4036 = vsel %vm4022, %v3945, %v2056
        %v4037 = vsel %vm4022, %v3946, %v2058
        %v4038 = vsel %vm4022, %v3947, %v2060
        %v4039 = vsel %vm4022, %v3948, %v2062
        %v4040 = vsel %vm4022, %v3949, %v2064
        %v4041 = vsel %vm4022, %v3950, %v2066
        %v4042 = vsel %vm4022, %v3951, %v2068
        %v4043 = vsel %vm4022, %v3952, %v2070
        %v4044 = vsel %vm4022, %v3953, %v2072
        %v4045 = vsel %vm4022, %v3954, %v2074
        %v4046 = vsel %vm4022, %v3955, %v2076
        %v4047 = vsel %vm4022, %v3956, %v2078
        %v4048 = vsel %vm4022, %v3957, %v2080
        %v4049 = vsel %vm4022, %v3958, %v2082
        %v4050 = vsel %vm4022, %v3959, %v2084
        %v4051 = vsel %vm4022, %v3960, %v2086
        %v4052 = vsel %vm4022, %v3961, %v2088
        %v4053 = vsel %vm4022, %v3962, %v2090
        %v4054 = vsel %vm4022, %v3963, %v2092
        %v4055 = vsel %vm4022, %v3964, %v2094
        %v4056 = vsel %vm4022, %v3965, %v2096
        %v4057 = vsel %vm4022, %v3966, %v2098
        %v4058 = vsel %vm4022, %v3967, %v2100
        %v4059 = vsel %vm4022, %v3968, %v2102
        %v4060 = vsel %vm4022, %v3969, %v2104
        %v4061 = vsel %vm4022, %v3970, %v2106
        %v4062 = vsel %vm4022, %v3971, %v2108
        %v4063 = vsel %vm4022, %v3972, %v2110
        %v4064 = vsel %vm4022, %v3973, %v2112
        %v4065 = vsel %vm4022, %v3974, %v2114
        %v4066 = vsel %vm4022, %v3975, %v2116
        %v4067 = vsel %vm4022, %v3976, %v2118
        %v4068 = vsel %vm4022, %v3977, %v2120
        %v4069 = vsel %vm4022, %v3978, %v2122
        %v4070 = vsel %vm4022, %v3979, %v2124
        %v4071 = vsel %vm4022, %v3980, %v2126
        %v4072 = vsel %vm4022, %v3981, %v2128
        %v4073 = vsel %vm4022, %v3982, %v2130
        %v4074 = vsel %vm4022, %v3983, %v2132
        %v4075 = vsel %vm4022, %v3984, %v2134
        %v4076 = vsel %vm4022, %v3985, %v2136
        %v4077 = vsel %vm4022, %v3986, %v2138
        %v4078 = vsel %vm4022, %v3987, %v2140
        %v4079 = vsel %vm4022, %v3988, %v2142
        %v4080 = vsel %vm4022, %v3989, %v2144
        %v4081 = vsel %vm4022, %v3990, %v2146
        %v4082 = vsel %vm4022, %v3991, %v2148
        %v4083 = vsel %vm4022, %v3992, %v2150
        %v4084 = vsel %vm4022, %v3993, %v2152
        %v4085 = vsel %vm4022, %v3994, %v2154
        %v4086 = vsel %vm4022, %v3995, %v2156
        %v4087 = vsel %vm4022, %v3996, %v2158
        %v4088 = vsel %vm4022, %v3997, %v2160
        %v4089 = vsel %vm4022, %v3998, %v2162
        %v4090 = vsel %vm4022, %v3999, %v2164
        %v4091 = vsel %vm4022, %v4000, %v2166
        %v4092 = vsel %vm4022, %v4001, %v2168
        %v4093 = vsel %vm4022, %v4002, %v2170
        %v4094 = vsel %vm4022, %v4003, %v2172
        %v4095 = vsel %vm4022, %v4004, %v2174
        %v4096 = vsel %vm4022, %v4005, %v2176
        %v4097 = vsel %vm4022, %v4006, %v2178
        %v4098 = vsel %vm4022, %v4007, %v2180
        %v4099 = vsel %vm4022, %v4008, %v2182
        %v4100 = vsel %vm4022, %v4009, %v2184
        %v4101 = vsel %vm4022, %v4010, %v2186
        %v4102 = vsel %vm4022, %v4011, %v2188
        %v4103 = vsel %vm4022, %v4012, %v2190
        %v4104 = vsel %vm4022, %v4013, %v2192
        %v4105 = vsel %vm4022, %v4014, %v2194
        %v4106 = vsel %vm4022, %v4015, %v2196
        %v4107 = vsel %vm4022, %v4016, %v2198
        %v4108 = vsel %vm4022, %v4017, %v2200
        %v4109 = vsel %vm4022, %v4018, %v2202
        %v4110 = vsel %vm4022, %v4019, %v2204
        %v4111 = vsel %vm4022, %v4020, %v2206
        %v4112 = vsel %vm4022, %v4021, %v2208
        %vm4113 = vcmask 97280
        %v4114 = vsel %vm4113, %v4023, %v2390
        %v4115 = vsel %vm4113, %v4024, %v2392
        %v4116 = vsel %vm4113, %v4025, %v2394
        %v4117 = vsel %vm4113, %v4026, %v2396
        %v4118 = vsel %vm4113, %v4027, %v2398
        %v4119 = vsel %vm4113, %v4028, %v2400
        %v4120 = vsel %vm4113, %v4029, %v2402
        %v4121 = vsel %vm4113, %v4030, %v2404
        %v4122 = vsel %vm4113, %v4031, %v2406
        %v4123 = vsel %vm4113, %v4032, %v2408
        %v4124 = vsel %vm4113, %v4033, %v2410
        %v4125 = vsel %vm4113, %v4034, %v2412
        %v4126 = vsel %vm4113, %v4035, %v2414
        %v4127 = vsel %vm4113, %v4036, %v2416
        %v4128 = vsel %vm4113, %v4037, %v2418
        %v4129 = vsel %vm4113, %v4038, %v2420
        %v4130 = vsel %vm4113, %v4039, %v2422
        %v4131 = vsel %vm4113, %v4040, %v2424
        %v4132 = vsel %vm4113, %v4041, %v2426
        %v4133 = vsel %vm4113, %v4042, %v2428
        %v4134 = vsel %vm4113, %v4043, %v2430
        %v4135 = vsel %vm4113, %v4044, %v2432
        %v4136 = vsel %vm4113, %v4045, %v2434
        %v4137 = vsel %vm4113, %v4046, %v2436
        %v4138 = vsel %vm4113, %v4047, %v2438
        %v4139 = vsel %vm4113, %v4048, %v2440
        %v4140 = vsel %vm4113, %v4049, %v2442
        %v4141 = vsel %vm4113, %v4050, %v2444
        %v4142 = vsel %vm4113, %v4051, %v2446
        %v4143 = vsel %vm4113, %v4052, %v2448
        %v4144 = vsel %vm4113, %v4053, %v2450
        %v4145 = vsel %vm4113, %v4054, %v2452
        %v4146 = vsel %vm4113, %v4055, %v2454
        %v4147 = vsel %vm4113, %v4056, %v2456
        %v4148 = vsel %vm4113, %v4057, %v2458
        %v4149 = vsel %vm4113, %v4058, %v2460
        %v4150 = vsel %vm4113, %v4059, %v2462
        %v4151 = vsel %vm4113, %v4060, %v2464
        %v4152 = vsel %vm4113, %v4061, %v2466
        %v4153 = vsel %vm4113, %v4062, %v2468
        %v4154 = vsel %vm4113, %v4063, %v2470
        %v4155 = vsel %vm4113, %v4064, %v2472
        %v4156 = vsel %vm4113, %v4065, %v2474
        %v4157 = vsel %vm4113, %v4066, %v2476
        %v4158 = vsel %vm4113, %v4067, %v2478
        %v4159 = vsel %vm4113, %v4068, %v2480
        %v4160 = vsel %vm4113, %v4069, %v2482
        %v4161 = vsel %vm4113, %v4070, %v2484
        %v4162 = vsel %vm4113, %v4071, %v2486
        %v4163 = vsel %vm4113, %v4072, %v2488
        %v4164 = vsel %vm4113, %v4073, %v2490
        %v4165 = vsel %vm4113, %v4074, %v2492
        %v4166 = vsel %vm4113, %v4075, %v2494
        %v4167 = vsel %vm4113, %v4076, %v2496
        %v4168 = vsel %vm4113, %v4077, %v2498
        %v4169 = vsel %vm4113, %v4078, %v2500
        %v4170 = vsel %vm4113, %v4079, %v2502
        %v4171 = vsel %vm4113, %v4080, %v2504
        %v4172 = vsel %vm4113, %v4081, %v2506
        %v4173 = vsel %vm4113, %v4082, %v2508
        %v4174 = vsel %vm4113, %v4083, %v2510
        %v4175 = vsel %vm4113, %v4084, %v2512
        %v4176 = vsel %vm4113, %v4085, %v2514
        %v4177 = vsel %vm4113, %v4086, %v2516
        %v4178 = vsel %vm4113, %v4087, %v2518
        %v4179 = vsel %vm4113, %v4088, %v2520
        %v4180 = vsel %vm4113, %v4089, %v2522
        %v4181 = vsel %vm4113, %v4090, %v2524
        %v4182 = vsel %vm4113, %v4091, %v2526
        %v4183 = vsel %vm4113, %v4092, %v2528
        %v4184 = vsel %vm4113, %v4093, %v2530
        %v4185 = vsel %vm4113, %v4094, %v2532
        %v4186 = vsel %vm4113, %v4095, %v2534
        %v4187 = vsel %vm4113, %v4096, %v2536
        %v4188 = vsel %vm4113, %v4097, %v2538
        %v4189 = vsel %vm4113, %v4098, %v2540
        %v4190 = vsel %vm4113, %v4099, %v2542
        %v4191 = vsel %vm4113, %v4100, %v2544
        %v4192 = vsel %vm4113, %v4101, %v2546
        %v4193 = vsel %vm4113, %v4102, %v2548
        %v4194 = vsel %vm4113, %v4103, %v2550
        %v4195 = vsel %vm4113, %v4104, %v2552
        %v4196 = vsel %vm4113, %v4105, %v2554
        %v4197 = vsel %vm4113, %v4106, %v2556
        %v4198 = vsel %vm4113, %v4107, %v2558
        %v4199 = vsel %vm4113, %v4108, %v2560
        %v4200 = vsel %vm4113, %v4109, %v2562
        %v4201 = vsel %vm4113, %v4110, %v2564
        %v4202 = vsel %vm4113, %v4111, %v2566
        %v4203 = vsel %vm4113, %v4112, %v2568
        %vm4204 = vcmask 121856
        %v4205 = vsel %vm4204, %v4114, %v2664
        %v4206 = vsel %vm4204, %v4115, %v2666
        %v4207 = vsel %vm4204, %v4116, %v2668
        %v4208 = vsel %vm4204, %v4117, %v2670
        %v4209 = vsel %vm4204, %v4118, %v2672
        %v4210 = vsel %vm4204, %v4119, %v2674
        %v4211 = vsel %vm4204, %v4120, %v2676
        %v4212 = vsel %vm4204, %v4121, %v2678
        %v4213 = vsel %vm4204, %v4122, %v2680
        %v4214 = vsel %vm4204, %v4123, %v2682
        %v4215 = vsel %vm4204, %v4124, %v2684
        %v4216 = vsel %vm4204, %v4125, %v2686
        %v4217 = vsel %vm4204, %v4126, %v2688
        %v4218 = vsel %vm4204, %v4127, %v2690
        %v4219 = vsel %vm4204, %v4128, %v2692
        %v4220 = vsel %vm4204, %v4129, %v2694
        %v4221 = vsel %vm4204, %v4130, %v2696
        %v4222 = vsel %vm4204, %v4131, %v2698
        %v4223 = vsel %vm4204, %v4132, %v2700
        %v4224 = vsel %vm4204, %v4133, %v2702
        %v4225 = vsel %vm4204, %v4134, %v2704
        %v4226 = vsel %vm4204, %v4135, %v2706
        %v4227 = vsel %vm4204, %v4136, %v2708
        %v4228 = vsel %vm4204, %v4137, %v2710
        %v4229 = vsel %vm4204, %v4138, %v2712
        %v4230 = vsel %vm4204, %v4139, %v2714
        %v4231 = vsel %vm4204, %v4140, %v2716
        %v4232 = vsel %vm4204, %v4141, %v2718
        %v4233 = vsel %vm4204, %v4142, %v2720
        %v4234 = vsel %vm4204, %v4143, %v2722
        %v4235 = vsel %vm4204, %v4144, %v2724
        %v4236 = vsel %vm4204, %v4145, %v2726
        %v4237 = vsel %vm4204, %v4146, %v2728
        %v4238 = vsel %vm4204, %v4147, %v2730
        %v4239 = vsel %vm4204, %v4148, %v2732
        %v4240 = vsel %vm4204, %v4149, %v2734
        %v4241 = vsel %vm4204, %v4150, %v2736
        %v4242 = vsel %vm4204, %v4151, %v2738
        %v4243 = vsel %vm4204, %v4152, %v2740
        %v4244 = vsel %vm4204, %v4153, %v2742
        %v4245 = vsel %vm4204, %v4154, %v2744
        %v4246 = vsel %vm4204, %v4155, %v2746
        %v4247 = vsel %vm4204, %v4156, %v2748
        %v4248 = vsel %vm4204, %v4157, %v2750
        %v4249 = vsel %vm4204, %v4158, %v2752
        %v4250 = vsel %vm4204, %v4159, %v2754
        %v4251 = vsel %vm4204, %v4160, %v2756
        %v4252 = vsel %vm4204, %v4161, %v2758
        %v4253 = vsel %vm4204, %v4162, %v2760
        %v4254 = vsel %vm4204, %v4163, %v2762
        %v4255 = vsel %vm4204, %v4164, %v2764
        %v4256 = vsel %vm4204, %v4165, %v2766
        %v4257 = vsel %vm4204, %v4166, %v2768
        %v4258 = vsel %vm4204, %v4167, %v2770
        %v4259 = vsel %vm4204, %v4168, %v2772
        %v4260 = vsel %vm4204, %v4169, %v2774
        %v4261 = vsel %vm4204, %v4170, %v2776
        %v4262 = vsel %vm4204, %v4171, %v2778
        %v4263 = vsel %vm4204, %v4172, %v2780
        %v4264 = vsel %vm4204, %v4173, %v2782
        %v4265 = vsel %vm4204, %v4174, %v2784
        %v4266 = vsel %vm4204, %v4175, %v2786
        %v4267 = vsel %vm4204, %v4176, %v2788
        %v4268 = vsel %vm4204, %v4177, %v2790
        %v4269 = vsel %vm4204, %v4178, %v2792
        %v4270 = vsel %vm4204, %v4179, %v2794
        %v4271 = vsel %vm4204, %v4180, %v2796
        %v4272 = vsel %vm4204, %v4181, %v2798
        %v4273 = vsel %vm4204, %v4182, %v2800
        %v4274 = vsel %vm4204, %v4183, %v2802
        %v4275 = vsel %vm4204, %v4184, %v2804
        %v4276 = vsel %vm4204, %v4185, %v2806
        %v4277 = vsel %vm4204, %v4186, %v2808
        %v4278 = vsel %vm4204, %v4187, %v2810
        %v4279 = vsel %vm4204, %v4188, %v2812
        %v4280 = vsel %vm4204, %v4189, %v2814
        %v4281 = vsel %vm4204, %v4190, %v2816
        %v4282 = vsel %vm4204, %v4191, %v2818
        %v4283 = vsel %vm4204, %v4192, %v2820
        %v4284 = vsel %vm4204, %v4193, %v2822
        %v4285 = vsel %vm4204, %v4194, %v2824
        %v4286 = vsel %vm4204, %v4195, %v2826
        %v4287 = vsel %vm4204, %v4196, %v2828
        %v4288 = vsel %vm4204, %v4197, %v2830
        %v4289 = vsel %vm4204, %v4198, %v2832
        %v4290 = vsel %vm4204, %v4199, %v2834
        %v4291 = vsel %vm4204, %v4200, %v2836
        %v4292 = vsel %vm4204, %v4201, %v2838
        %v4293 = vsel %vm4204, %v4202, %v2840
        %v4294 = vsel %vm4204, %v4203, %v2842
        %vm4295 = vcmask 146432
        %v4296 = vsel %vm4295, %v4205, %v3024
        %v4297 = vsel %vm4295, %v4206, %v3026
        %v4298 = vsel %vm4295, %v4207, %v3028
        %v4299 = vsel %vm4295, %v4208, %v3030
        %v4300 = vsel %vm4295, %v4209, %v3032
        %v4301 = vsel %vm4295, %v4210, %v3034
        %v4302 = vsel %vm4295, %v4211, %v3036
        %v4303 = vsel %vm4295, %v4212, %v3038
        %v4304 = vsel %vm4295, %v4213, %v3040
        %v4305 = vsel %vm4295, %v4214, %v3042
        %v4306 = vsel %vm4295, %v4215, %v3044
        %v4307 = vsel %vm4295, %v4216, %v3046
        %v4308 = vsel %vm4295, %v4217, %v3048
        %v4309 = vsel %vm4295, %v4218, %v3050
        %v4310 = vsel %vm4295, %v4219, %v3052
        %v4311 = vsel %vm4295, %v4220, %v3054
        %v4312 = vsel %vm4295, %v4221, %v3056
        %v4313 = vsel %vm4295, %v4222, %v3058
        %v4314 = vsel %vm4295, %v4223, %v3060
        %v4315 = vsel %vm4295, %v4224, %v3062
        %v4316 = vsel %vm4295, %v4225, %v3064
        %v4317 = vsel %vm4295, %v4226, %v3066
        %v4318 = vsel %vm4295, %v4227, %v3068
        %v4319 = vsel %vm4295, %v4228, %v3070
        %v4320 = vsel %vm4295, %v4229, %v3072
        %v4321 = vsel %vm4295, %v4230, %v3074
        %v4322 = vsel %vm4295, %v4231, %v3076
        %v4323 = vsel %vm4295, %v4232, %v3078
        %v4324 = vsel %vm4295, %v4233, %v3080
        %v4325 = vsel %vm4295, %v4234, %v3082
        %v4326 = vsel %vm4295, %v4235, %v3084
        %v4327 = vsel %vm4295, %v4236, %v3086
        %v4328 = vsel %vm4295, %v4237, %v3088
        %v4329 = vsel %vm4295, %v4238, %v3090
        %v4330 = vsel %vm4295, %v4239, %v3092
        %v4331 = vsel %vm4295, %v4240, %v3094
        %v4332 = vsel %vm4295, %v4241, %v3096
        %v4333 = vsel %vm4295, %v4242, %v3098
        %v4334 = vsel %vm4295, %v4243, %v3100
        %v4335 = vsel %vm4295, %v4244, %v3102
        %v4336 = vsel %vm4295, %v4245, %v3104
        %v4337 = vsel %vm4295, %v4246, %v3106
        %v4338 = vsel %vm4295, %v4247, %v3108
        %v4339 = vsel %vm4295, %v4248, %v3110
        %v4340 = vsel %vm4295, %v4249, %v3112
        %v4341 = vsel %vm4295, %v4250, %v3114
        %v4342 = vsel %vm4295, %v4251, %v3116
        %v4343 = vsel %vm4295, %v4252, %v3118
        %v4344 = vsel %vm4295, %v4253, %v3120
        %v4345 = vsel %vm4295, %v4254, %v3122
        %v4346 = vsel %vm4295, %v4255, %v3124
        %v4347 = vsel %vm4295, %v4256, %v3126
        %v4348 = vsel %vm4295, %v4257, %v3128
        %v4349 = vsel %vm4295, %v4258, %v3130
        %v4350 = vsel %vm4295, %v4259, %v3132
        %v4351 = vsel %vm4295, %v4260, %v3134
        %v4352 = vsel %vm4295, %v4261, %v3136
        %v4353 = vsel %vm4295, %v4262, %v3138
        %v4354 = vsel %vm4295, %v4263, %v3140
        %v4355 = vsel %vm4295, %v4264, %v3142
        %v4356 = vsel %vm4295, %v4265, %v3144
        %v4357 = vsel %vm4295, %v4266, %v3146
        %v4358 = vsel %vm4295, %v4267, %v3148
        %v4359 = vsel %vm4295, %v4268, %v3150
        %v4360 = vsel %vm4295, %v4269, %v3152
        %v4361 = vsel %vm4295, %v4270, %v3154
        %v4362 = vsel %vm4295, %v4271, %v3156
        %v4363 = vsel %vm4295, %v4272, %v3158
        %v4364 = vsel %vm4295, %v4273, %v3160
        %v4365 = vsel %vm4295, %v4274, %v3162
        %v4366 = vsel %vm4295, %v4275, %v3164
        %v4367 = vsel %vm4295, %v4276, %v3166
        %v4368 = vsel %vm4295, %v4277, %v3168
        %v4369 = vsel %vm4295, %v4278, %v3170
        %v4370 = vsel %vm4295, %v4279, %v3172
        %v4371 = vsel %vm4295, %v4280, %v3174
        %v4372 = vsel %vm4295, %v4281, %v3176
        %v4373 = vsel %vm4295, %v4282, %v3178
        %v4374 = vsel %vm4295, %v4283, %v3180
        %v4375 = vsel %vm4295, %v4284, %v3182
        %v4376 = vsel %vm4295, %v4285, %v3184
        %v4377 = vsel %vm4295, %v4286, %v3186
        %v4378 = vsel %vm4295, %v4287, %v3188
        %v4379 = vsel %vm4295, %v4288, %v3190
        %v4380 = vsel %vm4295, %v4289, %v3192
        %v4381 = vsel %vm4295, %v4290, %v3194
        %v4382 = vsel %vm4295, %v4291, %v3196
        %v4383 = vsel %vm4295, %v4292, %v3198
        %v4384 = vsel %vm4295, %v4293, %v3200
        %v4385 = vsel %vm4295, %v4294, %v3202
        %vm4386 = vcmask 171008
        %v4387 = vsel %vm4386, %v4296, %v3298
        %v4388 = vsel %vm4386, %v4297, %v3300
        %v4389 = vsel %vm4386, %v4298, %v3302
        %v4390 = vsel %vm4386, %v4299, %v3304
        %v4391 = vsel %vm4386, %v4300, %v3306
        %v4392 = vsel %vm4386, %v4301, %v3308
        %v4393 = vsel %vm4386, %v4302, %v3310
        %v4394 = vsel %vm4386, %v4303, %v3312
        %v4395 = vsel %vm4386, %v4304, %v3314
        %v4396 = vsel %vm4386, %v4305, %v3316
        %v4397 = vsel %vm4386, %v4306, %v3318
        %v4398 = vsel %vm4386, %v4307, %v3320
        %v4399 = vsel %vm4386, %v4308, %v3322
        %v4400 = vsel %vm4386, %v4309, %v3324
        %v4401 = vsel %vm4386, %v4310, %v3326
        %v4402 = vsel %vm4386, %v4311, %v3328
        %v4403 = vsel %vm4386, %v4312, %v3330
        %v4404 = vsel %vm4386, %v4313, %v3332
        %v4405 = vsel %vm4386, %v4314, %v3334
        %v4406 = vsel %vm4386, %v4315, %v3336
        %v4407 = vsel %vm4386, %v4316, %v3338
        %v4408 = vsel %vm4386, %v4317, %v3340
        %v4409 = vsel %vm4386, %v4318, %v3342
        %v4410 = vsel %vm4386, %v4319, %v3344
        %v4411 = vsel %vm4386, %v4320, %v3346
        %v4412 = vsel %vm4386, %v4321, %v3348
        %v4413 = vsel %vm4386, %v4322, %v3350
        %v4414 = vsel %vm4386, %v4323, %v3352
        %v4415 = vsel %vm4386, %v4324, %v3354
        %v4416 = vsel %vm4386, %v4325, %v3356
        %v4417 = vsel %vm4386, %v4326, %v3358
        %v4418 = vsel %vm4386, %v4327, %v3360
        %v4419 = vsel %vm4386, %v4328, %v3362
        %v4420 = vsel %vm4386, %v4329, %v3364
        %v4421 = vsel %vm4386, %v4330, %v3366
        %v4422 = vsel %vm4386, %v4331, %v3368
        %v4423 = vsel %vm4386, %v4332, %v3370
        %v4424 = vsel %vm4386, %v4333, %v3372
        %v4425 = vsel %vm4386, %v4334, %v3374
        %v4426 = vsel %vm4386, %v4335, %v3376
        %v4427 = vsel %vm4386, %v4336, %v3378
        %v4428 = vsel %vm4386, %v4337, %v3380
        %v4429 = vsel %vm4386, %v4338, %v3382
        %v4430 = vsel %vm4386, %v4339, %v3384
        %v4431 = vsel %vm4386, %v4340, %v3386
        %v4432 = vsel %vm4386, %v4341, %v3388
        %v4433 = vsel %vm4386, %v4342, %v3390
        %v4434 = vsel %vm4386, %v4343, %v3392
        %v4435 = vsel %vm4386, %v4344, %v3394
        %v4436 = vsel %vm4386, %v4345, %v3396
        %v4437 = vsel %vm4386, %v4346, %v3398
        %v4438 = vsel %vm4386, %v4347, %v3400
        %v4439 = vsel %vm4386, %v4348, %v3402
        %v4440 = vsel %vm4386, %v4349, %v3404
        %v4441 = vsel %vm4386, %v4350, %v3406
        %v4442 = vsel %vm4386, %v4351, %v3408
        %v4443 = vsel %vm4386, %v4352, %v3410
        %v4444 = vsel %vm4386, %v4353, %v3412
        %v4445 = vsel %vm4386, %v4354, %v3414
        %v4446 = vsel %vm4386, %v4355, %v3416
        %v4447 = vsel %vm4386, %v4356, %v3418
        %v4448 = vsel %vm4386, %v4357, %v3420
        %v4449 = vsel %vm4386, %v4358, %v3422
        %v4450 = vsel %vm4386, %v4359, %v3424
        %v4451 = vsel %vm4386, %v4360, %v3426
        %v4452 = vsel %vm4386, %v4361, %v3428
        %v4453 = vsel %vm4386, %v4362, %v3430
        %v4454 = vsel %vm4386, %v4363, %v3432
        %v4455 = vsel %vm4386, %v4364, %v3434
        %v4456 = vsel %vm4386, %v4365, %v3436
        %v4457 = vsel %vm4386, %v4366, %v3438
        %v4458 = vsel %vm4386, %v4367, %v3440
        %v4459 = vsel %vm4386, %v4368, %v3442
        %v4460 = vsel %vm4386, %v4369, %v3444
        %v4461 = vsel %vm4386, %v4370, %v3446
        %v4462 = vsel %vm4386, %v4371, %v3448
        %v4463 = vsel %vm4386, %v4372, %v3450
        %v4464 = vsel %vm4386, %v4373, %v3452
        %v4465 = vsel %vm4386, %v4374, %v3454
        %v4466 = vsel %vm4386, %v4375, %v3456
        %v4467 = vsel %vm4386, %v4376, %v3458
        %v4468 = vsel %vm4386, %v4377, %v3460
        %v4469 = vsel %vm4386, %v4378, %v3462
        %v4470 = vsel %vm4386, %v4379, %v3464
        %v4471 = vsel %vm4386, %v4380, %v3466
        %v4472 = vsel %vm4386, %v4381, %v3468
        %v4473 = vsel %vm4386, %v4382, %v3470
        %v4474 = vsel %vm4386, %v4383, %v3472
        %v4475 = vsel %vm4386, %v4384, %v3474
        %v4476 = vsel %vm4386, %v4385, %v3476
        %vm4477 = vcmask 195584
        %v4478 = vsel %vm4477, %v4387, %v3572
        %v4479 = vsel %vm4477, %v4388, %v3574
        %v4480 = vsel %vm4477, %v4389, %v3576
        %v4481 = vsel %vm4477, %v4390, %v3578
        %v4482 = vsel %vm4477, %v4391, %v3580
        %v4483 = vsel %vm4477, %v4392, %v3582
        %v4484 = vsel %vm4477, %v4393, %v3584
        %v4485 = vsel %vm4477, %v4394, %v3586
        %v4486 = vsel %vm4477, %v4395, %v3588
        %v4487 = vsel %vm4477, %v4396, %v3590
        %v4488 = vsel %vm4477, %v4397, %v3592
        %v4489 = vsel %vm4477, %v4398, %v3594
        %v4490 = vsel %vm4477, %v4399, %v3596
        %v4491 = vsel %vm4477, %v4400, %v3598
        %v4492 = vsel %vm4477, %v4401, %v3600
        %v4493 = vsel %vm4477, %v4402, %v3602
        %v4494 = vsel %vm4477, %v4403, %v3604
        %v4495 = vsel %vm4477, %v4404, %v3606
        %v4496 = vsel %vm4477, %v4405, %v3608
        %v4497 = vsel %vm4477, %v4406, %v3610
        %v4498 = vsel %vm4477, %v4407, %v3612
        %v4499 = vsel %vm4477, %v4408, %v3614
        %v4500 = vsel %vm4477, %v4409, %v3616
        %v4501 = vsel %vm4477, %v4410, %v3618
        %v4502 = vsel %vm4477, %v4411, %v3620
        %v4503 = vsel %vm4477, %v4412, %v3622
        %v4504 = vsel %vm4477, %v4413, %v3624
        %v4505 = vsel %vm4477, %v4414, %v3626
        %v4506 = vsel %vm4477, %v4415, %v3628
        %v4507 = vsel %vm4477, %v4416, %v3630
        %v4508 = vsel %vm4477, %v4417, %v3632
        %v4509 = vsel %vm4477, %v4418, %v3634
        %v4510 = vsel %vm4477, %v4419, %v3636
        %v4511 = vsel %vm4477, %v4420, %v3638
        %v4512 = vsel %vm4477, %v4421, %v3640
        %v4513 = vsel %vm4477, %v4422, %v3642
        %v4514 = vsel %vm4477, %v4423, %v3644
        %v4515 = vsel %vm4477, %v4424, %v3646
        %v4516 = vsel %vm4477, %v4425, %v3648
        %v4517 = vsel %vm4477, %v4426, %v3650
        %v4518 = vsel %vm4477, %v4427, %v3652
        %v4519 = vsel %vm4477, %v4428, %v3654
        %v4520 = vsel %vm4477, %v4429, %v3656
        %v4521 = vsel %vm4477, %v4430, %v3658
        %v4522 = vsel %vm4477, %v4431, %v3660
        %v4523 = vsel %vm4477, %v4432, %v3662
        %v4524 = vsel %vm4477, %v4433, %v3664
        %v4525 = vsel %vm4477, %v4434, %v3666
        %v4526 = vsel %vm4477, %v4435, %v3668
        %v4527 = vsel %vm4477, %v4436, %v3670
        %v4528 = vsel %vm4477, %v4437, %v3672
        %v4529 = vsel %vm4477, %v4438, %v3674
        %v4530 = vsel %vm4477, %v4439, %v3676
        %v4531 = vsel %vm4477, %v4440, %v3678
        %v4532 = vsel %vm4477, %v4441, %v3680
        %v4533 = vsel %vm4477, %v4442, %v3682
        %v4534 = vsel %vm4477, %v4443, %v3684
        %v4535 = vsel %vm4477, %v4444, %v3686
        %v4536 = vsel %vm4477, %v4445, %v3688
        %v4537 = vsel %vm4477, %v4446, %v3690
        %v4538 = vsel %vm4477, %v4447, %v3692
        %v4539 = vsel %vm4477, %v4448, %v3694
        %v4540 = vsel %vm4477, %v4449, %v3696
        %v4541 = vsel %vm4477, %v4450, %v3698
        %v4542 = vsel %vm4477, %v4451, %v3700
        %v4543 = vsel %vm4477, %v4452, %v3702
        %v4544 = vsel %vm4477, %v4453, %v3704
        %v4545 = vsel %vm4477, %v4454, %v3706
        %v4546 = vsel %vm4477, %v4455, %v3708
        %v4547 = vsel %vm4477, %v4456, %v3710
        %v4548 = vsel %vm4477, %v4457, %v3712
        %v4549 = vsel %vm4477, %v4458, %v3714
        %v4550 = vsel %vm4477, %v4459, %v3716
        %v4551 = vsel %vm4477, %v4460, %v3718
        %v4552 = vsel %vm4477, %v4461, %v3720
        %v4553 = vsel %vm4477, %v4462, %v3722
        %v4554 = vsel %vm4477, %v4463, %v3724
        %v4555 = vsel %vm4477, %v4464, %v3726
        %v4556 = vsel %vm4477, %v4465, %v3728
        %v4557 = vsel %vm4477, %v4466, %v3730
        %v4558 = vsel %vm4477, %v4467, %v3732
        %v4559 = vsel %vm4477, %v4468, %v3734
        %v4560 = vsel %vm4477, %v4469, %v3736
        %v4561 = vsel %vm4477, %v4470, %v3738
        %v4562 = vsel %vm4477, %v4471, %v3740
        %v4563 = vsel %vm4477, %v4472, %v3742
        %v4564 = vsel %vm4477, %v4473, %v3744
        %v4565 = vsel %vm4477, %v4474, %v3746
        %v4566 = vsel %vm4477, %v4475, %v3748
        %v4567 = vsel %vm4477, %v4476, %v3750
        %v4568 = vpack.c.bf16 %v4479, %v4478
        %v4569 = vpack.c.bf16 %v4481, %v4480
        %v4570 = vpack.c.bf16 %v4483, %v4482
        %v4571 = vpack.c.bf16 %v4485, %v4484
        %v4572 = vpack.c.bf16 %v4487, %v4486
        %v4573 = vpack.c.bf16 %v4489, %v4488
        %v4574 = vpack.c.bf16 %v4491, %v4490
        %v4575 = vpack.c.bf16 %v4493, %v4492
        %v4576 = vpack.c.bf16 %v4495, %v4494
        %v4577 = vpack.c.bf16 %v4497, %v4496
        %v4578 = vpack.c.bf16 %v4499, %v4498
        %v4579 = vpack.c.bf16 %v4501, %v4500
        %v4580 = vpack.c.bf16 %v4503, %v4502
        %v4581 = vpack.c.bf16 %v4505, %v4504
        %v4582 = vpack.c.bf16 %v4507, %v4506
        %v4583 = vpack.c.bf16 %v4509, %v4508
        %v4584 = vpack.c.bf16 %v4511, %v4510
        %v4585 = vpack.c.bf16 %v4513, %v4512
        %v4586 = vpack.c.bf16 %v4515, %v4514
        %v4587 = vpack.c.bf16 %v4517, %v4516
        %v4588 = vpack.c.bf16 %v4519, %v4518
        %v4589 = vpack.c.bf16 %v4521, %v4520
        %v4590 = vpack.c.bf16 %v4523, %v4522
        %v4591 = vpack.c.bf16 %v4525, %v4524
        %v4592 = vpack.c.bf16 %v4527, %v4526
        %v4593 = vpack.c.bf16 %v4529, %v4528
        %v4594 = vpack.c.bf16 %v4531, %v4530
        %v4595 = vpack.c.bf16 %v4533, %v4532
        %v4596 = vpack.c.bf16 %v4535, %v4534
        %v4597 = vpack.c.bf16 %v4537, %v4536
        %v4598 = vpack.c.bf16 %v4539, %v4538
        %v4599 = vpack.c.bf16 %v4541, %v4540
        %v4600 = vpack.c.bf16 %v4543, %v4542
        %v4601 = vpack.c.bf16 %v4545, %v4544
        %v4602 = vpack.c.bf16 %v4547, %v4546
        %v4603 = vpack.c.bf16 %v4549, %v4548
        %v4604 = vpack.c.bf16 %v4551, %v4550
        %v4605 = vpack.c.bf16 %v4553, %v4552
        %v4606 = vpack.c.bf16 %v4555, %v4554
        %v4607 = vpack.c.bf16 %v4557, %v4556
        %v4608 = vpack.c.bf16 %v4559, %v4558
        %v4609 = vpack.c.bf16 %v4561, %v4560
        %v4610 = vpack.c.bf16 %v4563, %v4562
        %v4611 = vpack.c.bf16 %v4565, %v4564
        %v4612 = vpack.c.bf16 %v4567, %v4566
        %v4613 = vld [vmem:[%s1] sm:$0xf]
        %v4614 = vld [vmem:[%s1 + $0x4] sm:$0xf]
        %v4615 = vld [vmem:[%s1 + $0x8] sm:$0xf]
        %v4616 = vld [vmem:[%s1 + $0xc] sm:$0x3]
        %v4617 = vld [vmem:[%s2] sm:$0x1]
        %v4619 = vlaneseq
        %v4620 = vshrl.u32 %v4619, 7
        %v4621 = vsub.s32 0, %v4620
        %v4622 = vrot.slane %v4617, %v4621
        %v4628 = vunpack.c.l.b16 %v4613
        %v4629 = vunpack.c.l.b16 %v4614
        %v4630 = vunpack.c.l.b16 %v4615
        %v4631 = vunpack.c.l.b16 %v4616
        %v4632 = vpack.c.b16 %v4629, %v4628
        %v4633 = vpack.c.b16 %v4631, %v4630
        %vm4635 = vcmask 220160
        %v4637 = vsel %vm4635, %v4568, 0
        %v4640 = vsel %vm4635, %v4569, 0
        %v4643 = vsel %vm4635, %v4570, 0
        %v4646 = vsel %vm4635, %v4571, 0
        %v4649 = vsel %vm4635, %v4572, 0
        %v4652 = vsel %vm4635, %v4573, 0
        %v4655 = vsel %vm4635, %v4574, 0
        %v4658 = vsel %vm4635, %v4575, 0
        %v4661 = vsel %vm4635, %v4576, 0
        %v4664 = vsel %vm4635, %v4577, 0
        %v4667 = vsel %vm4635, %v4578, 0
        %v4670 = vsel %vm4635, %v4579, 0
        %v4673 = vsel %vm4635, %v4580, 0
        %v4676 = vsel %vm4635, %v4581, 0
        %v4679 = vsel %vm4635, %v4582, 0
        %v4682 = vsel %vm4635, %v4583, 0
        %v4685 = vsel %vm4635, %v4584, 0
        %v4688 = vsel %vm4635, %v4585, 0
        %v4691 = vsel %vm4635, %v4586, 0
        %v4694 = vsel %vm4635, %v4587, 0
        %v4697 = vsel %vm4635, %v4588, 0
        %v4700 = vsel %vm4635, %v4589, 0
        %v4703 = vsel %vm4635, %v4590, 0
        %v4706 = vsel %vm4635, %v4591, 0
        %v4709 = vsel %vm4635, %v4592, 0
        %v4712 = vsel %vm4635, %v4593, 0
        %v4715 = vsel %vm4635, %v4594, 0
        %v4718 = vsel %vm4635, %v4595, 0
        %v4721 = vsel %vm4635, %v4596, 0
        %v4724 = vsel %vm4635, %v4597, 0
        %v4727 = vsel %vm4635, %v4598, 0
        %v4730 = vsel %vm4635, %v4599, 0
        %v4733 = vsel %vm4635, %v4600, 0
        %v4736 = vsel %vm4635, %v4601, 0
        %v4739 = vsel %vm4635, %v4602, 0
        %v4742 = vsel %vm4635, %v4603, 0
        %v4745 = vsel %vm4635, %v4604, 0
        %v4748 = vsel %vm4635, %v4605, 0
        %v4751 = vsel %vm4635, %v4606, 0
        %v4754 = vsel %vm4635, %v4607, 0
        %v4757 = vsel %vm4635, %v4608, 0
        %v4760 = vsel %vm4635, %v4609, 0
        %v4763 = vsel %vm4635, %v4610, 0
        %v4766 = vsel %vm4635, %v4611, 0
        %v4769 = vsel %vm4635, %v4612, 0
        %vm4771 = vcmask 1044480
        %vm4772 = vcmask 1045504
        %v4773 = vsel %vm4771, 4294967295, 65535
        %v4774 = vsel %vm4772, %v4773, 0
        %v4776 = vand.u32 %v4633, %v4774
        %4778 = vmatprep.subr.bf16.mxu0 0
        %4779 = vmatpush1.bf16.msra.mxu0 0
        %4780 = vmatprep.subr.bf16.mxu0 0
        %4781 = vmatpush1.bf16.msra.mxu0 0
        %4782 = vmatprep.subr.bf16.mxu0 0
        %4783 = vmatpush1.bf16.msra.mxu0 0
        %4784 = vmatprep.subr.bf16.mxu0 0
        %4785 = vmatpush1.bf16.msra.mxu0 0
        %4786 = vmatprep.subr.bf16.mxu0 0
        %4787 = vmatpush1.bf16.msra.mxu0 0
        %4788 = vmatprep.subr.bf16.mxu0 0
        %4789 = vmatpush1.bf16.msra.mxu0 0
        %4790 = vmatprep.subr.bf16.mxu0 0
        %4791 = vmatpush1.bf16.msra.mxu0 %v4776
        %4792 = vmatprep.subr.bf16.mxu0 0
        %4793 = vmatpush1.bf16.msra.mxu0 %v4632
        %4794 = vmatprep.subr.bf16.mxu0 0
        %4795 = vmatpush2.bf16.msra.mxu0 0
        %4796 = vmatprep.subr.bf16.mxu0 0
        %4797 = vmatpush2.bf16.msra.mxu0 0
        %4798 = vmatprep.subr.bf16.mxu0 0
        %4799 = vmatpush2.bf16.msra.mxu0 0
        %4800 = vmatprep.subr.bf16.mxu0 0
        %4801 = vmatpush2.bf16.msra.mxu0 0
        %4802 = vmatprep.subr.bf16.mxu0 0
        %4803 = vmatpush2.bf16.msra.mxu0 0
        %4804 = vmatprep.subr.bf16.mxu0 0
        %4805 = vmatpush2.bf16.msra.mxu0 0
        %4806 = vmatprep.subr.bf16.mxu0 0
        %4807 = vmatpush2.bf16.msra.mxu0 0
        %4808 = vmatprep.subr.bf16.mxu0 0
        %4809 = vmatpush2.bf16.msra.mxu0 0
        %4810 = vmatprep.mubr.bf16.mxu0 0
        %4811 = vmatmul.mubr.bf16.gmra.mxu0 %v4637
        %v4812 = vpop.f32.mrf.mxu0
        %v4813 = vadd.f32 %v4622, %v4812
        %v4814 = vpop.f32.mrf.mxu0
        %v4815 = vpop.f32.mrf.mxu0
        %v4816 = vadd.f32 %v4622, %v4815
        %v4817 = vpop.f32.mrf.mxu0
        %4818 = vmatprep.mubr.bf16.mxu0 0
        %4819 = vmatmul.mubr.bf16.gmra.mxu0 %v4640
        %v4820 = vpop.f32.mrf.mxu0
        %v4821 = vadd.f32 %v4622, %v4820
        %v4822 = vpop.f32.mrf.mxu0
        %v4823 = vpop.f32.mrf.mxu0
        %v4824 = vadd.f32 %v4622, %v4823
        %v4825 = vpop.f32.mrf.mxu0
        %4826 = vmatprep.mubr.bf16.mxu0 0
        %4827 = vmatmul.mubr.bf16.gmra.mxu0 %v4643
        %v4828 = vpop.f32.mrf.mxu0
        %v4829 = vadd.f32 %v4622, %v4828
        %v4830 = vpop.f32.mrf.mxu0
        %v4831 = vpop.f32.mrf.mxu0
        %v4832 = vadd.f32 %v4622, %v4831
        %v4833 = vpop.f32.mrf.mxu0
        %4834 = vmatprep.mubr.bf16.mxu0 0
        %4835 = vmatmul.mubr.bf16.gmra.mxu0 %v4646
        %v4836 = vpop.f32.mrf.mxu0
        %v4837 = vadd.f32 %v4622, %v4836
        %v4838 = vpop.f32.mrf.mxu0
        %v4839 = vpop.f32.mrf.mxu0
        %v4840 = vadd.f32 %v4622, %v4839
        %v4841 = vpop.f32.mrf.mxu0
        %4842 = vmatprep.mubr.bf16.mxu0 0
        %4843 = vmatmul.mubr.bf16.gmra.mxu0 %v4649
        %v4844 = vpop.f32.mrf.mxu0
        %v4845 = vadd.f32 %v4622, %v4844
        %v4846 = vpop.f32.mrf.mxu0
        %v4847 = vpop.f32.mrf.mxu0
        %v4848 = vadd.f32 %v4622, %v4847
        %v4849 = vpop.f32.mrf.mxu0
        %4850 = vmatprep.mubr.bf16.mxu0 0
        %4851 = vmatmul.mubr.bf16.gmra.mxu0 %v4652
        %v4852 = vpop.f32.mrf.mxu0
        %v4853 = vadd.f32 %v4622, %v4852
        %v4854 = vpop.f32.mrf.mxu0
        %v4855 = vpop.f32.mrf.mxu0
        %v4856 = vadd.f32 %v4622, %v4855
        %v4857 = vpop.f32.mrf.mxu0
        %4858 = vmatprep.mubr.bf16.mxu0 0
        %4859 = vmatmul.mubr.bf16.gmra.mxu0 %v4655
        %v4860 = vpop.f32.mrf.mxu0
        %v4861 = vadd.f32 %v4622, %v4860
        %v4862 = vpop.f32.mrf.mxu0
        %v4863 = vpop.f32.mrf.mxu0
        %v4864 = vadd.f32 %v4622, %v4863
        %v4865 = vpop.f32.mrf.mxu0
        %4866 = vmatprep.mubr.bf16.mxu0 0
        %4867 = vmatmul.mubr.bf16.gmra.mxu0 %v4658
        %v4868 = vpop.f32.mrf.mxu0
        %v4869 = vadd.f32 %v4622, %v4868
        %v4870 = vpop.f32.mrf.mxu0
        %v4871 = vpop.f32.mrf.mxu0
        %v4872 = vadd.f32 %v4622, %v4871
        %v4873 = vpop.f32.mrf.mxu0
        %4874 = vmatprep.mubr.bf16.mxu0 0
        %4875 = vmatmul.mubr.bf16.gmra.mxu0 %v4661
        %v4876 = vpop.f32.mrf.mxu0
        %v4877 = vadd.f32 %v4622, %v4876
        %v4878 = vpop.f32.mrf.mxu0
        %v4879 = vpop.f32.mrf.mxu0
        %v4880 = vadd.f32 %v4622, %v4879
        %v4881 = vpop.f32.mrf.mxu0
        %4882 = vmatprep.mubr.bf16.mxu0 0
        %4883 = vmatmul.mubr.bf16.gmra.mxu0 %v4664
        %v4884 = vpop.f32.mrf.mxu0
        %v4885 = vadd.f32 %v4622, %v4884
        %v4886 = vpop.f32.mrf.mxu0
        %v4887 = vpop.f32.mrf.mxu0
        %v4888 = vadd.f32 %v4622, %v4887
        %v4889 = vpop.f32.mrf.mxu0
        %4890 = vmatprep.mubr.bf16.mxu0 0
        %4891 = vmatmul.mubr.bf16.gmra.mxu0 %v4667
        %v4892 = vpop.f32.mrf.mxu0
        %v4893 = vadd.f32 %v4622, %v4892
        %v4894 = vpop.f32.mrf.mxu0
        %v4895 = vpop.f32.mrf.mxu0
        %v4896 = vadd.f32 %v4622, %v4895
        %v4897 = vpop.f32.mrf.mxu0
        %4898 = vmatprep.mubr.bf16.mxu0 0
        %4899 = vmatmul.mubr.bf16.gmra.mxu0 %v4670
        %v4900 = vpop.f32.mrf.mxu0
        %v4901 = vadd.f32 %v4622, %v4900
        %v4902 = vpop.f32.mrf.mxu0
        %v4903 = vpop.f32.mrf.mxu0
        %v4904 = vadd.f32 %v4622, %v4903
        %v4905 = vpop.f32.mrf.mxu0
        %4906 = vmatprep.mubr.bf16.mxu0 0
        %4907 = vmatmul.mubr.bf16.gmra.mxu0 %v4673
        %v4908 = vpop.f32.mrf.mxu0
        %v4909 = vadd.f32 %v4622, %v4908
        %v4910 = vpop.f32.mrf.mxu0
        %v4911 = vpop.f32.mrf.mxu0
        %v4912 = vadd.f32 %v4622, %v4911
        %v4913 = vpop.f32.mrf.mxu0
        %4914 = vmatprep.mubr.bf16.mxu0 0
        %4915 = vmatmul.mubr.bf16.gmra.mxu0 %v4676
        %v4916 = vpop.f32.mrf.mxu0
        %v4917 = vadd.f32 %v4622, %v4916
        %v4918 = vpop.f32.mrf.mxu0
        %v4919 = vpop.f32.mrf.mxu0
        %v4920 = vadd.f32 %v4622, %v4919
        %v4921 = vpop.f32.mrf.mxu0
        %4922 = vmatprep.mubr.bf16.mxu0 0
        %4923 = vmatmul.mubr.bf16.gmra.mxu0 %v4679
        %v4924 = vpop.f32.mrf.mxu0
        %v4925 = vadd.f32 %v4622, %v4924
        %v4926 = vpop.f32.mrf.mxu0
        %v4927 = vpop.f32.mrf.mxu0
        %v4928 = vadd.f32 %v4622, %v4927
        %v4929 = vpop.f32.mrf.mxu0
        %4930 = vmatprep.mubr.bf16.mxu0 0
        %4931 = vmatmul.mubr.bf16.gmra.mxu0 %v4682
        %v4932 = vpop.f32.mrf.mxu0
        %v4933 = vadd.f32 %v4622, %v4932
        %v4934 = vpop.f32.mrf.mxu0
        %v4935 = vpop.f32.mrf.mxu0
        %v4936 = vadd.f32 %v4622, %v4935
        %v4937 = vpop.f32.mrf.mxu0
        %4938 = vmatprep.mubr.bf16.mxu0 0
        %4939 = vmatmul.mubr.bf16.gmra.mxu0 %v4685
        %v4940 = vpop.f32.mrf.mxu0
        %v4941 = vadd.f32 %v4622, %v4940
        %v4942 = vpop.f32.mrf.mxu0
        %v4943 = vpop.f32.mrf.mxu0
        %v4944 = vadd.f32 %v4622, %v4943
        %v4945 = vpop.f32.mrf.mxu0
        %4946 = vmatprep.mubr.bf16.mxu0 0
        %4947 = vmatmul.mubr.bf16.gmra.mxu0 %v4688
        %v4948 = vpop.f32.mrf.mxu0
        %v4949 = vadd.f32 %v4622, %v4948
        %v4950 = vpop.f32.mrf.mxu0
        %v4951 = vpop.f32.mrf.mxu0
        %v4952 = vadd.f32 %v4622, %v4951
        %v4953 = vpop.f32.mrf.mxu0
        %4954 = vmatprep.mubr.bf16.mxu0 0
        %4955 = vmatmul.mubr.bf16.gmra.mxu0 %v4691
        %v4956 = vpop.f32.mrf.mxu0
        %v4957 = vadd.f32 %v4622, %v4956
        %v4958 = vpop.f32.mrf.mxu0
        %v4959 = vpop.f32.mrf.mxu0
        %v4960 = vadd.f32 %v4622, %v4959
        %v4961 = vpop.f32.mrf.mxu0
        %4962 = vmatprep.mubr.bf16.mxu0 0
        %4963 = vmatmul.mubr.bf16.gmra.mxu0 %v4694
        %v4964 = vpop.f32.mrf.mxu0
        %v4965 = vadd.f32 %v4622, %v4964
        %v4966 = vpop.f32.mrf.mxu0
        %v4967 = vpop.f32.mrf.mxu0
        %v4968 = vadd.f32 %v4622, %v4967
        %v4969 = vpop.f32.mrf.mxu0
        %4970 = vmatprep.mubr.bf16.mxu0 0
        %4971 = vmatmul.mubr.bf16.gmra.mxu0 %v4697
        %v4972 = vpop.f32.mrf.mxu0
        %v4973 = vadd.f32 %v4622, %v4972
        %v4974 = vpop.f32.mrf.mxu0
        %v4975 = vpop.f32.mrf.mxu0
        %v4976 = vadd.f32 %v4622, %v4975
        %v4977 = vpop.f32.mrf.mxu0
        %4978 = vmatprep.mubr.bf16.mxu0 0
        %4979 = vmatmul.mubr.bf16.gmra.mxu0 %v4700
        %v4980 = vpop.f32.mrf.mxu0
        %v4981 = vadd.f32 %v4622, %v4980
        %v4982 = vpop.f32.mrf.mxu0
        %v4983 = vpop.f32.mrf.mxu0
        %v4984 = vadd.f32 %v4622, %v4983
        %v4985 = vpop.f32.mrf.mxu0
        %4986 = vmatprep.mubr.bf16.mxu0 0
        %4987 = vmatmul.mubr.bf16.gmra.mxu0 %v4703
        %v4988 = vpop.f32.mrf.mxu0
        %v4989 = vadd.f32 %v4622, %v4988
        %v4990 = vpop.f32.mrf.mxu0
        %v4991 = vpop.f32.mrf.mxu0
        %v4992 = vadd.f32 %v4622, %v4991
        %v4993 = vpop.f32.mrf.mxu0
        %4994 = vmatprep.mubr.bf16.mxu0 0
        %4995 = vmatmul.mubr.bf16.gmra.mxu0 %v4706
        %v4996 = vpop.f32.mrf.mxu0
        %v4997 = vadd.f32 %v4622, %v4996
        %v4998 = vpop.f32.mrf.mxu0
        %v4999 = vpop.f32.mrf.mxu0
        %v5000 = vadd.f32 %v4622, %v4999
        %v5001 = vpop.f32.mrf.mxu0
        %5002 = vmatprep.mubr.bf16.mxu0 0
        %5003 = vmatmul.mubr.bf16.gmra.mxu0 %v4709
        %v5004 = vpop.f32.mrf.mxu0
        %v5005 = vadd.f32 %v4622, %v5004
        %v5006 = vpop.f32.mrf.mxu0
        %v5007 = vpop.f32.mrf.mxu0
        %v5008 = vadd.f32 %v4622, %v5007
        %v5009 = vpop.f32.mrf.mxu0
        %5010 = vmatprep.mubr.bf16.mxu0 0
        %5011 = vmatmul.mubr.bf16.gmra.mxu0 %v4712
        %v5012 = vpop.f32.mrf.mxu0
        %v5013 = vadd.f32 %v4622, %v5012
        %v5014 = vpop.f32.mrf.mxu0
        %v5015 = vpop.f32.mrf.mxu0
        %v5016 = vadd.f32 %v4622, %v5015
        %v5017 = vpop.f32.mrf.mxu0
        %5018 = vmatprep.mubr.bf16.mxu0 0
        %5019 = vmatmul.mubr.bf16.gmra.mxu0 %v4715
        %v5020 = vpop.f32.mrf.mxu0
        %v5021 = vadd.f32 %v4622, %v5020
        %v5022 = vpop.f32.mrf.mxu0
        %v5023 = vpop.f32.mrf.mxu0
        %v5024 = vadd.f32 %v4622, %v5023
        %v5025 = vpop.f32.mrf.mxu0
        %5026 = vmatprep.mubr.bf16.mxu0 0
        %5027 = vmatmul.mubr.bf16.gmra.mxu0 %v4718
        %v5028 = vpop.f32.mrf.mxu0
        %v5029 = vadd.f32 %v4622, %v5028
        %v5030 = vpop.f32.mrf.mxu0
        %v5031 = vpop.f32.mrf.mxu0
        %v5032 = vadd.f32 %v4622, %v5031
        %v5033 = vpop.f32.mrf.mxu0
        %5034 = vmatprep.mubr.bf16.mxu0 0
        %5035 = vmatmul.mubr.bf16.gmra.mxu0 %v4721
        %v5036 = vpop.f32.mrf.mxu0
        %v5037 = vadd.f32 %v4622, %v5036
        %v5038 = vpop.f32.mrf.mxu0
        %v5039 = vpop.f32.mrf.mxu0
        %v5040 = vadd.f32 %v4622, %v5039
        %v5041 = vpop.f32.mrf.mxu0
        %5042 = vmatprep.mubr.bf16.mxu0 0
        %5043 = vmatmul.mubr.bf16.gmra.mxu0 %v4724
        %v5044 = vpop.f32.mrf.mxu0
        %v5045 = vadd.f32 %v4622, %v5044
        %v5046 = vpop.f32.mrf.mxu0
        %v5047 = vpop.f32.mrf.mxu0
        %v5048 = vadd.f32 %v4622, %v5047
        %v5049 = vpop.f32.mrf.mxu0
        %5050 = vmatprep.mubr.bf16.mxu0 0
        %5051 = vmatmul.mubr.bf16.gmra.mxu0 %v4727
        %v5052 = vpop.f32.mrf.mxu0
        %v5053 = vadd.f32 %v4622, %v5052
        %v5054 = vpop.f32.mrf.mxu0
        %v5055 = vpop.f32.mrf.mxu0
        %v5056 = vadd.f32 %v4622, %v5055
        %v5057 = vpop.f32.mrf.mxu0
        %5058 = vmatprep.mubr.bf16.mxu0 0
        %5059 = vmatmul.mubr.bf16.gmra.mxu0 %v4730
        %v5060 = vpop.f32.mrf.mxu0
        %v5061 = vadd.f32 %v4622, %v5060
        %v5062 = vpop.f32.mrf.mxu0
        %v5063 = vpop.f32.mrf.mxu0
        %v5064 = vadd.f32 %v4622, %v5063
        %v5065 = vpop.f32.mrf.mxu0
        %5066 = vmatprep.mubr.bf16.mxu0 0
        %5067 = vmatmul.mubr.bf16.gmra.mxu0 %v4733
        %v5068 = vpop.f32.mrf.mxu0
        %v5069 = vadd.f32 %v4622, %v5068
        %v5070 = vpop.f32.mrf.mxu0
        %v5071 = vpop.f32.mrf.mxu0
        %v5072 = vadd.f32 %v4622, %v5071
        %v5073 = vpop.f32.mrf.mxu0
        %5074 = vmatprep.mubr.bf16.mxu0 0
        %5075 = vmatmul.mubr.bf16.gmra.mxu0 %v4736
        %v5076 = vpop.f32.mrf.mxu0
        %v5077 = vadd.f32 %v4622, %v5076
        %v5078 = vpop.f32.mrf.mxu0
        %v5079 = vpop.f32.mrf.mxu0
        %v5080 = vadd.f32 %v4622, %v5079
        %v5081 = vpop.f32.mrf.mxu0
        %5082 = vmatprep.mubr.bf16.mxu0 0
        %5083 = vmatmul.mubr.bf16.gmra.mxu0 %v4739
        %v5084 = vpop.f32.mrf.mxu0
        %v5085 = vadd.f32 %v4622, %v5084
        %v5086 = vpop.f32.mrf.mxu0
        %v5087 = vpop.f32.mrf.mxu0
        %v5088 = vadd.f32 %v4622, %v5087
        %v5089 = vpop.f32.mrf.mxu0
        %5090 = vmatprep.mubr.bf16.mxu0 0
        %5091 = vmatmul.mubr.bf16.gmra.mxu0 %v4742
        %v5092 = vpop.f32.mrf.mxu0
        %v5093 = vadd.f32 %v4622, %v5092
        %v5094 = vpop.f32.mrf.mxu0
        %v5095 = vpop.f32.mrf.mxu0
        %v5096 = vadd.f32 %v4622, %v5095
        %v5097 = vpop.f32.mrf.mxu0
        %5098 = vmatprep.mubr.bf16.mxu0 0
        %5099 = vmatmul.mubr.bf16.gmra.mxu0 %v4745
        %v5100 = vpop.f32.mrf.mxu0
        %v5101 = vadd.f32 %v4622, %v5100
        %v5102 = vpop.f32.mrf.mxu0
        %v5103 = vpop.f32.mrf.mxu0
        %v5104 = vadd.f32 %v4622, %v5103
        %v5105 = vpop.f32.mrf.mxu0
        %5106 = vmatprep.mubr.bf16.mxu0 0
        %5107 = vmatmul.mubr.bf16.gmra.mxu0 %v4748
        %v5108 = vpop.f32.mrf.mxu0
        %v5109 = vadd.f32 %v4622, %v5108
        %v5110 = vpop.f32.mrf.mxu0
        %v5111 = vpop.f32.mrf.mxu0
        %v5112 = vadd.f32 %v4622, %v5111
        %v5113 = vpop.f32.mrf.mxu0
        %5114 = vmatprep.mubr.bf16.mxu0 0
        %5115 = vmatmul.mubr.bf16.gmra.mxu0 %v4751
        %v5116 = vpop.f32.mrf.mxu0
        %v5117 = vadd.f32 %v4622, %v5116
        %v5118 = vpop.f32.mrf.mxu0
        %v5119 = vpop.f32.mrf.mxu0
        %v5120 = vadd.f32 %v4622, %v5119
        %v5121 = vpop.f32.mrf.mxu0
        %5122 = vmatprep.mubr.bf16.mxu0 0
        %5123 = vmatmul.mubr.bf16.gmra.mxu0 %v4754
        %v5124 = vpop.f32.mrf.mxu0
        %v5125 = vadd.f32 %v4622, %v5124
        %v5126 = vpop.f32.mrf.mxu0
        %v5127 = vpop.f32.mrf.mxu0
        %v5128 = vadd.f32 %v4622, %v5127
        %v5129 = vpop.f32.mrf.mxu0
        %5130 = vmatprep.mubr.bf16.mxu0 0
        %5131 = vmatmul.mubr.bf16.gmra.mxu0 %v4757
        %v5132 = vpop.f32.mrf.mxu0
        %v5133 = vadd.f32 %v4622, %v5132
        %v5134 = vpop.f32.mrf.mxu0
        %v5135 = vpop.f32.mrf.mxu0
        %v5136 = vadd.f32 %v4622, %v5135
        %v5137 = vpop.f32.mrf.mxu0
        %5138 = vmatprep.mubr.bf16.mxu0 0
        %5139 = vmatmul.mubr.bf16.gmra.mxu0 %v4760
        %v5140 = vpop.f32.mrf.mxu0
        %v5141 = vadd.f32 %v4622, %v5140
        %v5142 = vpop.f32.mrf.mxu0
        %v5143 = vpop.f32.mrf.mxu0
        %v5144 = vadd.f32 %v4622, %v5143
        %v5145 = vpop.f32.mrf.mxu0
        %5146 = vmatprep.mubr.bf16.mxu0 0
        %5147 = vmatmul.mubr.bf16.gmra.mxu0 %v4763
        %v5148 = vpop.f32.mrf.mxu0
        %v5149 = vadd.f32 %v4622, %v5148
        %v5150 = vpop.f32.mrf.mxu0
        %v5151 = vpop.f32.mrf.mxu0
        %v5152 = vadd.f32 %v4622, %v5151
        %v5153 = vpop.f32.mrf.mxu0
        %5154 = vmatprep.mubr.bf16.mxu0 0
        %5155 = vmatmul.mubr.bf16.gmra.mxu0 %v4766
        %v5156 = vpop.f32.mrf.mxu0
        %v5157 = vadd.f32 %v4622, %v5156
        %v5158 = vpop.f32.mrf.mxu0
        %v5159 = vpop.f32.mrf.mxu0
        %v5160 = vadd.f32 %v4622, %v5159
        %v5161 = vpop.f32.mrf.mxu0
        %5162 = vmatprep.mubr.bf16.mxu0 0
        %5163 = vmatmul.mubr.bf16.gmra.mxu0 %v4769
        %v5164 = vpop.f32.mrf.mxu0
        %v5165 = vadd.f32 %v4622, %v5164
        %v5166 = vpop.f32.mrf.mxu0
        %v5167 = vpop.f32.mrf.mxu0
        %v5168 = vadd.f32 %v4622, %v5167
        %v5169 = vpop.f32.mrf.mxu0
        %5170 = vdwg.mxu0
        %v5171 = vmax.f32 %v4813, 0.0
        %v5172 = vmax.f32 %v4816, 0.0
        %v5173 = vmax.f32 %v4821, 0.0
        %v5174 = vmax.f32 %v4824, 0.0
        %v5175 = vmax.f32 %v4829, 0.0
        %v5176 = vmax.f32 %v4832, 0.0
        %v5177 = vmax.f32 %v4837, 0.0
        %v5178 = vmax.f32 %v4840, 0.0
        %v5179 = vmax.f32 %v4845, 0.0
        %v5180 = vmax.f32 %v4848, 0.0
        %v5181 = vmax.f32 %v4853, 0.0
        %v5182 = vmax.f32 %v4856, 0.0
        %v5183 = vmax.f32 %v4861, 0.0
        %v5184 = vmax.f32 %v4864, 0.0
        %v5185 = vmax.f32 %v4869, 0.0
        %v5186 = vmax.f32 %v4872, 0.0
        %v5187 = vmax.f32 %v4877, 0.0
        %v5188 = vmax.f32 %v4880, 0.0
        %v5189 = vmax.f32 %v4885, 0.0
        %v5190 = vmax.f32 %v4888, 0.0
        %v5191 = vmax.f32 %v4893, 0.0
        %v5192 = vmax.f32 %v4896, 0.0
        %v5193 = vmax.f32 %v4901, 0.0
        %v5194 = vmax.f32 %v4904, 0.0
        %v5195 = vmax.f32 %v4909, 0.0
        %v5196 = vmax.f32 %v4912, 0.0
        %v5197 = vmax.f32 %v4917, 0.0
        %v5198 = vmax.f32 %v4920, 0.0
        %v5199 = vmax.f32 %v4925, 0.0
        %v5200 = vmax.f32 %v4928, 0.0
        %v5201 = vmax.f32 %v4933, 0.0
        %v5202 = vmax.f32 %v4936, 0.0
        %v5203 = vmax.f32 %v4941, 0.0
        %v5204 = vmax.f32 %v4944, 0.0
        %v5205 = vmax.f32 %v4949, 0.0
        %v5206 = vmax.f32 %v4952, 0.0
        %v5207 = vmax.f32 %v4957, 0.0
        %v5208 = vmax.f32 %v4960, 0.0
        %v5209 = vmax.f32 %v4965, 0.0
        %v5210 = vmax.f32 %v4968, 0.0
        %v5211 = vmax.f32 %v4973, 0.0
        %v5212 = vmax.f32 %v4976, 0.0
        %v5213 = vmax.f32 %v4981, 0.0
        %v5214 = vmax.f32 %v4984, 0.0
        %v5215 = vmax.f32 %v4989, 0.0
        %v5216 = vmax.f32 %v4992, 0.0
        %v5217 = vmax.f32 %v4997, 0.0
        %v5218 = vmax.f32 %v5000, 0.0
        %v5219 = vmax.f32 %v5005, 0.0
        %v5220 = vmax.f32 %v5008, 0.0
        %v5221 = vmax.f32 %v5013, 0.0
        %v5222 = vmax.f32 %v5016, 0.0
        %v5223 = vmax.f32 %v5021, 0.0
        %v5224 = vmax.f32 %v5024, 0.0
        %v5225 = vmax.f32 %v5029, 0.0
        %v5226 = vmax.f32 %v5032, 0.0
        %v5227 = vmax.f32 %v5037, 0.0
        %v5228 = vmax.f32 %v5040, 0.0
        %v5229 = vmax.f32 %v5045, 0.0
        %v5230 = vmax.f32 %v5048, 0.0
        %v5231 = vmax.f32 %v5053, 0.0
        %v5232 = vmax.f32 %v5056, 0.0
        %v5233 = vmax.f32 %v5061, 0.0
        %v5234 = vmax.f32 %v5064, 0.0
        %v5235 = vmax.f32 %v5069, 0.0
        %v5236 = vmax.f32 %v5072, 0.0
        %v5237 = vmax.f32 %v5077, 0.0
        %v5238 = vmax.f32 %v5080, 0.0
        %v5239 = vmax.f32 %v5085, 0.0
        %v5240 = vmax.f32 %v5088, 0.0
        %v5241 = vmax.f32 %v5093, 0.0
        %v5242 = vmax.f32 %v5096, 0.0
        %v5243 = vmax.f32 %v5101, 0.0
        %v5244 = vmax.f32 %v5104, 0.0
        %v5245 = vmax.f32 %v5109, 0.0
        %v5246 = vmax.f32 %v5112, 0.0
        %v5247 = vmax.f32 %v5117, 0.0
        %v5248 = vmax.f32 %v5120, 0.0
        %v5249 = vmax.f32 %v5125, 0.0
        %v5250 = vmax.f32 %v5128, 0.0
        %v5251 = vmax.f32 %v5133, 0.0
        %v5252 = vmax.f32 %v5136, 0.0
        %v5253 = vmax.f32 %v5141, 0.0
        %v5254 = vmax.f32 %v5144, 0.0
        %v5255 = vmax.f32 %v5149, 0.0
        %v5256 = vmax.f32 %v5152, 0.0
        %v5257 = vmax.f32 %v5157, 0.0
        %v5258 = vmax.f32 %v5160, 0.0
        %v5259 = vmax.f32 %v5165, 0.0
        %v5260 = vmax.f32 %v5168, 0.0
        %5262 = vset.pattern.permute.xlu0 0
        %5263 = vperm.xlu0 %5262, %v385
        %v5264 = vpop.permute.xlu0 %5263
        %5267 = vset.pattern.permute.xlu0 0
        %5268 = vperm.xlu0 %5267, %v386
        %v5269 = vpop.permute.xlu0 %5268
        %5272 = vset.pattern.permute.xlu0 0
        %5273 = vperm.xlu0 %5272, %v387
        %v5274 = vpop.permute.xlu0 %5273
        %5277 = vset.pattern.permute.xlu0 0
        %5278 = vperm.xlu0 %5277, %v388
        %v5279 = vpop.permute.xlu0 %5278
        %5282 = vset.pattern.permute.xlu0 0
        %5283 = vperm.xlu0 %5282, %v389
        %v5284 = vpop.permute.xlu0 %5283
        %5287 = vset.pattern.permute.xlu0 0
        %5288 = vperm.xlu0 %5287, %v390
        %v5289 = vpop.permute.xlu0 %5288
        %5292 = vset.pattern.permute.xlu0 0
        %5293 = vperm.xlu0 %5292, %v391
        %v5294 = vpop.permute.xlu0 %5293
        %5297 = vset.pattern.permute.xlu0 0
        %5298 = vperm.xlu0 %5297, %v392
        %v5299 = vpop.permute.xlu0 %5298
        %5302 = vset.pattern.permute.xlu0 0
        %5303 = vperm.xlu0 %5302, %v393
        %v5304 = vpop.permute.xlu0 %5303
        %5307 = vset.pattern.permute.xlu0 0
        %5308 = vperm.xlu0 %5307, %v394
        %v5309 = vpop.permute.xlu0 %5308
        %5312 = vset.pattern.permute.xlu0 0
        %5313 = vperm.xlu0 %5312, %v395
        %v5314 = vpop.permute.xlu0 %5313
        %5317 = vset.pattern.permute.xlu0 0
        %5318 = vperm.xlu0 %5317, %v396
        %v5319 = vpop.permute.xlu0 %5318
        %5322 = vset.pattern.permute.xlu0 0
        %5323 = vperm.xlu0 %5322, %v397
        %v5324 = vpop.permute.xlu0 %5323
        %5327 = vset.pattern.permute.xlu0 0
        %5328 = vperm.xlu0 %5327, %v398
        %v5329 = vpop.permute.xlu0 %5328
        %5332 = vset.pattern.permute.xlu0 0
        %5333 = vperm.xlu0 %5332, %v399
        %v5334 = vpop.permute.xlu0 %5333
        %5337 = vset.pattern.permute.xlu0 0
        %5338 = vperm.xlu0 %5337, %v400
        %v5339 = vpop.permute.xlu0 %5338
        %5342 = vset.pattern.permute.xlu0 0
        %5343 = vperm.xlu0 %5342, %v401
        %v5344 = vpop.permute.xlu0 %5343
        %5347 = vset.pattern.permute.xlu0 0
        %5348 = vperm.xlu0 %5347, %v402
        %v5349 = vpop.permute.xlu0 %5348
        %5352 = vset.pattern.permute.xlu0 0
        %5353 = vperm.xlu0 %5352, %v403
        %v5354 = vpop.permute.xlu0 %5353
        %5357 = vset.pattern.permute.xlu0 0
        %5358 = vperm.xlu0 %5357, %v404
        %v5359 = vpop.permute.xlu0 %5358
        %5362 = vset.pattern.permute.xlu0 0
        %5363 = vperm.xlu0 %5362, %v405
        %v5364 = vpop.permute.xlu0 %5363
        %5367 = vset.pattern.permute.xlu0 0
        %5368 = vperm.xlu0 %5367, %v406
        %v5369 = vpop.permute.xlu0 %5368
        %5372 = vset.pattern.permute.xlu0 0
        %5373 = vperm.xlu0 %5372, %v407
        %v5374 = vpop.permute.xlu0 %5373
        %5377 = vset.pattern.permute.xlu0 0
        %5378 = vperm.xlu0 %5377, %v408
        %v5379 = vpop.permute.xlu0 %5378
        %5382 = vset.pattern.permute.xlu0 0
        %5383 = vperm.xlu0 %5382, %v409
        %v5384 = vpop.permute.xlu0 %5383
        %5387 = vset.pattern.permute.xlu0 0
        %5388 = vperm.xlu0 %5387, %v410
        %v5389 = vpop.permute.xlu0 %5388
        %5392 = vset.pattern.permute.xlu0 0
        %5393 = vperm.xlu0 %5392, %v411
        %v5394 = vpop.permute.xlu0 %5393
        %5397 = vset.pattern.permute.xlu0 0
        %5398 = vperm.xlu0 %5397, %v412
        %v5399 = vpop.permute.xlu0 %5398
        %5402 = vset.pattern.permute.xlu0 0
        %5403 = vperm.xlu0 %5402, %v413
        %v5404 = vpop.permute.xlu0 %5403
        %5407 = vset.pattern.permute.xlu0 0
        %5408 = vperm.xlu0 %5407, %v414
        %v5409 = vpop.permute.xlu0 %5408
        %5412 = vset.pattern.permute.xlu0 0
        %5413 = vperm.xlu0 %5412, %v415
        %v5414 = vpop.permute.xlu0 %5413
        %5417 = vset.pattern.permute.xlu0 0
        %5418 = vperm.xlu0 %5417, %v416
        %v5419 = vpop.permute.xlu0 %5418
        %5422 = vset.pattern.permute.xlu0 0
        %5423 = vperm.xlu0 %5422, %v417
        %v5424 = vpop.permute.xlu0 %5423
        %5427 = vset.pattern.permute.xlu0 0
        %5428 = vperm.xlu0 %5427, %v418
        %v5429 = vpop.permute.xlu0 %5428
        %5432 = vset.pattern.permute.xlu0 0
        %5433 = vperm.xlu0 %5432, %v419
        %v5434 = vpop.permute.xlu0 %5433
        %5437 = vset.pattern.permute.xlu0 0
        %5438 = vperm.xlu0 %5437, %v420
        %v5439 = vpop.permute.xlu0 %5438
        %5442 = vset.pattern.permute.xlu0 0
        %5443 = vperm.xlu0 %5442, %v421
        %v5444 = vpop.permute.xlu0 %5443
        %5447 = vset.pattern.permute.xlu0 0
        %5448 = vperm.xlu0 %5447, %v422
        %v5449 = vpop.permute.xlu0 %5448
        %5452 = vset.pattern.permute.xlu0 0
        %5453 = vperm.xlu0 %5452, %v423
        %v5454 = vpop.permute.xlu0 %5453
        %5457 = vset.pattern.permute.xlu0 0
        %5458 = vperm.xlu0 %5457, %v424
        %v5459 = vpop.permute.xlu0 %5458
        %5462 = vset.pattern.permute.xlu0 0
        %5463 = vperm.xlu0 %5462, %v425
        %v5464 = vpop.permute.xlu0 %5463
        %5467 = vset.pattern.permute.xlu0 0
        %5468 = vperm.xlu0 %5467, %v426
        %v5469 = vpop.permute.xlu0 %5468
        %5472 = vset.pattern.permute.xlu0 0
        %5473 = vperm.xlu0 %5472, %v427
        %v5474 = vpop.permute.xlu0 %5473
        %5477 = vset.pattern.permute.xlu0 0
        %5478 = vperm.xlu0 %5477, %v428
        %v5479 = vpop.permute.xlu0 %5478
        %5482 = vset.pattern.permute.xlu0 0
        %5483 = vperm.xlu0 %5482, %v429
        %v5484 = vpop.permute.xlu0 %5483
        %5487 = vset.pattern.permute.xlu0 0
        %5488 = vperm.xlu0 %5487, %v430
        %v5489 = vpop.permute.xlu0 %5488
        %5492 = vset.pattern.permute.xlu0 0
        %5493 = vperm.xlu0 %5492, %v431
        %v5494 = vpop.permute.xlu0 %5493
        %5497 = vset.pattern.permute.xlu0 0
        %5498 = vperm.xlu0 %5497, %v432
        %v5499 = vpop.permute.xlu0 %5498
        %5502 = vset.pattern.permute.xlu0 0
        %5503 = vperm.xlu0 %5502, %v433
        %v5504 = vpop.permute.xlu0 %5503
        %5507 = vset.pattern.permute.xlu0 0
        %5508 = vperm.xlu0 %5507, %v434
        %v5509 = vpop.permute.xlu0 %5508
        %5512 = vset.pattern.permute.xlu0 0
        %5513 = vperm.xlu0 %5512, %v435
        %v5514 = vpop.permute.xlu0 %5513
        %5517 = vset.pattern.permute.xlu0 0
        %5518 = vperm.xlu0 %5517, %v436
        %v5519 = vpop.permute.xlu0 %5518
        %5522 = vset.pattern.permute.xlu0 0
        %5523 = vperm.xlu0 %5522, %v437
        %v5524 = vpop.permute.xlu0 %5523
        %5527 = vset.pattern.permute.xlu0 0
        %5528 = vperm.xlu0 %5527, %v438
        %v5529 = vpop.permute.xlu0 %5528
        %5532 = vset.pattern.permute.xlu0 0
        %5533 = vperm.xlu0 %5532, %v439
        %v5534 = vpop.permute.xlu0 %5533
        %5537 = vset.pattern.permute.xlu0 0
        %5538 = vperm.xlu0 %5537, %v440
        %v5539 = vpop.permute.xlu0 %5538
        %5542 = vset.pattern.permute.xlu0 0
        %5543 = vperm.xlu0 %5542, %v441
        %v5544 = vpop.permute.xlu0 %5543
        %5547 = vset.pattern.permute.xlu0 0
        %5548 = vperm.xlu0 %5547, %v442
        %v5549 = vpop.permute.xlu0 %5548
        %5552 = vset.pattern.permute.xlu0 0
        %5553 = vperm.xlu0 %5552, %v443
        %v5554 = vpop.permute.xlu0 %5553
        %5557 = vset.pattern.permute.xlu0 0
        %5558 = vperm.xlu0 %5557, %v444
        %v5559 = vpop.permute.xlu0 %5558
        %5562 = vset.pattern.permute.xlu0 0
        %5563 = vperm.xlu0 %5562, %v445
        %v5564 = vpop.permute.xlu0 %5563
        %5567 = vset.pattern.permute.xlu0 0
        %5568 = vperm.xlu0 %5567, %v446
        %v5569 = vpop.permute.xlu0 %5568
        %5572 = vset.pattern.permute.xlu0 0
        %5573 = vperm.xlu0 %5572, %v447
        %v5574 = vpop.permute.xlu0 %5573
        %5577 = vset.pattern.permute.xlu0 0
        %5578 = vperm.xlu0 %5577, %v448
        %v5579 = vpop.permute.xlu0 %5578
        %5582 = vset.pattern.permute.xlu0 0
        %5583 = vperm.xlu0 %5582, %v449
        %v5584 = vpop.permute.xlu0 %5583
        %5587 = vset.pattern.permute.xlu0 0
        %5588 = vperm.xlu0 %5587, %v450
        %v5589 = vpop.permute.xlu0 %5588
        %5592 = vset.pattern.permute.xlu0 0
        %5593 = vperm.xlu0 %5592, %v451
        %v5594 = vpop.permute.xlu0 %5593
        %5597 = vset.pattern.permute.xlu0 0
        %5598 = vperm.xlu0 %5597, %v452
        %v5599 = vpop.permute.xlu0 %5598
        %5602 = vset.pattern.permute.xlu0 0
        %5603 = vperm.xlu0 %5602, %v453
        %v5604 = vpop.permute.xlu0 %5603
        %5607 = vset.pattern.permute.xlu0 0
        %5608 = vperm.xlu0 %5607, %v454
        %v5609 = vpop.permute.xlu0 %5608
        %5612 = vset.pattern.permute.xlu0 0
        %5613 = vperm.xlu0 %5612, %v455
        %v5614 = vpop.permute.xlu0 %5613
        %5617 = vset.pattern.permute.xlu0 0
        %5618 = vperm.xlu0 %5617, %v456
        %v5619 = vpop.permute.xlu0 %5618
        %5622 = vset.pattern.permute.xlu0 0
        %5623 = vperm.xlu0 %5622, %v457
        %v5624 = vpop.permute.xlu0 %5623
        %5627 = vset.pattern.permute.xlu0 0
        %5628 = vperm.xlu0 %5627, %v458
        %v5629 = vpop.permute.xlu0 %5628
        %5632 = vset.pattern.permute.xlu0 0
        %5633 = vperm.xlu0 %5632, %v459
        %v5634 = vpop.permute.xlu0 %5633
        %5637 = vset.pattern.permute.xlu0 0
        %5638 = vperm.xlu0 %5637, %v460
        %v5639 = vpop.permute.xlu0 %5638
        %5642 = vset.pattern.permute.xlu0 0
        %5643 = vperm.xlu0 %5642, %v461
        %v5644 = vpop.permute.xlu0 %5643
        %5647 = vset.pattern.permute.xlu0 0
        %5648 = vperm.xlu0 %5647, %v462
        %v5649 = vpop.permute.xlu0 %5648
        %5652 = vset.pattern.permute.xlu0 0
        %5653 = vperm.xlu0 %5652, %v463
        %v5654 = vpop.permute.xlu0 %5653
        %5657 = vset.pattern.permute.xlu0 0
        %5658 = vperm.xlu0 %5657, %v464
        %v5659 = vpop.permute.xlu0 %5658
        %5662 = vset.pattern.permute.xlu0 0
        %5663 = vperm.xlu0 %5662, %v465
        %v5664 = vpop.permute.xlu0 %5663
        %5667 = vset.pattern.permute.xlu0 0
        %5668 = vperm.xlu0 %5667, %v466
        %v5669 = vpop.permute.xlu0 %5668
        %5672 = vset.pattern.permute.xlu0 0
        %5673 = vperm.xlu0 %5672, %v467
        %v5674 = vpop.permute.xlu0 %5673
        %5677 = vset.pattern.permute.xlu0 0
        %5678 = vperm.xlu0 %5677, %v468
        %v5679 = vpop.permute.xlu0 %5678
        %5682 = vset.pattern.permute.xlu0 0
        %5683 = vperm.xlu0 %5682, %v469
        %v5684 = vpop.permute.xlu0 %5683
        %5687 = vset.pattern.permute.xlu0 0
        %5688 = vperm.xlu0 %5687, %v470
        %v5689 = vpop.permute.xlu0 %5688
        %5692 = vset.pattern.permute.xlu0 0
        %5693 = vperm.xlu0 %5692, %v471
        %v5694 = vpop.permute.xlu0 %5693
        %5697 = vset.pattern.permute.xlu0 0
        %5698 = vperm.xlu0 %5697, %v472
        %v5699 = vpop.permute.xlu0 %5698
        %5702 = vset.pattern.permute.xlu0 0
        %5703 = vperm.xlu0 %5702, %v473
        %v5704 = vpop.permute.xlu0 %5703
        %5707 = vset.pattern.permute.xlu0 0
        %5708 = vperm.xlu0 %5707, %v474
        %v5709 = vpop.permute.xlu0 %5708
        %v5711 = vmul.f32 %v5171, %v5264
        %v5712 = vmul.f32 %v5172, %v5269
        %v5713 = vmul.f32 %v5173, %v5274
        %v5714 = vmul.f32 %v5174, %v5279
        %v5715 = vmul.f32 %v5175, %v5284
        %v5716 = vmul.f32 %v5176, %v5289
        %v5717 = vmul.f32 %v5177, %v5294
        %v5718 = vmul.f32 %v5178, %v5299
        %v5719 = vmul.f32 %v5179, %v5304
        %v5720 = vmul.f32 %v5180, %v5309
        %v5721 = vmul.f32 %v5181, %v5314
        %v5722 = vmul.f32 %v5182, %v5319
        %v5723 = vmul.f32 %v5183, %v5324
        %v5724 = vmul.f32 %v5184, %v5329
        %v5725 = vmul.f32 %v5185, %v5334
        %v5726 = vmul.f32 %v5186, %v5339
        %v5727 = vmul.f32 %v5187, %v5344
        %v5728 = vmul.f32 %v5188, %v5349
        %v5729 = vmul.f32 %v5189, %v5354
        %v5730 = vmul.f32 %v5190, %v5359
        %v5731 = vmul.f32 %v5191, %v5364
        %v5732 = vmul.f32 %v5192, %v5369
        %v5733 = vmul.f32 %v5193, %v5374
        %v5734 = vmul.f32 %v5194, %v5379
        %v5735 = vmul.f32 %v5195, %v5384
        %v5736 = vmul.f32 %v5196, %v5389
        %v5737 = vmul.f32 %v5197, %v5394
        %v5738 = vmul.f32 %v5198, %v5399
        %v5739 = vmul.f32 %v5199, %v5404
        %v5740 = vmul.f32 %v5200, %v5409
        %v5741 = vmul.f32 %v5201, %v5414
        %v5742 = vmul.f32 %v5202, %v5419
        %v5743 = vmul.f32 %v5203, %v5424
        %v5744 = vmul.f32 %v5204, %v5429
        %v5745 = vmul.f32 %v5205, %v5434
        %v5746 = vmul.f32 %v5206, %v5439
        %v5747 = vmul.f32 %v5207, %v5444
        %v5748 = vmul.f32 %v5208, %v5449
        %v5749 = vmul.f32 %v5209, %v5454
        %v5750 = vmul.f32 %v5210, %v5459
        %v5751 = vmul.f32 %v5211, %v5464
        %v5752 = vmul.f32 %v5212, %v5469
        %v5753 = vmul.f32 %v5213, %v5474
        %v5754 = vmul.f32 %v5214, %v5479
        %v5755 = vmul.f32 %v5215, %v5484
        %v5756 = vmul.f32 %v5216, %v5489
        %v5757 = vmul.f32 %v5217, %v5494
        %v5758 = vmul.f32 %v5218, %v5499
        %v5759 = vmul.f32 %v5219, %v5504
        %v5760 = vmul.f32 %v5220, %v5509
        %v5761 = vmul.f32 %v5221, %v5514
        %v5762 = vmul.f32 %v5222, %v5519
        %v5763 = vmul.f32 %v5223, %v5524
        %v5764 = vmul.f32 %v5224, %v5529
        %v5765 = vmul.f32 %v5225, %v5534
        %v5766 = vmul.f32 %v5226, %v5539
        %v5767 = vmul.f32 %v5227, %v5544
        %v5768 = vmul.f32 %v5228, %v5549
        %v5769 = vmul.f32 %v5229, %v5554
        %v5770 = vmul.f32 %v5230, %v5559
        %v5771 = vmul.f32 %v5231, %v5564
        %v5772 = vmul.f32 %v5232, %v5569
        %v5773 = vmul.f32 %v5233, %v5574
        %v5774 = vmul.f32 %v5234, %v5579
        %v5775 = vmul.f32 %v5235, %v5584
        %v5776 = vmul.f32 %v5236, %v5589
        %v5777 = vmul.f32 %v5237, %v5594
        %v5778 = vmul.f32 %v5238, %v5599
        %v5779 = vmul.f32 %v5239, %v5604
        %v5780 = vmul.f32 %v5240, %v5609
        %v5781 = vmul.f32 %v5241, %v5614
        %v5782 = vmul.f32 %v5242, %v5619
        %v5783 = vmul.f32 %v5243, %v5624
        %v5784 = vmul.f32 %v5244, %v5629
        %v5785 = vmul.f32 %v5245, %v5634
        %v5786 = vmul.f32 %v5246, %v5639
        %v5787 = vmul.f32 %v5247, %v5644
        %v5788 = vmul.f32 %v5248, %v5649
        %v5789 = vmul.f32 %v5249, %v5654
        %v5790 = vmul.f32 %v5250, %v5659
        %v5791 = vmul.f32 %v5251, %v5664
        %v5792 = vmul.f32 %v5252, %v5669
        %v5793 = vmul.f32 %v5253, %v5674
        %v5794 = vmul.f32 %v5254, %v5679
        %v5795 = vmul.f32 %v5255, %v5684
        %v5796 = vmul.f32 %v5256, %v5689
        %v5797 = vmul.f32 %v5257, %v5694
        %v5798 = vmul.f32 %v5258, %v5699
        %v5799 = vmul.f32 %v5259, %v5704
        %v5800 = vmul.f32 %v5260, %v5709
        %vm5801 = vcmask 392192
        %5802 = vst.msk [vmem:[#allocation3] sm:$0xff] %vm5801, 0.0
        %5803 = vst.msk [vmem:[#allocation3 + $0x8] sm:$0xff] %vm5801, 0.0
        %5804 = vst.msk [vmem:[#allocation3 + $0x10] sm:$0xff] %vm5801, 0.0
        %5805 = vst.msk [vmem:[#allocation3 + $0x18] sm:$0xff] %vm5801, 0.0
        %5806 = vst.msk [vmem:[#allocation3 + $0x20] sm:$0xff] %vm5801, 0.0
        %5807 = vst.msk [vmem:[#allocation3 + $0x28] sm:$0xff] %vm5801, 0.0
        %5808 = vst.msk [vmem:[#allocation3 + $0x30] sm:$0xff] %vm5801, 0.0
        %5809 = vst.msk [vmem:[#allocation3 + $0x38] sm:$0xff] %vm5801, 0.0
        %5810 = vst.msk [vmem:[#allocation3 + $0x40] sm:$0xff] %vm5801, 0.0
        %5811 = vst.msk [vmem:[#allocation3 + $0x48] sm:$0xff] %vm5801, 0.0
        %5812 = vst.msk [vmem:[#allocation3 + $0x50] sm:$0xff] %vm5801, 0.0
        %5813 = vst.msk [vmem:[#allocation3 + $0x58] sm:$0xff] %vm5801, 0.0
        %5814 = vst.msk [vmem:[#allocation3 + $0x60] sm:$0xff] %vm5801, 0.0
        %5815 = vst.msk [vmem:[#allocation3 + $0x68] sm:$0xff] %vm5801, 0.0
        %5816 = vst.msk [vmem:[#allocation3 + $0x70] sm:$0xff] %vm5801, 0.0
        %5817 = vst.msk [vmem:[#allocation3 + $0x78] sm:$0xff] %vm5801, 0.0
        %5818 = vst.msk [vmem:[#allocation3 + $0x80] sm:$0xff] %vm5801, 0.0
        %5819 = vst.msk [vmem:[#allocation3 + $0x88] sm:$0xff] %vm5801, 0.0
        %5820 = vst.msk [vmem:[#allocation3 + $0x90] sm:$0xff] %vm5801, 0.0
        %5821 = vst.msk [vmem:[#allocation3 + $0x98] sm:$0xff] %vm5801, 0.0
        %5822 = vst.msk [vmem:[#allocation3 + $0xa0] sm:$0xff] %vm5801, 0.0
        %5823 = vst.msk [vmem:[#allocation3 + $0xa8] sm:$0xff] %vm5801, 0.0
        %5824 = vst.msk [vmem:[#allocation3 + $0xb0] sm:$0xff] %vm5801, 0.0
        %5825 = vst.msk [vmem:[#allocation3 + $0xb8] sm:$0xff] %vm5801, 0.0
        %5826 = vst.msk [vmem:[#allocation3 + $0xc0] sm:$0xff] %vm5801, 0.0
        %5827 = vst.msk [vmem:[#allocation3 + $0xc8] sm:$0xff] %vm5801, 0.0
        %5828 = vst.msk [vmem:[#allocation3 + $0xd0] sm:$0xff] %vm5801, 0.0
        %5829 = vst.msk [vmem:[#allocation3 + $0xd8] sm:$0xff] %vm5801, 0.0
        %5830 = vst.msk [vmem:[#allocation3 + $0xe0] sm:$0xff] %vm5801, 0.0
        %5831 = vst.msk [vmem:[#allocation3 + $0xe8] sm:$0xff] %vm5801, 0.0
        %5832 = vst.msk [vmem:[#allocation3 + $0xf0] sm:$0xff] %vm5801, 0.0
        %5833 = vst.msk [vmem:[#allocation3 + $0xf8] sm:$0xff] %vm5801, 0.0
        %5834 = vst.msk [vmem:[#allocation3 + $0x100] sm:$0xff] %vm5801, 0.0
        %5835 = vst.msk [vmem:[#allocation3 + $0x108] sm:$0xff] %vm5801, 0.0
        %5836 = vst.msk [vmem:[#allocation3 + $0x110] sm:$0xff] %vm5801, 0.0
        %5837 = vst.msk [vmem:[#allocation3 + $0x118] sm:$0xff] %vm5801, 0.0
        %5838 = vst.msk [vmem:[#allocation3 + $0x120] sm:$0xff] %vm5801, 0.0
        %5839 = vst.msk [vmem:[#allocation3 + $0x128] sm:$0xff] %vm5801, 0.0
        %5840 = vst.msk [vmem:[#allocation3 + $0x130] sm:$0xff] %vm5801, 0.0
        %5841 = vst.msk [vmem:[#allocation3 + $0x138] sm:$0xff] %vm5801, 0.0
        %5842 = vst.msk [vmem:[#allocation3 + $0x140] sm:$0xff] %vm5801, 0.0
        %5843 = vst.msk [vmem:[#allocation3 + $0x148] sm:$0xff] %vm5801, 0.0
        %5844 = vst.msk [vmem:[#allocation3 + $0x150] sm:$0xff] %vm5801, 0.0
        %5845 = vst.msk [vmem:[#allocation3 + $0x158] sm:$0xff] %vm5801, 0.0
        %5846 = vst.msk [vmem:[#allocation3 + $0x160] sm:$0xff] %vm5801, 0.0
        %5847 = vst.msk [vmem:[#allocation3 + $0x168] sm:$0xff] %vm5801, 0.0
        %5848 = vst.msk [vmem:[#allocation3 + $0x170] sm:$0xff] %vm5801, 0.0
        %5849 = vst.msk [vmem:[#allocation3 + $0x178] sm:$0xff] %vm5801, 0.0
        %5850 = vst.msk [vmem:[#allocation3 + $0x180] sm:$0xff] %vm5801, 0.0
        %5851 = vst.msk [vmem:[#allocation3 + $0x188] sm:$0xff] %vm5801, 0.0
        %5852 = vst.msk [vmem:[#allocation3 + $0x190] sm:$0xff] %vm5801, 0.0
        %5853 = vst.msk [vmem:[#allocation3 + $0x198] sm:$0xff] %vm5801, 0.0
        %5854 = vst.msk [vmem:[#allocation3 + $0x1a0] sm:$0xff] %vm5801, 0.0
        %5855 = vst.msk [vmem:[#allocation3 + $0x1a8] sm:$0xff] %vm5801, 0.0
        %5856 = vst.msk [vmem:[#allocation3 + $0x1b0] sm:$0xff] %vm5801, 0.0
        %5857 = vst.msk [vmem:[#allocation3 + $0x1b8] sm:$0xff] %vm5801, 0.0
        %5858 = vst.msk [vmem:[#allocation3 + $0x1c0] sm:$0xff] %vm5801, 0.0
        %5859 = vst.msk [vmem:[#allocation3 + $0x1c8] sm:$0xff] %vm5801, 0.0
        %5860 = vst.msk [vmem:[#allocation3 + $0x1d0] sm:$0xff] %vm5801, 0.0
        %5861 = vst.msk [vmem:[#allocation3 + $0x1d8] sm:$0xff] %vm5801, 0.0
        %5862 = vst.msk [vmem:[#allocation3 + $0x1e0] sm:$0xff] %vm5801, 0.0
        %5863 = vst.msk [vmem:[#allocation3 + $0x1e8] sm:$0xff] %vm5801, 0.0
        %5864 = vst.msk [vmem:[#allocation3 + $0x1f0] sm:$0xff] %vm5801, 0.0
        %5865 = vst.msk [vmem:[#allocation3 + $0x1f8] sm:$0xff] %vm5801, 0.0
        %5866 = vst.msk [vmem:[#allocation3 + $0x200] sm:$0xff] %vm5801, 0.0
        %5867 = vst.msk [vmem:[#allocation3 + $0x208] sm:$0xff] %vm5801, 0.0
        %5868 = vst.msk [vmem:[#allocation3 + $0x210] sm:$0xff] %vm5801, 0.0
        %5869 = vst.msk [vmem:[#allocation3 + $0x218] sm:$0xff] %vm5801, 0.0
        %5870 = vst.msk [vmem:[#allocation3 + $0x220] sm:$0xff] %vm5801, 0.0
        %5871 = vst.msk [vmem:[#allocation3 + $0x228] sm:$0xff] %vm5801, 0.0
        %5872 = vst.msk [vmem:[#allocation3 + $0x230] sm:$0xff] %vm5801, 0.0
        %5873 = vst.msk [vmem:[#allocation3 + $0x238] sm:$0xff] %vm5801, 0.0
        %5874 = vst.msk [vmem:[#allocation3 + $0x240] sm:$0xff] %vm5801, 0.0
        %5875 = vst.msk [vmem:[#allocation3 + $0x248] sm:$0xff] %vm5801, 0.0
        %5876 = vst.msk [vmem:[#allocation3 + $0x250] sm:$0xff] %vm5801, 0.0
        %5877 = vst.msk [vmem:[#allocation3 + $0x258] sm:$0xff] %vm5801, 0.0
        %5878 = vst.msk [vmem:[#allocation3 + $0x260] sm:$0xff] %vm5801, 0.0
        %5879 = vst.msk [vmem:[#allocation3 + $0x268] sm:$0xff] %vm5801, 0.0
        %5880 = vst.msk [vmem:[#allocation3 + $0x270] sm:$0xff] %vm5801, 0.0
        %5881 = vst.msk [vmem:[#allocation3 + $0x278] sm:$0xff] %vm5801, 0.0
        %5882 = vst.msk [vmem:[#allocation3 + $0x280] sm:$0xff] %vm5801, 0.0
        %5883 = vst.msk [vmem:[#allocation3 + $0x288] sm:$0xff] %vm5801, 0.0
        %5884 = vst.msk [vmem:[#allocation3 + $0x290] sm:$0xff] %vm5801, 0.0
        %5885 = vst.msk [vmem:[#allocation3 + $0x298] sm:$0xff] %vm5801, 0.0
        %5886 = vst.msk [vmem:[#allocation3 + $0x2a0] sm:$0xff] %vm5801, 0.0
        %5887 = vst.msk [vmem:[#allocation3 + $0x2a8] sm:$0xff] %vm5801, 0.0
        %5888 = vst.msk [vmem:[#allocation3 + $0x2b0] sm:$0xff] %vm5801, 0.0
        %5889 = vst.msk [vmem:[#allocation3 + $0x2b8] sm:$0xff] %vm5801, 0.0
        %5890 = vst.msk [vmem:[#allocation3 + $0x2c0] sm:$0xff] %vm5801, 0.0
        %5891 = vst.msk [vmem:[#allocation3 + $0x2c8] sm:$0xff] %vm5801, 0.0
        %5892 = vst.msk [vmem:[#allocation3 + $0x2d0] sm:$0xff] %vm5801, 0.0
        %5893 = vst.msk [vmem:[#allocation3 + $0x2d8] sm:$0xff] %vm5801, 0.0
        %5894 = vst.msk [vmem:[#allocation3 + $0x2e0] sm:$0xff] %vm5801, 0.0
        %5895 = vst.msk [vmem:[#allocation3 + $0x2e8] sm:$0xff] %vm5801, 0.0
        %5896 = vst.msk [vmem:[#allocation3 + $0x2f0] sm:$0xff] %vm5801, 0.0
        %5897 = vst.msk [vmem:[#allocation3 + $0x2f8] sm:$0xff] %vm5801, 0.0
        %5898 = vst.msk [vmem:[#allocation3 + $0x18] sm:$0xff] %vm5801, %v5711
        %5899 = vst.msk [vmem:[#allocation3 + $0x20] sm:$0xff] %vm5801, %v5712
        %5900 = vst.msk [vmem:[#allocation3 + $0x28] sm:$0xff] %vm5801, %v5713
        %5901 = vst.msk [vmem:[#allocation3 + $0x30] sm:$0xff] %vm5801, %v5714
        %5902 = vst.msk [vmem:[#allocation3 + $0x38] sm:$0xff] %vm5801, %v5715
        %5903 = vst.msk [vmem:[#allocation3 + $0x40] sm:$0xff] %vm5801, %v5716
        %5904 = vst.msk [vmem:[#allocation3 + $0x48] sm:$0xff] %vm5801, %v5717
        %5905 = vst.msk [vmem:[#allocation3 + $0x50] sm:$0xff] %vm5801, %v5718
        %5906 = vst.msk [vmem:[#allocation3 + $0x58] sm:$0xff] %vm5801, %v5719
        %5907 = vst.msk [vmem:[#allocation3 + $0x60] sm:$0xff] %vm5801, %v5720
        %5908 = vst.msk [vmem:[#allocation3 + $0x68] sm:$0xff] %vm5801, %v5721
        %5909 = vst.msk [vmem:[#allocation3 + $0x70] sm:$0xff] %vm5801, %v5722
        %5910 = vst.msk [vmem:[#allocation3 + $0x78] sm:$0xff] %vm5801, %v5723
        %5911 = vst.msk [vmem:[#allocation3 + $0x80] sm:$0xff] %vm5801, %v5724
        %5912 = vst.msk [vmem:[#allocation3 + $0x88] sm:$0xff] %vm5801, %v5725
        %5913 = vst.msk [vmem:[#allocation3 + $0x90] sm:$0xff] %vm5801, %v5726
        %5914 = vst.msk [vmem:[#allocation3 + $0x98] sm:$0xff] %vm5801, %v5727
        %5915 = vst.msk [vmem:[#allocation3 + $0xa0] sm:$0xff] %vm5801, %v5728
        %5916 = vst.msk [vmem:[#allocation3 + $0xa8] sm:$0xff] %vm5801, %v5729
        %5917 = vst.msk [vmem:[#allocation3 + $0xb0] sm:$0xff] %vm5801, %v5730
        %5918 = vst.msk [vmem:[#allocation3 + $0xb8] sm:$0xff] %vm5801, %v5731
        %5919 = vst.msk [vmem:[#allocation3 + $0xc0] sm:$0xff] %vm5801, %v5732
        %5920 = vst.msk [vmem:[#allocation3 + $0xc8] sm:$0xff] %vm5801, %v5733
        %5921 = vst.msk [vmem:[#allocation3 + $0xd0] sm:$0xff] %vm5801, %v5734
        %5922 = vst.msk [vmem:[#allocation3 + $0xd8] sm:$0xff] %vm5801, %v5735
        %5923 = vst.msk [vmem:[#allocation3 + $0xe0] sm:$0xff] %vm5801, %v5736
        %5924 = vst.msk [vmem:[#allocation3 + $0xe8] sm:$0xff] %vm5801, %v5737
        %5925 = vst.msk [vmem:[#allocation3 + $0xf0] sm:$0xff] %vm5801, %v5738
        %5926 = vst.msk [vmem:[#allocation3 + $0xf8] sm:$0xff] %vm5801, %v5739
        %5927 = vst.msk [vmem:[#allocation3 + $0x100] sm:$0xff] %vm5801, %v5740
        %5928 = vst.msk [vmem:[#allocation3 + $0x108] sm:$0xff] %vm5801, %v5741
        %5929 = vst.msk [vmem:[#allocation3 + $0x110] sm:$0xff] %vm5801, %v5742
        %5930 = vst.msk [vmem:[#allocation3 + $0x118] sm:$0xff] %vm5801, %v5743
        %5931 = vst.msk [vmem:[#allocation3 + $0x120] sm:$0xff] %vm5801, %v5744
        %5932 = vst.msk [vmem:[#allocation3 + $0x128] sm:$0xff] %vm5801, %v5745
        %5933 = vst.msk [vmem:[#allocation3 + $0x130] sm:$0xff] %vm5801, %v5746
        %5934 = vst.msk [vmem:[#allocation3 + $0x138] sm:$0xff] %vm5801, %v5747
        %5935 = vst.msk [vmem:[#allocation3 + $0x140] sm:$0xff] %vm5801, %v5748
        %5936 = vst.msk [vmem:[#allocation3 + $0x148] sm:$0xff] %vm5801, %v5749
        %5937 = vst.msk [vmem:[#allocation3 + $0x150] sm:$0xff] %vm5801, %v5750
        %5938 = vst.msk [vmem:[#allocation3 + $0x158] sm:$0xff] %vm5801, %v5751
        %5939 = vst.msk [vmem:[#allocation3 + $0x160] sm:$0xff] %vm5801, %v5752
        %5940 = vst.msk [vmem:[#allocation3 + $0x168] sm:$0xff] %vm5801, %v5753
        %5941 = vst.msk [vmem:[#allocation3 + $0x170] sm:$0xff] %vm5801, %v5754
        %5942 = vst.msk [vmem:[#allocation3 + $0x178] sm:$0xff] %vm5801, %v5755
        %5943 = vst.msk [vmem:[#allocation3 + $0x180] sm:$0xff] %vm5801, %v5756
        %5944 = vst.msk [vmem:[#allocation3 + $0x188] sm:$0xff] %vm5801, %v5757
        %5945 = vst.msk [vmem:[#allocation3 + $0x190] sm:$0xff] %vm5801, %v5758
        %5946 = vst.msk [vmem:[#allocation3 + $0x198] sm:$0xff] %vm5801, %v5759
        %5947 = vst.msk [vmem:[#allocation3 + $0x1a0] sm:$0xff] %vm5801, %v5760
        %5948 = vst.msk [vmem:[#allocation3 + $0x1a8] sm:$0xff] %vm5801, %v5761
        %5949 = vst.msk [vmem:[#allocation3 + $0x1b0] sm:$0xff] %vm5801, %v5762
        %5950 = vst.msk [vmem:[#allocation3 + $0x1b8] sm:$0xff] %vm5801, %v5763
        %5951 = vst.msk [vmem:[#allocation3 + $0x1c0] sm:$0xff] %vm5801, %v5764
        %5952 = vst.msk [vmem:[#allocation3 + $0x1c8] sm:$0xff] %vm5801, %v5765
        %5953 = vst.msk [vmem:[#allocation3 + $0x1d0] sm:$0xff] %vm5801, %v5766
        %5954 = vst.msk [vmem:[#allocation3 + $0x1d8] sm:$0xff] %vm5801, %v5767
        %5955 = vst.msk [vmem:[#allocation3 + $0x1e0] sm:$0xff] %vm5801, %v5768
        %5956 = vst.msk [vmem:[#allocation3 + $0x1e8] sm:$0xff] %vm5801, %v5769
        %5957 = vst.msk [vmem:[#allocation3 + $0x1f0] sm:$0xff] %vm5801, %v5770
        %5958 = vst.msk [vmem:[#allocation3 + $0x1f8] sm:$0xff] %vm5801, %v5771
        %5959 = vst.msk [vmem:[#allocation3 + $0x200] sm:$0xff] %vm5801, %v5772
        %5960 = vst.msk [vmem:[#allocation3 + $0x208] sm:$0xff] %vm5801, %v5773
        %5961 = vst.msk [vmem:[#allocation3 + $0x210] sm:$0xff] %vm5801, %v5774
        %5962 = vst.msk [vmem:[#allocation3 + $0x218] sm:$0xff] %vm5801, %v5775
        %5963 = vst.msk [vmem:[#allocation3 + $0x220] sm:$0xff] %vm5801, %v5776
        %5964 = vst.msk [vmem:[#allocation3 + $0x228] sm:$0xff] %vm5801, %v5777
        %5965 = vst.msk [vmem:[#allocation3 + $0x230] sm:$0xff] %vm5801, %v5778
        %5966 = vst.msk [vmem:[#allocation3 + $0x238] sm:$0xff] %vm5801, %v5779
        %5967 = vst.msk [vmem:[#allocation3 + $0x240] sm:$0xff] %vm5801, %v5780
        %5968 = vst.msk [vmem:[#allocation3 + $0x248] sm:$0xff] %vm5801, %v5781
        %5969 = vst.msk [vmem:[#allocation3 + $0x250] sm:$0xff] %vm5801, %v5782
        %5970 = vst.msk [vmem:[#allocation3 + $0x258] sm:$0xff] %vm5801, %v5783
        %5971 = vst.msk [vmem:[#allocation3 + $0x260] sm:$0xff] %vm5801, %v5784
        %5972 = vst.msk [vmem:[#allocation3 + $0x268] sm:$0xff] %vm5801, %v5785
        %5973 = vst.msk [vmem:[#allocation3 + $0x270] sm:$0xff] %vm5801, %v5786
        %5974 = vst.msk [vmem:[#allocation3 + $0x278] sm:$0xff] %vm5801, %v5787
        %5975 = vst.msk [vmem:[#allocation3 + $0x280] sm:$0xff] %vm5801, %v5788
        %5976 = vst.msk [vmem:[#allocation3 + $0x288] sm:$0xff] %vm5801, %v5789
        %5977 = vst.msk [vmem:[#allocation3 + $0x290] sm:$0xff] %vm5801, %v5790
        %5978 = vst.msk [vmem:[#allocation3 + $0x298] sm:$0xff] %vm5801, %v5791
        %5979 = vst.msk [vmem:[#allocation3 + $0x2a0] sm:$0xff] %vm5801, %v5792
        %5980 = vst.msk [vmem:[#allocation3 + $0x2a8] sm:$0xff] %vm5801, %v5793
        %5981 = vst.msk [vmem:[#allocation3 + $0x2b0] sm:$0xff] %vm5801, %v5794
        %5982 = vst.msk [vmem:[#allocation3 + $0x2b8] sm:$0xff] %vm5801, %v5795
        %5983 = vst.msk [vmem:[#allocation3 + $0x2c0] sm:$0xff] %vm5801, %v5796
        %5984 = vst.msk [vmem:[#allocation3 + $0x2c8] sm:$0xff] %vm5801, %v5797
        %5985 = vst.msk [vmem:[#allocation3 + $0x2d0] sm:$0xff] %vm5801, %v5798
        %5986 = vst.msk [vmem:[#allocation3 + $0x2d8] sm:$0xff] %vm5801, %v5799
        %vm5987 = vcmask 385024
        %5988 = vst.msk [vmem:[#allocation3 + $0x2e0] sm:$0x1] %vm5987, %v5800
        %v5989 = vld [vmem:[#allocation3] sm:$0xff]
        %v5990 = vld [vmem:[#allocation3 + $0x8] sm:$0xff]
        %v5991 = vld [vmem:[#allocation3 + $0x10] sm:$0xff]
        %v5992 = vld [vmem:[#allocation3 + $0x18] sm:$0xff]
        %v5993 = vld [vmem:[#allocation3 + $0x20] sm:$0xff]
        %v5994 = vld [vmem:[#allocation3 + $0x28] sm:$0xff]
        %v5995 = vld [vmem:[#allocation3 + $0x30] sm:$0xff]
        %v5996 = vld [vmem:[#allocation3 + $0x38] sm:$0xff]
        %v5997 = vld [vmem:[#allocation3 + $0x40] sm:$0xff]
        %v5998 = vld [vmem:[#allocation3 + $0x48] sm:$0xff]
        %v5999 = vld [vmem:[#allocation3 + $0x50] sm:$0xff]
        %v6000 = vld [vmem:[#allocation3 + $0x58] sm:$0xff]
        %v6001 = vld [vmem:[#allocation3 + $0x60] sm:$0xff]
        %v6002 = vld [vmem:[#allocation3 + $0x68] sm:$0xff]
        %v6003 = vld [vmem:[#allocation3 + $0x70] sm:$0xff]
        %v6004 = vld [vmem:[#allocation3 + $0x78] sm:$0xff]
        %v6005 = vld [vmem:[#allocation3 + $0x80] sm:$0xff]
        %v6006 = vld [vmem:[#allocation3 + $0x88] sm:$0xff]
        %v6007 = vld [vmem:[#allocation3 + $0x90] sm:$0xff]
        %v6008 = vld [vmem:[#allocation3 + $0x98] sm:$0xff]
        %v6009 = vld [vmem:[#allocation3 + $0xa0] sm:$0xff]
        %v6010 = vld [vmem:[#allocation3 + $0xa8] sm:$0xff]
        %v6011 = vld [vmem:[#allocation3 + $0xb0] sm:$0xff]
        %v6012 = vld [vmem:[#allocation3 + $0xb8] sm:$0xff]
        %v6013 = vld [vmem:[#allocation3 + $0xc0] sm:$0xff]
        %v6014 = vld [vmem:[#allocation3 + $0xc8] sm:$0xff]
        %v6015 = vld [vmem:[#allocation3 + $0xd0] sm:$0xff]
        %v6016 = vld [vmem:[#allocation3 + $0xd8] sm:$0xff]
        %v6017 = vld [vmem:[#allocation3 + $0xe0] sm:$0xff]
        %v6018 = vld [vmem:[#allocation3 + $0xe8] sm:$0xff]
        %v6019 = vld [vmem:[#allocation3 + $0xf0] sm:$0xff]
        %v6020 = vld [vmem:[#allocation3 + $0xf8] sm:$0xff]
        %v6021 = vld [vmem:[#allocation3 + $0x100] sm:$0xff]
        %v6022 = vld [vmem:[#allocation3 + $0x108] sm:$0xff]
        %v6023 = vld [vmem:[#allocation3 + $0x110] sm:$0xff]
        %v6024 = vld [vmem:[#allocation3 + $0x118] sm:$0xff]
        %v6025 = vld [vmem:[#allocation3 + $0x120] sm:$0xff]
        %v6026 = vld [vmem:[#allocation3 + $0x128] sm:$0xff]
        %v6027 = vld [vmem:[#allocation3 + $0x130] sm:$0xff]
        %v6028 = vld [vmem:[#allocation3 + $0x138] sm:$0xff]
        %v6029 = vld [vmem:[#allocation3 + $0x140] sm:$0xff]
        %v6030 = vld [vmem:[#allocation3 + $0x148] sm:$0xff]
        %v6031 = vld [vmem:[#allocation3 + $0x150] sm:$0xff]
        %v6032 = vld [vmem:[#allocation3 + $0x158] sm:$0xff]
        %v6033 = vld [vmem:[#allocation3 + $0x160] sm:$0xff]
        %v6034 = vld [vmem:[#allocation3 + $0x168] sm:$0xff]
        %v6035 = vld [vmem:[#allocation3 + $0x170] sm:$0xff]
        %v6036 = vld [vmem:[#allocation3 + $0x178] sm:$0xff]
        %v6037 = vld [vmem:[#allocation3 + $0x180] sm:$0xff]
        %v6038 = vld [vmem:[#allocation3 + $0x188] sm:$0xff]
        %v6039 = vld [vmem:[#allocation3 + $0x190] sm:$0xff]
        %v6040 = vld [vmem:[#allocation3 + $0x198] sm:$0xff]
        %v6041 = vld [vmem:[#allocation3 + $0x1a0] sm:$0xff]
        %v6042 = vld [vmem:[#allocation3 + $0x1a8] sm:$0xff]
        %v6043 = vld [vmem:[#allocation3 + $0x1b0] sm:$0xff]
        %v6044 = vld [vmem:[#allocation3 + $0x1b8] sm:$0xff]
        %v6045 = vld [vmem:[#allocation3 + $0x1c0] sm:$0xff]
        %v6046 = vld [vmem:[#allocation3 + $0x1c8] sm:$0xff]
        %v6047 = vld [vmem:[#allocation3 + $0x1d0] sm:$0xff]
        %v6048 = vld [vmem:[#allocation3 + $0x1d8] sm:$0xff]
        %v6049 = vld [vmem:[#allocation3 + $0x1e0] sm:$0xff]
        %v6050 = vld [vmem:[#allocation3 + $0x1e8] sm:$0xff]
        %v6051 = vld [vmem:[#allocation3 + $0x1f0] sm:$0xff]
        %v6052 = vld [vmem:[#allocation3 + $0x1f8] sm:$0xff]
        %v6053 = vld [vmem:[#allocation3 + $0x200] sm:$0xff]
        %v6054 = vld [vmem:[#allocation3 + $0x208] sm:$0xff]
        %v6055 = vld [vmem:[#allocation3 + $0x210] sm:$0xff]
        %v6056 = vld [vmem:[#allocation3 + $0x218] sm:$0xff]
        %v6057 = vld [vmem:[#allocation3 + $0x220] sm:$0xff]
        %v6058 = vld [vmem:[#allocation3 + $0x228] sm:$0xff]
        %v6059 = vld [vmem:[#allocation3 + $0x230] sm:$0xff]
        %v6060 = vld [vmem:[#allocation3 + $0x238] sm:$0xff]
        %v6061 = vld [vmem:[#allocation3 + $0x240] sm:$0xff]
        %v6062 = vld [vmem:[#allocation3 + $0x248] sm:$0xff]
        %v6063 = vld [vmem:[#allocation3 + $0x250] sm:$0xff]
        %v6064 = vld [vmem:[#allocation3 + $0x258] sm:$0xff]
        %v6065 = vld [vmem:[#allocation3 + $0x260] sm:$0xff]
        %v6066 = vld [vmem:[#allocation3 + $0x268] sm:$0xff]
        %v6067 = vld [vmem:[#allocation3 + $0x270] sm:$0xff]
        %v6068 = vld [vmem:[#allocation3 + $0x278] sm:$0xff]
        %v6069 = vld [vmem:[#allocation3 + $0x280] sm:$0xff]
        %v6070 = vld [vmem:[#allocation3 + $0x288] sm:$0xff]
        %v6071 = vld [vmem:[#allocation3 + $0x290] sm:$0xff]
        %v6072 = vld [vmem:[#allocation3 + $0x298] sm:$0xff]
        %v6073 = vld [vmem:[#allocation3 + $0x2a0] sm:$0xff]
        %v6074 = vld [vmem:[#allocation3 + $0x2a8] sm:$0xff]
        %v6075 = vld [vmem:[#allocation3 + $0x2b0] sm:$0xff]
        %v6076 = vld [vmem:[#allocation3 + $0x2b8] sm:$0xff]
        %v6077 = vld [vmem:[#allocation3 + $0x2c0] sm:$0xff]
        %v6078 = vld [vmem:[#allocation3 + $0x2c8] sm:$0x1]
        %v6079 = vld [vmem:[#allocation3 + $0x1] sm:$0xff]
        %v6080 = vld [vmem:[#allocation3 + $0x9] sm:$0xff]
        %v6081 = vld [vmem:[#allocation3 + $0x11] sm:$0xff]
        %v6082 = vld [vmem:[#allocation3 + $0x19] sm:$0xff]
        %v6083 = vld [vmem:[#allocation3 + $0x21] sm:$0xff]
        %v6084 = vld [vmem:[#allocation3 + $0x29] sm:$0xff]
        %v6085 = vld [vmem:[#allocation3 + $0x31] sm:$0xff]
        %v6086 = vld [vmem:[#allocation3 + $0x39] sm:$0xff]
        %v6087 = vld [vmem:[#allocation3 + $0x41] sm:$0xff]
        %v6088 = vld [vmem:[#allocation3 + $0x49] sm:$0xff]
        %v6089 = vld [vmem:[#allocation3 + $0x51] sm:$0xff]
        %v6090 = vld [vmem:[#allocation3 + $0x59] sm:$0xff]
        %v6091 = vld [vmem:[#allocation3 + $0x61] sm:$0xff]
        %v6092 = vld [vmem:[#allocation3 + $0x69] sm:$0xff]
        %v6093 = vld [vmem:[#allocation3 + $0x71] sm:$0xff]
        %v6094 = vld [vmem:[#allocation3 + $0x79] sm:$0xff]
        %v6095 = vld [vmem:[#allocation3 + $0x81] sm:$0xff]
        %v6096 = vld [vmem:[#allocation3 + $0x89] sm:$0xff]
        %v6097 = vld [vmem:[#allocation3 + $0x91] sm:$0xff]
        %v6098 = vld [vmem:[#allocation3 + $0x99] sm:$0xff]
        %v6099 = vld [vmem:[#allocation3 + $0xa1] sm:$0xff]
        %v6100 = vld [vmem:[#allocation3 + $0xa9] sm:$0xff]
        %v6101 = vld [vmem:[#allocation3 + $0xb1] sm:$0xff]
        %v6102 = vld [vmem:[#allocation3 + $0xb9] sm:$0xff]
        %v6103 = vld [vmem:[#allocation3 + $0xc1] sm:$0xff]
        %v6104 = vld [vmem:[#allocation3 + $0xc9] sm:$0xff]
        %v6105 = vld [vmem:[#allocation3 + $0xd1] sm:$0xff]
        %v6106 = vld [vmem:[#allocation3 + $0xd9] sm:$0xff]
        %v6107 = vld [vmem:[#allocation3 + $0xe1] sm:$0xff]
        %v6108 = vld [vmem:[#allocation3 + $0xe9] sm:$0xff]
        %v6109 = vld [vmem:[#allocation3 + $0xf1] sm:$0xff]
        %v6110 = vld [vmem:[#allocation3 + $0xf9] sm:$0xff]
        %v6111 = vld [vmem:[#allocation3 + $0x101] sm:$0xff]
        %v6112 = vld [vmem:[#allocation3 + $0x109] sm:$0xff]
        %v6113 = vld [vmem:[#allocation3 + $0x111] sm:$0xff]
        %v6114 = vld [vmem:[#allocation3 + $0x119] sm:$0xff]
        %v6115 = vld [vmem:[#allocation3 + $0x121] sm:$0xff]
        %v6116 = vld [vmem:[#allocation3 + $0x129] sm:$0xff]
        %v6117 = vld [vmem:[#allocation3 + $0x131] sm:$0xff]
        %v6118 = vld [vmem:[#allocation3 + $0x139] sm:$0xff]
        %v6119 = vld [vmem:[#allocation3 + $0x141] sm:$0xff]
        %v6120 = vld [vmem:[#allocation3 + $0x149] sm:$0xff]
        %v6121 = vld [vmem:[#allocation3 + $0x151] sm:$0xff]
        %v6122 = vld [vmem:[#allocation3 + $0x159] sm:$0xff]
        %v6123 = vld [vmem:[#allocation3 + $0x161] sm:$0xff]
        %v6124 = vld [vmem:[#allocation3 + $0x169] sm:$0xff]
        %v6125 = vld [vmem:[#allocation3 + $0x171] sm:$0xff]
        %v6126 = vld [vmem:[#allocation3 + $0x179] sm:$0xff]
        %v6127 = vld [vmem:[#allocation3 + $0x181] sm:$0xff]
        %v6128 = vld [vmem:[#allocation3 + $0x189] sm:$0xff]
        %v6129 = vld [vmem:[#allocation3 + $0x191] sm:$0xff]
        %v6130 = vld [vmem:[#allocation3 + $0x199] sm:$0xff]
        %v6131 = vld [vmem:[#allocation3 + $0x1a1] sm:$0xff]
        %v6132 = vld [vmem:[#allocation3 + $0x1a9] sm:$0xff]
        %v6133 = vld [vmem:[#allocation3 + $0x1b1] sm:$0xff]
        %v6134 = vld [vmem:[#allocation3 + $0x1b9] sm:$0xff]
        %v6135 = vld [vmem:[#allocation3 + $0x1c1] sm:$0xff]
        %v6136 = vld [vmem:[#allocation3 + $0x1c9] sm:$0xff]
        %v6137 = vld [vmem:[#allocation3 + $0x1d1] sm:$0xff]
        %v6138 = vld [vmem:[#allocation3 + $0x1d9] sm:$0xff]
        %v6139 = vld [vmem:[#allocation3 + $0x1e1] sm:$0xff]
        %v6140 = vld [vmem:[#allocation3 + $0x1e9] sm:$0xff]
        %v6141 = vld [vmem:[#allocation3 + $0x1f1] sm:$0xff]
        %v6142 = vld [vmem:[#allocation3 + $0x1f9] sm:$0xff]
        %v6143 = vld [vmem:[#allocation3 + $0x201] sm:$0xff]
        %v6144 = vld [vmem:[#allocation3 + $0x209] sm:$0xff]
        %v6145 = vld [vmem:[#allocation3 + $0x211] sm:$0xff]
        %v6146 = vld [vmem:[#allocation3 + $0x219] sm:$0xff]
        %v6147 = vld [vmem:[#allocation3 + $0x221] sm:$0xff]
        %v6148 = vld [vmem:[#allocation3 + $0x229] sm:$0xff]
        %v6149 = vld [vmem:[#allocation3 + $0x231] sm:$0xff]
        %v6150 = vld [vmem:[#allocation3 + $0x239] sm:$0xff]
        %v6151 = vld [vmem:[#allocation3 + $0x241] sm:$0xff]
        %v6152 = vld [vmem:[#allocation3 + $0x249] sm:$0xff]
        %v6153 = vld [vmem:[#allocation3 + $0x251] sm:$0xff]
        %v6154 = vld [vmem:[#allocation3 + $0x259] sm:$0xff]
        %v6155 = vld [vmem:[#allocation3 + $0x261] sm:$0xff]
        %v6156 = vld [vmem:[#allocation3 + $0x269] sm:$0xff]
        %v6157 = vld [vmem:[#allocation3 + $0x271] sm:$0xff]
        %v6158 = vld [vmem:[#allocation3 + $0x279] sm:$0xff]
        %v6159 = vld [vmem:[#allocation3 + $0x281] sm:$0xff]
        %v6160 = vld [vmem:[#allocation3 + $0x289] sm:$0xff]
        %v6161 = vld [vmem:[#allocation3 + $0x291] sm:$0xff]
        %v6162 = vld [vmem:[#allocation3 + $0x299] sm:$0xff]
        %v6163 = vld [vmem:[#allocation3 + $0x2a1] sm:$0xff]
        %v6164 = vld [vmem:[#allocation3 + $0x2a9] sm:$0xff]
        %v6165 = vld [vmem:[#allocation3 + $0x2b1] sm:$0xff]
        %v6166 = vld [vmem:[#allocation3 + $0x2b9] sm:$0xff]
        %v6167 = vld [vmem:[#allocation3 + $0x2c1] sm:$0xff]
        %v6168 = vld [vmem:[#allocation3 + $0x2c9] sm:$0x1]
        %v6169 = vld [vmem:[#allocation3 + $0x2] sm:$0xff]
        %v6170 = vld [vmem:[#allocation3 + $0xa] sm:$0xff]
        %v6171 = vld [vmem:[#allocation3 + $0x12] sm:$0xff]
        %v6172 = vld [vmem:[#allocation3 + $0x1a] sm:$0xff]
        %v6173 = vld [vmem:[#allocation3 + $0x22] sm:$0xff]
        %v6174 = vld [vmem:[#allocation3 + $0x2a] sm:$0xff]
        %v6175 = vld [vmem:[#allocation3 + $0x32] sm:$0xff]
        %v6176 = vld [vmem:[#allocation3 + $0x3a] sm:$0xff]
        %v6177 = vld [vmem:[#allocation3 + $0x42] sm:$0xff]
        %v6178 = vld [vmem:[#allocation3 + $0x4a] sm:$0xff]
        %v6179 = vld [vmem:[#allocation3 + $0x52] sm:$0xff]
        %v6180 = vld [vmem:[#allocation3 + $0x5a] sm:$0xff]
        %v6181 = vld [vmem:[#allocation3 + $0x62] sm:$0xff]
        %v6182 = vld [vmem:[#allocation3 + $0x6a] sm:$0xff]
        %v6183 = vld [vmem:[#allocation3 + $0x72] sm:$0xff]
        %v6184 = vld [vmem:[#allocation3 + $0x7a] sm:$0xff]
        %v6185 = vld [vmem:[#allocation3 + $0x82] sm:$0xff]
        %v6186 = vld [vmem:[#allocation3 + $0x8a] sm:$0xff]
        %v6187 = vld [vmem:[#allocation3 + $0x92] sm:$0xff]
        %v6188 = vld [vmem:[#allocation3 + $0x9a] sm:$0xff]
        %v6189 = vld [vmem:[#allocation3 + $0xa2] sm:$0xff]
        %v6190 = vld [vmem:[#allocation3 + $0xaa] sm:$0xff]
        %v6191 = vld [vmem:[#allocation3 + $0xb2] sm:$0xff]
        %v6192 = vld [vmem:[#allocation3 + $0xba] sm:$0xff]
        %v6193 = vld [vmem:[#allocation3 + $0xc2] sm:$0xff]
        %v6194 = vld [vmem:[#allocation3 + $0xca] sm:$0xff]
        %v6195 = vld [vmem:[#allocation3 + $0xd2] sm:$0xff]
        %v6196 = vld [vmem:[#allocation3 + $0xda] sm:$0xff]
        %v6197 = vld [vmem:[#allocation3 + $0xe2] sm:$0xff]
        %v6198 = vld [vmem:[#allocation3 + $0xea] sm:$0xff]
        %v6199 = vld [vmem:[#allocation3 + $0xf2] sm:$0xff]
        %v6200 = vld [vmem:[#allocation3 + $0xfa] sm:$0xff]
        %v6201 = vld [vmem:[#allocation3 + $0x102] sm:$0xff]
        %v6202 = vld [vmem:[#allocation3 + $0x10a] sm:$0xff]
        %v6203 = vld [vmem:[#allocation3 + $0x112] sm:$0xff]
        %v6204 = vld [vmem:[#allocation3 + $0x11a] sm:$0xff]
        %v6205 = vld [vmem:[#allocation3 + $0x122] sm:$0xff]
        %v6206 = vld [vmem:[#allocation3 + $0x12a] sm:$0xff]
        %v6207 = vld [vmem:[#allocation3 + $0x132] sm:$0xff]
        %v6208 = vld [vmem:[#allocation3 + $0x13a] sm:$0xff]
        %v6209 = vld [vmem:[#allocation3 + $0x142] sm:$0xff]
        %v6210 = vld [vmem:[#allocation3 + $0x14a] sm:$0xff]
        %v6211 = vld [vmem:[#allocation3 + $0x152] sm:$0xff]
        %v6212 = vld [vmem:[#allocation3 + $0x15a] sm:$0xff]
        %v6213 = vld [vmem:[#allocation3 + $0x162] sm:$0xff]
        %v6214 = vld [vmem:[#allocation3 + $0x16a] sm:$0xff]
        %v6215 = vld [vmem:[#allocation3 + $0x172] sm:$0xff]
        %v6216 = vld [vmem:[#allocation3 + $0x17a] sm:$0xff]
        %v6217 = vld [vmem:[#allocation3 + $0x182] sm:$0xff]
        %v6218 = vld [vmem:[#allocation3 + $0x18a] sm:$0xff]
        %v6219 = vld [vmem:[#allocation3 + $0x192] sm:$0xff]
        %v6220 = vld [vmem:[#allocation3 + $0x19a] sm:$0xff]
        %v6221 = vld [vmem:[#allocation3 + $0x1a2] sm:$0xff]
        %v6222 = vld [vmem:[#allocation3 + $0x1aa] sm:$0xff]
        %v6223 = vld [vmem:[#allocation3 + $0x1b2] sm:$0xff]
        %v6224 = vld [vmem:[#allocation3 + $0x1ba] sm:$0xff]
        %v6225 = vld [vmem:[#allocation3 + $0x1c2] sm:$0xff]
        %v6226 = vld [vmem:[#allocation3 + $0x1ca] sm:$0xff]
        %v6227 = vld [vmem:[#allocation3 + $0x1d2] sm:$0xff]
        %v6228 = vld [vmem:[#allocation3 + $0x1da] sm:$0xff]
        %v6229 = vld [vmem:[#allocation3 + $0x1e2] sm:$0xff]
        %v6230 = vld [vmem:[#allocation3 + $0x1ea] sm:$0xff]
        %v6231 = vld [vmem:[#allocation3 + $0x1f2] sm:$0xff]
        %v6232 = vld [vmem:[#allocation3 + $0x1fa] sm:$0xff]
        %v6233 = vld [vmem:[#allocation3 + $0x202] sm:$0xff]
        %v6234 = vld [vmem:[#allocation3 + $0x20a] sm:$0xff]
        %v6235 = vld [vmem:[#allocation3 + $0x212] sm:$0xff]
        %v6236 = vld [vmem:[#allocation3 + $0x21a] sm:$0xff]
        %v6237 = vld [vmem:[#allocation3 + $0x222] sm:$0xff]
        %v6238 = vld [vmem:[#allocation3 + $0x22a] sm:$0xff]
        %v6239 = vld [vmem:[#allocation3 + $0x232] sm:$0xff]
        %v6240 = vld [vmem:[#allocation3 + $0x23a] sm:$0xff]
        %v6241 = vld [vmem:[#allocation3 + $0x242] sm:$0xff]
        %v6242 = vld [vmem:[#allocation3 + $0x24a] sm:$0xff]
        %v6243 = vld [vmem:[#allocation3 + $0x252] sm:$0xff]
        %v6244 = vld [vmem:[#allocation3 + $0x25a] sm:$0xff]
        %v6245 = vld [vmem:[#allocation3 + $0x262] sm:$0xff]
        %v6246 = vld [vmem:[#allocation3 + $0x26a] sm:$0xff]
        %v6247 = vld [vmem:[#allocation3 + $0x272] sm:$0xff]
        %v6248 = vld [vmem:[#allocation3 + $0x27a] sm:$0xff]
        %v6249 = vld [vmem:[#allocation3 + $0x282] sm:$0xff]
        %v6250 = vld [vmem:[#allocation3 + $0x28a] sm:$0xff]
        %v6251 = vld [vmem:[#allocation3 + $0x292] sm:$0xff]
        %v6252 = vld [vmem:[#allocation3 + $0x29a] sm:$0xff]
        %v6253 = vld [vmem:[#allocation3 + $0x2a2] sm:$0xff]
        %v6254 = vld [vmem:[#allocation3 + $0x2aa] sm:$0xff]
        %v6255 = vld [vmem:[#allocation3 + $0x2b2] sm:$0xff]
        %v6256 = vld [vmem:[#allocation3 + $0x2ba] sm:$0xff]
        %v6257 = vld [vmem:[#allocation3 + $0x2c2] sm:$0xff]
        %v6258 = vld [vmem:[#allocation3 + $0x2ca] sm:$0x1]
        %v6259 = vld [vmem:[#allocation3 + $0x17] sm:$0xff]
        %v6260 = vld [vmem:[#allocation3 + $0x1f] sm:$0xff]
        %v6261 = vld [vmem:[#allocation3 + $0x27] sm:$0xff]
        %v6262 = vld [vmem:[#allocation3 + $0x2f] sm:$0xff]
        %v6263 = vld [vmem:[#allocation3 + $0x37] sm:$0xff]
        %v6264 = vld [vmem:[#allocation3 + $0x3f] sm:$0xff]
        %v6265 = vld [vmem:[#allocation3 + $0x47] sm:$0xff]
        %v6266 = vld [vmem:[#allocation3 + $0x4f] sm:$0xff]
        %v6267 = vld [vmem:[#allocation3 + $0x57] sm:$0xff]
        %v6268 = vld [vmem:[#allocation3 + $0x5f] sm:$0xff]
        %v6269 = vld [vmem:[#allocation3 + $0x67] sm:$0xff]
        %v6270 = vld [vmem:[#allocation3 + $0x6f] sm:$0xff]
        %v6271 = vld [vmem:[#allocation3 + $0x77] sm:$0xff]
        %v6272 = vld [vmem:[#allocation3 + $0x7f] sm:$0xff]
        %v6273 = vld [vmem:[#allocation3 + $0x87] sm:$0xff]
        %v6274 = vld [vmem:[#allocation3 + $0x8f] sm:$0xff]
        %v6275 = vld [vmem:[#allocation3 + $0x97] sm:$0xff]
        %v6276 = vld [vmem:[#allocation3 + $0x9f] sm:$0xff]
        %v6277 = vld [vmem:[#allocation3 + $0xa7] sm:$0xff]
        %v6278 = vld [vmem:[#allocation3 + $0xaf] sm:$0xff]
        %v6279 = vld [vmem:[#allocation3 + $0xb7] sm:$0xff]
        %v6280 = vld [vmem:[#allocation3 + $0xbf] sm:$0xff]
        %v6281 = vld [vmem:[#allocation3 + $0xc7] sm:$0xff]
        %v6282 = vld [vmem:[#allocation3 + $0xcf] sm:$0xff]
        %v6283 = vld [vmem:[#allocation3 + $0xd7] sm:$0xff]
        %v6284 = vld [vmem:[#allocation3 + $0xdf] sm:$0xff]
        %v6285 = vld [vmem:[#allocation3 + $0xe7] sm:$0xff]
        %v6286 = vld [vmem:[#allocation3 + $0xef] sm:$0xff]
        %v6287 = vld [vmem:[#allocation3 + $0xf7] sm:$0xff]
        %v6288 = vld [vmem:[#allocation3 + $0xff] sm:$0xff]
        %v6289 = vld [vmem:[#allocation3 + $0x107] sm:$0xff]
        %v6290 = vld [vmem:[#allocation3 + $0x10f] sm:$0xff]
        %v6291 = vld [vmem:[#allocation3 + $0x117] sm:$0xff]
        %v6292 = vld [vmem:[#allocation3 + $0x11f] sm:$0xff]
        %v6293 = vld [vmem:[#allocation3 + $0x127] sm:$0xff]
        %v6294 = vld [vmem:[#allocation3 + $0x12f] sm:$0xff]
        %v6295 = vld [vmem:[#allocation3 + $0x137] sm:$0xff]
        %v6296 = vld [vmem:[#allocation3 + $0x13f] sm:$0xff]
        %v6297 = vld [vmem:[#allocation3 + $0x147] sm:$0xff]
        %v6298 = vld [vmem:[#allocation3 + $0x14f] sm:$0xff]
        %v6299 = vld [vmem:[#allocation3 + $0x157] sm:$0xff]
        %v6300 = vld [vmem:[#allocation3 + $0x15f] sm:$0xff]
        %v6301 = vld [vmem:[#allocation3 + $0x167] sm:$0xff]
        %v6302 = vld [vmem:[#allocation3 + $0x16f] sm:$0xff]
        %v6303 = vld [vmem:[#allocation3 + $0x177] sm:$0xff]
        %v6304 = vld [vmem:[#allocation3 + $0x17f] sm:$0xff]
        %v6305 = vld [vmem:[#allocation3 + $0x187] sm:$0xff]
        %v6306 = vld [vmem:[#allocation3 + $0x18f] sm:$0xff]
        %v6307 = vld [vmem:[#allocation3 + $0x197] sm:$0xff]
        %v6308 = vld [vmem:[#allocation3 + $0x19f] sm:$0xff]
        %v6309 = vld [vmem:[#allocation3 + $0x1a7] sm:$0xff]
        %v6310 = vld [vmem:[#allocation3 + $0x1af] sm:$0xff]
        %v6311 = vld [vmem:[#allocation3 + $0x1b7] sm:$0xff]
        %v6312 = vld [vmem:[#allocation3 + $0x1bf] sm:$0xff]
        %v6313 = vld [vmem:[#allocation3 + $0x1c7] sm:$0xff]
        %v6314 = vld [vmem:[#allocation3 + $0x1cf] sm:$0xff]
        %v6315 = vld [vmem:[#allocation3 + $0x1d7] sm:$0xff]
        %v6316 = vld [vmem:[#allocation3 + $0x1df] sm:$0xff]
        %v6317 = vld [vmem:[#allocation3 + $0x1e7] sm:$0xff]
        %v6318 = vld [vmem:[#allocation3 + $0x1ef] sm:$0xff]
        %v6319 = vld [vmem:[#allocation3 + $0x1f7] sm:$0xff]
        %v6320 = vld [vmem:[#allocation3 + $0x1ff] sm:$0xff]
        %v6321 = vld [vmem:[#allocation3 + $0x207] sm:$0xff]
        %v6322 = vld [vmem:[#allocation3 + $0x20f] sm:$0xff]
        %v6323 = vld [vmem:[#allocation3 + $0x217] sm:$0xff]
        %v6324 = vld [vmem:[#allocation3 + $0x21f] sm:$0xff]
        %v6325 = vld [vmem:[#allocation3 + $0x227] sm:$0xff]
        %v6326 = vld [vmem:[#allocation3 + $0x22f] sm:$0xff]
        %v6327 = vld [vmem:[#allocation3 + $0x237] sm:$0xff]
        %v6328 = vld [vmem:[#allocation3 + $0x23f] sm:$0xff]
        %v6329 = vld [vmem:[#allocation3 + $0x247] sm:$0xff]
        %v6330 = vld [vmem:[#allocation3 + $0x24f] sm:$0xff]
        %v6331 = vld [vmem:[#allocation3 + $0x257] sm:$0xff]
        %v6332 = vld [vmem:[#allocation3 + $0x25f] sm:$0xff]
        %v6333 = vld [vmem:[#allocation3 + $0x267] sm:$0xff]
        %v6334 = vld [vmem:[#allocation3 + $0x26f] sm:$0xff]
        %v6335 = vld [vmem:[#allocation3 + $0x277] sm:$0xff]
        %v6336 = vld [vmem:[#allocation3 + $0x27f] sm:$0xff]
        %v6337 = vld [vmem:[#allocation3 + $0x287] sm:$0xff]
        %v6338 = vld [vmem:[#allocation3 + $0x28f] sm:$0xff]
        %v6339 = vld [vmem:[#allocation3 + $0x297] sm:$0xff]
        %v6340 = vld [vmem:[#allocation3 + $0x29f] sm:$0xff]
        %v6341 = vld [vmem:[#allocation3 + $0x2a7] sm:$0xff]
        %v6342 = vld [vmem:[#allocation3 + $0x2af] sm:$0xff]
        %v6343 = vld [vmem:[#allocation3 + $0x2b7] sm:$0xff]
        %v6344 = vld [vmem:[#allocation3 + $0x2bf] sm:$0xff]
        %v6345 = vld [vmem:[#allocation3 + $0x2c7] sm:$0xff]
        %v6346 = vld [vmem:[#allocation3 + $0x2cf] sm:$0xff]
        %v6347 = vld [vmem:[#allocation3 + $0x2d7] sm:$0xff]
        %v6348 = vld [vmem:[#allocation3 + $0x2df] sm:$0x1]
        %v6349 = vld [vmem:[#allocation3 + $0x2c8] sm:$0xff]
        %v6350 = vld [vmem:[#allocation3 + $0x2d0] sm:$0xff]
        %v6351 = vld [vmem:[#allocation3 + $0x2d8] sm:$0xff]
        %v6352 = vld [vmem:[#allocation3 + $0x2e0] sm:$0x1]
        %v6353 = vld [vmem:[#allocation3 + $0x2c9] sm:$0xff]
        %v6354 = vld [vmem:[#allocation3 + $0x2d1] sm:$0xff]
        %v6355 = vld [vmem:[#allocation3 + $0x2d9] sm:$0xff]
        %v6356 = vld [vmem:[#allocation3 + $0x2e1] sm:$0x1]
        %v6357 = vld [vmem:[#allocation3 + $0x2e] sm:$0xff]
        %v6358 = vld [vmem:[#allocation3 + $0x36] sm:$0xff]
        %v6359 = vld [vmem:[#allocation3 + $0x3e] sm:$0xff]
        %v6360 = vld [vmem:[#allocation3 + $0x46] sm:$0xff]
        %v6361 = vld [vmem:[#allocation3 + $0x4e] sm:$0xff]
        %v6362 = vld [vmem:[#allocation3 + $0x56] sm:$0xff]
        %v6363 = vld [vmem:[#allocation3 + $0x5e] sm:$0xff]
        %v6364 = vld [vmem:[#allocation3 + $0x66] sm:$0xff]
        %v6365 = vld [vmem:[#allocation3 + $0x6e] sm:$0xff]
        %v6366 = vld [vmem:[#allocation3 + $0x76] sm:$0xff]
        %v6367 = vld [vmem:[#allocation3 + $0x7e] sm:$0xff]
        %v6368 = vld [vmem:[#allocation3 + $0x86] sm:$0xff]
        %v6369 = vld [vmem:[#allocation3 + $0x8e] sm:$0xff]
        %v6370 = vld [vmem:[#allocation3 + $0x96] sm:$0xff]
        %v6371 = vld [vmem:[#allocation3 + $0x9e] sm:$0xff]
        %v6372 = vld [vmem:[#allocation3 + $0xa6] sm:$0xff]
        %v6373 = vld [vmem:[#allocation3 + $0xae] sm:$0xff]
        %v6374 = vld [vmem:[#allocation3 + $0xb6] sm:$0xff]
        %v6375 = vld [vmem:[#allocation3 + $0xbe] sm:$0xff]
        %v6376 = vld [vmem:[#allocation3 + $0xc6] sm:$0xff]
        %v6377 = vld [vmem:[#allocation3 + $0xce] sm:$0xff]
        %v6378 = vld [vmem:[#allocation3 + $0xd6] sm:$0xff]
        %v6379 = vld [vmem:[#allocation3 + $0xde] sm:$0xff]
        %v6380 = vld [vmem:[#allocation3 + $0xe6] sm:$0xff]
        %v6381 = vld [vmem:[#allocation3 + $0xee] sm:$0xff]
        %v6382 = vld [vmem:[#allocation3 + $0xf6] sm:$0xff]
        %v6383 = vld [vmem:[#allocation3 + $0xfe] sm:$0xff]
        %v6384 = vld [vmem:[#allocation3 + $0x106] sm:$0xff]
        %v6385 = vld [vmem:[#allocation3 + $0x10e] sm:$0xff]
        %v6386 = vld [vmem:[#allocation3 + $0x116] sm:$0xff]
        %v6387 = vld [vmem:[#allocation3 + $0x11e] sm:$0xff]
        %v6388 = vld [vmem:[#allocation3 + $0x126] sm:$0xff]
        %v6389 = vld [vmem:[#allocation3 + $0x12e] sm:$0xff]
        %v6390 = vld [vmem:[#allocation3 + $0x136] sm:$0xff]
        %v6391 = vld [vmem:[#allocation3 + $0x13e] sm:$0xff]
        %v6392 = vld [vmem:[#allocation3 + $0x146] sm:$0xff]
        %v6393 = vld [vmem:[#allocation3 + $0x14e] sm:$0xff]
        %v6394 = vld [vmem:[#allocation3 + $0x156] sm:$0xff]
        %v6395 = vld [vmem:[#allocation3 + $0x15e] sm:$0xff]
        %v6396 = vld [vmem:[#allocation3 + $0x166] sm:$0xff]
        %v6397 = vld [vmem:[#allocation3 + $0x16e] sm:$0xff]
        %v6398 = vld [vmem:[#allocation3 + $0x176] sm:$0xff]
        %v6399 = vld [vmem:[#allocation3 + $0x17e] sm:$0xff]
        %v6400 = vld [vmem:[#allocation3 + $0x186] sm:$0xff]
        %v6401 = vld [vmem:[#allocation3 + $0x18e] sm:$0xff]
        %v6402 = vld [vmem:[#allocation3 + $0x196] sm:$0xff]
        %v6403 = vld [vmem:[#allocation3 + $0x19e] sm:$0xff]
        %v6404 = vld [vmem:[#allocation3 + $0x1a6] sm:$0xff]
        %v6405 = vld [vmem:[#allocation3 + $0x1ae] sm:$0xff]
        %v6406 = vld [vmem:[#allocation3 + $0x1b6] sm:$0xff]
        %v6407 = vld [vmem:[#allocation3 + $0x1be] sm:$0xff]
        %v6408 = vld [vmem:[#allocation3 + $0x1c6] sm:$0xff]
        %v6409 = vld [vmem:[#allocation3 + $0x1ce] sm:$0xff]
        %v6410 = vld [vmem:[#allocation3 + $0x1d6] sm:$0xff]
        %v6411 = vld [vmem:[#allocation3 + $0x1de] sm:$0xff]
        %v6412 = vld [vmem:[#allocation3 + $0x1e6] sm:$0xff]
        %v6413 = vld [vmem:[#allocation3 + $0x1ee] sm:$0xff]
        %v6414 = vld [vmem:[#allocation3 + $0x1f6] sm:$0xff]
        %v6415 = vld [vmem:[#allocation3 + $0x1fe] sm:$0xff]
        %v6416 = vld [vmem:[#allocation3 + $0x206] sm:$0xff]
        %v6417 = vld [vmem:[#allocation3 + $0x20e] sm:$0xff]
        %v6418 = vld [vmem:[#allocation3 + $0x216] sm:$0xff]
        %v6419 = vld [vmem:[#allocation3 + $0x21e] sm:$0xff]
        %v6420 = vld [vmem:[#allocation3 + $0x226] sm:$0xff]
        %v6421 = vld [vmem:[#allocation3 + $0x22e] sm:$0xff]
        %v6422 = vld [vmem:[#allocation3 + $0x236] sm:$0xff]
        %v6423 = vld [vmem:[#allocation3 + $0x23e] sm:$0xff]
        %v6424 = vld [vmem:[#allocation3 + $0x246] sm:$0xff]
        %v6425 = vld [vmem:[#allocation3 + $0x24e] sm:$0xff]
        %v6426 = vld [vmem:[#allocation3 + $0x256] sm:$0xff]
        %v6427 = vld [vmem:[#allocation3 + $0x25e] sm:$0xff]
        %v6428 = vld [vmem:[#allocation3 + $0x266] sm:$0xff]
        %v6429 = vld [vmem:[#allocation3 + $0x26e] sm:$0xff]
        %v6430 = vld [vmem:[#allocation3 + $0x276] sm:$0xff]
        %v6431 = vld [vmem:[#allocation3 + $0x27e] sm:$0xff]
        %v6432 = vld [vmem:[#allocation3 + $0x286] sm:$0xff]
        %v6433 = vld [vmem:[#allocation3 + $0x28e] sm:$0xff]
        %v6434 = vld [vmem:[#allocation3 + $0x296] sm:$0xff]
        %v6435 = vld [vmem:[#allocation3 + $0x29e] sm:$0xff]
        %v6436 = vld [vmem:[#allocation3 + $0x2a6] sm:$0xff]
        %v6437 = vld [vmem:[#allocation3 + $0x2ae] sm:$0xff]
        %v6438 = vld [vmem:[#allocation3 + $0x2b6] sm:$0xff]
        %v6439 = vld [vmem:[#allocation3 + $0x2be] sm:$0xff]
        %v6440 = vld [vmem:[#allocation3 + $0x2c6] sm:$0xff]
        %v6441 = vld [vmem:[#allocation3 + $0x2ce] sm:$0xff]
        %v6442 = vld [vmem:[#allocation3 + $0x2d6] sm:$0xff]
        %v6443 = vld [vmem:[#allocation3 + $0x2de] sm:$0xff]
        %v6444 = vld [vmem:[#allocation3 + $0x2e6] sm:$0xff]
        %v6445 = vld [vmem:[#allocation3 + $0x2ee] sm:$0xff]
        %v6446 = vld [vmem:[#allocation3 + $0x2f6] sm:$0x1]
        %v6447 = vld [vmem:[#allocation3 + $0x2df] sm:$0xff]
        %v6448 = vld [vmem:[#allocation3 + $0x2e7] sm:$0xff]
        %v6449 = vld [vmem:[#allocation3 + $0x2ef] sm:$0xff]
        %v6450 = vld [vmem:[#allocation3 + $0x2f7] sm:$0x1]
        %v6451 = vld [vmem:[#allocation3 + $0x2e0] sm:$0xff]
        %v6452 = vld [vmem:[#allocation3 + $0x2e8] sm:$0xff]
        %v6453 = vld [vmem:[#allocation3 + $0x2f0] sm:$0xff]
        %v6454 = vld [vmem:[#allocation3 + $0x2f8] sm:$0x1]
        %6545 = vrot.lane.b32.xlu0 %v6079, 48
        %v6546 = vpop.permute.xlu0 %6545
        %6547 = vrot.lane.b32.xlu0 %v6080, 48
        %v6548 = vpop.permute.xlu0 %6547
        %6549 = vrot.lane.b32.xlu0 %v6081, 48
        %v6550 = vpop.permute.xlu0 %6549
        %6551 = vrot.lane.b32.xlu0 %v6082, 48
        %v6552 = vpop.permute.xlu0 %6551
        %6553 = vrot.lane.b32.xlu0 %v6083, 48
        %v6554 = vpop.permute.xlu0 %6553
        %6555 = vrot.lane.b32.xlu0 %v6084, 48
        %v6556 = vpop.permute.xlu0 %6555
        %6557 = vrot.lane.b32.xlu0 %v6085, 48
        %v6558 = vpop.permute.xlu0 %6557
        %6559 = vrot.lane.b32.xlu0 %v6086, 48
        %v6560 = vpop.permute.xlu0 %6559
        %6561 = vrot.lane.b32.xlu0 %v6087, 48
        %v6562 = vpop.permute.xlu0 %6561
        %6563 = vrot.lane.b32.xlu0 %v6088, 48
        %v6564 = vpop.permute.xlu0 %6563
        %6565 = vrot.lane.b32.xlu0 %v6089, 48
        %v6566 = vpop.permute.xlu0 %6565
        %6567 = vrot.lane.b32.xlu0 %v6090, 48
        %v6568 = vpop.permute.xlu0 %6567
        %6569 = vrot.lane.b32.xlu0 %v6091, 48
        %v6570 = vpop.permute.xlu0 %6569
        %6571 = vrot.lane.b32.xlu0 %v6092, 48
        %v6572 = vpop.permute.xlu0 %6571
        %6573 = vrot.lane.b32.xlu0 %v6093, 48
        %v6574 = vpop.permute.xlu0 %6573
        %6575 = vrot.lane.b32.xlu0 %v6094, 48
        %v6576 = vpop.permute.xlu0 %6575
        %6577 = vrot.lane.b32.xlu0 %v6095, 48
        %v6578 = vpop.permute.xlu0 %6577
        %6579 = vrot.lane.b32.xlu0 %v6096, 48
        %v6580 = vpop.permute.xlu0 %6579
        %6581 = vrot.lane.b32.xlu0 %v6097, 48
        %v6582 = vpop.permute.xlu0 %6581
        %6583 = vrot.lane.b32.xlu0 %v6098, 48
        %v6584 = vpop.permute.xlu0 %6583
        %6585 = vrot.lane.b32.xlu0 %v6099, 48
        %v6586 = vpop.permute.xlu0 %6585
        %6587 = vrot.lane.b32.xlu0 %v6100, 48
        %v6588 = vpop.permute.xlu0 %6587
        %6589 = vrot.lane.b32.xlu0 %v6101, 48
        %v6590 = vpop.permute.xlu0 %6589
        %6591 = vrot.lane.b32.xlu0 %v6102, 48
        %v6592 = vpop.permute.xlu0 %6591
        %6593 = vrot.lane.b32.xlu0 %v6103, 48
        %v6594 = vpop.permute.xlu0 %6593
        %6595 = vrot.lane.b32.xlu0 %v6104, 48
        %v6596 = vpop.permute.xlu0 %6595
        %6597 = vrot.lane.b32.xlu0 %v6105, 48
        %v6598 = vpop.permute.xlu0 %6597
        %6599 = vrot.lane.b32.xlu0 %v6106, 48
        %v6600 = vpop.permute.xlu0 %6599
        %6601 = vrot.lane.b32.xlu0 %v6107, 48
        %v6602 = vpop.permute.xlu0 %6601
        %6603 = vrot.lane.b32.xlu0 %v6108, 48
        %v6604 = vpop.permute.xlu0 %6603
        %6605 = vrot.lane.b32.xlu0 %v6109, 48
        %v6606 = vpop.permute.xlu0 %6605
        %6607 = vrot.lane.b32.xlu0 %v6110, 48
        %v6608 = vpop.permute.xlu0 %6607
        %6609 = vrot.lane.b32.xlu0 %v6111, 48
        %v6610 = vpop.permute.xlu0 %6609
        %6611 = vrot.lane.b32.xlu0 %v6112, 48
        %v6612 = vpop.permute.xlu0 %6611
        %6613 = vrot.lane.b32.xlu0 %v6113, 48
        %v6614 = vpop.permute.xlu0 %6613
        %6615 = vrot.lane.b32.xlu0 %v6114, 48
        %v6616 = vpop.permute.xlu0 %6615
        %6617 = vrot.lane.b32.xlu0 %v6115, 48
        %v6618 = vpop.permute.xlu0 %6617
        %6619 = vrot.lane.b32.xlu0 %v6116, 48
        %v6620 = vpop.permute.xlu0 %6619
        %6621 = vrot.lane.b32.xlu0 %v6117, 48
        %v6622 = vpop.permute.xlu0 %6621
        %6623 = vrot.lane.b32.xlu0 %v6118, 48
        %v6624 = vpop.permute.xlu0 %6623
        %6625 = vrot.lane.b32.xlu0 %v6119, 48
        %v6626 = vpop.permute.xlu0 %6625
        %6627 = vrot.lane.b32.xlu0 %v6120, 48
        %v6628 = vpop.permute.xlu0 %6627
        %6629 = vrot.lane.b32.xlu0 %v6121, 48
        %v6630 = vpop.permute.xlu0 %6629
        %6631 = vrot.lane.b32.xlu0 %v6122, 48
        %v6632 = vpop.permute.xlu0 %6631
        %6633 = vrot.lane.b32.xlu0 %v6123, 48
        %v6634 = vpop.permute.xlu0 %6633
        %6635 = vrot.lane.b32.xlu0 %v6124, 48
        %v6636 = vpop.permute.xlu0 %6635
        %6637 = vrot.lane.b32.xlu0 %v6125, 48
        %v6638 = vpop.permute.xlu0 %6637
        %6639 = vrot.lane.b32.xlu0 %v6126, 48
        %v6640 = vpop.permute.xlu0 %6639
        %6641 = vrot.lane.b32.xlu0 %v6127, 48
        %v6642 = vpop.permute.xlu0 %6641
        %6643 = vrot.lane.b32.xlu0 %v6128, 48
        %v6644 = vpop.permute.xlu0 %6643
        %6645 = vrot.lane.b32.xlu0 %v6129, 48
        %v6646 = vpop.permute.xlu0 %6645
        %6647 = vrot.lane.b32.xlu0 %v6130, 48
        %v6648 = vpop.permute.xlu0 %6647
        %6649 = vrot.lane.b32.xlu0 %v6131, 48
        %v6650 = vpop.permute.xlu0 %6649
        %6651 = vrot.lane.b32.xlu0 %v6132, 48
        %v6652 = vpop.permute.xlu0 %6651
        %6653 = vrot.lane.b32.xlu0 %v6133, 48
        %v6654 = vpop.permute.xlu0 %6653
        %6655 = vrot.lane.b32.xlu0 %v6134, 48
        %v6656 = vpop.permute.xlu0 %6655
        %6657 = vrot.lane.b32.xlu0 %v6135, 48
        %v6658 = vpop.permute.xlu0 %6657
        %6659 = vrot.lane.b32.xlu0 %v6136, 48
        %v6660 = vpop.permute.xlu0 %6659
        %6661 = vrot.lane.b32.xlu0 %v6137, 48
        %v6662 = vpop.permute.xlu0 %6661
        %6663 = vrot.lane.b32.xlu0 %v6138, 48
        %v6664 = vpop.permute.xlu0 %6663
        %6665 = vrot.lane.b32.xlu0 %v6139, 48
        %v6666 = vpop.permute.xlu0 %6665
        %6667 = vrot.lane.b32.xlu0 %v6140, 48
        %v6668 = vpop.permute.xlu0 %6667
        %6669 = vrot.lane.b32.xlu0 %v6141, 48
        %v6670 = vpop.permute.xlu0 %6669
        %6671 = vrot.lane.b32.xlu0 %v6142, 48
        %v6672 = vpop.permute.xlu0 %6671
        %6673 = vrot.lane.b32.xlu0 %v6143, 48
        %v6674 = vpop.permute.xlu0 %6673
        %6675 = vrot.lane.b32.xlu0 %v6144, 48
        %v6676 = vpop.permute.xlu0 %6675
        %6677 = vrot.lane.b32.xlu0 %v6145, 48
        %v6678 = vpop.permute.xlu0 %6677
        %6679 = vrot.lane.b32.xlu0 %v6146, 48
        %v6680 = vpop.permute.xlu0 %6679
        %6681 = vrot.lane.b32.xlu0 %v6147, 48
        %v6682 = vpop.permute.xlu0 %6681
        %6683 = vrot.lane.b32.xlu0 %v6148, 48
        %v6684 = vpop.permute.xlu0 %6683
        %6685 = vrot.lane.b32.xlu0 %v6149, 48
        %v6686 = vpop.permute.xlu0 %6685
        %6687 = vrot.lane.b32.xlu0 %v6150, 48
        %v6688 = vpop.permute.xlu0 %6687
        %6689 = vrot.lane.b32.xlu0 %v6151, 48
        %v6690 = vpop.permute.xlu0 %6689
        %6691 = vrot.lane.b32.xlu0 %v6152, 48
        %v6692 = vpop.permute.xlu0 %6691
        %6693 = vrot.lane.b32.xlu0 %v6153, 48
        %v6694 = vpop.permute.xlu0 %6693
        %6695 = vrot.lane.b32.xlu0 %v6154, 48
        %v6696 = vpop.permute.xlu0 %6695
        %6697 = vrot.lane.b32.xlu0 %v6155, 48
        %v6698 = vpop.permute.xlu0 %6697
        %6699 = vrot.lane.b32.xlu0 %v6156, 48
        %v6700 = vpop.permute.xlu0 %6699
        %6701 = vrot.lane.b32.xlu0 %v6157, 48
        %v6702 = vpop.permute.xlu0 %6701
        %6703 = vrot.lane.b32.xlu0 %v6158, 48
        %v6704 = vpop.permute.xlu0 %6703
        %6705 = vrot.lane.b32.xlu0 %v6159, 48
        %v6706 = vpop.permute.xlu0 %6705
        %6707 = vrot.lane.b32.xlu0 %v6160, 48
        %v6708 = vpop.permute.xlu0 %6707
        %6709 = vrot.lane.b32.xlu0 %v6161, 48
        %v6710 = vpop.permute.xlu0 %6709
        %6711 = vrot.lane.b32.xlu0 %v6162, 48
        %v6712 = vpop.permute.xlu0 %6711
        %6713 = vrot.lane.b32.xlu0 %v6163, 48
        %v6714 = vpop.permute.xlu0 %6713
        %6715 = vrot.lane.b32.xlu0 %v6164, 48
        %v6716 = vpop.permute.xlu0 %6715
        %6717 = vrot.lane.b32.xlu0 %v6165, 48
        %v6718 = vpop.permute.xlu0 %6717
        %6719 = vrot.lane.b32.xlu0 %v6166, 48
        %v6720 = vpop.permute.xlu0 %6719
        %6721 = vrot.lane.b32.xlu0 %v6167, 48
        %v6722 = vpop.permute.xlu0 %6721
        %6723 = vrot.lane.b32.xlu0 %v6168, 48
        %v6724 = vpop.permute.xlu0 %6723
        %6905 = vrot.lane.b32.xlu0 %v6169, 96
        %v6906 = vpop.permute.xlu0 %6905
        %6907 = vrot.lane.b32.xlu0 %v6170, 96
        %v6908 = vpop.permute.xlu0 %6907
        %6909 = vrot.lane.b32.xlu0 %v6171, 96
        %v6910 = vpop.permute.xlu0 %6909
        %6911 = vrot.lane.b32.xlu0 %v6172, 96
        %v6912 = vpop.permute.xlu0 %6911
        %6913 = vrot.lane.b32.xlu0 %v6173, 96
        %v6914 = vpop.permute.xlu0 %6913
        %6915 = vrot.lane.b32.xlu0 %v6174, 96
        %v6916 = vpop.permute.xlu0 %6915
        %6917 = vrot.lane.b32.xlu0 %v6175, 96
        %v6918 = vpop.permute.xlu0 %6917
        %6919 = vrot.lane.b32.xlu0 %v6176, 96
        %v6920 = vpop.permute.xlu0 %6919
        %6921 = vrot.lane.b32.xlu0 %v6177, 96
        %v6922 = vpop.permute.xlu0 %6921
        %6923 = vrot.lane.b32.xlu0 %v6178, 96
        %v6924 = vpop.permute.xlu0 %6923
        %6925 = vrot.lane.b32.xlu0 %v6179, 96
        %v6926 = vpop.permute.xlu0 %6925
        %6927 = vrot.lane.b32.xlu0 %v6180, 96
        %v6928 = vpop.permute.xlu0 %6927
        %6929 = vrot.lane.b32.xlu0 %v6181, 96
        %v6930 = vpop.permute.xlu0 %6929
        %6931 = vrot.lane.b32.xlu0 %v6182, 96
        %v6932 = vpop.permute.xlu0 %6931
        %6933 = vrot.lane.b32.xlu0 %v6183, 96
        %v6934 = vpop.permute.xlu0 %6933
        %6935 = vrot.lane.b32.xlu0 %v6184, 96
        %v6936 = vpop.permute.xlu0 %6935
        %6937 = vrot.lane.b32.xlu0 %v6185, 96
        %v6938 = vpop.permute.xlu0 %6937
        %6939 = vrot.lane.b32.xlu0 %v6186, 96
        %v6940 = vpop.permute.xlu0 %6939
        %6941 = vrot.lane.b32.xlu0 %v6187, 96
        %v6942 = vpop.permute.xlu0 %6941
        %6943 = vrot.lane.b32.xlu0 %v6188, 96
        %v6944 = vpop.permute.xlu0 %6943
        %6945 = vrot.lane.b32.xlu0 %v6189, 96
        %v6946 = vpop.permute.xlu0 %6945
        %6947 = vrot.lane.b32.xlu0 %v6190, 96
        %v6948 = vpop.permute.xlu0 %6947
        %6949 = vrot.lane.b32.xlu0 %v6191, 96
        %v6950 = vpop.permute.xlu0 %6949
        %6951 = vrot.lane.b32.xlu0 %v6192, 96
        %v6952 = vpop.permute.xlu0 %6951
        %6953 = vrot.lane.b32.xlu0 %v6193, 96
        %v6954 = vpop.permute.xlu0 %6953
        %6955 = vrot.lane.b32.xlu0 %v6194, 96
        %v6956 = vpop.permute.xlu0 %6955
        %6957 = vrot.lane.b32.xlu0 %v6195, 96
        %v6958 = vpop.permute.xlu0 %6957
        %6959 = vrot.lane.b32.xlu0 %v6196, 96
        %v6960 = vpop.permute.xlu0 %6959
        %6961 = vrot.lane.b32.xlu0 %v6197, 96
        %v6962 = vpop.permute.xlu0 %6961
        %6963 = vrot.lane.b32.xlu0 %v6198, 96
        %v6964 = vpop.permute.xlu0 %6963
        %6965 = vrot.lane.b32.xlu0 %v6199, 96
        %v6966 = vpop.permute.xlu0 %6965
        %6967 = vrot.lane.b32.xlu0 %v6200, 96
        %v6968 = vpop.permute.xlu0 %6967
        %6969 = vrot.lane.b32.xlu0 %v6201, 96
        %v6970 = vpop.permute.xlu0 %6969
        %6971 = vrot.lane.b32.xlu0 %v6202, 96
        %v6972 = vpop.permute.xlu0 %6971
        %6973 = vrot.lane.b32.xlu0 %v6203, 96
        %v6974 = vpop.permute.xlu0 %6973
        %6975 = vrot.lane.b32.xlu0 %v6204, 96
        %v6976 = vpop.permute.xlu0 %6975
        %6977 = vrot.lane.b32.xlu0 %v6205, 96
        %v6978 = vpop.permute.xlu0 %6977
        %6979 = vrot.lane.b32.xlu0 %v6206, 96
        %v6980 = vpop.permute.xlu0 %6979
        %6981 = vrot.lane.b32.xlu0 %v6207, 96
        %v6982 = vpop.permute.xlu0 %6981
        %6983 = vrot.lane.b32.xlu0 %v6208, 96
        %v6984 = vpop.permute.xlu0 %6983
        %6985 = vrot.lane.b32.xlu0 %v6209, 96
        %v6986 = vpop.permute.xlu0 %6985
        %6987 = vrot.lane.b32.xlu0 %v6210, 96
        %v6988 = vpop.permute.xlu0 %6987
        %6989 = vrot.lane.b32.xlu0 %v6211, 96
        %v6990 = vpop.permute.xlu0 %6989
        %6991 = vrot.lane.b32.xlu0 %v6212, 96
        %v6992 = vpop.permute.xlu0 %6991
        %6993 = vrot.lane.b32.xlu0 %v6213, 96
        %v6994 = vpop.permute.xlu0 %6993
        %6995 = vrot.lane.b32.xlu0 %v6214, 96
        %v6996 = vpop.permute.xlu0 %6995
        %6997 = vrot.lane.b32.xlu0 %v6215, 96
        %v6998 = vpop.permute.xlu0 %6997
        %6999 = vrot.lane.b32.xlu0 %v6216, 96
        %v7000 = vpop.permute.xlu0 %6999
        %7001 = vrot.lane.b32.xlu0 %v6217, 96
        %v7002 = vpop.permute.xlu0 %7001
        %7003 = vrot.lane.b32.xlu0 %v6218, 96
        %v7004 = vpop.permute.xlu0 %7003
        %7005 = vrot.lane.b32.xlu0 %v6219, 96
        %v7006 = vpop.permute.xlu0 %7005
        %7007 = vrot.lane.b32.xlu0 %v6220, 96
        %v7008 = vpop.permute.xlu0 %7007
        %7009 = vrot.lane.b32.xlu0 %v6221, 96
        %v7010 = vpop.permute.xlu0 %7009
        %7011 = vrot.lane.b32.xlu0 %v6222, 96
        %v7012 = vpop.permute.xlu0 %7011
        %7013 = vrot.lane.b32.xlu0 %v6223, 96
        %v7014 = vpop.permute.xlu0 %7013
        %7015 = vrot.lane.b32.xlu0 %v6224, 96
        %v7016 = vpop.permute.xlu0 %7015
        %7017 = vrot.lane.b32.xlu0 %v6225, 96
        %v7018 = vpop.permute.xlu0 %7017
        %7019 = vrot.lane.b32.xlu0 %v6226, 96
        %v7020 = vpop.permute.xlu0 %7019
        %7021 = vrot.lane.b32.xlu0 %v6227, 96
        %v7022 = vpop.permute.xlu0 %7021
        %7023 = vrot.lane.b32.xlu0 %v6228, 96
        %v7024 = vpop.permute.xlu0 %7023
        %7025 = vrot.lane.b32.xlu0 %v6229, 96
        %v7026 = vpop.permute.xlu0 %7025
        %7027 = vrot.lane.b32.xlu0 %v6230, 96
        %v7028 = vpop.permute.xlu0 %7027
        %7029 = vrot.lane.b32.xlu0 %v6231, 96
        %v7030 = vpop.permute.xlu0 %7029
        %7031 = vrot.lane.b32.xlu0 %v6232, 96
        %v7032 = vpop.permute.xlu0 %7031
        %7033 = vrot.lane.b32.xlu0 %v6233, 96
        %v7034 = vpop.permute.xlu0 %7033
        %7035 = vrot.lane.b32.xlu0 %v6234, 96
        %v7036 = vpop.permute.xlu0 %7035
        %7037 = vrot.lane.b32.xlu0 %v6235, 96
        %v7038 = vpop.permute.xlu0 %7037
        %7039 = vrot.lane.b32.xlu0 %v6236, 96
        %v7040 = vpop.permute.xlu0 %7039
        %7041 = vrot.lane.b32.xlu0 %v6237, 96
        %v7042 = vpop.permute.xlu0 %7041
        %7043 = vrot.lane.b32.xlu0 %v6238, 96
        %v7044 = vpop.permute.xlu0 %7043
        %7045 = vrot.lane.b32.xlu0 %v6239, 96
        %v7046 = vpop.permute.xlu0 %7045
        %7047 = vrot.lane.b32.xlu0 %v6240, 96
        %v7048 = vpop.permute.xlu0 %7047
        %7049 = vrot.lane.b32.xlu0 %v6241, 96
        %v7050 = vpop.permute.xlu0 %7049
        %7051 = vrot.lane.b32.xlu0 %v6242, 96
        %v7052 = vpop.permute.xlu0 %7051
        %7053 = vrot.lane.b32.xlu0 %v6243, 96
        %v7054 = vpop.permute.xlu0 %7053
        %7055 = vrot.lane.b32.xlu0 %v6244, 96
        %v7056 = vpop.permute.xlu0 %7055
        %7057 = vrot.lane.b32.xlu0 %v6245, 96
        %v7058 = vpop.permute.xlu0 %7057
        %7059 = vrot.lane.b32.xlu0 %v6246, 96
        %v7060 = vpop.permute.xlu0 %7059
        %7061 = vrot.lane.b32.xlu0 %v6247, 96
        %v7062 = vpop.permute.xlu0 %7061
        %7063 = vrot.lane.b32.xlu0 %v6248, 96
        %v7064 = vpop.permute.xlu0 %7063
        %7065 = vrot.lane.b32.xlu0 %v6249, 96
        %v7066 = vpop.permute.xlu0 %7065
        %7067 = vrot.lane.b32.xlu0 %v6250, 96
        %v7068 = vpop.permute.xlu0 %7067
        %7069 = vrot.lane.b32.xlu0 %v6251, 96
        %v7070 = vpop.permute.xlu0 %7069
        %7071 = vrot.lane.b32.xlu0 %v6252, 96
        %v7072 = vpop.permute.xlu0 %7071
        %7073 = vrot.lane.b32.xlu0 %v6253, 96
        %v7074 = vpop.permute.xlu0 %7073
        %7075 = vrot.lane.b32.xlu0 %v6254, 96
        %v7076 = vpop.permute.xlu0 %7075
        %7077 = vrot.lane.b32.xlu0 %v6255, 96
        %v7078 = vpop.permute.xlu0 %7077
        %7079 = vrot.lane.b32.xlu0 %v6256, 96
        %v7080 = vpop.permute.xlu0 %7079
        %7081 = vrot.lane.b32.xlu0 %v6257, 96
        %v7082 = vpop.permute.xlu0 %7081
        %7083 = vrot.lane.b32.xlu0 %v6258, 96
        %v7084 = vpop.permute.xlu0 %7083
        %7265 = vrot.lane.b32.xlu0 %v6259, 16
        %v7266 = vpop.permute.xlu0 %7265
        %7267 = vrot.lane.b32.xlu0 %v6260, 16
        %v7268 = vpop.permute.xlu0 %7267
        %7269 = vrot.lane.b32.xlu0 %v6261, 16
        %v7270 = vpop.permute.xlu0 %7269
        %7271 = vrot.lane.b32.xlu0 %v6262, 16
        %v7272 = vpop.permute.xlu0 %7271
        %7273 = vrot.lane.b32.xlu0 %v6263, 16
        %v7274 = vpop.permute.xlu0 %7273
        %7275 = vrot.lane.b32.xlu0 %v6264, 16
        %v7276 = vpop.permute.xlu0 %7275
        %7277 = vrot.lane.b32.xlu0 %v6265, 16
        %v7278 = vpop.permute.xlu0 %7277
        %7279 = vrot.lane.b32.xlu0 %v6266, 16
        %v7280 = vpop.permute.xlu0 %7279
        %7281 = vrot.lane.b32.xlu0 %v6267, 16
        %v7282 = vpop.permute.xlu0 %7281
        %7283 = vrot.lane.b32.xlu0 %v6268, 16
        %v7284 = vpop.permute.xlu0 %7283
        %7285 = vrot.lane.b32.xlu0 %v6269, 16
        %v7286 = vpop.permute.xlu0 %7285
        %7287 = vrot.lane.b32.xlu0 %v6270, 16
        %v7288 = vpop.permute.xlu0 %7287
        %7289 = vrot.lane.b32.xlu0 %v6271, 16
        %v7290 = vpop.permute.xlu0 %7289
        %7291 = vrot.lane.b32.xlu0 %v6272, 16
        %v7292 = vpop.permute.xlu0 %7291
        %7293 = vrot.lane.b32.xlu0 %v6273, 16
        %v7294 = vpop.permute.xlu0 %7293
        %7295 = vrot.lane.b32.xlu0 %v6274, 16
        %v7296 = vpop.permute.xlu0 %7295
        %7297 = vrot.lane.b32.xlu0 %v6275, 16
        %v7298 = vpop.permute.xlu0 %7297
        %7299 = vrot.lane.b32.xlu0 %v6276, 16
        %v7300 = vpop.permute.xlu0 %7299
        %7301 = vrot.lane.b32.xlu0 %v6277, 16
        %v7302 = vpop.permute.xlu0 %7301
        %7303 = vrot.lane.b32.xlu0 %v6278, 16
        %v7304 = vpop.permute.xlu0 %7303
        %7305 = vrot.lane.b32.xlu0 %v6279, 16
        %v7306 = vpop.permute.xlu0 %7305
        %7307 = vrot.lane.b32.xlu0 %v6280, 16
        %v7308 = vpop.permute.xlu0 %7307
        %7309 = vrot.lane.b32.xlu0 %v6281, 16
        %v7310 = vpop.permute.xlu0 %7309
        %7311 = vrot.lane.b32.xlu0 %v6282, 16
        %v7312 = vpop.permute.xlu0 %7311
        %7313 = vrot.lane.b32.xlu0 %v6283, 16
        %v7314 = vpop.permute.xlu0 %7313
        %7315 = vrot.lane.b32.xlu0 %v6284, 16
        %v7316 = vpop.permute.xlu0 %7315
        %7317 = vrot.lane.b32.xlu0 %v6285, 16
        %v7318 = vpop.permute.xlu0 %7317
        %7319 = vrot.lane.b32.xlu0 %v6286, 16
        %v7320 = vpop.permute.xlu0 %7319
        %7321 = vrot.lane.b32.xlu0 %v6287, 16
        %v7322 = vpop.permute.xlu0 %7321
        %7323 = vrot.lane.b32.xlu0 %v6288, 16
        %v7324 = vpop.permute.xlu0 %7323
        %7325 = vrot.lane.b32.xlu0 %v6289, 16
        %v7326 = vpop.permute.xlu0 %7325
        %7327 = vrot.lane.b32.xlu0 %v6290, 16
        %v7328 = vpop.permute.xlu0 %7327
        %7329 = vrot.lane.b32.xlu0 %v6291, 16
        %v7330 = vpop.permute.xlu0 %7329
        %7331 = vrot.lane.b32.xlu0 %v6292, 16
        %v7332 = vpop.permute.xlu0 %7331
        %7333 = vrot.lane.b32.xlu0 %v6293, 16
        %v7334 = vpop.permute.xlu0 %7333
        %7335 = vrot.lane.b32.xlu0 %v6294, 16
        %v7336 = vpop.permute.xlu0 %7335
        %7337 = vrot.lane.b32.xlu0 %v6295, 16
        %v7338 = vpop.permute.xlu0 %7337
        %7339 = vrot.lane.b32.xlu0 %v6296, 16
        %v7340 = vpop.permute.xlu0 %7339
        %7341 = vrot.lane.b32.xlu0 %v6297, 16
        %v7342 = vpop.permute.xlu0 %7341
        %7343 = vrot.lane.b32.xlu0 %v6298, 16
        %v7344 = vpop.permute.xlu0 %7343
        %7345 = vrot.lane.b32.xlu0 %v6299, 16
        %v7346 = vpop.permute.xlu0 %7345
        %7347 = vrot.lane.b32.xlu0 %v6300, 16
        %v7348 = vpop.permute.xlu0 %7347
        %7349 = vrot.lane.b32.xlu0 %v6301, 16
        %v7350 = vpop.permute.xlu0 %7349
        %7351 = vrot.lane.b32.xlu0 %v6302, 16
        %v7352 = vpop.permute.xlu0 %7351
        %7353 = vrot.lane.b32.xlu0 %v6303, 16
        %v7354 = vpop.permute.xlu0 %7353
        %7355 = vrot.lane.b32.xlu0 %v6304, 16
        %v7356 = vpop.permute.xlu0 %7355
        %7357 = vrot.lane.b32.xlu0 %v6305, 16
        %v7358 = vpop.permute.xlu0 %7357
        %7359 = vrot.lane.b32.xlu0 %v6306, 16
        %v7360 = vpop.permute.xlu0 %7359
        %7361 = vrot.lane.b32.xlu0 %v6307, 16
        %v7362 = vpop.permute.xlu0 %7361
        %7363 = vrot.lane.b32.xlu0 %v6308, 16
        %v7364 = vpop.permute.xlu0 %7363
        %7365 = vrot.lane.b32.xlu0 %v6309, 16
        %v7366 = vpop.permute.xlu0 %7365
        %7367 = vrot.lane.b32.xlu0 %v6310, 16
        %v7368 = vpop.permute.xlu0 %7367
        %7369 = vrot.lane.b32.xlu0 %v6311, 16
        %v7370 = vpop.permute.xlu0 %7369
        %7371 = vrot.lane.b32.xlu0 %v6312, 16
        %v7372 = vpop.permute.xlu0 %7371
        %7373 = vrot.lane.b32.xlu0 %v6313, 16
        %v7374 = vpop.permute.xlu0 %7373
        %7375 = vrot.lane.b32.xlu0 %v6314, 16
        %v7376 = vpop.permute.xlu0 %7375
        %7377 = vrot.lane.b32.xlu0 %v6315, 16
        %v7378 = vpop.permute.xlu0 %7377
        %7379 = vrot.lane.b32.xlu0 %v6316, 16
        %v7380 = vpop.permute.xlu0 %7379
        %7381 = vrot.lane.b32.xlu0 %v6317, 16
        %v7382 = vpop.permute.xlu0 %7381
        %7383 = vrot.lane.b32.xlu0 %v6318, 16
        %v7384 = vpop.permute.xlu0 %7383
        %7385 = vrot.lane.b32.xlu0 %v6319, 16
        %v7386 = vpop.permute.xlu0 %7385
        %7387 = vrot.lane.b32.xlu0 %v6320, 16
        %v7388 = vpop.permute.xlu0 %7387
        %7389 = vrot.lane.b32.xlu0 %v6321, 16
        %v7390 = vpop.permute.xlu0 %7389
        %7391 = vrot.lane.b32.xlu0 %v6322, 16
        %v7392 = vpop.permute.xlu0 %7391
        %7393 = vrot.lane.b32.xlu0 %v6323, 16
        %v7394 = vpop.permute.xlu0 %7393
        %7395 = vrot.lane.b32.xlu0 %v6324, 16
        %v7396 = vpop.permute.xlu0 %7395
        %7397 = vrot.lane.b32.xlu0 %v6325, 16
        %v7398 = vpop.permute.xlu0 %7397
        %7399 = vrot.lane.b32.xlu0 %v6326, 16
        %v7400 = vpop.permute.xlu0 %7399
        %7401 = vrot.lane.b32.xlu0 %v6327, 16
        %v7402 = vpop.permute.xlu0 %7401
        %7403 = vrot.lane.b32.xlu0 %v6328, 16
        %v7404 = vpop.permute.xlu0 %7403
        %7405 = vrot.lane.b32.xlu0 %v6329, 16
        %v7406 = vpop.permute.xlu0 %7405
        %7407 = vrot.lane.b32.xlu0 %v6330, 16
        %v7408 = vpop.permute.xlu0 %7407
        %7409 = vrot.lane.b32.xlu0 %v6331, 16
        %v7410 = vpop.permute.xlu0 %7409
        %7411 = vrot.lane.b32.xlu0 %v6332, 16
        %v7412 = vpop.permute.xlu0 %7411
        %7413 = vrot.lane.b32.xlu0 %v6333, 16
        %v7414 = vpop.permute.xlu0 %7413
        %7415 = vrot.lane.b32.xlu0 %v6334, 16
        %v7416 = vpop.permute.xlu0 %7415
        %7417 = vrot.lane.b32.xlu0 %v6335, 16
        %v7418 = vpop.permute.xlu0 %7417
        %7419 = vrot.lane.b32.xlu0 %v6336, 16
        %v7420 = vpop.permute.xlu0 %7419
        %7421 = vrot.lane.b32.xlu0 %v6337, 16
        %v7422 = vpop.permute.xlu0 %7421
        %7423 = vrot.lane.b32.xlu0 %v6338, 16
        %v7424 = vpop.permute.xlu0 %7423
        %7425 = vrot.lane.b32.xlu0 %v6339, 16
        %v7426 = vpop.permute.xlu0 %7425
        %7427 = vrot.lane.b32.xlu0 %v6340, 16
        %v7428 = vpop.permute.xlu0 %7427
        %7429 = vrot.lane.b32.xlu0 %v6341, 16
        %v7430 = vpop.permute.xlu0 %7429
        %7431 = vrot.lane.b32.xlu0 %v6342, 16
        %v7432 = vpop.permute.xlu0 %7431
        %7433 = vrot.lane.b32.xlu0 %v6343, 16
        %v7434 = vpop.permute.xlu0 %7433
        %7435 = vrot.lane.b32.xlu0 %v6344, 16
        %v7436 = vpop.permute.xlu0 %7435
        %7437 = vrot.lane.b32.xlu0 %v6345, 16
        %v7438 = vpop.permute.xlu0 %7437
        %7439 = vrot.lane.b32.xlu0 %v6346, 16
        %v7440 = vpop.permute.xlu0 %7439
        %7441 = vrot.lane.b32.xlu0 %v6347, 16
        %v7442 = vpop.permute.xlu0 %7441
        %7443 = vrot.lane.b32.xlu0 %v6348, 16
        %v7444 = vpop.permute.xlu0 %7443
        %7625 = vrot.lane.b32.xlu0 %v5992, 64
        %v7626 = vpop.permute.xlu0 %7625
        %7627 = vrot.lane.b32.xlu0 %v5993, 64
        %v7628 = vpop.permute.xlu0 %7627
        %7629 = vrot.lane.b32.xlu0 %v5994, 64
        %v7630 = vpop.permute.xlu0 %7629
        %7631 = vrot.lane.b32.xlu0 %v5995, 64
        %v7632 = vpop.permute.xlu0 %7631
        %7633 = vrot.lane.b32.xlu0 %v5996, 64
        %v7634 = vpop.permute.xlu0 %7633
        %7635 = vrot.lane.b32.xlu0 %v5997, 64
        %v7636 = vpop.permute.xlu0 %7635
        %7637 = vrot.lane.b32.xlu0 %v5998, 64
        %v7638 = vpop.permute.xlu0 %7637
        %7639 = vrot.lane.b32.xlu0 %v5999, 64
        %v7640 = vpop.permute.xlu0 %7639
        %7641 = vrot.lane.b32.xlu0 %v6000, 64
        %v7642 = vpop.permute.xlu0 %7641
        %7643 = vrot.lane.b32.xlu0 %v6001, 64
        %v7644 = vpop.permute.xlu0 %7643
        %7645 = vrot.lane.b32.xlu0 %v6002, 64
        %v7646 = vpop.permute.xlu0 %7645
        %7647 = vrot.lane.b32.xlu0 %v6003, 64
        %v7648 = vpop.permute.xlu0 %7647
        %7649 = vrot.lane.b32.xlu0 %v6004, 64
        %v7650 = vpop.permute.xlu0 %7649
        %7651 = vrot.lane.b32.xlu0 %v6005, 64
        %v7652 = vpop.permute.xlu0 %7651
        %7653 = vrot.lane.b32.xlu0 %v6006, 64
        %v7654 = vpop.permute.xlu0 %7653
        %7655 = vrot.lane.b32.xlu0 %v6007, 64
        %v7656 = vpop.permute.xlu0 %7655
        %7657 = vrot.lane.b32.xlu0 %v6008, 64
        %v7658 = vpop.permute.xlu0 %7657
        %7659 = vrot.lane.b32.xlu0 %v6009, 64
        %v7660 = vpop.permute.xlu0 %7659
        %7661 = vrot.lane.b32.xlu0 %v6010, 64
        %v7662 = vpop.permute.xlu0 %7661
        %7663 = vrot.lane.b32.xlu0 %v6011, 64
        %v7664 = vpop.permute.xlu0 %7663
        %7665 = vrot.lane.b32.xlu0 %v6012, 64
        %v7666 = vpop.permute.xlu0 %7665
        %7667 = vrot.lane.b32.xlu0 %v6013, 64
        %v7668 = vpop.permute.xlu0 %7667
        %7669 = vrot.lane.b32.xlu0 %v6014, 64
        %v7670 = vpop.permute.xlu0 %7669
        %7671 = vrot.lane.b32.xlu0 %v6015, 64
        %v7672 = vpop.permute.xlu0 %7671
        %7673 = vrot.lane.b32.xlu0 %v6016, 64
        %v7674 = vpop.permute.xlu0 %7673
        %7675 = vrot.lane.b32.xlu0 %v6017, 64
        %v7676 = vpop.permute.xlu0 %7675
        %7677 = vrot.lane.b32.xlu0 %v6018, 64
        %v7678 = vpop.permute.xlu0 %7677
        %7679 = vrot.lane.b32.xlu0 %v6019, 64
        %v7680 = vpop.permute.xlu0 %7679
        %7681 = vrot.lane.b32.xlu0 %v6020, 64
        %v7682 = vpop.permute.xlu0 %7681
        %7683 = vrot.lane.b32.xlu0 %v6021, 64
        %v7684 = vpop.permute.xlu0 %7683
        %7685 = vrot.lane.b32.xlu0 %v6022, 64
        %v7686 = vpop.permute.xlu0 %7685
        %7687 = vrot.lane.b32.xlu0 %v6023, 64
        %v7688 = vpop.permute.xlu0 %7687
        %7689 = vrot.lane.b32.xlu0 %v6024, 64
        %v7690 = vpop.permute.xlu0 %7689
        %7691 = vrot.lane.b32.xlu0 %v6025, 64
        %v7692 = vpop.permute.xlu0 %7691
        %7693 = vrot.lane.b32.xlu0 %v6026, 64
        %v7694 = vpop.permute.xlu0 %7693
        %7695 = vrot.lane.b32.xlu0 %v6027, 64
        %v7696 = vpop.permute.xlu0 %7695
        %7697 = vrot.lane.b32.xlu0 %v6028, 64
        %v7698 = vpop.permute.xlu0 %7697
        %7699 = vrot.lane.b32.xlu0 %v6029, 64
        %v7700 = vpop.permute.xlu0 %7699
        %7701 = vrot.lane.b32.xlu0 %v6030, 64
        %v7702 = vpop.permute.xlu0 %7701
        %7703 = vrot.lane.b32.xlu0 %v6031, 64
        %v7704 = vpop.permute.xlu0 %7703
        %7705 = vrot.lane.b32.xlu0 %v6032, 64
        %v7706 = vpop.permute.xlu0 %7705
        %7707 = vrot.lane.b32.xlu0 %v6033, 64
        %v7708 = vpop.permute.xlu0 %7707
        %7709 = vrot.lane.b32.xlu0 %v6034, 64
        %v7710 = vpop.permute.xlu0 %7709
        %7711 = vrot.lane.b32.xlu0 %v6035, 64
        %v7712 = vpop.permute.xlu0 %7711
        %7713 = vrot.lane.b32.xlu0 %v6036, 64
        %v7714 = vpop.permute.xlu0 %7713
        %7715 = vrot.lane.b32.xlu0 %v6037, 64
        %v7716 = vpop.permute.xlu0 %7715
        %7717 = vrot.lane.b32.xlu0 %v6038, 64
        %v7718 = vpop.permute.xlu0 %7717
        %7719 = vrot.lane.b32.xlu0 %v6039, 64
        %v7720 = vpop.permute.xlu0 %7719
        %7721 = vrot.lane.b32.xlu0 %v6040, 64
        %v7722 = vpop.permute.xlu0 %7721
        %7723 = vrot.lane.b32.xlu0 %v6041, 64
        %v7724 = vpop.permute.xlu0 %7723
        %7725 = vrot.lane.b32.xlu0 %v6042, 64
        %v7726 = vpop.permute.xlu0 %7725
        %7727 = vrot.lane.b32.xlu0 %v6043, 64
        %v7728 = vpop.permute.xlu0 %7727
        %7729 = vrot.lane.b32.xlu0 %v6044, 64
        %v7730 = vpop.permute.xlu0 %7729
        %7731 = vrot.lane.b32.xlu0 %v6045, 64
        %v7732 = vpop.permute.xlu0 %7731
        %7733 = vrot.lane.b32.xlu0 %v6046, 64
        %v7734 = vpop.permute.xlu0 %7733
        %7735 = vrot.lane.b32.xlu0 %v6047, 64
        %v7736 = vpop.permute.xlu0 %7735
        %7737 = vrot.lane.b32.xlu0 %v6048, 64
        %v7738 = vpop.permute.xlu0 %7737
        %7739 = vrot.lane.b32.xlu0 %v6049, 64
        %v7740 = vpop.permute.xlu0 %7739
        %7741 = vrot.lane.b32.xlu0 %v6050, 64
        %v7742 = vpop.permute.xlu0 %7741
        %7743 = vrot.lane.b32.xlu0 %v6051, 64
        %v7744 = vpop.permute.xlu0 %7743
        %7745 = vrot.lane.b32.xlu0 %v6052, 64
        %v7746 = vpop.permute.xlu0 %7745
        %7747 = vrot.lane.b32.xlu0 %v6053, 64
        %v7748 = vpop.permute.xlu0 %7747
        %7749 = vrot.lane.b32.xlu0 %v6054, 64
        %v7750 = vpop.permute.xlu0 %7749
        %7751 = vrot.lane.b32.xlu0 %v6055, 64
        %v7752 = vpop.permute.xlu0 %7751
        %7753 = vrot.lane.b32.xlu0 %v6056, 64
        %v7754 = vpop.permute.xlu0 %7753
        %7755 = vrot.lane.b32.xlu0 %v6057, 64
        %v7756 = vpop.permute.xlu0 %7755
        %7757 = vrot.lane.b32.xlu0 %v6058, 64
        %v7758 = vpop.permute.xlu0 %7757
        %7759 = vrot.lane.b32.xlu0 %v6059, 64
        %v7760 = vpop.permute.xlu0 %7759
        %7761 = vrot.lane.b32.xlu0 %v6060, 64
        %v7762 = vpop.permute.xlu0 %7761
        %7763 = vrot.lane.b32.xlu0 %v6061, 64
        %v7764 = vpop.permute.xlu0 %7763
        %7765 = vrot.lane.b32.xlu0 %v6062, 64
        %v7766 = vpop.permute.xlu0 %7765
        %7767 = vrot.lane.b32.xlu0 %v6063, 64
        %v7768 = vpop.permute.xlu0 %7767
        %7769 = vrot.lane.b32.xlu0 %v6064, 64
        %v7770 = vpop.permute.xlu0 %7769
        %7771 = vrot.lane.b32.xlu0 %v6065, 64
        %v7772 = vpop.permute.xlu0 %7771
        %7773 = vrot.lane.b32.xlu0 %v6066, 64
        %v7774 = vpop.permute.xlu0 %7773
        %7775 = vrot.lane.b32.xlu0 %v6067, 64
        %v7776 = vpop.permute.xlu0 %7775
        %7777 = vrot.lane.b32.xlu0 %v6068, 64
        %v7778 = vpop.permute.xlu0 %7777
        %7779 = vrot.lane.b32.xlu0 %v6069, 64
        %v7780 = vpop.permute.xlu0 %7779
        %7781 = vrot.lane.b32.xlu0 %v6070, 64
        %v7782 = vpop.permute.xlu0 %7781
        %7783 = vrot.lane.b32.xlu0 %v6071, 64
        %v7784 = vpop.permute.xlu0 %7783
        %7785 = vrot.lane.b32.xlu0 %v6072, 64
        %v7786 = vpop.permute.xlu0 %7785
        %7787 = vrot.lane.b32.xlu0 %v6073, 64
        %v7788 = vpop.permute.xlu0 %7787
        %7789 = vrot.lane.b32.xlu0 %v6074, 64
        %v7790 = vpop.permute.xlu0 %7789
        %7791 = vrot.lane.b32.xlu0 %v6075, 64
        %v7792 = vpop.permute.xlu0 %7791
        %7793 = vrot.lane.b32.xlu0 %v6076, 64
        %v7794 = vpop.permute.xlu0 %7793
        %7795 = vrot.lane.b32.xlu0 %v6077, 64
        %v7796 = vpop.permute.xlu0 %7795
        %7797 = vrot.lane.b32.xlu0 %v6349, 64
        %v7798 = vpop.permute.xlu0 %7797
        %7799 = vrot.lane.b32.xlu0 %v6350, 64
        %v7800 = vpop.permute.xlu0 %7799
        %7801 = vrot.lane.b32.xlu0 %v6351, 64
        %v7802 = vpop.permute.xlu0 %7801
        %7803 = vrot.lane.b32.xlu0 %v6352, 64
        %v7804 = vpop.permute.xlu0 %7803
        %7899 = vrot.lane.b32.xlu0 %v6082, 112
        %v7900 = vpop.permute.xlu0 %7899
        %7901 = vrot.lane.b32.xlu0 %v6083, 112
        %v7902 = vpop.permute.xlu0 %7901
        %7903 = vrot.lane.b32.xlu0 %v6084, 112
        %v7904 = vpop.permute.xlu0 %7903
        %7905 = vrot.lane.b32.xlu0 %v6085, 112
        %v7906 = vpop.permute.xlu0 %7905
        %7907 = vrot.lane.b32.xlu0 %v6086, 112
        %v7908 = vpop.permute.xlu0 %7907
        %7909 = vrot.lane.b32.xlu0 %v6087, 112
        %v7910 = vpop.permute.xlu0 %7909
        %7911 = vrot.lane.b32.xlu0 %v6088, 112
        %v7912 = vpop.permute.xlu0 %7911
        %7913 = vrot.lane.b32.xlu0 %v6089, 112
        %v7914 = vpop.permute.xlu0 %7913
        %7915 = vrot.lane.b32.xlu0 %v6090, 112
        %v7916 = vpop.permute.xlu0 %7915
        %7917 = vrot.lane.b32.xlu0 %v6091, 112
        %v7918 = vpop.permute.xlu0 %7917
        %7919 = vrot.lane.b32.xlu0 %v6092, 112
        %v7920 = vpop.permute.xlu0 %7919
        %7921 = vrot.lane.b32.xlu0 %v6093, 112
        %v7922 = vpop.permute.xlu0 %7921
        %7923 = vrot.lane.b32.xlu0 %v6094, 112
        %v7924 = vpop.permute.xlu0 %7923
        %7925 = vrot.lane.b32.xlu0 %v6095, 112
        %v7926 = vpop.permute.xlu0 %7925
        %7927 = vrot.lane.b32.xlu0 %v6096, 112
        %v7928 = vpop.permute.xlu0 %7927
        %7929 = vrot.lane.b32.xlu0 %v6097, 112
        %v7930 = vpop.permute.xlu0 %7929
        %7931 = vrot.lane.b32.xlu0 %v6098, 112
        %v7932 = vpop.permute.xlu0 %7931
        %7933 = vrot.lane.b32.xlu0 %v6099, 112
        %v7934 = vpop.permute.xlu0 %7933
        %7935 = vrot.lane.b32.xlu0 %v6100, 112
        %v7936 = vpop.permute.xlu0 %7935
        %7937 = vrot.lane.b32.xlu0 %v6101, 112
        %v7938 = vpop.permute.xlu0 %7937
        %7939 = vrot.lane.b32.xlu0 %v6102, 112
        %v7940 = vpop.permute.xlu0 %7939
        %7941 = vrot.lane.b32.xlu0 %v6103, 112
        %v7942 = vpop.permute.xlu0 %7941
        %7943 = vrot.lane.b32.xlu0 %v6104, 112
        %v7944 = vpop.permute.xlu0 %7943
        %7945 = vrot.lane.b32.xlu0 %v6105, 112
        %v7946 = vpop.permute.xlu0 %7945
        %7947 = vrot.lane.b32.xlu0 %v6106, 112
        %v7948 = vpop.permute.xlu0 %7947
        %7949 = vrot.lane.b32.xlu0 %v6107, 112
        %v7950 = vpop.permute.xlu0 %7949
        %7951 = vrot.lane.b32.xlu0 %v6108, 112
        %v7952 = vpop.permute.xlu0 %7951
        %7953 = vrot.lane.b32.xlu0 %v6109, 112
        %v7954 = vpop.permute.xlu0 %7953
        %7955 = vrot.lane.b32.xlu0 %v6110, 112
        %v7956 = vpop.permute.xlu0 %7955
        %7957 = vrot.lane.b32.xlu0 %v6111, 112
        %v7958 = vpop.permute.xlu0 %7957
        %7959 = vrot.lane.b32.xlu0 %v6112, 112
        %v7960 = vpop.permute.xlu0 %7959
        %7961 = vrot.lane.b32.xlu0 %v6113, 112
        %v7962 = vpop.permute.xlu0 %7961
        %7963 = vrot.lane.b32.xlu0 %v6114, 112
        %v7964 = vpop.permute.xlu0 %7963
        %7965 = vrot.lane.b32.xlu0 %v6115, 112
        %v7966 = vpop.permute.xlu0 %7965
        %7967 = vrot.lane.b32.xlu0 %v6116, 112
        %v7968 = vpop.permute.xlu0 %7967
        %7969 = vrot.lane.b32.xlu0 %v6117, 112
        %v7970 = vpop.permute.xlu0 %7969
        %7971 = vrot.lane.b32.xlu0 %v6118, 112
        %v7972 = vpop.permute.xlu0 %7971
        %7973 = vrot.lane.b32.xlu0 %v6119, 112
        %v7974 = vpop.permute.xlu0 %7973
        %7975 = vrot.lane.b32.xlu0 %v6120, 112
        %v7976 = vpop.permute.xlu0 %7975
        %7977 = vrot.lane.b32.xlu0 %v6121, 112
        %v7978 = vpop.permute.xlu0 %7977
        %7979 = vrot.lane.b32.xlu0 %v6122, 112
        %v7980 = vpop.permute.xlu0 %7979
        %7981 = vrot.lane.b32.xlu0 %v6123, 112
        %v7982 = vpop.permute.xlu0 %7981
        %7983 = vrot.lane.b32.xlu0 %v6124, 112
        %v7984 = vpop.permute.xlu0 %7983
        %7985 = vrot.lane.b32.xlu0 %v6125, 112
        %v7986 = vpop.permute.xlu0 %7985
        %7987 = vrot.lane.b32.xlu0 %v6126, 112
        %v7988 = vpop.permute.xlu0 %7987
        %7989 = vrot.lane.b32.xlu0 %v6127, 112
        %v7990 = vpop.permute.xlu0 %7989
        %7991 = vrot.lane.b32.xlu0 %v6128, 112
        %v7992 = vpop.permute.xlu0 %7991
        %7993 = vrot.lane.b32.xlu0 %v6129, 112
        %v7994 = vpop.permute.xlu0 %7993
        %7995 = vrot.lane.b32.xlu0 %v6130, 112
        %v7996 = vpop.permute.xlu0 %7995
        %7997 = vrot.lane.b32.xlu0 %v6131, 112
        %v7998 = vpop.permute.xlu0 %7997
        %7999 = vrot.lane.b32.xlu0 %v6132, 112
        %v8000 = vpop.permute.xlu0 %7999
        %8001 = vrot.lane.b32.xlu0 %v6133, 112
        %v8002 = vpop.permute.xlu0 %8001
        %8003 = vrot.lane.b32.xlu0 %v6134, 112
        %v8004 = vpop.permute.xlu0 %8003
        %8005 = vrot.lane.b32.xlu0 %v6135, 112
        %v8006 = vpop.permute.xlu0 %8005
        %8007 = vrot.lane.b32.xlu0 %v6136, 112
        %v8008 = vpop.permute.xlu0 %8007
        %8009 = vrot.lane.b32.xlu0 %v6137, 112
        %v8010 = vpop.permute.xlu0 %8009
        %8011 = vrot.lane.b32.xlu0 %v6138, 112
        %v8012 = vpop.permute.xlu0 %8011
        %8013 = vrot.lane.b32.xlu0 %v6139, 112
        %v8014 = vpop.permute.xlu0 %8013
        %8015 = vrot.lane.b32.xlu0 %v6140, 112
        %v8016 = vpop.permute.xlu0 %8015
        %8017 = vrot.lane.b32.xlu0 %v6141, 112
        %v8018 = vpop.permute.xlu0 %8017
        %8019 = vrot.lane.b32.xlu0 %v6142, 112
        %v8020 = vpop.permute.xlu0 %8019
        %8021 = vrot.lane.b32.xlu0 %v6143, 112
        %v8022 = vpop.permute.xlu0 %8021
        %8023 = vrot.lane.b32.xlu0 %v6144, 112
        %v8024 = vpop.permute.xlu0 %8023
        %8025 = vrot.lane.b32.xlu0 %v6145, 112
        %v8026 = vpop.permute.xlu0 %8025
        %8027 = vrot.lane.b32.xlu0 %v6146, 112
        %v8028 = vpop.permute.xlu0 %8027
        %8029 = vrot.lane.b32.xlu0 %v6147, 112
        %v8030 = vpop.permute.xlu0 %8029
        %8031 = vrot.lane.b32.xlu0 %v6148, 112
        %v8032 = vpop.permute.xlu0 %8031
        %8033 = vrot.lane.b32.xlu0 %v6149, 112
        %v8034 = vpop.permute.xlu0 %8033
        %8035 = vrot.lane.b32.xlu0 %v6150, 112
        %v8036 = vpop.permute.xlu0 %8035
        %8037 = vrot.lane.b32.xlu0 %v6151, 112
        %v8038 = vpop.permute.xlu0 %8037
        %8039 = vrot.lane.b32.xlu0 %v6152, 112
        %v8040 = vpop.permute.xlu0 %8039
        %8041 = vrot.lane.b32.xlu0 %v6153, 112
        %v8042 = vpop.permute.xlu0 %8041
        %8043 = vrot.lane.b32.xlu0 %v6154, 112
        %v8044 = vpop.permute.xlu0 %8043
        %8045 = vrot.lane.b32.xlu0 %v6155, 112
        %v8046 = vpop.permute.xlu0 %8045
        %8047 = vrot.lane.b32.xlu0 %v6156, 112
        %v8048 = vpop.permute.xlu0 %8047
        %8049 = vrot.lane.b32.xlu0 %v6157, 112
        %v8050 = vpop.permute.xlu0 %8049
        %8051 = vrot.lane.b32.xlu0 %v6158, 112
        %v8052 = vpop.permute.xlu0 %8051
        %8053 = vrot.lane.b32.xlu0 %v6159, 112
        %v8054 = vpop.permute.xlu0 %8053
        %8055 = vrot.lane.b32.xlu0 %v6160, 112
        %v8056 = vpop.permute.xlu0 %8055
        %8057 = vrot.lane.b32.xlu0 %v6161, 112
        %v8058 = vpop.permute.xlu0 %8057
        %8059 = vrot.lane.b32.xlu0 %v6162, 112
        %v8060 = vpop.permute.xlu0 %8059
        %8061 = vrot.lane.b32.xlu0 %v6163, 112
        %v8062 = vpop.permute.xlu0 %8061
        %8063 = vrot.lane.b32.xlu0 %v6164, 112
        %v8064 = vpop.permute.xlu0 %8063
        %8065 = vrot.lane.b32.xlu0 %v6165, 112
        %v8066 = vpop.permute.xlu0 %8065
        %8067 = vrot.lane.b32.xlu0 %v6166, 112
        %v8068 = vpop.permute.xlu0 %8067
        %8069 = vrot.lane.b32.xlu0 %v6167, 112
        %v8070 = vpop.permute.xlu0 %8069
        %8071 = vrot.lane.b32.xlu0 %v6353, 112
        %v8072 = vpop.permute.xlu0 %8071
        %8073 = vrot.lane.b32.xlu0 %v6354, 112
        %v8074 = vpop.permute.xlu0 %8073
        %8075 = vrot.lane.b32.xlu0 %v6355, 112
        %v8076 = vpop.permute.xlu0 %8075
        %8077 = vrot.lane.b32.xlu0 %v6356, 112
        %v8078 = vpop.permute.xlu0 %8077
        %8259 = vrot.lane.b32.xlu0 %v6357, 32
        %v8260 = vpop.permute.xlu0 %8259
        %8261 = vrot.lane.b32.xlu0 %v6358, 32
        %v8262 = vpop.permute.xlu0 %8261
        %8263 = vrot.lane.b32.xlu0 %v6359, 32
        %v8264 = vpop.permute.xlu0 %8263
        %8265 = vrot.lane.b32.xlu0 %v6360, 32
        %v8266 = vpop.permute.xlu0 %8265
        %8267 = vrot.lane.b32.xlu0 %v6361, 32
        %v8268 = vpop.permute.xlu0 %8267
        %8269 = vrot.lane.b32.xlu0 %v6362, 32
        %v8270 = vpop.permute.xlu0 %8269
        %8271 = vrot.lane.b32.xlu0 %v6363, 32
        %v8272 = vpop.permute.xlu0 %8271
        %8273 = vrot.lane.b32.xlu0 %v6364, 32
        %v8274 = vpop.permute.xlu0 %8273
        %8275 = vrot.lane.b32.xlu0 %v6365, 32
        %v8276 = vpop.permute.xlu0 %8275
        %8277 = vrot.lane.b32.xlu0 %v6366, 32
        %v8278 = vpop.permute.xlu0 %8277
        %8279 = vrot.lane.b32.xlu0 %v6367, 32
        %v8280 = vpop.permute.xlu0 %8279
        %8281 = vrot.lane.b32.xlu0 %v6368, 32
        %v8282 = vpop.permute.xlu0 %8281
        %8283 = vrot.lane.b32.xlu0 %v6369, 32
        %v8284 = vpop.permute.xlu0 %8283
        %8285 = vrot.lane.b32.xlu0 %v6370, 32
        %v8286 = vpop.permute.xlu0 %8285
        %8287 = vrot.lane.b32.xlu0 %v6371, 32
        %v8288 = vpop.permute.xlu0 %8287
        %8289 = vrot.lane.b32.xlu0 %v6372, 32
        %v8290 = vpop.permute.xlu0 %8289
        %8291 = vrot.lane.b32.xlu0 %v6373, 32
        %v8292 = vpop.permute.xlu0 %8291
        %8293 = vrot.lane.b32.xlu0 %v6374, 32
        %v8294 = vpop.permute.xlu0 %8293
        %8295 = vrot.lane.b32.xlu0 %v6375, 32
        %v8296 = vpop.permute.xlu0 %8295
        %8297 = vrot.lane.b32.xlu0 %v6376, 32
        %v8298 = vpop.permute.xlu0 %8297
        %8299 = vrot.lane.b32.xlu0 %v6377, 32
        %v8300 = vpop.permute.xlu0 %8299
        %8301 = vrot.lane.b32.xlu0 %v6378, 32
        %v8302 = vpop.permute.xlu0 %8301
        %8303 = vrot.lane.b32.xlu0 %v6379, 32
        %v8304 = vpop.permute.xlu0 %8303
        %8305 = vrot.lane.b32.xlu0 %v6380, 32
        %v8306 = vpop.permute.xlu0 %8305
        %8307 = vrot.lane.b32.xlu0 %v6381, 32
        %v8308 = vpop.permute.xlu0 %8307
        %8309 = vrot.lane.b32.xlu0 %v6382, 32
        %v8310 = vpop.permute.xlu0 %8309
        %8311 = vrot.lane.b32.xlu0 %v6383, 32
        %v8312 = vpop.permute.xlu0 %8311
        %8313 = vrot.lane.b32.xlu0 %v6384, 32
        %v8314 = vpop.permute.xlu0 %8313
        %8315 = vrot.lane.b32.xlu0 %v6385, 32
        %v8316 = vpop.permute.xlu0 %8315
        %8317 = vrot.lane.b32.xlu0 %v6386, 32
        %v8318 = vpop.permute.xlu0 %8317
        %8319 = vrot.lane.b32.xlu0 %v6387, 32
        %v8320 = vpop.permute.xlu0 %8319
        %8321 = vrot.lane.b32.xlu0 %v6388, 32
        %v8322 = vpop.permute.xlu0 %8321
        %8323 = vrot.lane.b32.xlu0 %v6389, 32
        %v8324 = vpop.permute.xlu0 %8323
        %8325 = vrot.lane.b32.xlu0 %v6390, 32
        %v8326 = vpop.permute.xlu0 %8325
        %8327 = vrot.lane.b32.xlu0 %v6391, 32
        %v8328 = vpop.permute.xlu0 %8327
        %8329 = vrot.lane.b32.xlu0 %v6392, 32
        %v8330 = vpop.permute.xlu0 %8329
        %8331 = vrot.lane.b32.xlu0 %v6393, 32
        %v8332 = vpop.permute.xlu0 %8331
        %8333 = vrot.lane.b32.xlu0 %v6394, 32
        %v8334 = vpop.permute.xlu0 %8333
        %8335 = vrot.lane.b32.xlu0 %v6395, 32
        %v8336 = vpop.permute.xlu0 %8335
        %8337 = vrot.lane.b32.xlu0 %v6396, 32
        %v8338 = vpop.permute.xlu0 %8337
        %8339 = vrot.lane.b32.xlu0 %v6397, 32
        %v8340 = vpop.permute.xlu0 %8339
        %8341 = vrot.lane.b32.xlu0 %v6398, 32
        %v8342 = vpop.permute.xlu0 %8341
        %8343 = vrot.lane.b32.xlu0 %v6399, 32
        %v8344 = vpop.permute.xlu0 %8343
        %8345 = vrot.lane.b32.xlu0 %v6400, 32
        %v8346 = vpop.permute.xlu0 %8345
        %8347 = vrot.lane.b32.xlu0 %v6401, 32
        %v8348 = vpop.permute.xlu0 %8347
        %8349 = vrot.lane.b32.xlu0 %v6402, 32
        %v8350 = vpop.permute.xlu0 %8349
        %8351 = vrot.lane.b32.xlu0 %v6403, 32
        %v8352 = vpop.permute.xlu0 %8351
        %8353 = vrot.lane.b32.xlu0 %v6404, 32
        %v8354 = vpop.permute.xlu0 %8353
        %8355 = vrot.lane.b32.xlu0 %v6405, 32
        %v8356 = vpop.permute.xlu0 %8355
        %8357 = vrot.lane.b32.xlu0 %v6406, 32
        %v8358 = vpop.permute.xlu0 %8357
        %8359 = vrot.lane.b32.xlu0 %v6407, 32
        %v8360 = vpop.permute.xlu0 %8359
        %8361 = vrot.lane.b32.xlu0 %v6408, 32
        %v8362 = vpop.permute.xlu0 %8361
        %8363 = vrot.lane.b32.xlu0 %v6409, 32
        %v8364 = vpop.permute.xlu0 %8363
        %8365 = vrot.lane.b32.xlu0 %v6410, 32
        %v8366 = vpop.permute.xlu0 %8365
        %8367 = vrot.lane.b32.xlu0 %v6411, 32
        %v8368 = vpop.permute.xlu0 %8367
        %8369 = vrot.lane.b32.xlu0 %v6412, 32
        %v8370 = vpop.permute.xlu0 %8369
        %8371 = vrot.lane.b32.xlu0 %v6413, 32
        %v8372 = vpop.permute.xlu0 %8371
        %8373 = vrot.lane.b32.xlu0 %v6414, 32
        %v8374 = vpop.permute.xlu0 %8373
        %8375 = vrot.lane.b32.xlu0 %v6415, 32
        %v8376 = vpop.permute.xlu0 %8375
        %8377 = vrot.lane.b32.xlu0 %v6416, 32
        %v8378 = vpop.permute.xlu0 %8377
        %8379 = vrot.lane.b32.xlu0 %v6417, 32
        %v8380 = vpop.permute.xlu0 %8379
        %8381 = vrot.lane.b32.xlu0 %v6418, 32
        %v8382 = vpop.permute.xlu0 %8381
        %8383 = vrot.lane.b32.xlu0 %v6419, 32
        %v8384 = vpop.permute.xlu0 %8383
        %8385 = vrot.lane.b32.xlu0 %v6420, 32
        %v8386 = vpop.permute.xlu0 %8385
        %8387 = vrot.lane.b32.xlu0 %v6421, 32
        %v8388 = vpop.permute.xlu0 %8387
        %8389 = vrot.lane.b32.xlu0 %v6422, 32
        %v8390 = vpop.permute.xlu0 %8389
        %8391 = vrot.lane.b32.xlu0 %v6423, 32
        %v8392 = vpop.permute.xlu0 %8391
        %8393 = vrot.lane.b32.xlu0 %v6424, 32
        %v8394 = vpop.permute.xlu0 %8393
        %8395 = vrot.lane.b32.xlu0 %v6425, 32
        %v8396 = vpop.permute.xlu0 %8395
        %8397 = vrot.lane.b32.xlu0 %v6426, 32
        %v8398 = vpop.permute.xlu0 %8397
        %8399 = vrot.lane.b32.xlu0 %v6427, 32
        %v8400 = vpop.permute.xlu0 %8399
        %8401 = vrot.lane.b32.xlu0 %v6428, 32
        %v8402 = vpop.permute.xlu0 %8401
        %8403 = vrot.lane.b32.xlu0 %v6429, 32
        %v8404 = vpop.permute.xlu0 %8403
        %8405 = vrot.lane.b32.xlu0 %v6430, 32
        %v8406 = vpop.permute.xlu0 %8405
        %8407 = vrot.lane.b32.xlu0 %v6431, 32
        %v8408 = vpop.permute.xlu0 %8407
        %8409 = vrot.lane.b32.xlu0 %v6432, 32
        %v8410 = vpop.permute.xlu0 %8409
        %8411 = vrot.lane.b32.xlu0 %v6433, 32
        %v8412 = vpop.permute.xlu0 %8411
        %8413 = vrot.lane.b32.xlu0 %v6434, 32
        %v8414 = vpop.permute.xlu0 %8413
        %8415 = vrot.lane.b32.xlu0 %v6435, 32
        %v8416 = vpop.permute.xlu0 %8415
        %8417 = vrot.lane.b32.xlu0 %v6436, 32
        %v8418 = vpop.permute.xlu0 %8417
        %8419 = vrot.lane.b32.xlu0 %v6437, 32
        %v8420 = vpop.permute.xlu0 %8419
        %8421 = vrot.lane.b32.xlu0 %v6438, 32
        %v8422 = vpop.permute.xlu0 %8421
        %8423 = vrot.lane.b32.xlu0 %v6439, 32
        %v8424 = vpop.permute.xlu0 %8423
        %8425 = vrot.lane.b32.xlu0 %v6440, 32
        %v8426 = vpop.permute.xlu0 %8425
        %8427 = vrot.lane.b32.xlu0 %v6441, 32
        %v8428 = vpop.permute.xlu0 %8427
        %8429 = vrot.lane.b32.xlu0 %v6442, 32
        %v8430 = vpop.permute.xlu0 %8429
        %8431 = vrot.lane.b32.xlu0 %v6443, 32
        %v8432 = vpop.permute.xlu0 %8431
        %8433 = vrot.lane.b32.xlu0 %v6444, 32
        %v8434 = vpop.permute.xlu0 %8433
        %8435 = vrot.lane.b32.xlu0 %v6445, 32
        %v8436 = vpop.permute.xlu0 %8435
        %8437 = vrot.lane.b32.xlu0 %v6446, 32
        %v8438 = vpop.permute.xlu0 %8437
        %8533 = vrot.lane.b32.xlu0 %v6262, 80
        %v8534 = vpop.permute.xlu0 %8533
        %8535 = vrot.lane.b32.xlu0 %v6263, 80
        %v8536 = vpop.permute.xlu0 %8535
        %8537 = vrot.lane.b32.xlu0 %v6264, 80
        %v8538 = vpop.permute.xlu0 %8537
        %8539 = vrot.lane.b32.xlu0 %v6265, 80
        %v8540 = vpop.permute.xlu0 %8539
        %8541 = vrot.lane.b32.xlu0 %v6266, 80
        %v8542 = vpop.permute.xlu0 %8541
        %8543 = vrot.lane.b32.xlu0 %v6267, 80
        %v8544 = vpop.permute.xlu0 %8543
        %8545 = vrot.lane.b32.xlu0 %v6268, 80
        %v8546 = vpop.permute.xlu0 %8545
        %8547 = vrot.lane.b32.xlu0 %v6269, 80
        %v8548 = vpop.permute.xlu0 %8547
        %8549 = vrot.lane.b32.xlu0 %v6270, 80
        %v8550 = vpop.permute.xlu0 %8549
        %8551 = vrot.lane.b32.xlu0 %v6271, 80
        %v8552 = vpop.permute.xlu0 %8551
        %8553 = vrot.lane.b32.xlu0 %v6272, 80
        %v8554 = vpop.permute.xlu0 %8553
        %8555 = vrot.lane.b32.xlu0 %v6273, 80
        %v8556 = vpop.permute.xlu0 %8555
        %8557 = vrot.lane.b32.xlu0 %v6274, 80
        %v8558 = vpop.permute.xlu0 %8557
        %8559 = vrot.lane.b32.xlu0 %v6275, 80
        %v8560 = vpop.permute.xlu0 %8559
        %8561 = vrot.lane.b32.xlu0 %v6276, 80
        %v8562 = vpop.permute.xlu0 %8561
        %8563 = vrot.lane.b32.xlu0 %v6277, 80
        %v8564 = vpop.permute.xlu0 %8563
        %8565 = vrot.lane.b32.xlu0 %v6278, 80
        %v8566 = vpop.permute.xlu0 %8565
        %8567 = vrot.lane.b32.xlu0 %v6279, 80
        %v8568 = vpop.permute.xlu0 %8567
        %8569 = vrot.lane.b32.xlu0 %v6280, 80
        %v8570 = vpop.permute.xlu0 %8569
        %8571 = vrot.lane.b32.xlu0 %v6281, 80
        %v8572 = vpop.permute.xlu0 %8571
        %8573 = vrot.lane.b32.xlu0 %v6282, 80
        %v8574 = vpop.permute.xlu0 %8573
        %8575 = vrot.lane.b32.xlu0 %v6283, 80
        %v8576 = vpop.permute.xlu0 %8575
        %8577 = vrot.lane.b32.xlu0 %v6284, 80
        %v8578 = vpop.permute.xlu0 %8577
        %8579 = vrot.lane.b32.xlu0 %v6285, 80
        %v8580 = vpop.permute.xlu0 %8579
        %8581 = vrot.lane.b32.xlu0 %v6286, 80
        %v8582 = vpop.permute.xlu0 %8581
        %8583 = vrot.lane.b32.xlu0 %v6287, 80
        %v8584 = vpop.permute.xlu0 %8583
        %8585 = vrot.lane.b32.xlu0 %v6288, 80
        %v8586 = vpop.permute.xlu0 %8585
        %8587 = vrot.lane.b32.xlu0 %v6289, 80
        %v8588 = vpop.permute.xlu0 %8587
        %8589 = vrot.lane.b32.xlu0 %v6290, 80
        %v8590 = vpop.permute.xlu0 %8589
        %8591 = vrot.lane.b32.xlu0 %v6291, 80
        %v8592 = vpop.permute.xlu0 %8591
        %8593 = vrot.lane.b32.xlu0 %v6292, 80
        %v8594 = vpop.permute.xlu0 %8593
        %8595 = vrot.lane.b32.xlu0 %v6293, 80
        %v8596 = vpop.permute.xlu0 %8595
        %8597 = vrot.lane.b32.xlu0 %v6294, 80
        %v8598 = vpop.permute.xlu0 %8597
        %8599 = vrot.lane.b32.xlu0 %v6295, 80
        %v8600 = vpop.permute.xlu0 %8599
        %8601 = vrot.lane.b32.xlu0 %v6296, 80
        %v8602 = vpop.permute.xlu0 %8601
        %8603 = vrot.lane.b32.xlu0 %v6297, 80
        %v8604 = vpop.permute.xlu0 %8603
        %8605 = vrot.lane.b32.xlu0 %v6298, 80
        %v8606 = vpop.permute.xlu0 %8605
        %8607 = vrot.lane.b32.xlu0 %v6299, 80
        %v8608 = vpop.permute.xlu0 %8607
        %8609 = vrot.lane.b32.xlu0 %v6300, 80
        %v8610 = vpop.permute.xlu0 %8609
        %8611 = vrot.lane.b32.xlu0 %v6301, 80
        %v8612 = vpop.permute.xlu0 %8611
        %8613 = vrot.lane.b32.xlu0 %v6302, 80
        %v8614 = vpop.permute.xlu0 %8613
        %8615 = vrot.lane.b32.xlu0 %v6303, 80
        %v8616 = vpop.permute.xlu0 %8615
        %8617 = vrot.lane.b32.xlu0 %v6304, 80
        %v8618 = vpop.permute.xlu0 %8617
        %8619 = vrot.lane.b32.xlu0 %v6305, 80
        %v8620 = vpop.permute.xlu0 %8619
        %8621 = vrot.lane.b32.xlu0 %v6306, 80
        %v8622 = vpop.permute.xlu0 %8621
        %8623 = vrot.lane.b32.xlu0 %v6307, 80
        %v8624 = vpop.permute.xlu0 %8623
        %8625 = vrot.lane.b32.xlu0 %v6308, 80
        %v8626 = vpop.permute.xlu0 %8625
        %8627 = vrot.lane.b32.xlu0 %v6309, 80
        %v8628 = vpop.permute.xlu0 %8627
        %8629 = vrot.lane.b32.xlu0 %v6310, 80
        %v8630 = vpop.permute.xlu0 %8629
        %8631 = vrot.lane.b32.xlu0 %v6311, 80
        %v8632 = vpop.permute.xlu0 %8631
        %8633 = vrot.lane.b32.xlu0 %v6312, 80
        %v8634 = vpop.permute.xlu0 %8633
        %8635 = vrot.lane.b32.xlu0 %v6313, 80
        %v8636 = vpop.permute.xlu0 %8635
        %8637 = vrot.lane.b32.xlu0 %v6314, 80
        %v8638 = vpop.permute.xlu0 %8637
        %8639 = vrot.lane.b32.xlu0 %v6315, 80
        %v8640 = vpop.permute.xlu0 %8639
        %8641 = vrot.lane.b32.xlu0 %v6316, 80
        %v8642 = vpop.permute.xlu0 %8641
        %8643 = vrot.lane.b32.xlu0 %v6317, 80
        %v8644 = vpop.permute.xlu0 %8643
        %8645 = vrot.lane.b32.xlu0 %v6318, 80
        %v8646 = vpop.permute.xlu0 %8645
        %8647 = vrot.lane.b32.xlu0 %v6319, 80
        %v8648 = vpop.permute.xlu0 %8647
        %8649 = vrot.lane.b32.xlu0 %v6320, 80
        %v8650 = vpop.permute.xlu0 %8649
        %8651 = vrot.lane.b32.xlu0 %v6321, 80
        %v8652 = vpop.permute.xlu0 %8651
        %8653 = vrot.lane.b32.xlu0 %v6322, 80
        %v8654 = vpop.permute.xlu0 %8653
        %8655 = vrot.lane.b32.xlu0 %v6323, 80
        %v8656 = vpop.permute.xlu0 %8655
        %8657 = vrot.lane.b32.xlu0 %v6324, 80
        %v8658 = vpop.permute.xlu0 %8657
        %8659 = vrot.lane.b32.xlu0 %v6325, 80
        %v8660 = vpop.permute.xlu0 %8659
        %8661 = vrot.lane.b32.xlu0 %v6326, 80
        %v8662 = vpop.permute.xlu0 %8661
        %8663 = vrot.lane.b32.xlu0 %v6327, 80
        %v8664 = vpop.permute.xlu0 %8663
        %8665 = vrot.lane.b32.xlu0 %v6328, 80
        %v8666 = vpop.permute.xlu0 %8665
        %8667 = vrot.lane.b32.xlu0 %v6329, 80
        %v8668 = vpop.permute.xlu0 %8667
        %8669 = vrot.lane.b32.xlu0 %v6330, 80
        %v8670 = vpop.permute.xlu0 %8669
        %8671 = vrot.lane.b32.xlu0 %v6331, 80
        %v8672 = vpop.permute.xlu0 %8671
        %8673 = vrot.lane.b32.xlu0 %v6332, 80
        %v8674 = vpop.permute.xlu0 %8673
        %8675 = vrot.lane.b32.xlu0 %v6333, 80
        %v8676 = vpop.permute.xlu0 %8675
        %8677 = vrot.lane.b32.xlu0 %v6334, 80
        %v8678 = vpop.permute.xlu0 %8677
        %8679 = vrot.lane.b32.xlu0 %v6335, 80
        %v8680 = vpop.permute.xlu0 %8679
        %8681 = vrot.lane.b32.xlu0 %v6336, 80
        %v8682 = vpop.permute.xlu0 %8681
        %8683 = vrot.lane.b32.xlu0 %v6337, 80
        %v8684 = vpop.permute.xlu0 %8683
        %8685 = vrot.lane.b32.xlu0 %v6338, 80
        %v8686 = vpop.permute.xlu0 %8685
        %8687 = vrot.lane.b32.xlu0 %v6339, 80
        %v8688 = vpop.permute.xlu0 %8687
        %8689 = vrot.lane.b32.xlu0 %v6340, 80
        %v8690 = vpop.permute.xlu0 %8689
        %8691 = vrot.lane.b32.xlu0 %v6341, 80
        %v8692 = vpop.permute.xlu0 %8691
        %8693 = vrot.lane.b32.xlu0 %v6342, 80
        %v8694 = vpop.permute.xlu0 %8693
        %8695 = vrot.lane.b32.xlu0 %v6343, 80
        %v8696 = vpop.permute.xlu0 %8695
        %8697 = vrot.lane.b32.xlu0 %v6344, 80
        %v8698 = vpop.permute.xlu0 %8697
        %8699 = vrot.lane.b32.xlu0 %v6345, 80
        %v8700 = vpop.permute.xlu0 %8699
        %8701 = vrot.lane.b32.xlu0 %v6346, 80
        %v8702 = vpop.permute.xlu0 %8701
        %8703 = vrot.lane.b32.xlu0 %v6347, 80
        %v8704 = vpop.permute.xlu0 %8703
        %8705 = vrot.lane.b32.xlu0 %v6447, 80
        %v8706 = vpop.permute.xlu0 %8705
        %8707 = vrot.lane.b32.xlu0 %v6448, 80
        %v8708 = vpop.permute.xlu0 %8707
        %8709 = vrot.lane.b32.xlu0 %v6449, 80
        %v8710 = vpop.permute.xlu0 %8709
        %8711 = vrot.lane.b32.xlu0 %v6450, 80
        %v8712 = vpop.permute.xlu0 %8711
        %v8803 = vsel %vm5801, %v5989, %v6546
        %v8804 = vsel %vm5801, %v5990, %v6548
        %v8805 = vsel %vm5801, %v5991, %v6550
        %v8806 = vsel %vm5801, %v5992, %v6552
        %v8807 = vsel %vm5801, %v5993, %v6554
        %v8808 = vsel %vm5801, %v5994, %v6556
        %v8809 = vsel %vm5801, %v5995, %v6558
        %v8810 = vsel %vm5801, %v5996, %v6560
        %v8811 = vsel %vm5801, %v5997, %v6562
        %v8812 = vsel %vm5801, %v5998, %v6564
        %v8813 = vsel %vm5801, %v5999, %v6566
        %v8814 = vsel %vm5801, %v6000, %v6568
        %v8815 = vsel %vm5801, %v6001, %v6570
        %v8816 = vsel %vm5801, %v6002, %v6572
        %v8817 = vsel %vm5801, %v6003, %v6574
        %v8818 = vsel %vm5801, %v6004, %v6576
        %v8819 = vsel %vm5801, %v6005, %v6578
        %v8820 = vsel %vm5801, %v6006, %v6580
        %v8821 = vsel %vm5801, %v6007, %v6582
        %v8822 = vsel %vm5801, %v6008, %v6584
        %v8823 = vsel %vm5801, %v6009, %v6586
        %v8824 = vsel %vm5801, %v6010, %v6588
        %v8825 = vsel %vm5801, %v6011, %v6590
        %v8826 = vsel %vm5801, %v6012, %v6592
        %v8827 = vsel %vm5801, %v6013, %v6594
        %v8828 = vsel %vm5801, %v6014, %v6596
        %v8829 = vsel %vm5801, %v6015, %v6598
        %v8830 = vsel %vm5801, %v6016, %v6600
        %v8831 = vsel %vm5801, %v6017, %v6602
        %v8832 = vsel %vm5801, %v6018, %v6604
        %v8833 = vsel %vm5801, %v6019, %v6606
        %v8834 = vsel %vm5801, %v6020, %v6608
        %v8835 = vsel %vm5801, %v6021, %v6610
        %v8836 = vsel %vm5801, %v6022, %v6612
        %v8837 = vsel %vm5801, %v6023, %v6614
        %v8838 = vsel %vm5801, %v6024, %v6616
        %v8839 = vsel %vm5801, %v6025, %v6618
        %v8840 = vsel %vm5801, %v6026, %v6620
        %v8841 = vsel %vm5801, %v6027, %v6622
        %v8842 = vsel %vm5801, %v6028, %v6624
        %v8843 = vsel %vm5801, %v6029, %v6626
        %v8844 = vsel %vm5801, %v6030, %v6628
        %v8845 = vsel %vm5801, %v6031, %v6630
        %v8846 = vsel %vm5801, %v6032, %v6632
        %v8847 = vsel %vm5801, %v6033, %v6634
        %v8848 = vsel %vm5801, %v6034, %v6636
        %v8849 = vsel %vm5801, %v6035, %v6638
        %v8850 = vsel %vm5801, %v6036, %v6640
        %v8851 = vsel %vm5801, %v6037, %v6642
        %v8852 = vsel %vm5801, %v6038, %v6644
        %v8853 = vsel %vm5801, %v6039, %v6646
        %v8854 = vsel %vm5801, %v6040, %v6648
        %v8855 = vsel %vm5801, %v6041, %v6650
        %v8856 = vsel %vm5801, %v6042, %v6652
        %v8857 = vsel %vm5801, %v6043, %v6654
        %v8858 = vsel %vm5801, %v6044, %v6656
        %v8859 = vsel %vm5801, %v6045, %v6658
        %v8860 = vsel %vm5801, %v6046, %v6660
        %v8861 = vsel %vm5801, %v6047, %v6662
        %v8862 = vsel %vm5801, %v6048, %v6664
        %v8863 = vsel %vm5801, %v6049, %v6666
        %v8864 = vsel %vm5801, %v6050, %v6668
        %v8865 = vsel %vm5801, %v6051, %v6670
        %v8866 = vsel %vm5801, %v6052, %v6672
        %v8867 = vsel %vm5801, %v6053, %v6674
        %v8868 = vsel %vm5801, %v6054, %v6676
        %v8869 = vsel %vm5801, %v6055, %v6678
        %v8870 = vsel %vm5801, %v6056, %v6680
        %v8871 = vsel %vm5801, %v6057, %v6682
        %v8872 = vsel %vm5801, %v6058, %v6684
        %v8873 = vsel %vm5801, %v6059, %v6686
        %v8874 = vsel %vm5801, %v6060, %v6688
        %v8875 = vsel %vm5801, %v6061, %v6690
        %v8876 = vsel %vm5801, %v6062, %v6692
        %v8877 = vsel %vm5801, %v6063, %v6694
        %v8878 = vsel %vm5801, %v6064, %v6696
        %v8879 = vsel %vm5801, %v6065, %v6698
        %v8880 = vsel %vm5801, %v6066, %v6700
        %v8881 = vsel %vm5801, %v6067, %v6702
        %v8882 = vsel %vm5801, %v6068, %v6704
        %v8883 = vsel %vm5801, %v6069, %v6706
        %v8884 = vsel %vm5801, %v6070, %v6708
        %v8885 = vsel %vm5801, %v6071, %v6710
        %v8886 = vsel %vm5801, %v6072, %v6712
        %v8887 = vsel %vm5801, %v6073, %v6714
        %v8888 = vsel %vm5801, %v6074, %v6716
        %v8889 = vsel %vm5801, %v6075, %v6718
        %v8890 = vsel %vm5801, %v6076, %v6720
        %v8891 = vsel %vm5801, %v6077, %v6722
        %v8892 = vsel %vm5801, %v6078, %v6724
        %vm8893 = vcmask 785408
        %v8894 = vsel %vm8893, %v8803, %v6906
        %v8895 = vsel %vm8893, %v8804, %v6908
        %v8896 = vsel %vm8893, %v8805, %v6910
        %v8897 = vsel %vm8893, %v8806, %v6912
        %v8898 = vsel %vm8893, %v8807, %v6914
        %v8899 = vsel %vm8893, %v8808, %v6916
        %v8900 = vsel %vm8893, %v8809, %v6918
        %v8901 = vsel %vm8893, %v8810, %v6920
        %v8902 = vsel %vm8893, %v8811, %v6922
        %v8903 = vsel %vm8893, %v8812, %v6924
        %v8904 = vsel %vm8893, %v8813, %v6926
        %v8905 = vsel %vm8893, %v8814, %v6928
        %v8906 = vsel %vm8893, %v8815, %v6930
        %v8907 = vsel %vm8893, %v8816, %v6932
        %v8908 = vsel %vm8893, %v8817, %v6934
        %v8909 = vsel %vm8893, %v8818, %v6936
        %v8910 = vsel %vm8893, %v8819, %v6938
        %v8911 = vsel %vm8893, %v8820, %v6940
        %v8912 = vsel %vm8893, %v8821, %v6942
        %v8913 = vsel %vm8893, %v8822, %v6944
        %v8914 = vsel %vm8893, %v8823, %v6946
        %v8915 = vsel %vm8893, %v8824, %v6948
        %v8916 = vsel %vm8893, %v8825, %v6950
        %v8917 = vsel %vm8893, %v8826, %v6952
        %v8918 = vsel %vm8893, %v8827, %v6954
        %v8919 = vsel %vm8893, %v8828, %v6956
        %v8920 = vsel %vm8893, %v8829, %v6958
        %v8921 = vsel %vm8893, %v8830, %v6960
        %v8922 = vsel %vm8893, %v8831, %v6962
        %v8923 = vsel %vm8893, %v8832, %v6964
        %v8924 = vsel %vm8893, %v8833, %v6966
        %v8925 = vsel %vm8893, %v8834, %v6968
        %v8926 = vsel %vm8893, %v8835, %v6970
        %v8927 = vsel %vm8893, %v8836, %v6972
        %v8928 = vsel %vm8893, %v8837, %v6974
        %v8929 = vsel %vm8893, %v8838, %v6976
        %v8930 = vsel %vm8893, %v8839, %v6978
        %v8931 = vsel %vm8893, %v8840, %v6980
        %v8932 = vsel %vm8893, %v8841, %v6982
        %v8933 = vsel %vm8893, %v8842, %v6984
        %v8934 = vsel %vm8893, %v8843, %v6986
        %v8935 = vsel %vm8893, %v8844, %v6988
        %v8936 = vsel %vm8893, %v8845, %v6990
        %v8937 = vsel %vm8893, %v8846, %v6992
        %v8938 = vsel %vm8893, %v8847, %v6994
        %v8939 = vsel %vm8893, %v8848, %v6996
        %v8940 = vsel %vm8893, %v8849, %v6998
        %v8941 = vsel %vm8893, %v8850, %v7000
        %v8942 = vsel %vm8893, %v8851, %v7002
        %v8943 = vsel %vm8893, %v8852, %v7004
        %v8944 = vsel %vm8893, %v8853, %v7006
        %v8945 = vsel %vm8893, %v8854, %v7008
        %v8946 = vsel %vm8893, %v8855, %v7010
        %v8947 = vsel %vm8893, %v8856, %v7012
        %v8948 = vsel %vm8893, %v8857, %v7014
        %v8949 = vsel %vm8893, %v8858, %v7016
        %v8950 = vsel %vm8893, %v8859, %v7018
        %v8951 = vsel %vm8893, %v8860, %v7020
        %v8952 = vsel %vm8893, %v8861, %v7022
        %v8953 = vsel %vm8893, %v8862, %v7024
        %v8954 = vsel %vm8893, %v8863, %v7026
        %v8955 = vsel %vm8893, %v8864, %v7028
        %v8956 = vsel %vm8893, %v8865, %v7030
        %v8957 = vsel %vm8893, %v8866, %v7032
        %v8958 = vsel %vm8893, %v8867, %v7034
        %v8959 = vsel %vm8893, %v8868, %v7036
        %v8960 = vsel %vm8893, %v8869, %v7038
        %v8961 = vsel %vm8893, %v8870, %v7040
        %v8962 = vsel %vm8893, %v8871, %v7042
        %v8963 = vsel %vm8893, %v8872, %v7044
        %v8964 = vsel %vm8893, %v8873, %v7046
        %v8965 = vsel %vm8893, %v8874, %v7048
        %v8966 = vsel %vm8893, %v8875, %v7050
        %v8967 = vsel %vm8893, %v8876, %v7052
        %v8968 = vsel %vm8893, %v8877, %v7054
        %v8969 = vsel %vm8893, %v8878, %v7056
        %v8970 = vsel %vm8893, %v8879, %v7058
        %v8971 = vsel %vm8893, %v8880, %v7060
        %v8972 = vsel %vm8893, %v8881, %v7062
        %v8973 = vsel %vm8893, %v8882, %v7064
        %v8974 = vsel %vm8893, %v8883, %v7066
        %v8975 = vsel %vm8893, %v8884, %v7068
        %v8976 = vsel %vm8893, %v8885, %v7070
        %v8977 = vsel %vm8893, %v8886, %v7072
        %v8978 = vsel %vm8893, %v8887, %v7074
        %v8979 = vsel %vm8893, %v8888, %v7076
        %v8980 = vsel %vm8893, %v8889, %v7078
        %v8981 = vsel %vm8893, %v8890, %v7080
        %v8982 = vsel %vm8893, %v8891, %v7082
        %v8983 = vsel %vm8893, %v8892, %v7084
        %vm8984 = vcmask 130048
        %v8985 = vsel %vm8984, %v6906, %v7266
        %v8986 = vsel %vm8984, %v6908, %v7268
        %v8987 = vsel %vm8984, %v6910, %v7270
        %v8988 = vsel %vm8984, %v6912, %v7272
        %v8989 = vsel %vm8984, %v6914, %v7274
        %v8990 = vsel %vm8984, %v6916, %v7276
        %v8991 = vsel %vm8984, %v6918, %v7278
        %v8992 = vsel %vm8984, %v6920, %v7280
        %v8993 = vsel %vm8984, %v6922, %v7282
        %v8994 = vsel %vm8984, %v6924, %v7284
        %v8995 = vsel %vm8984, %v6926, %v7286
        %v8996 = vsel %vm8984, %v6928, %v7288
        %v8997 = vsel %vm8984, %v6930, %v7290
        %v8998 = vsel %vm8984, %v6932, %v7292
        %v8999 = vsel %vm8984, %v6934, %v7294
        %v9000 = vsel %vm8984, %v6936, %v7296
        %v9001 = vsel %vm8984, %v6938, %v7298
        %v9002 = vsel %vm8984, %v6940, %v7300
        %v9003 = vsel %vm8984, %v6942, %v7302
        %v9004 = vsel %vm8984, %v6944, %v7304
        %v9005 = vsel %vm8984, %v6946, %v7306
        %v9006 = vsel %vm8984, %v6948, %v7308
        %v9007 = vsel %vm8984, %v6950, %v7310
        %v9008 = vsel %vm8984, %v6952, %v7312
        %v9009 = vsel %vm8984, %v6954, %v7314
        %v9010 = vsel %vm8984, %v6956, %v7316
        %v9011 = vsel %vm8984, %v6958, %v7318
        %v9012 = vsel %vm8984, %v6960, %v7320
        %v9013 = vsel %vm8984, %v6962, %v7322
        %v9014 = vsel %vm8984, %v6964, %v7324
        %v9015 = vsel %vm8984, %v6966, %v7326
        %v9016 = vsel %vm8984, %v6968, %v7328
        %v9017 = vsel %vm8984, %v6970, %v7330
        %v9018 = vsel %vm8984, %v6972, %v7332
        %v9019 = vsel %vm8984, %v6974, %v7334
        %v9020 = vsel %vm8984, %v6976, %v7336
        %v9021 = vsel %vm8984, %v6978, %v7338
        %v9022 = vsel %vm8984, %v6980, %v7340
        %v9023 = vsel %vm8984, %v6982, %v7342
        %v9024 = vsel %vm8984, %v6984, %v7344
        %v9025 = vsel %vm8984, %v6986, %v7346
        %v9026 = vsel %vm8984, %v6988, %v7348
        %v9027 = vsel %vm8984, %v6990, %v7350
        %v9028 = vsel %vm8984, %v6992, %v7352
        %v9029 = vsel %vm8984, %v6994, %v7354
        %v9030 = vsel %vm8984, %v6996, %v7356
        %v9031 = vsel %vm8984, %v6998, %v7358
        %v9032 = vsel %vm8984, %v7000, %v7360
        %v9033 = vsel %vm8984, %v7002, %v7362
        %v9034 = vsel %vm8984, %v7004, %v7364
        %v9035 = vsel %vm8984, %v7006, %v7366
        %v9036 = vsel %vm8984, %v7008, %v7368
        %v9037 = vsel %vm8984, %v7010, %v7370
        %v9038 = vsel %vm8984, %v7012, %v7372
        %v9039 = vsel %vm8984, %v7014, %v7374
        %v9040 = vsel %vm8984, %v7016, %v7376
        %v9041 = vsel %vm8984, %v7018, %v7378
        %v9042 = vsel %vm8984, %v7020, %v7380
        %v9043 = vsel %vm8984, %v7022, %v7382
        %v9044 = vsel %vm8984, %v7024, %v7384
        %v9045 = vsel %vm8984, %v7026, %v7386
        %v9046 = vsel %vm8984, %v7028, %v7388
        %v9047 = vsel %vm8984, %v7030, %v7390
        %v9048 = vsel %vm8984, %v7032, %v7392
        %v9049 = vsel %vm8984, %v7034, %v7394
        %v9050 = vsel %vm8984, %v7036, %v7396
        %v9051 = vsel %vm8984, %v7038, %v7398
        %v9052 = vsel %vm8984, %v7040, %v7400
        %v9053 = vsel %vm8984, %v7042, %v7402
        %v9054 = vsel %vm8984, %v7044, %v7404
        %v9055 = vsel %vm8984, %v7046, %v7406
        %v9056 = vsel %vm8984, %v7048, %v7408
        %v9057 = vsel %vm8984, %v7050, %v7410
        %v9058 = vsel %vm8984, %v7052, %v7412
        %v9059 = vsel %vm8984, %v7054, %v7414
        %v9060 = vsel %vm8984, %v7056, %v7416
        %v9061 = vsel %vm8984, %v7058, %v7418
        %v9062 = vsel %vm8984, %v7060, %v7420
        %v9063 = vsel %vm8984, %v7062, %v7422
        %v9064 = vsel %vm8984, %v7064, %v7424
        %v9065 = vsel %vm8984, %v7066, %v7426
        %v9066 = vsel %vm8984, %v7068, %v7428
        %v9067 = vsel %vm8984, %v7070, %v7430
        %v9068 = vsel %vm8984, %v7072, %v7432
        %v9069 = vsel %vm8984, %v7074, %v7434
        %v9070 = vsel %vm8984, %v7076, %v7436
        %v9071 = vsel %vm8984, %v7078, %v7438
        %v9072 = vsel %vm8984, %v7080, %v7440
        %v9073 = vsel %vm8984, %v7082, %v7442
        %v9074 = vsel %vm8984, %v7084, %v7444
        %vm9075 = vcmask 523264
        %v9076 = vsel %vm9075, %v8985, %v7626
        %v9077 = vsel %vm9075, %v8986, %v7628
        %v9078 = vsel %vm9075, %v8987, %v7630
        %v9079 = vsel %vm9075, %v8988, %v7632
        %v9080 = vsel %vm9075, %v8989, %v7634
        %v9081 = vsel %vm9075, %v8990, %v7636
        %v9082 = vsel %vm9075, %v8991, %v7638
        %v9083 = vsel %vm9075, %v8992, %v7640
        %v9084 = vsel %vm9075, %v8993, %v7642
        %v9085 = vsel %vm9075, %v8994, %v7644
        %v9086 = vsel %vm9075, %v8995, %v7646
        %v9087 = vsel %vm9075, %v8996, %v7648
        %v9088 = vsel %vm9075, %v8997, %v7650
        %v9089 = vsel %vm9075, %v8998, %v7652
        %v9090 = vsel %vm9075, %v8999, %v7654
        %v9091 = vsel %vm9075, %v9000, %v7656
        %v9092 = vsel %vm9075, %v9001, %v7658
        %v9093 = vsel %vm9075, %v9002, %v7660
        %v9094 = vsel %vm9075, %v9003, %v7662
        %v9095 = vsel %vm9075, %v9004, %v7664
        %v9096 = vsel %vm9075, %v9005, %v7666
        %v9097 = vsel %vm9075, %v9006, %v7668
        %v9098 = vsel %vm9075, %v9007, %v7670
        %v9099 = vsel %vm9075, %v9008, %v7672
        %v9100 = vsel %vm9075, %v9009, %v7674
        %v9101 = vsel %vm9075, %v9010, %v7676
        %v9102 = vsel %vm9075, %v9011, %v7678
        %v9103 = vsel %vm9075, %v9012, %v7680
        %v9104 = vsel %vm9075, %v9013, %v7682
        %v9105 = vsel %vm9075, %v9014, %v7684
        %v9106 = vsel %vm9075, %v9015, %v7686
        %v9107 = vsel %vm9075, %v9016, %v7688
        %v9108 = vsel %vm9075, %v9017, %v7690
        %v9109 = vsel %vm9075, %v9018, %v7692
        %v9110 = vsel %vm9075, %v9019, %v7694
        %v9111 = vsel %vm9075, %v9020, %v7696
        %v9112 = vsel %vm9075, %v9021, %v7698
        %v9113 = vsel %vm9075, %v9022, %v7700
        %v9114 = vsel %vm9075, %v9023, %v7702
        %v9115 = vsel %vm9075, %v9024, %v7704
        %v9116 = vsel %vm9075, %v9025, %v7706
        %v9117 = vsel %vm9075, %v9026, %v7708
        %v9118 = vsel %vm9075, %v9027, %v7710
        %v9119 = vsel %vm9075, %v9028, %v7712
        %v9120 = vsel %vm9075, %v9029, %v7714
        %v9121 = vsel %vm9075, %v9030, %v7716
        %v9122 = vsel %vm9075, %v9031, %v7718
        %v9123 = vsel %vm9075, %v9032, %v7720
        %v9124 = vsel %vm9075, %v9033, %v7722
        %v9125 = vsel %vm9075, %v9034, %v7724
        %v9126 = vsel %vm9075, %v9035, %v7726
        %v9127 = vsel %vm9075, %v9036, %v7728
        %v9128 = vsel %vm9075, %v9037, %v7730
        %v9129 = vsel %vm9075, %v9038, %v7732
        %v9130 = vsel %vm9075, %v9039, %v7734
        %v9131 = vsel %vm9075, %v9040, %v7736
        %v9132 = vsel %vm9075, %v9041, %v7738
        %v9133 = vsel %vm9075, %v9042, %v7740
        %v9134 = vsel %vm9075, %v9043, %v7742
        %v9135 = vsel %vm9075, %v9044, %v7744
        %v9136 = vsel %vm9075, %v9045, %v7746
        %v9137 = vsel %vm9075, %v9046, %v7748
        %v9138 = vsel %vm9075, %v9047, %v7750
        %v9139 = vsel %vm9075, %v9048, %v7752
        %v9140 = vsel %vm9075, %v9049, %v7754
        %v9141 = vsel %vm9075, %v9050, %v7756
        %v9142 = vsel %vm9075, %v9051, %v7758
        %v9143 = vsel %vm9075, %v9052, %v7760
        %v9144 = vsel %vm9075, %v9053, %v7762
        %v9145 = vsel %vm9075, %v9054, %v7764
        %v9146 = vsel %vm9075, %v9055, %v7766
        %v9147 = vsel %vm9075, %v9056, %v7768
        %v9148 = vsel %vm9075, %v9057, %v7770
        %v9149 = vsel %vm9075, %v9058, %v7772
        %v9150 = vsel %vm9075, %v9059, %v7774
        %v9151 = vsel %vm9075, %v9060, %v7776
        %v9152 = vsel %vm9075, %v9061, %v7778
        %v9153 = vsel %vm9075, %v9062, %v7780
        %v9154 = vsel %vm9075, %v9063, %v7782
        %v9155 = vsel %vm9075, %v9064, %v7784
        %v9156 = vsel %vm9075, %v9065, %v7786
        %v9157 = vsel %vm9075, %v9066, %v7788
        %v9158 = vsel %vm9075, %v9067, %v7790
        %v9159 = vsel %vm9075, %v9068, %v7792
        %v9160 = vsel %vm9075, %v9069, %v7794
        %v9161 = vsel %vm9075, %v9070, %v7796
        %v9162 = vsel %vm9075, %v9071, %v7798
        %v9163 = vsel %vm9075, %v9072, %v7800
        %v9164 = vsel %vm9075, %v9073, %v7802
        %v9165 = vsel %vm9075, %v9074, %v7804
        %vm9166 = vcmask 916480
        %v9167 = vsel %vm9166, %v9076, %v7900
        %v9168 = vsel %vm9166, %v9077, %v7902
        %v9169 = vsel %vm9166, %v9078, %v7904
        %v9170 = vsel %vm9166, %v9079, %v7906
        %v9171 = vsel %vm9166, %v9080, %v7908
        %v9172 = vsel %vm9166, %v9081, %v7910
        %v9173 = vsel %vm9166, %v9082, %v7912
        %v9174 = vsel %vm9166, %v9083, %v7914
        %v9175 = vsel %vm9166, %v9084, %v7916
        %v9176 = vsel %vm9166, %v9085, %v7918
        %v9177 = vsel %vm9166, %v9086, %v7920
        %v9178 = vsel %vm9166, %v9087, %v7922
        %v9179 = vsel %vm9166, %v9088, %v7924
        %v9180 = vsel %vm9166, %v9089, %v7926
        %v9181 = vsel %vm9166, %v9090, %v7928
        %v9182 = vsel %vm9166, %v9091, %v7930
        %v9183 = vsel %vm9166, %v9092, %v7932
        %v9184 = vsel %vm9166, %v9093, %v7934
        %v9185 = vsel %vm9166, %v9094, %v7936
        %v9186 = vsel %vm9166, %v9095, %v7938
        %v9187 = vsel %vm9166, %v9096, %v7940
        %v9188 = vsel %vm9166, %v9097, %v7942
        %v9189 = vsel %vm9166, %v9098, %v7944
        %v9190 = vsel %vm9166, %v9099, %v7946
        %v9191 = vsel %vm9166, %v9100, %v7948
        %v9192 = vsel %vm9166, %v9101, %v7950
        %v9193 = vsel %vm9166, %v9102, %v7952
        %v9194 = vsel %vm9166, %v9103, %v7954
        %v9195 = vsel %vm9166, %v9104, %v7956
        %v9196 = vsel %vm9166, %v9105, %v7958
        %v9197 = vsel %vm9166, %v9106, %v7960
        %v9198 = vsel %vm9166, %v9107, %v7962
        %v9199 = vsel %vm9166, %v9108, %v7964
        %v9200 = vsel %vm9166, %v9109, %v7966
        %v9201 = vsel %vm9166, %v9110, %v7968
        %v9202 = vsel %vm9166, %v9111, %v7970
        %v9203 = vsel %vm9166, %v9112, %v7972
        %v9204 = vsel %vm9166, %v9113, %v7974
        %v9205 = vsel %vm9166, %v9114, %v7976
        %v9206 = vsel %vm9166, %v9115, %v7978
        %v9207 = vsel %vm9166, %v9116, %v7980
        %v9208 = vsel %vm9166, %v9117, %v7982
        %v9209 = vsel %vm9166, %v9118, %v7984
        %v9210 = vsel %vm9166, %v9119, %v7986
        %v9211 = vsel %vm9166, %v9120, %v7988
        %v9212 = vsel %vm9166, %v9121, %v7990
        %v9213 = vsel %vm9166, %v9122, %v7992
        %v9214 = vsel %vm9166, %v9123, %v7994
        %v9215 = vsel %vm9166, %v9124, %v7996
        %v9216 = vsel %vm9166, %v9125, %v7998
        %v9217 = vsel %vm9166, %v9126, %v8000
        %v9218 = vsel %vm9166, %v9127, %v8002
        %v9219 = vsel %vm9166, %v9128, %v8004
        %v9220 = vsel %vm9166, %v9129, %v8006
        %v9221 = vsel %vm9166, %v9130, %v8008
        %v9222 = vsel %vm9166, %v9131, %v8010
        %v9223 = vsel %vm9166, %v9132, %v8012
        %v9224 = vsel %vm9166, %v9133, %v8014
        %v9225 = vsel %vm9166, %v9134, %v8016
        %v9226 = vsel %vm9166, %v9135, %v8018
        %v9227 = vsel %vm9166, %v9136, %v8020
        %v9228 = vsel %vm9166, %v9137, %v8022
        %v9229 = vsel %vm9166, %v9138, %v8024
        %v9230 = vsel %vm9166, %v9139, %v8026
        %v9231 = vsel %vm9166, %v9140, %v8028
        %v9232 = vsel %vm9166, %v9141, %v8030
        %v9233 = vsel %vm9166, %v9142, %v8032
        %v9234 = vsel %vm9166, %v9143, %v8034
        %v9235 = vsel %vm9166, %v9144, %v8036
        %v9236 = vsel %vm9166, %v9145, %v8038
        %v9237 = vsel %vm9166, %v9146, %v8040
        %v9238 = vsel %vm9166, %v9147, %v8042
        %v9239 = vsel %vm9166, %v9148, %v8044
        %v9240 = vsel %vm9166, %v9149, %v8046
        %v9241 = vsel %vm9166, %v9150, %v8048
        %v9242 = vsel %vm9166, %v9151, %v8050
        %v9243 = vsel %vm9166, %v9152, %v8052
        %v9244 = vsel %vm9166, %v9153, %v8054
        %v9245 = vsel %vm9166, %v9154, %v8056
        %v9246 = vsel %vm9166, %v9155, %v8058
        %v9247 = vsel %vm9166, %v9156, %v8060
        %v9248 = vsel %vm9166, %v9157, %v8062
        %v9249 = vsel %vm9166, %v9158, %v8064
        %v9250 = vsel %vm9166, %v9159, %v8066
        %v9251 = vsel %vm9166, %v9160, %v8068
        %v9252 = vsel %vm9166, %v9161, %v8070
        %v9253 = vsel %vm9166, %v9162, %v8072
        %v9254 = vsel %vm9166, %v9163, %v8074
        %v9255 = vsel %vm9166, %v9164, %v8076
        %v9256 = vsel %vm9166, %v9165, %v8078
        %vm9257 = vcmask 261120
        %v9258 = vsel %vm9257, %v7900, %v8260
        %v9259 = vsel %vm9257, %v7902, %v8262
        %v9260 = vsel %vm9257, %v7904, %v8264
        %v9261 = vsel %vm9257, %v7906, %v8266
        %v9262 = vsel %vm9257, %v7908, %v8268
        %v9263 = vsel %vm9257, %v7910, %v8270
        %v9264 = vsel %vm9257, %v7912, %v8272
        %v9265 = vsel %vm9257, %v7914, %v8274
        %v9266 = vsel %vm9257, %v7916, %v8276
        %v9267 = vsel %vm9257, %v7918, %v8278
        %v9268 = vsel %vm9257, %v7920, %v8280
        %v9269 = vsel %vm9257, %v7922, %v8282
        %v9270 = vsel %vm9257, %v7924, %v8284
        %v9271 = vsel %vm9257, %v7926, %v8286
        %v9272 = vsel %vm9257, %v7928, %v8288
        %v9273 = vsel %vm9257, %v7930, %v8290
        %v9274 = vsel %vm9257, %v7932, %v8292
        %v9275 = vsel %vm9257, %v7934, %v8294
        %v9276 = vsel %vm9257, %v7936, %v8296
        %v9277 = vsel %vm9257, %v7938, %v8298
        %v9278 = vsel %vm9257, %v7940, %v8300
        %v9279 = vsel %vm9257, %v7942, %v8302
        %v9280 = vsel %vm9257, %v7944, %v8304
        %v9281 = vsel %vm9257, %v7946, %v8306
        %v9282 = vsel %vm9257, %v7948, %v8308
        %v9283 = vsel %vm9257, %v7950, %v8310
        %v9284 = vsel %vm9257, %v7952, %v8312
        %v9285 = vsel %vm9257, %v7954, %v8314
        %v9286 = vsel %vm9257, %v7956, %v8316
        %v9287 = vsel %vm9257, %v7958, %v8318
        %v9288 = vsel %vm9257, %v7960, %v8320
        %v9289 = vsel %vm9257, %v7962, %v8322
        %v9290 = vsel %vm9257, %v7964, %v8324
        %v9291 = vsel %vm9257, %v7966, %v8326
        %v9292 = vsel %vm9257, %v7968, %v8328
        %v9293 = vsel %vm9257, %v7970, %v8330
        %v9294 = vsel %vm9257, %v7972, %v8332
        %v9295 = vsel %vm9257, %v7974, %v8334
        %v9296 = vsel %vm9257, %v7976, %v8336
        %v9297 = vsel %vm9257, %v7978, %v8338
        %v9298 = vsel %vm9257, %v7980, %v8340
        %v9299 = vsel %vm9257, %v7982, %v8342
        %v9300 = vsel %vm9257, %v7984, %v8344
        %v9301 = vsel %vm9257, %v7986, %v8346
        %v9302 = vsel %vm9257, %v7988, %v8348
        %v9303 = vsel %vm9257, %v7990, %v8350
        %v9304 = vsel %vm9257, %v7992, %v8352
        %v9305 = vsel %vm9257, %v7994, %v8354
        %v9306 = vsel %vm9257, %v7996, %v8356
        %v9307 = vsel %vm9257, %v7998, %v8358
        %v9308 = vsel %vm9257, %v8000, %v8360
        %v9309 = vsel %vm9257, %v8002, %v8362
        %v9310 = vsel %vm9257, %v8004, %v8364
        %v9311 = vsel %vm9257, %v8006, %v8366
        %v9312 = vsel %vm9257, %v8008, %v8368
        %v9313 = vsel %vm9257, %v8010, %v8370
        %v9314 = vsel %vm9257, %v8012, %v8372
        %v9315 = vsel %vm9257, %v8014, %v8374
        %v9316 = vsel %vm9257, %v8016, %v8376
        %v9317 = vsel %vm9257, %v8018, %v8378
        %v9318 = vsel %vm9257, %v8020, %v8380
        %v9319 = vsel %vm9257, %v8022, %v8382
        %v9320 = vsel %vm9257, %v8024, %v8384
        %v9321 = vsel %vm9257, %v8026, %v8386
        %v9322 = vsel %vm9257, %v8028, %v8388
        %v9323 = vsel %vm9257, %v8030, %v8390
        %v9324 = vsel %vm9257, %v8032, %v8392
        %v9325 = vsel %vm9257, %v8034, %v8394
        %v9326 = vsel %vm9257, %v8036, %v8396
        %v9327 = vsel %vm9257, %v8038, %v8398
        %v9328 = vsel %vm9257, %v8040, %v8400
        %v9329 = vsel %vm9257, %v8042, %v8402
        %v9330 = vsel %vm9257, %v8044, %v8404
        %v9331 = vsel %vm9257, %v8046, %v8406
        %v9332 = vsel %vm9257, %v8048, %v8408
        %v9333 = vsel %vm9257, %v8050, %v8410
        %v9334 = vsel %vm9257, %v8052, %v8412
        %v9335 = vsel %vm9257, %v8054, %v8414
        %v9336 = vsel %vm9257, %v8056, %v8416
        %v9337 = vsel %vm9257, %v8058, %v8418
        %v9338 = vsel %vm9257, %v8060, %v8420
        %v9339 = vsel %vm9257, %v8062, %v8422
        %v9340 = vsel %vm9257, %v8064, %v8424
        %v9341 = vsel %vm9257, %v8066, %v8426
        %v9342 = vsel %vm9257, %v8068, %v8428
        %v9343 = vsel %vm9257, %v8070, %v8430
        %v9344 = vsel %vm9257, %v8072, %v8432
        %v9345 = vsel %vm9257, %v8074, %v8434
        %v9346 = vsel %vm9257, %v8076, %v8436
        %v9347 = vsel %vm9257, %v8078, %v8438
        %vm9348 = vcmask 654336
        %v9349 = vsel %vm9348, %v9258, %v8534
        %v9350 = vsel %vm9348, %v9259, %v8536
        %v9351 = vsel %vm9348, %v9260, %v8538
        %v9352 = vsel %vm9348, %v9261, %v8540
        %v9353 = vsel %vm9348, %v9262, %v8542
        %v9354 = vsel %vm9348, %v9263, %v8544
        %v9355 = vsel %vm9348, %v9264, %v8546
        %v9356 = vsel %vm9348, %v9265, %v8548
        %v9357 = vsel %vm9348, %v9266, %v8550
        %v9358 = vsel %vm9348, %v9267, %v8552
        %v9359 = vsel %vm9348, %v9268, %v8554
        %v9360 = vsel %vm9348, %v9269, %v8556
        %v9361 = vsel %vm9348, %v9270, %v8558
        %v9362 = vsel %vm9348, %v9271, %v8560
        %v9363 = vsel %vm9348, %v9272, %v8562
        %v9364 = vsel %vm9348, %v9273, %v8564
        %v9365 = vsel %vm9348, %v9274, %v8566
        %v9366 = vsel %vm9348, %v9275, %v8568
        %v9367 = vsel %vm9348, %v9276, %v8570
        %v9368 = vsel %vm9348, %v9277, %v8572
        %v9369 = vsel %vm9348, %v9278, %v8574
        %v9370 = vsel %vm9348, %v9279, %v8576
        %v9371 = vsel %vm9348, %v9280, %v8578
        %v9372 = vsel %vm9348, %v9281, %v8580
        %v9373 = vsel %vm9348, %v9282, %v8582
        %v9374 = vsel %vm9348, %v9283, %v8584
        %v9375 = vsel %vm9348, %v9284, %v8586
        %v9376 = vsel %vm9348, %v9285, %v8588
        %v9377 = vsel %vm9348, %v9286, %v8590
        %v9378 = vsel %vm9348, %v9287, %v8592
        %v9379 = vsel %vm9348, %v9288, %v8594
        %v9380 = vsel %vm9348, %v9289, %v8596
        %v9381 = vsel %vm9348, %v9290, %v8598
        %v9382 = vsel %vm9348, %v9291, %v8600
        %v9383 = vsel %vm9348, %v9292, %v8602
        %v9384 = vsel %vm9348, %v9293, %v8604
        %v9385 = vsel %vm9348, %v9294, %v8606
        %v9386 = vsel %vm9348, %v9295, %v8608
        %v9387 = vsel %vm9348, %v9296, %v8610
        %v9388 = vsel %vm9348, %v9297, %v8612
        %v9389 = vsel %vm9348, %v9298, %v8614
        %v9390 = vsel %vm9348, %v9299, %v8616
        %v9391 = vsel %vm9348, %v9300, %v8618
        %v9392 = vsel %vm9348, %v9301, %v8620
        %v9393 = vsel %vm9348, %v9302, %v8622
        %v9394 = vsel %vm9348, %v9303, %v8624
        %v9395 = vsel %vm9348, %v9304, %v8626
        %v9396 = vsel %vm9348, %v9305, %v8628
        %v9397 = vsel %vm9348, %v9306, %v8630
        %v9398 = vsel %vm9348, %v9307, %v8632
        %v9399 = vsel %vm9348, %v9308, %v8634
        %v9400 = vsel %vm9348, %v9309, %v8636
        %v9401 = vsel %vm9348, %v9310, %v8638
        %v9402 = vsel %vm9348, %v9311, %v8640
        %v9403 = vsel %vm9348, %v9312, %v8642
        %v9404 = vsel %vm9348, %v9313, %v8644
        %v9405 = vsel %vm9348, %v9314, %v8646
        %v9406 = vsel %vm9348, %v9315, %v8648
        %v9407 = vsel %vm9348, %v9316, %v8650
        %v9408 = vsel %vm9348, %v9317, %v8652
        %v9409 = vsel %vm9348, %v9318, %v8654
        %v9410 = vsel %vm9348, %v9319, %v8656
        %v9411 = vsel %vm9348, %v9320, %v8658
        %v9412 = vsel %vm9348, %v9321, %v8660
        %v9413 = vsel %vm9348, %v9322, %v8662
        %v9414 = vsel %vm9348, %v9323, %v8664
        %v9415 = vsel %vm9348, %v9324, %v8666
        %v9416 = vsel %vm9348, %v9325, %v8668
        %v9417 = vsel %vm9348, %v9326, %v8670
        %v9418 = vsel %vm9348, %v9327, %v8672
        %v9419 = vsel %vm9348, %v9328, %v8674
        %v9420 = vsel %vm9348, %v9329, %v8676
        %v9421 = vsel %vm9348, %v9330, %v8678
        %v9422 = vsel %vm9348, %v9331, %v8680
        %v9423 = vsel %vm9348, %v9332, %v8682
        %v9424 = vsel %vm9348, %v9333, %v8684
        %v9425 = vsel %vm9348, %v9334, %v8686
        %v9426 = vsel %vm9348, %v9335, %v8688
        %v9427 = vsel %vm9348, %v9336, %v8690
        %v9428 = vsel %vm9348, %v9337, %v8692
        %v9429 = vsel %vm9348, %v9338, %v8694
        %v9430 = vsel %vm9348, %v9339, %v8696
        %v9431 = vsel %vm9348, %v9340, %v8698
        %v9432 = vsel %vm9348, %v9341, %v8700
        %v9433 = vsel %vm9348, %v9342, %v8702
        %v9434 = vsel %vm9348, %v9343, %v8704
        %v9435 = vsel %vm9348, %v9344, %v8706
        %v9436 = vsel %vm9348, %v9345, %v8708
        %v9437 = vsel %vm9348, %v9346, %v8710
        %v9438 = vsel %vm9348, %v9347, %v8712
        %v9439 = vpack.c.bf16 %v8895, %v8894
        %v9440 = vpack.c.bf16 %v9168, %v9167
        %v9441 = vpack.c.bf16 %v9350, %v9349
        %v9442 = vpack.c.bf16 %v5996, %v5995
        %v9443 = vpack.c.bf16 %v8897, %v8896
        %v9444 = vpack.c.bf16 %v9170, %v9169
        %v9445 = vpack.c.bf16 %v9352, %v9351
        %v9446 = vpack.c.bf16 %v5998, %v5997
        %v9447 = vpack.c.bf16 %v8899, %v8898
        %v9448 = vpack.c.bf16 %v9172, %v9171
        %v9449 = vpack.c.bf16 %v9354, %v9353
        %v9450 = vpack.c.bf16 %v6000, %v5999
        %v9451 = vpack.c.bf16 %v8901, %v8900
        %v9452 = vpack.c.bf16 %v9174, %v9173
        %v9453 = vpack.c.bf16 %v9356, %v9355
        %v9454 = vpack.c.bf16 %v6002, %v6001
        %v9455 = vpack.c.bf16 %v8903, %v8902
        %v9456 = vpack.c.bf16 %v9176, %v9175
        %v9457 = vpack.c.bf16 %v9358, %v9357
        %v9458 = vpack.c.bf16 %v6004, %v6003
        %v9459 = vpack.c.bf16 %v8905, %v8904
        %v9460 = vpack.c.bf16 %v9178, %v9177
        %v9461 = vpack.c.bf16 %v9360, %v9359
        %v9462 = vpack.c.bf16 %v6006, %v6005
        %v9463 = vpack.c.bf16 %v8907, %v8906
        %v9464 = vpack.c.bf16 %v9180, %v9179
        %v9465 = vpack.c.bf16 %v9362, %v9361
        %v9466 = vpack.c.bf16 %v6008, %v6007
        %v9467 = vpack.c.bf16 %v8909, %v8908
        %v9468 = vpack.c.bf16 %v9182, %v9181
        %v9469 = vpack.c.bf16 %v9364, %v9363
        %v9470 = vpack.c.bf16 %v6010, %v6009
        %v9471 = vpack.c.bf16 %v8911, %v8910
        %v9472 = vpack.c.bf16 %v9184, %v9183
        %v9473 = vpack.c.bf16 %v9366, %v9365
        %v9474 = vpack.c.bf16 %v6012, %v6011
        %v9475 = vpack.c.bf16 %v8913, %v8912
        %v9476 = vpack.c.bf16 %v9186, %v9185
        %v9477 = vpack.c.bf16 %v9368, %v9367
        %v9478 = vpack.c.bf16 %v6014, %v6013
        %v9479 = vpack.c.bf16 %v8915, %v8914
        %v9480 = vpack.c.bf16 %v9188, %v9187
        %v9481 = vpack.c.bf16 %v9370, %v9369
        %v9482 = vpack.c.bf16 %v6016, %v6015
        %v9483 = vpack.c.bf16 %v8917, %v8916
        %v9484 = vpack.c.bf16 %v9190, %v9189
        %v9485 = vpack.c.bf16 %v9372, %v9371
        %v9486 = vpack.c.bf16 %v6018, %v6017
        %v9487 = vpack.c.bf16 %v8919, %v8918
        %v9488 = vpack.c.bf16 %v9192, %v9191
        %v9489 = vpack.c.bf16 %v9374, %v9373
        %v9490 = vpack.c.bf16 %v6020, %v6019
        %v9491 = vpack.c.bf16 %v8921, %v8920
        %v9492 = vpack.c.bf16 %v9194, %v9193
        %v9493 = vpack.c.bf16 %v9376, %v9375
        %v9494 = vpack.c.bf16 %v6022, %v6021
        %v9495 = vpack.c.bf16 %v8923, %v8922
        %v9496 = vpack.c.bf16 %v9196, %v9195
        %v9497 = vpack.c.bf16 %v9378, %v9377
        %v9498 = vpack.c.bf16 %v6024, %v6023
        %v9499 = vpack.c.bf16 %v8925, %v8924
        %v9500 = vpack.c.bf16 %v9198, %v9197
        %v9501 = vpack.c.bf16 %v9380, %v9379
        %v9502 = vpack.c.bf16 %v6026, %v6025
        %v9503 = vpack.c.bf16 %v8927, %v8926
        %v9504 = vpack.c.bf16 %v9200, %v9199
        %v9505 = vpack.c.bf16 %v9382, %v9381
        %v9506 = vpack.c.bf16 %v6028, %v6027
        %v9507 = vpack.c.bf16 %v8929, %v8928
        %v9508 = vpack.c.bf16 %v9202, %v9201
        %v9509 = vpack.c.bf16 %v9384, %v9383
        %v9510 = vpack.c.bf16 %v6030, %v6029
        %v9511 = vpack.c.bf16 %v8931, %v8930
        %v9512 = vpack.c.bf16 %v9204, %v9203
        %v9513 = vpack.c.bf16 %v9386, %v9385
        %v9514 = vpack.c.bf16 %v6032, %v6031
        %v9515 = vpack.c.bf16 %v8933, %v8932
        %v9516 = vpack.c.bf16 %v9206, %v9205
        %v9517 = vpack.c.bf16 %v9388, %v9387
        %v9518 = vpack.c.bf16 %v6034, %v6033
        %v9519 = vpack.c.bf16 %v8935, %v8934
        %v9520 = vpack.c.bf16 %v9208, %v9207
        %v9521 = vpack.c.bf16 %v9390, %v9389
        %v9522 = vpack.c.bf16 %v6036, %v6035
        %v9523 = vpack.c.bf16 %v8937, %v8936
        %v9524 = vpack.c.bf16 %v9210, %v9209
        %v9525 = vpack.c.bf16 %v9392, %v9391
        %v9526 = vpack.c.bf16 %v6038, %v6037
        %v9527 = vpack.c.bf16 %v8939, %v8938
        %v9528 = vpack.c.bf16 %v9212, %v9211
        %v9529 = vpack.c.bf16 %v9394, %v9393
        %v9530 = vpack.c.bf16 %v6040, %v6039
        %v9531 = vpack.c.bf16 %v8941, %v8940
        %v9532 = vpack.c.bf16 %v9214, %v9213
        %v9533 = vpack.c.bf16 %v9396, %v9395
        %v9534 = vpack.c.bf16 %v6042, %v6041
        %v9535 = vpack.c.bf16 %v8943, %v8942
        %v9536 = vpack.c.bf16 %v9216, %v9215
        %v9537 = vpack.c.bf16 %v9398, %v9397
        %v9538 = vpack.c.bf16 %v6044, %v6043
        %v9539 = vpack.c.bf16 %v8945, %v8944
        %v9540 = vpack.c.bf16 %v9218, %v9217
        %v9541 = vpack.c.bf16 %v9400, %v9399
        %v9542 = vpack.c.bf16 %v6046, %v6045
        %v9543 = vpack.c.bf16 %v8947, %v8946
        %v9544 = vpack.c.bf16 %v9220, %v9219
        %v9545 = vpack.c.bf16 %v9402, %v9401
        %v9546 = vpack.c.bf16 %v6048, %v6047
        %v9547 = vpack.c.bf16 %v8949, %v8948
        %v9548 = vpack.c.bf16 %v9222, %v9221
        %v9549 = vpack.c.bf16 %v9404, %v9403
        %v9550 = vpack.c.bf16 %v6050, %v6049
        %v9551 = vpack.c.bf16 %v8951, %v8950
        %v9552 = vpack.c.bf16 %v9224, %v9223
        %v9553 = vpack.c.bf16 %v9406, %v9405
        %v9554 = vpack.c.bf16 %v6052, %v6051
        %v9555 = vpack.c.bf16 %v8953, %v8952
        %v9556 = vpack.c.bf16 %v9226, %v9225
        %v9557 = vpack.c.bf16 %v9408, %v9407
        %v9558 = vpack.c.bf16 %v6054, %v6053
        %v9559 = vpack.c.bf16 %v8955, %v8954
        %v9560 = vpack.c.bf16 %v9228, %v9227
        %v9561 = vpack.c.bf16 %v9410, %v9409
        %v9562 = vpack.c.bf16 %v6056, %v6055
        %v9563 = vpack.c.bf16 %v8957, %v8956
        %v9564 = vpack.c.bf16 %v9230, %v9229
        %v9565 = vpack.c.bf16 %v9412, %v9411
        %v9566 = vpack.c.bf16 %v6058, %v6057
        %v9567 = vpack.c.bf16 %v8959, %v8958
        %v9568 = vpack.c.bf16 %v9232, %v9231
        %v9569 = vpack.c.bf16 %v9414, %v9413
        %v9570 = vpack.c.bf16 %v6060, %v6059
        %v9571 = vpack.c.bf16 %v8961, %v8960
        %v9572 = vpack.c.bf16 %v9234, %v9233
        %v9573 = vpack.c.bf16 %v9416, %v9415
        %v9574 = vpack.c.bf16 %v6062, %v6061
        %v9575 = vpack.c.bf16 %v8963, %v8962
        %v9576 = vpack.c.bf16 %v9236, %v9235
        %v9577 = vpack.c.bf16 %v9418, %v9417
        %v9578 = vpack.c.bf16 %v6064, %v6063
        %v9579 = vpack.c.bf16 %v8965, %v8964
        %v9580 = vpack.c.bf16 %v9238, %v9237
        %v9581 = vpack.c.bf16 %v9420, %v9419
        %v9582 = vpack.c.bf16 %v6066, %v6065
        %v9583 = vpack.c.bf16 %v8967, %v8966
        %v9584 = vpack.c.bf16 %v9240, %v9239
        %v9585 = vpack.c.bf16 %v9422, %v9421
        %v9586 = vpack.c.bf16 %v6068, %v6067
        %v9587 = vpack.c.bf16 %v8969, %v8968
        %v9588 = vpack.c.bf16 %v9242, %v9241
        %v9589 = vpack.c.bf16 %v9424, %v9423
        %v9590 = vpack.c.bf16 %v6070, %v6069
        %v9591 = vpack.c.bf16 %v8971, %v8970
        %v9592 = vpack.c.bf16 %v9244, %v9243
        %v9593 = vpack.c.bf16 %v9426, %v9425
        %v9594 = vpack.c.bf16 %v6072, %v6071
        %v9595 = vpack.c.bf16 %v8973, %v8972
        %v9596 = vpack.c.bf16 %v9246, %v9245
        %v9597 = vpack.c.bf16 %v9428, %v9427
        %v9598 = vpack.c.bf16 %v6074, %v6073
        %v9599 = vpack.c.bf16 %v8975, %v8974
        %v9600 = vpack.c.bf16 %v9248, %v9247
        %v9601 = vpack.c.bf16 %v9430, %v9429
        %v9602 = vpack.c.bf16 %v6076, %v6075
        %v9603 = vpack.c.bf16 %v8977, %v8976
        %v9604 = vpack.c.bf16 %v9250, %v9249
        %v9605 = vpack.c.bf16 %v9432, %v9431
        %v9606 = vpack.c.bf16 %v6349, %v6077
        %v9607 = vpack.c.bf16 %v8979, %v8978
        %v9608 = vpack.c.bf16 %v9252, %v9251
        %v9609 = vpack.c.bf16 %v9434, %v9433
        %v9610 = vpack.c.bf16 %v6351, %v6350
        %v9611 = vpack.c.bf16 %v8981, %v8980
        %v9612 = vpack.c.bf16 %v9254, %v9253
        %v9613 = vpack.c.bf16 %v9436, %v9435
        %v9614 = vpack.c.bf16 %v6452, %v6451
        %v9615 = vpack.c.bf16 %v8983, %v8982
        %v9616 = vpack.c.bf16 %v9256, %v9255
        %v9617 = vpack.c.bf16 %v9438, %v9437
        %v9618 = vpack.c.bf16 %v6454, %v6453
        %v9619 = vld [vmem:[%s3] sm:$0xf]
        %v9620 = vld [vmem:[%s3 + $0x4] sm:$0xf]
        %v9621 = vld [vmem:[%s3 + $0x8] sm:$0xf]
        %v9622 = vld [vmem:[%s3 + $0xc] sm:$0xf]
        %v9623 = vld [vmem:[%s3 + $0x10] sm:$0xf]
        %v9624 = vld [vmem:[%s3 + $0x14] sm:$0xf]
        %v9625 = vld [vmem:[%s3 + $0x18] sm:$0xf]
        %v9626 = vld [vmem:[%s3 + $0x1c] sm:$0xf]
        %v9627 = vld [vmem:[%s3 + $0x20] sm:$0xf]
        %v9628 = vld [vmem:[%s3 + $0x24] sm:$0xf]
        %v9629 = vld [vmem:[%s3 + $0x28] sm:$0xf]
        %v9630 = vld [vmem:[%s3 + $0x2c] sm:$0xf]
        %v9631 = vld [vmem:[%s3 + $0x30] sm:$0xf]
        %v9632 = vld [vmem:[%s3 + $0x34] sm:$0xf]
        %v9633 = vld [vmem:[%s3 + $0x38] sm:$0xf]
        %v9634 = vld [vmem:[%s3 + $0x3c] sm:$0xf]
        %v9635 = vld [vmem:[%s3 + $0x40] sm:$0xf]
        %v9636 = vld [vmem:[%s3 + $0x44] sm:$0xf]
        %v9637 = vld [vmem:[%s3 + $0x48] sm:$0xf]
        %v9638 = vld [vmem:[%s3 + $0x4c] sm:$0xf]
        %v9639 = vld [vmem:[%s3 + $0x50] sm:$0xf]
        %v9640 = vld [vmem:[%s3 + $0x54] sm:$0xf]
        %v9641 = vld [vmem:[%s3 + $0x58] sm:$0xf]
        %v9642 = vld [vmem:[%s3 + $0x5c] sm:$0xf]
        %v9643 = vld [vmem:[%s3 + $0x60] sm:$0xf]
        %v9644 = vld [vmem:[%s3 + $0x64] sm:$0xf]
        %v9645 = vld [vmem:[%s3 + $0x68] sm:$0xf]
        %v9646 = vld [vmem:[%s3 + $0x6c] sm:$0xf]
        %v9647 = vld [vmem:[%s3 + $0x70] sm:$0xf]
        %v9648 = vld [vmem:[%s3 + $0x74] sm:$0xf]
        %v9649 = vld [vmem:[%s3 + $0x78] sm:$0xf]
        %v9650 = vld [vmem:[%s3 + $0x7c] sm:$0xf]
        %v9651 = vld [vmem:[%s3 + $0x80] sm:$0xf]
        %v9652 = vld [vmem:[%s3 + $0x84] sm:$0xf]
        %v9653 = vld [vmem:[%s3 + $0x88] sm:$0xf]
        %v9654 = vld [vmem:[%s3 + $0x8c] sm:$0xf]
        %v9655 = vld [vmem:[%s3 + $0x90] sm:$0xf]
        %v9656 = vld [vmem:[%s3 + $0x94] sm:$0xf]
        %v9657 = vld [vmem:[%s3 + $0x98] sm:$0xf]
        %v9658 = vld [vmem:[%s3 + $0x9c] sm:$0xf]
        %v9659 = vld [vmem:[%s3 + $0xa0] sm:$0xf]
        %v9660 = vld [vmem:[%s3 + $0xa4] sm:$0xf]
        %v9661 = vld [vmem:[%s3 + $0xa8] sm:$0xf]
        %v9662 = vld [vmem:[%s3 + $0xac] sm:$0xf]
        %v9663 = vld [vmem:[%s3 + $0xb0] sm:$0xf]
        %v9664 = vld [vmem:[%s3 + $0xb4] sm:$0xf]
        %v9665 = vld [vmem:[%s3 + $0xb8] sm:$0xf]
        %v9666 = vld [vmem:[%s3 + $0xbc] sm:$0xf]
        %v9667 = vld [vmem:[%s3 + $0xc0] sm:$0xf]
        %v9668 = vld [vmem:[%s3 + $0xc4] sm:$0xf]
        %v9669 = vld [vmem:[%s3 + $0xc8] sm:$0xf]
        %v9670 = vld [vmem:[%s3 + $0xcc] sm:$0xf]
        %v9671 = vld [vmem:[%s3 + $0xd0] sm:$0xf]
        %v9672 = vld [vmem:[%s3 + $0xd4] sm:$0xf]
        %v9673 = vld [vmem:[%s4] sm:$0x1]
        %v9675 = vlaneseq
        %v9676 = vshrl.u32 %v9675, 7
        %v9677 = vsub.s32 0, %v9676
        %v9678 = vrot.slane %v9673, %v9677
        %v9734 = vunpack.c.l.b16 %v9619
        %v9735 = vunpack.c.l.b16 %v9620
        %v9736 = vunpack.c.l.b16 %v9621
        %v9737 = vunpack.c.l.b16 %v9622
        %v9738 = vunpack.c.l.b16 %v9623
        %v9739 = vunpack.c.l.b16 %v9624
        %v9740 = vunpack.c.l.b16 %v9625
        %v9741 = vunpack.c.l.b16 %v9626
        %v9742 = vunpack.c.l.b16 %v9627
        %v9743 = vunpack.c.l.b16 %v9628
        %v9744 = vunpack.c.l.b16 %v9629
        %v9745 = vunpack.c.l.b16 %v9630
        %v9746 = vunpack.c.l.b16 %v9631
        %v9747 = vunpack.c.l.b16 %v9632
        %v9748 = vunpack.c.l.b16 %v9633
        %v9749 = vunpack.c.l.b16 %v9634
        %v9750 = vunpack.c.l.b16 %v9635
        %v9751 = vunpack.c.l.b16 %v9636
        %v9752 = vunpack.c.l.b16 %v9637
        %v9753 = vunpack.c.l.b16 %v9638
        %v9754 = vunpack.c.l.b16 %v9639
        %v9755 = vunpack.c.l.b16 %v9640
        %v9756 = vunpack.c.l.b16 %v9641
        %v9757 = vunpack.c.l.b16 %v9642
        %v9758 = vunpack.c.l.b16 %v9643
        %v9759 = vunpack.c.l.b16 %v9644
        %v9760 = vunpack.c.l.b16 %v9645
        %v9761 = vunpack.c.l.b16 %v9646
        %v9762 = vunpack.c.l.b16 %v9647
        %v9763 = vunpack.c.l.b16 %v9648
        %v9764 = vunpack.c.l.b16 %v9649
        %v9765 = vunpack.c.l.b16 %v9650
        %v9766 = vunpack.c.l.b16 %v9651
        %v9767 = vunpack.c.l.b16 %v9652
        %v9768 = vunpack.c.l.b16 %v9653
        %v9769 = vunpack.c.l.b16 %v9654
        %v9770 = vunpack.c.l.b16 %v9655
        %v9771 = vunpack.c.l.b16 %v9656
        %v9772 = vunpack.c.l.b16 %v9657
        %v9773 = vunpack.c.l.b16 %v9658
        %v9774 = vunpack.c.l.b16 %v9659
        %v9775 = vunpack.c.l.b16 %v9660
        %v9776 = vunpack.c.l.b16 %v9661
        %v9777 = vunpack.c.l.b16 %v9662
        %v9778 = vunpack.c.l.b16 %v9663
        %v9779 = vunpack.c.l.b16 %v9664
        %v9780 = vunpack.c.l.b16 %v9665
        %v9781 = vunpack.c.l.b16 %v9666
        %v9782 = vunpack.c.l.b16 %v9667
        %v9783 = vunpack.c.l.b16 %v9668
        %v9784 = vunpack.c.l.b16 %v9669
        %v9785 = vunpack.c.l.b16 %v9670
        %v9786 = vunpack.c.l.b16 %v9671
        %v9787 = vunpack.c.l.b16 %v9672
        %v9788 = vpack.c.b16 %v9735, %v9734
        %v9789 = vpack.c.b16 %v9737, %v9736
        %v9790 = vpack.c.b16 %v9739, %v9738
        %v9791 = vpack.c.b16 %v9741, %v9740
        %v9792 = vpack.c.b16 %v9743, %v9742
        %v9793 = vpack.c.b16 %v9745, %v9744
        %v9794 = vpack.c.b16 %v9747, %v9746
        %v9795 = vpack.c.b16 %v9749, %v9748
        %v9796 = vpack.c.b16 %v9751, %v9750
        %v9797 = vpack.c.b16 %v9753, %v9752
        %v9798 = vpack.c.b16 %v9755, %v9754
        %v9799 = vpack.c.b16 %v9757, %v9756
        %v9800 = vpack.c.b16 %v9759, %v9758
        %v9801 = vpack.c.b16 %v9761, %v9760
        %v9802 = vpack.c.b16 %v9763, %v9762
        %v9803 = vpack.c.b16 %v9765, %v9764
        %v9804 = vpack.c.b16 %v9767, %v9766
        %v9805 = vpack.c.b16 %v9769, %v9768
        %v9806 = vpack.c.b16 %v9771, %v9770
        %v9807 = vpack.c.b16 %v9773, %v9772
        %v9808 = vpack.c.b16 %v9775, %v9774
        %v9809 = vpack.c.b16 %v9777, %v9776
        %v9810 = vpack.c.b16 %v9779, %v9778
        %v9811 = vpack.c.b16 %v9781, %v9780
        %v9812 = vpack.c.b16 %v9783, %v9782
        %v9813 = vpack.c.b16 %v9785, %v9784
        %v9814 = vpack.c.b16 %v9787, %v9786
        %v9843 = vsel %vm5801, %v9442, 0
        %v9846 = vsel %vm5801, %v9446, 0
        %v9849 = vsel %vm5801, %v9450, 0
        %v9852 = vsel %vm5801, %v9454, 0
        %v9855 = vsel %vm5801, %v9458, 0
        %v9858 = vsel %vm5801, %v9462, 0
        %v9861 = vsel %vm5801, %v9466, 0
        %v9864 = vsel %vm5801, %v9470, 0
        %v9867 = vsel %vm5801, %v9474, 0
        %v9870 = vsel %vm5801, %v9478, 0
        %v9873 = vsel %vm5801, %v9482, 0
        %v9876 = vsel %vm5801, %v9486, 0
        %v9879 = vsel %vm5801, %v9490, 0
        %v9882 = vsel %vm5801, %v9494, 0
        %v9885 = vsel %vm5801, %v9498, 0
        %v9888 = vsel %vm5801, %v9502, 0
        %v9891 = vsel %vm5801, %v9506, 0
        %v9894 = vsel %vm5801, %v9510, 0
        %v9897 = vsel %vm5801, %v9514, 0
        %v9900 = vsel %vm5801, %v9518, 0
        %v9903 = vsel %vm5801, %v9522, 0
        %v9906 = vsel %vm5801, %v9526, 0
        %v9909 = vsel %vm5801, %v9530, 0
        %v9912 = vsel %vm5801, %v9534, 0
        %v9915 = vsel %vm5801, %v9538, 0
        %v9918 = vsel %vm5801, %v9542, 0
        %v9921 = vsel %vm5801, %v9546, 0
        %v9924 = vsel %vm5801, %v9550, 0
        %v9927 = vsel %vm5801, %v9554, 0
        %v9930 = vsel %vm5801, %v9558, 0
        %v9933 = vsel %vm5801, %v9562, 0
        %v9936 = vsel %vm5801, %v9566, 0
        %v9939 = vsel %vm5801, %v9570, 0
        %v9942 = vsel %vm5801, %v9574, 0
        %v9945 = vsel %vm5801, %v9578, 0
        %v9948 = vsel %vm5801, %v9582, 0
        %v9951 = vsel %vm5801, %v9586, 0
        %v9954 = vsel %vm5801, %v9590, 0
        %v9957 = vsel %vm5801, %v9594, 0
        %v9960 = vsel %vm5801, %v9598, 0
        %v9963 = vsel %vm5801, %v9602, 0
        %v9966 = vsel %vm5801, %v9606, 0
        %v9969 = vsel %vm5801, %v9610, 0
        %v9972 = vsel %vm5801, %v9614, 0
        %v9975 = vsel %vm5801, %v9618, 0
        %9977 = vmatprep.subr.bf16.mxu0 0
        %9978 = vmatpush1.bf16.msra.mxu0 %v9795
        %9979 = vmatprep.subr.bf16.mxu0 0
        %9980 = vmatpush1.bf16.msra.mxu0 %v9794
        %9981 = vmatprep.subr.bf16.mxu0 0
        %9982 = vmatpush1.bf16.msra.mxu0 %v9793
        %9983 = vmatprep.subr.bf16.mxu0 0
        %9984 = vmatpush1.bf16.msra.mxu0 %v9792
        %9985 = vmatprep.subr.bf16.mxu0 0
        %9986 = vmatpush1.bf16.msra.mxu0 %v9791
        %9987 = vmatprep.subr.bf16.mxu0 0
        %9988 = vmatpush1.bf16.msra.mxu0 %v9790
        %9989 = vmatprep.subr.bf16.mxu0 0
        %9990 = vmatpush1.bf16.msra.mxu0 %v9789
        %9991 = vmatprep.subr.bf16.mxu0 0
        %9992 = vmatpush1.bf16.msra.mxu0 %v9788
        %9993 = vmatprep.subr.bf16.mxu0 0
        %9994 = vmatpush2.bf16.msra.mxu0 %v9803
        %9995 = vmatprep.subr.bf16.mxu0 0
        %9996 = vmatpush2.bf16.msra.mxu0 %v9802
        %9997 = vmatprep.subr.bf16.mxu0 0
        %9998 = vmatpush2.bf16.msra.mxu0 %v9801
        %9999 = vmatprep.subr.bf16.mxu0 0
        %10000 = vmatpush2.bf16.msra.mxu0 %v9800
        %10001 = vmatprep.subr.bf16.mxu0 0
        %10002 = vmatpush2.bf16.msra.mxu0 %v9799
        %10003 = vmatprep.subr.bf16.mxu0 0
        %10004 = vmatpush2.bf16.msra.mxu0 %v9798
        %10005 = vmatprep.subr.bf16.mxu0 0
        %10006 = vmatpush2.bf16.msra.mxu0 %v9797
        %10007 = vmatprep.subr.bf16.mxu0 0
        %10008 = vmatpush2.bf16.msra.mxu0 %v9796
        %10009 = vmatprep.mubr.bf16.mxu0 %v9440
        %10010 = vmatmul.mubr.bf16.gmra.mxu0 %v9439
        %v10011 = vpop.f32.mrf.mxu0
        %v10012 = vadd.f32 %v9678, %v10011
        %v10013 = vpop.f32.mrf.mxu0
        %v10014 = vpop.f32.mrf.mxu0
        %v10015 = vadd.f32 %v9678, %v10014
        %v10016 = vpop.f32.mrf.mxu0
        %10017 = vmatprep.mubr.bf16.mxu0 %v9444
        %10018 = vmatmul.mubr.bf16.gmra.mxu0 %v9443
        %v10019 = vpop.f32.mrf.mxu0
        %v10020 = vadd.f32 %v9678, %v10019
        %v10021 = vpop.f32.mrf.mxu0
        %v10022 = vpop.f32.mrf.mxu0
        %v10023 = vadd.f32 %v9678, %v10022
        %v10024 = vpop.f32.mrf.mxu0
        %10025 = vmatprep.mubr.bf16.mxu0 %v9448
        %10026 = vmatmul.mubr.bf16.gmra.mxu0 %v9447
        %v10027 = vpop.f32.mrf.mxu0
        %v10028 = vadd.f32 %v9678, %v10027
        %v10029 = vpop.f32.mrf.mxu0
        %v10030 = vpop.f32.mrf.mxu0
        %v10031 = vadd.f32 %v9678, %v10030
        %v10032 = vpop.f32.mrf.mxu0
        %10033 = vmatprep.mubr.bf16.mxu0 %v9452
        %10034 = vmatmul.mubr.bf16.gmra.mxu0 %v9451
        %v10035 = vpop.f32.mrf.mxu0
        %v10036 = vadd.f32 %v9678, %v10035
        %v10037 = vpop.f32.mrf.mxu0
        %v10038 = vpop.f32.mrf.mxu0
        %v10039 = vadd.f32 %v9678, %v10038
        %v10040 = vpop.f32.mrf.mxu0
        %10041 = vmatprep.mubr.bf16.mxu0 %v9456
        %10042 = vmatmul.mubr.bf16.gmra.mxu0 %v9455
        %v10043 = vpop.f32.mrf.mxu0
        %v10044 = vadd.f32 %v9678, %v10043
        %v10045 = vpop.f32.mrf.mxu0
        %v10046 = vpop.f32.mrf.mxu0
        %v10047 = vadd.f32 %v9678, %v10046
        %v10048 = vpop.f32.mrf.mxu0
        %10049 = vmatprep.mubr.bf16.mxu0 %v9460
        %10050 = vmatmul.mubr.bf16.gmra.mxu0 %v9459
        %v10051 = vpop.f32.mrf.mxu0
        %v10052 = vadd.f32 %v9678, %v10051
        %v10053 = vpop.f32.mrf.mxu0
        %v10054 = vpop.f32.mrf.mxu0
        %v10055 = vadd.f32 %v9678, %v10054
        %v10056 = vpop.f32.mrf.mxu0
        %10057 = vmatprep.mubr.bf16.mxu0 %v9464
        %10058 = vmatmul.mubr.bf16.gmra.mxu0 %v9463
        %v10059 = vpop.f32.mrf.mxu0
        %v10060 = vadd.f32 %v9678, %v10059
        %v10061 = vpop.f32.mrf.mxu0
        %v10062 = vpop.f32.mrf.mxu0
        %v10063 = vadd.f32 %v9678, %v10062
        %v10064 = vpop.f32.mrf.mxu0
        %10065 = vmatprep.mubr.bf16.mxu0 %v9468
        %10066 = vmatmul.mubr.bf16.gmra.mxu0 %v9467
        %v10067 = vpop.f32.mrf.mxu0
        %v10068 = vadd.f32 %v9678, %v10067
        %v10069 = vpop.f32.mrf.mxu0
        %v10070 = vpop.f32.mrf.mxu0
        %v10071 = vadd.f32 %v9678, %v10070
        %v10072 = vpop.f32.mrf.mxu0
        %10073 = vmatprep.mubr.bf16.mxu0 %v9472
        %10074 = vmatmul.mubr.bf16.gmra.mxu0 %v9471
        %v10075 = vpop.f32.mrf.mxu0
        %v10076 = vadd.f32 %v9678, %v10075
        %v10077 = vpop.f32.mrf.mxu0
        %v10078 = vpop.f32.mrf.mxu0
        %v10079 = vadd.f32 %v9678, %v10078
        %v10080 = vpop.f32.mrf.mxu0
        %10081 = vmatprep.mubr.bf16.mxu0 %v9476
        %10082 = vmatmul.mubr.bf16.gmra.mxu0 %v9475
        %v10083 = vpop.f32.mrf.mxu0
        %v10084 = vadd.f32 %v9678, %v10083
        %v10085 = vpop.f32.mrf.mxu0
        %v10086 = vpop.f32.mrf.mxu0
        %v10087 = vadd.f32 %v9678, %v10086
        %v10088 = vpop.f32.mrf.mxu0
        %10089 = vmatprep.mubr.bf16.mxu0 %v9480
        %10090 = vmatmul.mubr.bf16.gmra.mxu0 %v9479
        %v10091 = vpop.f32.mrf.mxu0
        %v10092 = vadd.f32 %v9678, %v10091
        %v10093 = vpop.f32.mrf.mxu0
        %v10094 = vpop.f32.mrf.mxu0
        %v10095 = vadd.f32 %v9678, %v10094
        %v10096 = vpop.f32.mrf.mxu0
        %10097 = vmatprep.mubr.bf16.mxu0 %v9484
        %10098 = vmatmul.mubr.bf16.gmra.mxu0 %v9483
        %v10099 = vpop.f32.mrf.mxu0
        %v10100 = vadd.f32 %v9678, %v10099
        %v10101 = vpop.f32.mrf.mxu0
        %v10102 = vpop.f32.mrf.mxu0
        %v10103 = vadd.f32 %v9678, %v10102
        %v10104 = vpop.f32.mrf.mxu0
        %10105 = vmatprep.mubr.bf16.mxu0 %v9488
        %10106 = vmatmul.mubr.bf16.gmra.mxu0 %v9487
        %v10107 = vpop.f32.mrf.mxu0
        %v10108 = vadd.f32 %v9678, %v10107
        %v10109 = vpop.f32.mrf.mxu0
        %v10110 = vpop.f32.mrf.mxu0
        %v10111 = vadd.f32 %v9678, %v10110
        %v10112 = vpop.f32.mrf.mxu0
        %10113 = vmatprep.mubr.bf16.mxu0 %v9492
        %10114 = vmatmul.mubr.bf16.gmra.mxu0 %v9491
        %v10115 = vpop.f32.mrf.mxu0
        %v10116 = vadd.f32 %v9678, %v10115
        %v10117 = vpop.f32.mrf.mxu0
        %v10118 = vpop.f32.mrf.mxu0
        %v10119 = vadd.f32 %v9678, %v10118
        %v10120 = vpop.f32.mrf.mxu0
        %10121 = vmatprep.mubr.bf16.mxu0 %v9496
        %10122 = vmatmul.mubr.bf16.gmra.mxu0 %v9495
        %v10123 = vpop.f32.mrf.mxu0
        %v10124 = vadd.f32 %v9678, %v10123
        %v10125 = vpop.f32.mrf.mxu0
        %v10126 = vpop.f32.mrf.mxu0
        %v10127 = vadd.f32 %v9678, %v10126
        %v10128 = vpop.f32.mrf.mxu0
        %10129 = vmatprep.mubr.bf16.mxu0 %v9500
        %10130 = vmatmul.mubr.bf16.gmra.mxu0 %v9499
        %v10131 = vpop.f32.mrf.mxu0
        %v10132 = vadd.f32 %v9678, %v10131
        %v10133 = vpop.f32.mrf.mxu0
        %v10134 = vpop.f32.mrf.mxu0
        %v10135 = vadd.f32 %v9678, %v10134
        %v10136 = vpop.f32.mrf.mxu0
        %10137 = vmatprep.mubr.bf16.mxu0 %v9504
        %10138 = vmatmul.mubr.bf16.gmra.mxu0 %v9503
        %v10139 = vpop.f32.mrf.mxu0
        %v10140 = vadd.f32 %v9678, %v10139
        %v10141 = vpop.f32.mrf.mxu0
        %v10142 = vpop.f32.mrf.mxu0
        %v10143 = vadd.f32 %v9678, %v10142
        %v10144 = vpop.f32.mrf.mxu0
        %10145 = vmatprep.mubr.bf16.mxu0 %v9508
        %10146 = vmatmul.mubr.bf16.gmra.mxu0 %v9507
        %v10147 = vpop.f32.mrf.mxu0
        %v10148 = vadd.f32 %v9678, %v10147
        %v10149 = vpop.f32.mrf.mxu0
        %v10150 = vpop.f32.mrf.mxu0
        %v10151 = vadd.f32 %v9678, %v10150
        %v10152 = vpop.f32.mrf.mxu0
        %10153 = vmatprep.mubr.bf16.mxu0 %v9512
        %10154 = vmatmul.mubr.bf16.gmra.mxu0 %v9511
        %v10155 = vpop.f32.mrf.mxu0
        %v10156 = vadd.f32 %v9678, %v10155
        %v10157 = vpop.f32.mrf.mxu0
        %v10158 = vpop.f32.mrf.mxu0
        %v10159 = vadd.f32 %v9678, %v10158
        %v10160 = vpop.f32.mrf.mxu0
        %10161 = vmatprep.mubr.bf16.mxu0 %v9516
        %10162 = vmatmul.mubr.bf16.gmra.mxu0 %v9515
        %v10163 = vpop.f32.mrf.mxu0
        %v10164 = vadd.f32 %v9678, %v10163
        %v10165 = vpop.f32.mrf.mxu0
        %v10166 = vpop.f32.mrf.mxu0
        %v10167 = vadd.f32 %v9678, %v10166
        %v10168 = vpop.f32.mrf.mxu0
        %10169 = vmatprep.mubr.bf16.mxu0 %v9520
        %10170 = vmatmul.mubr.bf16.gmra.mxu0 %v9519
        %v10171 = vpop.f32.mrf.mxu0
        %v10172 = vadd.f32 %v9678, %v10171
        %v10173 = vpop.f32.mrf.mxu0
        %v10174 = vpop.f32.mrf.mxu0
        %v10175 = vadd.f32 %v9678, %v10174
        %v10176 = vpop.f32.mrf.mxu0
        %10177 = vmatprep.mubr.bf16.mxu0 %v9524
        %10178 = vmatmul.mubr.bf16.gmra.mxu0 %v9523
        %v10179 = vpop.f32.mrf.mxu0
        %v10180 = vadd.f32 %v9678, %v10179
        %v10181 = vpop.f32.mrf.mxu0
        %v10182 = vpop.f32.mrf.mxu0
        %v10183 = vadd.f32 %v9678, %v10182
        %v10184 = vpop.f32.mrf.mxu0
        %10185 = vmatprep.mubr.bf16.mxu0 %v9528
        %10186 = vmatmul.mubr.bf16.gmra.mxu0 %v9527
        %v10187 = vpop.f32.mrf.mxu0
        %v10188 = vadd.f32 %v9678, %v10187
        %v10189 = vpop.f32.mrf.mxu0
        %v10190 = vpop.f32.mrf.mxu0
        %v10191 = vadd.f32 %v9678, %v10190
        %v10192 = vpop.f32.mrf.mxu0
        %10193 = vmatprep.mubr.bf16.mxu0 %v9532
        %10194 = vmatmul.mubr.bf16.gmra.mxu0 %v9531
        %v10195 = vpop.f32.mrf.mxu0
        %v10196 = vadd.f32 %v9678, %v10195
        %v10197 = vpop.f32.mrf.mxu0
        %v10198 = vpop.f32.mrf.mxu0
        %v10199 = vadd.f32 %v9678, %v10198
        %v10200 = vpop.f32.mrf.mxu0
        %10201 = vmatprep.mubr.bf16.mxu0 %v9536
        %10202 = vmatmul.mubr.bf16.gmra.mxu0 %v9535
        %v10203 = vpop.f32.mrf.mxu0
        %v10204 = vadd.f32 %v9678, %v10203
        %v10205 = vpop.f32.mrf.mxu0
        %v10206 = vpop.f32.mrf.mxu0
        %v10207 = vadd.f32 %v9678, %v10206
        %v10208 = vpop.f32.mrf.mxu0
        %10209 = vmatprep.mubr.bf16.mxu0 %v9540
        %10210 = vmatmul.mubr.bf16.gmra.mxu0 %v9539
        %v10211 = vpop.f32.mrf.mxu0
        %v10212 = vadd.f32 %v9678, %v10211
        %v10213 = vpop.f32.mrf.mxu0
        %v10214 = vpop.f32.mrf.mxu0
        %v10215 = vadd.f32 %v9678, %v10214
        %v10216 = vpop.f32.mrf.mxu0
        %10217 = vmatprep.mubr.bf16.mxu0 %v9544
        %10218 = vmatmul.mubr.bf16.gmra.mxu0 %v9543
        %v10219 = vpop.f32.mrf.mxu0
        %v10220 = vadd.f32 %v9678, %v10219
        %v10221 = vpop.f32.mrf.mxu0
        %v10222 = vpop.f32.mrf.mxu0
        %v10223 = vadd.f32 %v9678, %v10222
        %v10224 = vpop.f32.mrf.mxu0
        %10225 = vmatprep.mubr.bf16.mxu0 %v9548
        %10226 = vmatmul.mubr.bf16.gmra.mxu0 %v9547
        %v10227 = vpop.f32.mrf.mxu0
        %v10228 = vadd.f32 %v9678, %v10227
        %v10229 = vpop.f32.mrf.mxu0
        %v10230 = vpop.f32.mrf.mxu0
        %v10231 = vadd.f32 %v9678, %v10230
        %v10232 = vpop.f32.mrf.mxu0
        %10233 = vmatprep.mubr.bf16.mxu0 %v9552
        %10234 = vmatmul.mubr.bf16.gmra.mxu0 %v9551
        %v10235 = vpop.f32.mrf.mxu0
        %v10236 = vadd.f32 %v9678, %v10235
        %v10237 = vpop.f32.mrf.mxu0
        %v10238 = vpop.f32.mrf.mxu0
        %v10239 = vadd.f32 %v9678, %v10238
        %v10240 = vpop.f32.mrf.mxu0
        %10241 = vmatprep.mubr.bf16.mxu0 %v9556
        %10242 = vmatmul.mubr.bf16.gmra.mxu0 %v9555
        %v10243 = vpop.f32.mrf.mxu0
        %v10244 = vadd.f32 %v9678, %v10243
        %v10245 = vpop.f32.mrf.mxu0
        %v10246 = vpop.f32.mrf.mxu0
        %v10247 = vadd.f32 %v9678, %v10246
        %v10248 = vpop.f32.mrf.mxu0
        %10249 = vmatprep.mubr.bf16.mxu0 %v9560
        %10250 = vmatmul.mubr.bf16.gmra.mxu0 %v9559
        %v10251 = vpop.f32.mrf.mxu0
        %v10252 = vadd.f32 %v9678, %v10251
        %v10253 = vpop.f32.mrf.mxu0
        %v10254 = vpop.f32.mrf.mxu0
        %v10255 = vadd.f32 %v9678, %v10254
        %v10256 = vpop.f32.mrf.mxu0
        %10257 = vmatprep.mubr.bf16.mxu0 %v9564
        %10258 = vmatmul.mubr.bf16.gmra.mxu0 %v9563
        %v10259 = vpop.f32.mrf.mxu0
        %v10260 = vadd.f32 %v9678, %v10259
        %v10261 = vpop.f32.mrf.mxu0
        %v10262 = vpop.f32.mrf.mxu0
        %v10263 = vadd.f32 %v9678, %v10262
        %v10264 = vpop.f32.mrf.mxu0
        %10265 = vmatprep.mubr.bf16.mxu0 %v9568
        %10266 = vmatmul.mubr.bf16.gmra.mxu0 %v9567
        %v10267 = vpop.f32.mrf.mxu0
        %v10268 = vadd.f32 %v9678, %v10267
        %v10269 = vpop.f32.mrf.mxu0
        %v10270 = vpop.f32.mrf.mxu0
        %v10271 = vadd.f32 %v9678, %v10270
        %v10272 = vpop.f32.mrf.mxu0
        %10273 = vmatprep.mubr.bf16.mxu0 %v9572
        %10274 = vmatmul.mubr.bf16.gmra.mxu0 %v9571
        %v10275 = vpop.f32.mrf.mxu0
        %v10276 = vadd.f32 %v9678, %v10275
        %v10277 = vpop.f32.mrf.mxu0
        %v10278 = vpop.f32.mrf.mxu0
        %v10279 = vadd.f32 %v9678, %v10278
        %v10280 = vpop.f32.mrf.mxu0
        %10281 = vmatprep.mubr.bf16.mxu0 %v9576
        %10282 = vmatmul.mubr.bf16.gmra.mxu0 %v9575
        %v10283 = vpop.f32.mrf.mxu0
        %v10284 = vadd.f32 %v9678, %v10283
        %v10285 = vpop.f32.mrf.mxu0
        %v10286 = vpop.f32.mrf.mxu0
        %v10287 = vadd.f32 %v9678, %v10286
        %v10288 = vpop.f32.mrf.mxu0
        %10289 = vmatprep.mubr.bf16.mxu0 %v9580
        %10290 = vmatmul.mubr.bf16.gmra.mxu0 %v9579
        %v10291 = vpop.f32.mrf.mxu0
        %v10292 = vadd.f32 %v9678, %v10291
        %v10293 = vpop.f32.mrf.mxu0
        %v10294 = vpop.f32.mrf.mxu0
        %v10295 = vadd.f32 %v9678, %v10294
        %v10296 = vpop.f32.mrf.mxu0
        %10297 = vmatprep.mubr.bf16.mxu0 %v9584
        %10298 = vmatmul.mubr.bf16.gmra.mxu0 %v9583
        %v10299 = vpop.f32.mrf.mxu0
        %v10300 = vadd.f32 %v9678, %v10299
        %v10301 = vpop.f32.mrf.mxu0
        %v10302 = vpop.f32.mrf.mxu0
        %v10303 = vadd.f32 %v9678, %v10302
        %v10304 = vpop.f32.mrf.mxu0
        %10305 = vmatprep.mubr.bf16.mxu0 %v9588
        %10306 = vmatmul.mubr.bf16.gmra.mxu0 %v9587
        %v10307 = vpop.f32.mrf.mxu0
        %v10308 = vadd.f32 %v9678, %v10307
        %v10309 = vpop.f32.mrf.mxu0
        %v10310 = vpop.f32.mrf.mxu0
        %v10311 = vadd.f32 %v9678, %v10310
        %v10312 = vpop.f32.mrf.mxu0
        %10313 = vmatprep.mubr.bf16.mxu0 %v9592
        %10314 = vmatmul.mubr.bf16.gmra.mxu0 %v9591
        %v10315 = vpop.f32.mrf.mxu0
        %v10316 = vadd.f32 %v9678, %v10315
        %v10317 = vpop.f32.mrf.mxu0
        %v10318 = vpop.f32.mrf.mxu0
        %v10319 = vadd.f32 %v9678, %v10318
        %v10320 = vpop.f32.mrf.mxu0
        %10321 = vmatprep.mubr.bf16.mxu0 %v9596
        %10322 = vmatmul.mubr.bf16.gmra.mxu0 %v9595
        %v10323 = vpop.f32.mrf.mxu0
        %v10324 = vadd.f32 %v9678, %v10323
        %v10325 = vpop.f32.mrf.mxu0
        %v10326 = vpop.f32.mrf.mxu0
        %v10327 = vadd.f32 %v9678, %v10326
        %v10328 = vpop.f32.mrf.mxu0
        %10329 = vmatprep.mubr.bf16.mxu0 %v9600
        %10330 = vmatmul.mubr.bf16.gmra.mxu0 %v9599
        %v10331 = vpop.f32.mrf.mxu0
        %v10332 = vadd.f32 %v9678, %v10331
        %v10333 = vpop.f32.mrf.mxu0
        %v10334 = vpop.f32.mrf.mxu0
        %v10335 = vadd.f32 %v9678, %v10334
        %v10336 = vpop.f32.mrf.mxu0
        %10337 = vmatprep.mubr.bf16.mxu0 %v9604
        %10338 = vmatmul.mubr.bf16.gmra.mxu0 %v9603
        %v10339 = vpop.f32.mrf.mxu0
        %v10340 = vadd.f32 %v9678, %v10339
        %v10341 = vpop.f32.mrf.mxu0
        %v10342 = vpop.f32.mrf.mxu0
        %v10343 = vadd.f32 %v9678, %v10342
        %v10344 = vpop.f32.mrf.mxu0
        %10345 = vmatprep.mubr.bf16.mxu0 %v9608
        %10346 = vmatmul.mubr.bf16.gmra.mxu0 %v9607
        %v10347 = vpop.f32.mrf.mxu0
        %v10348 = vadd.f32 %v9678, %v10347
        %v10349 = vpop.f32.mrf.mxu0
        %v10350 = vpop.f32.mrf.mxu0
        %v10351 = vadd.f32 %v9678, %v10350
        %v10352 = vpop.f32.mrf.mxu0
        %10353 = vmatprep.mubr.bf16.mxu0 %v9612
        %10354 = vmatmul.mubr.bf16.gmra.mxu0 %v9611
        %v10355 = vpop.f32.mrf.mxu0
        %v10356 = vadd.f32 %v9678, %v10355
        %v10357 = vpop.f32.mrf.mxu0
        %v10358 = vpop.f32.mrf.mxu0
        %v10359 = vadd.f32 %v9678, %v10358
        %v10360 = vpop.f32.mrf.mxu0
        %10361 = vmatprep.mubr.bf16.mxu0 %v9616
        %10362 = vmatmul.mubr.bf16.gmra.mxu0 %v9615
        %v10363 = vpop.f32.mrf.mxu0
        %v10364 = vadd.f32 %v9678, %v10363
        %v10365 = vpop.f32.mrf.mxu0
        %v10366 = vpop.f32.mrf.mxu0
        %v10367 = vadd.f32 %v9678, %v10366
        %v10368 = vpop.f32.mrf.mxu0
        %10369 = vdwg.mxu0
        %10370 = vmatprep.subr.bf16.mxu0 0
        %10371 = vmatpush1.bf16.msra.mxu0 %v9811
        %10372 = vmatprep.subr.bf16.mxu0 0
        %10373 = vmatpush1.bf16.msra.mxu0 %v9810
        %10374 = vmatprep.subr.bf16.mxu0 0
        %10375 = vmatpush1.bf16.msra.mxu0 %v9809
        %10376 = vmatprep.subr.bf16.mxu0 0
        %10377 = vmatpush1.bf16.msra.mxu0 %v9808
        %10378 = vmatprep.subr.bf16.mxu0 0
        %10379 = vmatpush1.bf16.msra.mxu0 %v9807
        %10380 = vmatprep.subr.bf16.mxu0 0
        %10381 = vmatpush1.bf16.msra.mxu0 %v9806
        %10382 = vmatprep.subr.bf16.mxu0 0
        %10383 = vmatpush1.bf16.msra.mxu0 %v9805
        %10384 = vmatprep.subr.bf16.mxu0 0
        %10385 = vmatpush1.bf16.msra.mxu0 %v9804
        %10386 = vmatprep.subr.bf16.mxu0 0
        %10387 = vmatpush2.bf16.msra.mxu0 0
        %10388 = vmatprep.subr.bf16.mxu0 0
        %10389 = vmatpush2.bf16.msra.mxu0 0
        %10390 = vmatprep.subr.bf16.mxu0 0
        %10391 = vmatpush2.bf16.msra.mxu0 0
        %10392 = vmatprep.subr.bf16.mxu0 0
        %10393 = vmatpush2.bf16.msra.mxu0 0
        %10394 = vmatprep.subr.bf16.mxu0 0
        %10395 = vmatpush2.bf16.msra.mxu0 0
        %10396 = vmatprep.subr.bf16.mxu0 0
        %10397 = vmatpush2.bf16.msra.mxu0 %v9814
        %10398 = vmatprep.subr.bf16.mxu0 0
        %10399 = vmatpush2.bf16.msra.mxu0 %v9813
        %10400 = vmatprep.subr.bf16.mxu0 0
        %10401 = vmatpush2.bf16.msra.mxu0 %v9812
        %10402 = vmatprep.mubr.bf16.mxu0 %v9843
        %10403 = vmatmul.mubr.bf16.gmra.mxu0 %v9441
        %v10404 = vpop.f32.mrf.mxu0
        %v10405 = vadd.f32 %v10012, %v10404
        %v10406 = vpop.f32.mrf.mxu0
        %v10407 = vpop.f32.mrf.mxu0
        %v10408 = vadd.f32 %v10015, %v10407
        %v10409 = vpop.f32.mrf.mxu0
        %10410 = vmatprep.mubr.bf16.mxu0 %v9846
        %10411 = vmatmul.mubr.bf16.gmra.mxu0 %v9445
        %v10412 = vpop.f32.mrf.mxu0
        %v10413 = vadd.f32 %v10020, %v10412
        %v10414 = vpop.f32.mrf.mxu0
        %v10415 = vpop.f32.mrf.mxu0
        %v10416 = vadd.f32 %v10023, %v10415
        %v10417 = vpop.f32.mrf.mxu0
        %10418 = vmatprep.mubr.bf16.mxu0 %v9849
        %10419 = vmatmul.mubr.bf16.gmra.mxu0 %v9449
        %v10420 = vpop.f32.mrf.mxu0
        %v10421 = vadd.f32 %v10028, %v10420
        %v10422 = vpop.f32.mrf.mxu0
        %v10423 = vpop.f32.mrf.mxu0
        %v10424 = vadd.f32 %v10031, %v10423
        %v10425 = vpop.f32.mrf.mxu0
        %10426 = vmatprep.mubr.bf16.mxu0 %v9852
        %10427 = vmatmul.mubr.bf16.gmra.mxu0 %v9453
        %v10428 = vpop.f32.mrf.mxu0
        %v10429 = vadd.f32 %v10036, %v10428
        %v10430 = vpop.f32.mrf.mxu0
        %v10431 = vpop.f32.mrf.mxu0
        %v10432 = vadd.f32 %v10039, %v10431
        %v10433 = vpop.f32.mrf.mxu0
        %10434 = vmatprep.mubr.bf16.mxu0 %v9855
        %10435 = vmatmul.mubr.bf16.gmra.mxu0 %v9457
        %v10436 = vpop.f32.mrf.mxu0
        %v10437 = vadd.f32 %v10044, %v10436
        %v10438 = vpop.f32.mrf.mxu0
        %v10439 = vpop.f32.mrf.mxu0
        %v10440 = vadd.f32 %v10047, %v10439
        %v10441 = vpop.f32.mrf.mxu0
        %10442 = vmatprep.mubr.bf16.mxu0 %v9858
        %10443 = vmatmul.mubr.bf16.gmra.mxu0 %v9461
        %v10444 = vpop.f32.mrf.mxu0
        %v10445 = vadd.f32 %v10052, %v10444
        %v10446 = vpop.f32.mrf.mxu0
        %v10447 = vpop.f32.mrf.mxu0
        %v10448 = vadd.f32 %v10055, %v10447
        %v10449 = vpop.f32.mrf.mxu0
        %10450 = vmatprep.mubr.bf16.mxu0 %v9861
        %10451 = vmatmul.mubr.bf16.gmra.mxu0 %v9465
        %v10452 = vpop.f32.mrf.mxu0
        %v10453 = vadd.f32 %v10060, %v10452
        %v10454 = vpop.f32.mrf.mxu0
        %v10455 = vpop.f32.mrf.mxu0
        %v10456 = vadd.f32 %v10063, %v10455
        %v10457 = vpop.f32.mrf.mxu0
        %10458 = vmatprep.mubr.bf16.mxu0 %v9864
        %10459 = vmatmul.mubr.bf16.gmra.mxu0 %v9469
        %v10460 = vpop.f32.mrf.mxu0
        %v10461 = vadd.f32 %v10068, %v10460
        %v10462 = vpop.f32.mrf.mxu0
        %v10463 = vpop.f32.mrf.mxu0
        %v10464 = vadd.f32 %v10071, %v10463
        %v10465 = vpop.f32.mrf.mxu0
        %10466 = vmatprep.mubr.bf16.mxu0 %v9867
        %10467 = vmatmul.mubr.bf16.gmra.mxu0 %v9473
        %v10468 = vpop.f32.mrf.mxu0
        %v10469 = vadd.f32 %v10076, %v10468
        %v10470 = vpop.f32.mrf.mxu0
        %v10471 = vpop.f32.mrf.mxu0
        %v10472 = vadd.f32 %v10079, %v10471
        %v10473 = vpop.f32.mrf.mxu0
        %10474 = vmatprep.mubr.bf16.mxu0 %v9870
        %10475 = vmatmul.mubr.bf16.gmra.mxu0 %v9477
        %v10476 = vpop.f32.mrf.mxu0
        %v10477 = vadd.f32 %v10084, %v10476
        %v10478 = vpop.f32.mrf.mxu0
        %v10479 = vpop.f32.mrf.mxu0
        %v10480 = vadd.f32 %v10087, %v10479
        %v10481 = vpop.f32.mrf.mxu0
        %10482 = vmatprep.mubr.bf16.mxu0 %v9873
        %10483 = vmatmul.mubr.bf16.gmra.mxu0 %v9481
        %v10484 = vpop.f32.mrf.mxu0
        %v10485 = vadd.f32 %v10092, %v10484
        %v10486 = vpop.f32.mrf.mxu0
        %v10487 = vpop.f32.mrf.mxu0
        %v10488 = vadd.f32 %v10095, %v10487
        %v10489 = vpop.f32.mrf.mxu0
        %10490 = vmatprep.mubr.bf16.mxu0 %v9876
        %10491 = vmatmul.mubr.bf16.gmra.mxu0 %v9485
        %v10492 = vpop.f32.mrf.mxu0
        %v10493 = vadd.f32 %v10100, %v10492
        %v10494 = vpop.f32.mrf.mxu0
        %v10495 = vpop.f32.mrf.mxu0
        %v10496 = vadd.f32 %v10103, %v10495
        %v10497 = vpop.f32.mrf.mxu0
        %10498 = vmatprep.mubr.bf16.mxu0 %v9879
        %10499 = vmatmul.mubr.bf16.gmra.mxu0 %v9489
        %v10500 = vpop.f32.mrf.mxu0
        %v10501 = vadd.f32 %v10108, %v10500
        %v10502 = vpop.f32.mrf.mxu0
        %v10503 = vpop.f32.mrf.mxu0
        %v10504 = vadd.f32 %v10111, %v10503
        %v10505 = vpop.f32.mrf.mxu0
        %10506 = vmatprep.mubr.bf16.mxu0 %v9882
        %10507 = vmatmul.mubr.bf16.gmra.mxu0 %v9493
        %v10508 = vpop.f32.mrf.mxu0
        %v10509 = vadd.f32 %v10116, %v10508
        %v10510 = vpop.f32.mrf.mxu0
        %v10511 = vpop.f32.mrf.mxu0
        %v10512 = vadd.f32 %v10119, %v10511
        %v10513 = vpop.f32.mrf.mxu0
        %10514 = vmatprep.mubr.bf16.mxu0 %v9885
        %10515 = vmatmul.mubr.bf16.gmra.mxu0 %v9497
        %v10516 = vpop.f32.mrf.mxu0
        %v10517 = vadd.f32 %v10124, %v10516
        %v10518 = vpop.f32.mrf.mxu0
        %v10519 = vpop.f32.mrf.mxu0
        %v10520 = vadd.f32 %v10127, %v10519
        %v10521 = vpop.f32.mrf.mxu0
        %10522 = vmatprep.mubr.bf16.mxu0 %v9888
        %10523 = vmatmul.mubr.bf16.gmra.mxu0 %v9501
        %v10524 = vpop.f32.mrf.mxu0
        %v10525 = vadd.f32 %v10132, %v10524
        %v10526 = vpop.f32.mrf.mxu0
        %v10527 = vpop.f32.mrf.mxu0
        %v10528 = vadd.f32 %v10135, %v10527
        %v10529 = vpop.f32.mrf.mxu0
        %10530 = vmatprep.mubr.bf16.mxu0 %v9891
        %10531 = vmatmul.mubr.bf16.gmra.mxu0 %v9505
        %v10532 = vpop.f32.mrf.mxu0
        %v10533 = vadd.f32 %v10140, %v10532
        %v10534 = vpop.f32.mrf.mxu0
        %v10535 = vpop.f32.mrf.mxu0
        %v10536 = vadd.f32 %v10143, %v10535
        %v10537 = vpop.f32.mrf.mxu0
        %10538 = vmatprep.mubr.bf16.mxu0 %v9894
        %10539 = vmatmul.mubr.bf16.gmra.mxu0 %v9509
        %v10540 = vpop.f32.mrf.mxu0
        %v10541 = vadd.f32 %v10148, %v10540
        %v10542 = vpop.f32.mrf.mxu0
        %v10543 = vpop.f32.mrf.mxu0
        %v10544 = vadd.f32 %v10151, %v10543
        %v10545 = vpop.f32.mrf.mxu0
        %10546 = vmatprep.mubr.bf16.mxu0 %v9897
        %10547 = vmatmul.mubr.bf16.gmra.mxu0 %v9513
        %v10548 = vpop.f32.mrf.mxu0
        %v10549 = vadd.f32 %v10156, %v10548
        %v10550 = vpop.f32.mrf.mxu0
        %v10551 = vpop.f32.mrf.mxu0
        %v10552 = vadd.f32 %v10159, %v10551
        %v10553 = vpop.f32.mrf.mxu0
        %10554 = vmatprep.mubr.bf16.mxu0 %v9900
        %10555 = vmatmul.mubr.bf16.gmra.mxu0 %v9517
        %v10556 = vpop.f32.mrf.mxu0
        %v10557 = vadd.f32 %v10164, %v10556
        %v10558 = vpop.f32.mrf.mxu0
        %v10559 = vpop.f32.mrf.mxu0
        %v10560 = vadd.f32 %v10167, %v10559
        %v10561 = vpop.f32.mrf.mxu0
        %10562 = vmatprep.mubr.bf16.mxu0 %v9903
        %10563 = vmatmul.mubr.bf16.gmra.mxu0 %v9521
        %v10564 = vpop.f32.mrf.mxu0
        %v10565 = vadd.f32 %v10172, %v10564
        %v10566 = vpop.f32.mrf.mxu0
        %v10567 = vpop.f32.mrf.mxu0
        %v10568 = vadd.f32 %v10175, %v10567
        %v10569 = vpop.f32.mrf.mxu0
        %10570 = vmatprep.mubr.bf16.mxu0 %v9906
        %10571 = vmatmul.mubr.bf16.gmra.mxu0 %v9525
        %v10572 = vpop.f32.mrf.mxu0
        %v10573 = vadd.f32 %v10180, %v10572
        %v10574 = vpop.f32.mrf.mxu0
        %v10575 = vpop.f32.mrf.mxu0
        %v10576 = vadd.f32 %v10183, %v10575
        %v10577 = vpop.f32.mrf.mxu0
        %10578 = vmatprep.mubr.bf16.mxu0 %v9909
        %10579 = vmatmul.mubr.bf16.gmra.mxu0 %v9529
        %v10580 = vpop.f32.mrf.mxu0
        %v10581 = vadd.f32 %v10188, %v10580
        %v10582 = vpop.f32.mrf.mxu0
        %v10583 = vpop.f32.mrf.mxu0
        %v10584 = vadd.f32 %v10191, %v10583
        %v10585 = vpop.f32.mrf.mxu0
        %10586 = vmatprep.mubr.bf16.mxu0 %v9912
        %10587 = vmatmul.mubr.bf16.gmra.mxu0 %v9533
        %v10588 = vpop.f32.mrf.mxu0
        %v10589 = vadd.f32 %v10196, %v10588
        %v10590 = vpop.f32.mrf.mxu0
        %v10591 = vpop.f32.mrf.mxu0
        %v10592 = vadd.f32 %v10199, %v10591
        %v10593 = vpop.f32.mrf.mxu0
        %10594 = vmatprep.mubr.bf16.mxu0 %v9915
        %10595 = vmatmul.mubr.bf16.gmra.mxu0 %v9537
        %v10596 = vpop.f32.mrf.mxu0
        %v10597 = vadd.f32 %v10204, %v10596
        %v10598 = vpop.f32.mrf.mxu0
        %v10599 = vpop.f32.mrf.mxu0
        %v10600 = vadd.f32 %v10207, %v10599
        %v10601 = vpop.f32.mrf.mxu0
        %10602 = vmatprep.mubr.bf16.mxu0 %v9918
        %10603 = vmatmul.mubr.bf16.gmra.mxu0 %v9541
        %v10604 = vpop.f32.mrf.mxu0
        %v10605 = vadd.f32 %v10212, %v10604
        %v10606 = vpop.f32.mrf.mxu0
        %v10607 = vpop.f32.mrf.mxu0
        %v10608 = vadd.f32 %v10215, %v10607
        %v10609 = vpop.f32.mrf.mxu0
        %10610 = vmatprep.mubr.bf16.mxu0 %v9921
        %10611 = vmatmul.mubr.bf16.gmra.mxu0 %v9545
        %v10612 = vpop.f32.mrf.mxu0
        %v10613 = vadd.f32 %v10220, %v10612
        %v10614 = vpop.f32.mrf.mxu0
        %v10615 = vpop.f32.mrf.mxu0
        %v10616 = vadd.f32 %v10223, %v10615
        %v10617 = vpop.f32.mrf.mxu0
        %10618 = vmatprep.mubr.bf16.mxu0 %v9924
        %10619 = vmatmul.mubr.bf16.gmra.mxu0 %v9549
        %v10620 = vpop.f32.mrf.mxu0
        %v10621 = vadd.f32 %v10228, %v10620
        %v10622 = vpop.f32.mrf.mxu0
        %v10623 = vpop.f32.mrf.mxu0
        %v10624 = vadd.f32 %v10231, %v10623
        %v10625 = vpop.f32.mrf.mxu0
        %10626 = vmatprep.mubr.bf16.mxu0 %v9927
        %10627 = vmatmul.mubr.bf16.gmra.mxu0 %v9553
        %v10628 = vpop.f32.mrf.mxu0
        %v10629 = vadd.f32 %v10236, %v10628
        %v10630 = vpop.f32.mrf.mxu0
        %v10631 = vpop.f32.mrf.mxu0
        %v10632 = vadd.f32 %v10239, %v10631
        %v10633 = vpop.f32.mrf.mxu0
        %10634 = vmatprep.mubr.bf16.mxu0 %v9930
        %10635 = vmatmul.mubr.bf16.gmra.mxu0 %v9557
        %v10636 = vpop.f32.mrf.mxu0
        %v10637 = vadd.f32 %v10244, %v10636
        %v10638 = vpop.f32.mrf.mxu0
        %v10639 = vpop.f32.mrf.mxu0
        %v10640 = vadd.f32 %v10247, %v10639
        %v10641 = vpop.f32.mrf.mxu0
        %10642 = vmatprep.mubr.bf16.mxu0 %v9933
        %10643 = vmatmul.mubr.bf16.gmra.mxu0 %v9561
        %v10644 = vpop.f32.mrf.mxu0
        %v10645 = vadd.f32 %v10252, %v10644
        %v10646 = vpop.f32.mrf.mxu0
        %v10647 = vpop.f32.mrf.mxu0
        %v10648 = vadd.f32 %v10255, %v10647
        %v10649 = vpop.f32.mrf.mxu0
        %10650 = vmatprep.mubr.bf16.mxu0 %v9936
        %10651 = vmatmul.mubr.bf16.gmra.mxu0 %v9565
        %v10652 = vpop.f32.mrf.mxu0
        %v10653 = vadd.f32 %v10260, %v10652
        %v10654 = vpop.f32.mrf.mxu0
        %v10655 = vpop.f32.mrf.mxu0
        %v10656 = vadd.f32 %v10263, %v10655
        %v10657 = vpop.f32.mrf.mxu0
        %10658 = vmatprep.mubr.bf16.mxu0 %v9939
        %10659 = vmatmul.mubr.bf16.gmra.mxu0 %v9569
        %v10660 = vpop.f32.mrf.mxu0
        %v10661 = vadd.f32 %v10268, %v10660
        %v10662 = vpop.f32.mrf.mxu0
        %v10663 = vpop.f32.mrf.mxu0
        %v10664 = vadd.f32 %v10271, %v10663
        %v10665 = vpop.f32.mrf.mxu0
        %10666 = vmatprep.mubr.bf16.mxu0 %v9942
        %10667 = vmatmul.mubr.bf16.gmra.mxu0 %v9573
        %v10668 = vpop.f32.mrf.mxu0
        %v10669 = vadd.f32 %v10276, %v10668
        %v10670 = vpop.f32.mrf.mxu0
        %v10671 = vpop.f32.mrf.mxu0
        %v10672 = vadd.f32 %v10279, %v10671
        %v10673 = vpop.f32.mrf.mxu0
        %10674 = vmatprep.mubr.bf16.mxu0 %v9945
        %10675 = vmatmul.mubr.bf16.gmra.mxu0 %v9577
        %v10676 = vpop.f32.mrf.mxu0
        %v10677 = vadd.f32 %v10284, %v10676
        %v10678 = vpop.f32.mrf.mxu0
        %v10679 = vpop.f32.mrf.mxu0
        %v10680 = vadd.f32 %v10287, %v10679
        %v10681 = vpop.f32.mrf.mxu0
        %10682 = vmatprep.mubr.bf16.mxu0 %v9948
        %10683 = vmatmul.mubr.bf16.gmra.mxu0 %v9581
        %v10684 = vpop.f32.mrf.mxu0
        %v10685 = vadd.f32 %v10292, %v10684
        %v10686 = vpop.f32.mrf.mxu0
        %v10687 = vpop.f32.mrf.mxu0
        %v10688 = vadd.f32 %v10295, %v10687
        %v10689 = vpop.f32.mrf.mxu0
        %10690 = vmatprep.mubr.bf16.mxu0 %v9951
        %10691 = vmatmul.mubr.bf16.gmra.mxu0 %v9585
        %v10692 = vpop.f32.mrf.mxu0
        %v10693 = vadd.f32 %v10300, %v10692
        %v10694 = vpop.f32.mrf.mxu0
        %v10695 = vpop.f32.mrf.mxu0
        %v10696 = vadd.f32 %v10303, %v10695
        %v10697 = vpop.f32.mrf.mxu0
        %10698 = vmatprep.mubr.bf16.mxu0 %v9954
        %10699 = vmatmul.mubr.bf16.gmra.mxu0 %v9589
        %v10700 = vpop.f32.mrf.mxu0
        %v10701 = vadd.f32 %v10308, %v10700
        %v10702 = vpop.f32.mrf.mxu0
        %v10703 = vpop.f32.mrf.mxu0
        %v10704 = vadd.f32 %v10311, %v10703
        %v10705 = vpop.f32.mrf.mxu0
        %10706 = vmatprep.mubr.bf16.mxu0 %v9957
        %10707 = vmatmul.mubr.bf16.gmra.mxu0 %v9593
        %v10708 = vpop.f32.mrf.mxu0
        %v10709 = vadd.f32 %v10316, %v10708
        %v10710 = vpop.f32.mrf.mxu0
        %v10711 = vpop.f32.mrf.mxu0
        %v10712 = vadd.f32 %v10319, %v10711
        %v10713 = vpop.f32.mrf.mxu0
        %10714 = vmatprep.mubr.bf16.mxu0 %v9960
        %10715 = vmatmul.mubr.bf16.gmra.mxu0 %v9597
        %v10716 = vpop.f32.mrf.mxu0
        %v10717 = vadd.f32 %v10324, %v10716
        %v10718 = vpop.f32.mrf.mxu0
        %v10719 = vpop.f32.mrf.mxu0
        %v10720 = vadd.f32 %v10327, %v10719
        %v10721 = vpop.f32.mrf.mxu0
        %10722 = vmatprep.mubr.bf16.mxu0 %v9963
        %10723 = vmatmul.mubr.bf16.gmra.mxu0 %v9601
        %v10724 = vpop.f32.mrf.mxu0
        %v10725 = vadd.f32 %v10332, %v10724
        %v10726 = vpop.f32.mrf.mxu0
        %v10727 = vpop.f32.mrf.mxu0
        %v10728 = vadd.f32 %v10335, %v10727
        %v10729 = vpop.f32.mrf.mxu0
        %10730 = vmatprep.mubr.bf16.mxu0 %v9966
        %10731 = vmatmul.mubr.bf16.gmra.mxu0 %v9605
        %v10732 = vpop.f32.mrf.mxu0
        %v10733 = vadd.f32 %v10340, %v10732
        %v10734 = vpop.f32.mrf.mxu0
        %v10735 = vpop.f32.mrf.mxu0
        %v10736 = vadd.f32 %v10343, %v10735
        %v10737 = vpop.f32.mrf.mxu0
        %10738 = vmatprep.mubr.bf16.mxu0 %v9969
        %10739 = vmatmul.mubr.bf16.gmra.mxu0 %v9609
        %v10740 = vpop.f32.mrf.mxu0
        %v10741 = vadd.f32 %v10348, %v10740
        %v10742 = vpop.f32.mrf.mxu0
        %v10743 = vpop.f32.mrf.mxu0
        %v10744 = vadd.f32 %v10351, %v10743
        %v10745 = vpop.f32.mrf.mxu0
        %10746 = vmatprep.mubr.bf16.mxu0 %v9972
        %10747 = vmatmul.mubr.bf16.gmra.mxu0 %v9613
        %v10748 = vpop.f32.mrf.mxu0
        %v10749 = vadd.f32 %v10356, %v10748
        %v10750 = vpop.f32.mrf.mxu0
        %v10751 = vpop.f32.mrf.mxu0
        %v10752 = vadd.f32 %v10359, %v10751
        %v10753 = vpop.f32.mrf.mxu0
        %10754 = vmatprep.mubr.bf16.mxu0 %v9975
        %10755 = vmatmul.mubr.bf16.gmra.mxu0 %v9617
        %v10756 = vpop.f32.mrf.mxu0
        %v10757 = vadd.f32 %v10364, %v10756
        %v10758 = vpop.f32.mrf.mxu0
        %v10759 = vpop.f32.mrf.mxu0
        %v10760 = vadd.f32 %v10367, %v10759
        %v10761 = vpop.f32.mrf.mxu0
        %10762 = vdwg.mxu0
        %v10763 = vmax.f32 %v10405, 0.0
        %v10764 = vmax.f32 %v10408, 0.0
        %v10765 = vmax.f32 %v10413, 0.0
        %v10766 = vmax.f32 %v10416, 0.0
        %v10767 = vmax.f32 %v10421, 0.0
        %v10768 = vmax.f32 %v10424, 0.0
        %v10769 = vmax.f32 %v10429, 0.0
        %v10770 = vmax.f32 %v10432, 0.0
        %v10771 = vmax.f32 %v10437, 0.0
        %v10772 = vmax.f32 %v10440, 0.0
        %v10773 = vmax.f32 %v10445, 0.0
        %v10774 = vmax.f32 %v10448, 0.0
        %v10775 = vmax.f32 %v10453, 0.0
        %v10776 = vmax.f32 %v10456, 0.0
        %v10777 = vmax.f32 %v10461, 0.0
        %v10778 = vmax.f32 %v10464, 0.0
        %v10779 = vmax.f32 %v10469, 0.0
        %v10780 = vmax.f32 %v10472, 0.0
        %v10781 = vmax.f32 %v10477, 0.0
        %v10782 = vmax.f32 %v10480, 0.0
        %v10783 = vmax.f32 %v10485, 0.0
        %v10784 = vmax.f32 %v10488, 0.0
        %v10785 = vmax.f32 %v10493, 0.0
        %v10786 = vmax.f32 %v10496, 0.0
        %v10787 = vmax.f32 %v10501, 0.0
        %v10788 = vmax.f32 %v10504, 0.0
        %v10789 = vmax.f32 %v10509, 0.0
        %v10790 = vmax.f32 %v10512, 0.0
        %v10791 = vmax.f32 %v10517, 0.0
        %v10792 = vmax.f32 %v10520, 0.0
        %v10793 = vmax.f32 %v10525, 0.0
        %v10794 = vmax.f32 %v10528, 0.0
        %v10795 = vmax.f32 %v10533, 0.0
        %v10796 = vmax.f32 %v10536, 0.0
        %v10797 = vmax.f32 %v10541, 0.0
        %v10798 = vmax.f32 %v10544, 0.0
        %v10799 = vmax.f32 %v10549, 0.0
        %v10800 = vmax.f32 %v10552, 0.0
        %v10801 = vmax.f32 %v10557, 0.0
        %v10802 = vmax.f32 %v10560, 0.0
        %v10803 = vmax.f32 %v10565, 0.0
        %v10804 = vmax.f32 %v10568, 0.0
        %v10805 = vmax.f32 %v10573, 0.0
        %v10806 = vmax.f32 %v10576, 0.0
        %v10807 = vmax.f32 %v10581, 0.0
        %v10808 = vmax.f32 %v10584, 0.0
        %v10809 = vmax.f32 %v10589, 0.0
        %v10810 = vmax.f32 %v10592, 0.0
        %v10811 = vmax.f32 %v10597, 0.0
        %v10812 = vmax.f32 %v10600, 0.0
        %v10813 = vmax.f32 %v10605, 0.0
        %v10814 = vmax.f32 %v10608, 0.0
        %v10815 = vmax.f32 %v10613, 0.0
        %v10816 = vmax.f32 %v10616, 0.0
        %v10817 = vmax.f32 %v10621, 0.0
        %v10818 = vmax.f32 %v10624, 0.0
        %v10819 = vmax.f32 %v10629, 0.0
        %v10820 = vmax.f32 %v10632, 0.0
        %v10821 = vmax.f32 %v10637, 0.0
        %v10822 = vmax.f32 %v10640, 0.0
        %v10823 = vmax.f32 %v10645, 0.0
        %v10824 = vmax.f32 %v10648, 0.0
        %v10825 = vmax.f32 %v10653, 0.0
        %v10826 = vmax.f32 %v10656, 0.0
        %v10827 = vmax.f32 %v10661, 0.0
        %v10828 = vmax.f32 %v10664, 0.0
        %v10829 = vmax.f32 %v10669, 0.0
        %v10830 = vmax.f32 %v10672, 0.0
        %v10831 = vmax.f32 %v10677, 0.0
        %v10832 = vmax.f32 %v10680, 0.0
        %v10833 = vmax.f32 %v10685, 0.0
        %v10834 = vmax.f32 %v10688, 0.0
        %v10835 = vmax.f32 %v10693, 0.0
        %v10836 = vmax.f32 %v10696, 0.0
        %v10837 = vmax.f32 %v10701, 0.0
        %v10838 = vmax.f32 %v10704, 0.0
        %v10839 = vmax.f32 %v10709, 0.0
        %v10840 = vmax.f32 %v10712, 0.0
        %v10841 = vmax.f32 %v10717, 0.0
        %v10842 = vmax.f32 %v10720, 0.0
        %v10843 = vmax.f32 %v10725, 0.0
        %v10844 = vmax.f32 %v10728, 0.0
        %v10845 = vmax.f32 %v10733, 0.0
        %v10846 = vmax.f32 %v10736, 0.0
        %v10847 = vmax.f32 %v10741, 0.0
        %v10848 = vmax.f32 %v10744, 0.0
        %v10849 = vmax.f32 %v10749, 0.0
        %v10850 = vmax.f32 %v10752, 0.0
        %v10851 = vmax.f32 %v10757, 0.0
        %v10852 = vmax.f32 %v10760, 0.0
        %v10853 = vsub.f32 1.0, %v385
        %v10854 = vsub.f32 1.0, %v386
        %v10855 = vsub.f32 1.0, %v387
        %v10856 = vsub.f32 1.0, %v388
        %v10857 = vsub.f32 1.0, %v389
        %v10858 = vsub.f32 1.0, %v390
        %v10859 = vsub.f32 1.0, %v391
        %v10860 = vsub.f32 1.0, %v392
        %v10861 = vsub.f32 1.0, %v393
        %v10862 = vsub.f32 1.0, %v394
        %v10863 = vsub.f32 1.0, %v395
        %v10864 = vsub.f32 1.0, %v396
        %v10865 = vsub.f32 1.0, %v397
        %v10866 = vsub.f32 1.0, %v398
        %v10867 = vsub.f32 1.0, %v399
        %v10868 = vsub.f32 1.0, %v400
        %v10869 = vsub.f32 1.0, %v401
        %v10870 = vsub.f32 1.0, %v402
        %v10871 = vsub.f32 1.0, %v403
        %v10872 = vsub.f32 1.0, %v404
        %v10873 = vsub.f32 1.0, %v405
        %v10874 = vsub.f32 1.0, %v406
        %v10875 = vsub.f32 1.0, %v407
        %v10876 = vsub.f32 1.0, %v408
        %v10877 = vsub.f32 1.0, %v409
        %v10878 = vsub.f32 1.0, %v410
        %v10879 = vsub.f32 1.0, %v411
        %v10880 = vsub.f32 1.0, %v412
        %v10881 = vsub.f32 1.0, %v413
        %v10882 = vsub.f32 1.0, %v414
        %v10883 = vsub.f32 1.0, %v415
        %v10884 = vsub.f32 1.0, %v416
        %v10885 = vsub.f32 1.0, %v417
        %v10886 = vsub.f32 1.0, %v418
        %v10887 = vsub.f32 1.0, %v419
        %v10888 = vsub.f32 1.0, %v420
        %v10889 = vsub.f32 1.0, %v421
        %v10890 = vsub.f32 1.0, %v422
        %v10891 = vsub.f32 1.0, %v423
        %v10892 = vsub.f32 1.0, %v424
        %v10893 = vsub.f32 1.0, %v425
        %v10894 = vsub.f32 1.0, %v426
        %v10895 = vsub.f32 1.0, %v427
        %v10896 = vsub.f32 1.0, %v428
        %v10897 = vsub.f32 1.0, %v429
        %v10898 = vsub.f32 1.0, %v430
        %v10899 = vsub.f32 1.0, %v431
        %v10900 = vsub.f32 1.0, %v432
        %v10901 = vsub.f32 1.0, %v433
        %v10902 = vsub.f32 1.0, %v434
        %v10903 = vsub.f32 1.0, %v435
        %v10904 = vsub.f32 1.0, %v436
        %v10905 = vsub.f32 1.0, %v437
        %v10906 = vsub.f32 1.0, %v438
        %v10907 = vsub.f32 1.0, %v439
        %v10908 = vsub.f32 1.0, %v440
        %v10909 = vsub.f32 1.0, %v441
        %v10910 = vsub.f32 1.0, %v442
        %v10911 = vsub.f32 1.0, %v443
        %v10912 = vsub.f32 1.0, %v444
        %v10913 = vsub.f32 1.0, %v445
        %v10914 = vsub.f32 1.0, %v446
        %v10915 = vsub.f32 1.0, %v447
        %v10916 = vsub.f32 1.0, %v448
        %v10917 = vsub.f32 1.0, %v449
        %v10918 = vsub.f32 1.0, %v450
        %v10919 = vsub.f32 1.0, %v451
        %v10920 = vsub.f32 1.0, %v452
        %v10921 = vsub.f32 1.0, %v453
        %v10922 = vsub.f32 1.0, %v454
        %v10923 = vsub.f32 1.0, %v455
        %v10924 = vsub.f32 1.0, %v456
        %v10925 = vsub.f32 1.0, %v457
        %v10926 = vsub.f32 1.0, %v458
        %v10927 = vsub.f32 1.0, %v459
        %v10928 = vsub.f32 1.0, %v460
        %v10929 = vsub.f32 1.0, %v461
        %v10930 = vsub.f32 1.0, %v462
        %v10931 = vsub.f32 1.0, %v463
        %v10932 = vsub.f32 1.0, %v464
        %v10933 = vsub.f32 1.0, %v465
        %v10934 = vsub.f32 1.0, %v466
        %v10935 = vsub.f32 1.0, %v467
        %v10936 = vsub.f32 1.0, %v468
        %v10937 = vsub.f32 1.0, %v469
        %v10938 = vsub.f32 1.0, %v470
        %v10939 = vsub.f32 1.0, %v471
        %v10940 = vsub.f32 1.0, %v472
        %v10941 = vsub.f32 1.0, %v473
        %v10942 = vsub.f32 1.0, %v474
        %v10943 = vmul.f32 %v10853, 1e+30
        %v10944 = vmul.f32 %v10854, 1e+30
        %v10945 = vmul.f32 %v10855, 1e+30
        %v10946 = vmul.f32 %v10856, 1e+30
        %v10947 = vmul.f32 %v10857, 1e+30
        %v10948 = vmul.f32 %v10858, 1e+30
        %v10949 = vmul.f32 %v10859, 1e+30
        %v10950 = vmul.f32 %v10860, 1e+30
        %v10951 = vmul.f32 %v10861, 1e+30
        %v10952 = vmul.f32 %v10862, 1e+30
        %v10953 = vmul.f32 %v10863, 1e+30
        %v10954 = vmul.f32 %v10864, 1e+30
        %v10955 = vmul.f32 %v10865, 1e+30
        %v10956 = vmul.f32 %v10866, 1e+30
        %v10957 = vmul.f32 %v10867, 1e+30
        %v10958 = vmul.f32 %v10868, 1e+30
        %v10959 = vmul.f32 %v10869, 1e+30
        %v10960 = vmul.f32 %v10870, 1e+30
        %v10961 = vmul.f32 %v10871, 1e+30
        %v10962 = vmul.f32 %v10872, 1e+30
        %v10963 = vmul.f32 %v10873, 1e+30
        %v10964 = vmul.f32 %v10874, 1e+30
        %v10965 = vmul.f32 %v10875, 1e+30
        %v10966 = vmul.f32 %v10876, 1e+30
        %v10967 = vmul.f32 %v10877, 1e+30
        %v10968 = vmul.f32 %v10878, 1e+30
        %v10969 = vmul.f32 %v10879, 1e+30
        %v10970 = vmul.f32 %v10880, 1e+30
        %v10971 = vmul.f32 %v10881, 1e+30
        %v10972 = vmul.f32 %v10882, 1e+30
        %v10973 = vmul.f32 %v10883, 1e+30
        %v10974 = vmul.f32 %v10884, 1e+30
        %v10975 = vmul.f32 %v10885, 1e+30
        %v10976 = vmul.f32 %v10886, 1e+30
        %v10977 = vmul.f32 %v10887, 1e+30
        %v10978 = vmul.f32 %v10888, 1e+30
        %v10979 = vmul.f32 %v10889, 1e+30
        %v10980 = vmul.f32 %v10890, 1e+30
        %v10981 = vmul.f32 %v10891, 1e+30
        %v10982 = vmul.f32 %v10892, 1e+30
        %v10983 = vmul.f32 %v10893, 1e+30
        %v10984 = vmul.f32 %v10894, 1e+30
        %v10985 = vmul.f32 %v10895, 1e+30
        %v10986 = vmul.f32 %v10896, 1e+30
        %v10987 = vmul.f32 %v10897, 1e+30
        %v10988 = vmul.f32 %v10898, 1e+30
        %v10989 = vmul.f32 %v10899, 1e+30
        %v10990 = vmul.f32 %v10900, 1e+30
        %v10991 = vmul.f32 %v10901, 1e+30
        %v10992 = vmul.f32 %v10902, 1e+30
        %v10993 = vmul.f32 %v10903, 1e+30
        %v10994 = vmul.f32 %v10904, 1e+30
        %v10995 = vmul.f32 %v10905, 1e+30
        %v10996 = vmul.f32 %v10906, 1e+30
        %v10997 = vmul.f32 %v10907, 1e+30
        %v10998 = vmul.f32 %v10908, 1e+30
        %v10999 = vmul.f32 %v10909, 1e+30
        %v11000 = vmul.f32 %v10910, 1e+30
        %v11001 = vmul.f32 %v10911, 1e+30
        %v11002 = vmul.f32 %v10912, 1e+30
        %v11003 = vmul.f32 %v10913, 1e+30
        %v11004 = vmul.f32 %v10914, 1e+30
        %v11005 = vmul.f32 %v10915, 1e+30
        %v11006 = vmul.f32 %v10916, 1e+30
        %v11007 = vmul.f32 %v10917, 1e+30
        %v11008 = vmul.f32 %v10918, 1e+30
        %v11009 = vmul.f32 %v10919, 1e+30
        %v11010 = vmul.f32 %v10920, 1e+30
        %v11011 = vmul.f32 %v10921, 1e+30
        %v11012 = vmul.f32 %v10922, 1e+30
        %v11013 = vmul.f32 %v10923, 1e+30
        %v11014 = vmul.f32 %v10924, 1e+30
        %v11015 = vmul.f32 %v10925, 1e+30
        %v11016 = vmul.f32 %v10926, 1e+30
        %v11017 = vmul.f32 %v10927, 1e+30
        %v11018 = vmul.f32 %v10928, 1e+30
        %v11019 = vmul.f32 %v10929, 1e+30
        %v11020 = vmul.f32 %v10930, 1e+30
        %v11021 = vmul.f32 %v10931, 1e+30
        %v11022 = vmul.f32 %v10932, 1e+30
        %v11023 = vmul.f32 %v10933, 1e+30
        %v11024 = vmul.f32 %v10934, 1e+30
        %v11025 = vmul.f32 %v10935, 1e+30
        %v11026 = vmul.f32 %v10936, 1e+30
        %v11027 = vmul.f32 %v10937, 1e+30
        %v11028 = vmul.f32 %v10938, 1e+30
        %v11029 = vmul.f32 %v10939, 1e+30
        %v11030 = vmul.f32 %v10940, 1e+30
        %v11031 = vmul.f32 %v10941, 1e+30
        %v11032 = vmul.f32 %v10942, 1e+30
        %11034 = vset.pattern.permute.xlu0 0
        %11035 = vperm.xlu0 %11034, %v10943
        %v11036 = vpop.permute.xlu0 %11035
        %11039 = vset.pattern.permute.xlu0 0
        %11040 = vperm.xlu0 %11039, %v10944
        %v11041 = vpop.permute.xlu0 %11040
        %11044 = vset.pattern.permute.xlu0 0
        %11045 = vperm.xlu0 %11044, %v10945
        %v11046 = vpop.permute.xlu0 %11045
        %11049 = vset.pattern.permute.xlu0 0
        %11050 = vperm.xlu0 %11049, %v10946
        %v11051 = vpop.permute.xlu0 %11050
        %11054 = vset.pattern.permute.xlu0 0
        %11055 = vperm.xlu0 %11054, %v10947
        %v11056 = vpop.permute.xlu0 %11055
        %11059 = vset.pattern.permute.xlu0 0
        %11060 = vperm.xlu0 %11059, %v10948
        %v11061 = vpop.permute.xlu0 %11060
        %11064 = vset.pattern.permute.xlu0 0
        %11065 = vperm.xlu0 %11064, %v10949
        %v11066 = vpop.permute.xlu0 %11065
        %11069 = vset.pattern.permute.xlu0 0
        %11070 = vperm.xlu0 %11069, %v10950
        %v11071 = vpop.permute.xlu0 %11070
        %11074 = vset.pattern.permute.xlu0 0
        %11075 = vperm.xlu0 %11074, %v10951
        %v11076 = vpop.permute.xlu0 %11075
        %11079 = vset.pattern.permute.xlu0 0
        %11080 = vperm.xlu0 %11079, %v10952
        %v11081 = vpop.permute.xlu0 %11080
        %11084 = vset.pattern.permute.xlu0 0
        %11085 = vperm.xlu0 %11084, %v10953
        %v11086 = vpop.permute.xlu0 %11085
        %11089 = vset.pattern.permute.xlu0 0
        %11090 = vperm.xlu0 %11089, %v10954
        %v11091 = vpop.permute.xlu0 %11090
        %11094 = vset.pattern.permute.xlu0 0
        %11095 = vperm.xlu0 %11094, %v10955
        %v11096 = vpop.permute.xlu0 %11095
        %11099 = vset.pattern.permute.xlu0 0
        %11100 = vperm.xlu0 %11099, %v10956
        %v11101 = vpop.permute.xlu0 %11100
        %11104 = vset.pattern.permute.xlu0 0
        %11105 = vperm.xlu0 %11104, %v10957
        %v11106 = vpop.permute.xlu0 %11105
        %11109 = vset.pattern.permute.xlu0 0
        %11110 = vperm.xlu0 %11109, %v10958
        %v11111 = vpop.permute.xlu0 %11110
        %11114 = vset.pattern.permute.xlu0 0
        %11115 = vperm.xlu0 %11114, %v10959
        %v11116 = vpop.permute.xlu0 %11115
        %11119 = vset.pattern.permute.xlu0 0
        %11120 = vperm.xlu0 %11119, %v10960
        %v11121 = vpop.permute.xlu0 %11120
        %11124 = vset.pattern.permute.xlu0 0
        %11125 = vperm.xlu0 %11124, %v10961
        %v11126 = vpop.permute.xlu0 %11125
        %11129 = vset.pattern.permute.xlu0 0
        %11130 = vperm.xlu0 %11129, %v10962
        %v11131 = vpop.permute.xlu0 %11130
        %11134 = vset.pattern.permute.xlu0 0
        %11135 = vperm.xlu0 %11134, %v10963
        %v11136 = vpop.permute.xlu0 %11135
        %11139 = vset.pattern.permute.xlu0 0
        %11140 = vperm.xlu0 %11139, %v10964
        %v11141 = vpop.permute.xlu0 %11140
        %11144 = vset.pattern.permute.xlu0 0
        %11145 = vperm.xlu0 %11144, %v10965
        %v11146 = vpop.permute.xlu0 %11145
        %11149 = vset.pattern.permute.xlu0 0
        %11150 = vperm.xlu0 %11149, %v10966
        %v11151 = vpop.permute.xlu0 %11150
        %11154 = vset.pattern.permute.xlu0 0
        %11155 = vperm.xlu0 %11154, %v10967
        %v11156 = vpop.permute.xlu0 %11155
        %11159 = vset.pattern.permute.xlu0 0
        %11160 = vperm.xlu0 %11159, %v10968
        %v11161 = vpop.permute.xlu0 %11160
        %11164 = vset.pattern.permute.xlu0 0
        %11165 = vperm.xlu0 %11164, %v10969
        %v11166 = vpop.permute.xlu0 %11165
        %11169 = vset.pattern.permute.xlu0 0
        %11170 = vperm.xlu0 %11169, %v10970
        %v11171 = vpop.permute.xlu0 %11170
        %11174 = vset.pattern.permute.xlu0 0
        %11175 = vperm.xlu0 %11174, %v10971
        %v11176 = vpop.permute.xlu0 %11175
        %11179 = vset.pattern.permute.xlu0 0
        %11180 = vperm.xlu0 %11179, %v10972
        %v11181 = vpop.permute.xlu0 %11180
        %11184 = vset.pattern.permute.xlu0 0
        %11185 = vperm.xlu0 %11184, %v10973
        %v11186 = vpop.permute.xlu0 %11185
        %11189 = vset.pattern.permute.xlu0 0
        %11190 = vperm.xlu0 %11189, %v10974
        %v11191 = vpop.permute.xlu0 %11190
        %11194 = vset.pattern.permute.xlu0 0
        %11195 = vperm.xlu0 %11194, %v10975
        %v11196 = vpop.permute.xlu0 %11195
        %11199 = vset.pattern.permute.xlu0 0
        %11200 = vperm.xlu0 %11199, %v10976
        %v11201 = vpop.permute.xlu0 %11200
        %11204 = vset.pattern.permute.xlu0 0
        %11205 = vperm.xlu0 %11204, %v10977
        %v11206 = vpop.permute.xlu0 %11205
        %11209 = vset.pattern.permute.xlu0 0
        %11210 = vperm.xlu0 %11209, %v10978
        %v11211 = vpop.permute.xlu0 %11210
        %11214 = vset.pattern.permute.xlu0 0
        %11215 = vperm.xlu0 %11214, %v10979
        %v11216 = vpop.permute.xlu0 %11215
        %11219 = vset.pattern.permute.xlu0 0
        %11220 = vperm.xlu0 %11219, %v10980
        %v11221 = vpop.permute.xlu0 %11220
        %11224 = vset.pattern.permute.xlu0 0
        %11225 = vperm.xlu0 %11224, %v10981
        %v11226 = vpop.permute.xlu0 %11225
        %11229 = vset.pattern.permute.xlu0 0
        %11230 = vperm.xlu0 %11229, %v10982
        %v11231 = vpop.permute.xlu0 %11230
        %11234 = vset.pattern.permute.xlu0 0
        %11235 = vperm.xlu0 %11234, %v10983
        %v11236 = vpop.permute.xlu0 %11235
        %11239 = vset.pattern.permute.xlu0 0
        %11240 = vperm.xlu0 %11239, %v10984
        %v11241 = vpop.permute.xlu0 %11240
        %11244 = vset.pattern.permute.xlu0 0
        %11245 = vperm.xlu0 %11244, %v10985
        %v11246 = vpop.permute.xlu0 %11245
        %11249 = vset.pattern.permute.xlu0 0
        %11250 = vperm.xlu0 %11249, %v10986
        %v11251 = vpop.permute.xlu0 %11250
        %11254 = vset.pattern.permute.xlu0 0
        %11255 = vperm.xlu0 %11254, %v10987
        %v11256 = vpop.permute.xlu0 %11255
        %11259 = vset.pattern.permute.xlu0 0
        %11260 = vperm.xlu0 %11259, %v10988
        %v11261 = vpop.permute.xlu0 %11260
        %11264 = vset.pattern.permute.xlu0 0
        %11265 = vperm.xlu0 %11264, %v10989
        %v11266 = vpop.permute.xlu0 %11265
        %11269 = vset.pattern.permute.xlu0 0
        %11270 = vperm.xlu0 %11269, %v10990
        %v11271 = vpop.permute.xlu0 %11270
        %11274 = vset.pattern.permute.xlu0 0
        %11275 = vperm.xlu0 %11274, %v10991
        %v11276 = vpop.permute.xlu0 %11275
        %11279 = vset.pattern.permute.xlu0 0
        %11280 = vperm.xlu0 %11279, %v10992
        %v11281 = vpop.permute.xlu0 %11280
        %11284 = vset.pattern.permute.xlu0 0
        %11285 = vperm.xlu0 %11284, %v10993
        %v11286 = vpop.permute.xlu0 %11285
        %11289 = vset.pattern.permute.xlu0 0
        %11290 = vperm.xlu0 %11289, %v10994
        %v11291 = vpop.permute.xlu0 %11290
        %11294 = vset.pattern.permute.xlu0 0
        %11295 = vperm.xlu0 %11294, %v10995
        %v11296 = vpop.permute.xlu0 %11295
        %11299 = vset.pattern.permute.xlu0 0
        %11300 = vperm.xlu0 %11299, %v10996
        %v11301 = vpop.permute.xlu0 %11300
        %11304 = vset.pattern.permute.xlu0 0
        %11305 = vperm.xlu0 %11304, %v10997
        %v11306 = vpop.permute.xlu0 %11305
        %11309 = vset.pattern.permute.xlu0 0
        %11310 = vperm.xlu0 %11309, %v10998
        %v11311 = vpop.permute.xlu0 %11310
        %11314 = vset.pattern.permute.xlu0 0
        %11315 = vperm.xlu0 %11314, %v10999
        %v11316 = vpop.permute.xlu0 %11315
        %11319 = vset.pattern.permute.xlu0 0
        %11320 = vperm.xlu0 %11319, %v11000
        %v11321 = vpop.permute.xlu0 %11320
        %11324 = vset.pattern.permute.xlu0 0
        %11325 = vperm.xlu0 %11324, %v11001
        %v11326 = vpop.permute.xlu0 %11325
        %11329 = vset.pattern.permute.xlu0 0
        %11330 = vperm.xlu0 %11329, %v11002
        %v11331 = vpop.permute.xlu0 %11330
        %11334 = vset.pattern.permute.xlu0 0
        %11335 = vperm.xlu0 %11334, %v11003
        %v11336 = vpop.permute.xlu0 %11335
        %11339 = vset.pattern.permute.xlu0 0
        %11340 = vperm.xlu0 %11339, %v11004
        %v11341 = vpop.permute.xlu0 %11340
        %11344 = vset.pattern.permute.xlu0 0
        %11345 = vperm.xlu0 %11344, %v11005
        %v11346 = vpop.permute.xlu0 %11345
        %11349 = vset.pattern.permute.xlu0 0
        %11350 = vperm.xlu0 %11349, %v11006
        %v11351 = vpop.permute.xlu0 %11350
        %11354 = vset.pattern.permute.xlu0 0
        %11355 = vperm.xlu0 %11354, %v11007
        %v11356 = vpop.permute.xlu0 %11355
        %11359 = vset.pattern.permute.xlu0 0
        %11360 = vperm.xlu0 %11359, %v11008
        %v11361 = vpop.permute.xlu0 %11360
        %11364 = vset.pattern.permute.xlu0 0
        %11365 = vperm.xlu0 %11364, %v11009
        %v11366 = vpop.permute.xlu0 %11365
        %11369 = vset.pattern.permute.xlu0 0
        %11370 = vperm.xlu0 %11369, %v11010
        %v11371 = vpop.permute.xlu0 %11370
        %11374 = vset.pattern.permute.xlu0 0
        %11375 = vperm.xlu0 %11374, %v11011
        %v11376 = vpop.permute.xlu0 %11375
        %11379 = vset.pattern.permute.xlu0 0
        %11380 = vperm.xlu0 %11379, %v11012
        %v11381 = vpop.permute.xlu0 %11380
        %11384 = vset.pattern.permute.xlu0 0
        %11385 = vperm.xlu0 %11384, %v11013
        %v11386 = vpop.permute.xlu0 %11385
        %11389 = vset.pattern.permute.xlu0 0
        %11390 = vperm.xlu0 %11389, %v11014
        %v11391 = vpop.permute.xlu0 %11390
        %11394 = vset.pattern.permute.xlu0 0
        %11395 = vperm.xlu0 %11394, %v11015
        %v11396 = vpop.permute.xlu0 %11395
        %11399 = vset.pattern.permute.xlu0 0
        %11400 = vperm.xlu0 %11399, %v11016
        %v11401 = vpop.permute.xlu0 %11400
        %11404 = vset.pattern.permute.xlu0 0
        %11405 = vperm.xlu0 %11404, %v11017
        %v11406 = vpop.permute.xlu0 %11405
        %11409 = vset.pattern.permute.xlu0 0
        %11410 = vperm.xlu0 %11409, %v11018
        %v11411 = vpop.permute.xlu0 %11410
        %11414 = vset.pattern.permute.xlu0 0
        %11415 = vperm.xlu0 %11414, %v11019
        %v11416 = vpop.permute.xlu0 %11415
        %11419 = vset.pattern.permute.xlu0 0
        %11420 = vperm.xlu0 %11419, %v11020
        %v11421 = vpop.permute.xlu0 %11420
        %11424 = vset.pattern.permute.xlu0 0
        %11425 = vperm.xlu0 %11424, %v11021
        %v11426 = vpop.permute.xlu0 %11425
        %11429 = vset.pattern.permute.xlu0 0
        %11430 = vperm.xlu0 %11429, %v11022
        %v11431 = vpop.permute.xlu0 %11430
        %11434 = vset.pattern.permute.xlu0 0
        %11435 = vperm.xlu0 %11434, %v11023
        %v11436 = vpop.permute.xlu0 %11435
        %11439 = vset.pattern.permute.xlu0 0
        %11440 = vperm.xlu0 %11439, %v11024
        %v11441 = vpop.permute.xlu0 %11440
        %11444 = vset.pattern.permute.xlu0 0
        %11445 = vperm.xlu0 %11444, %v11025
        %v11446 = vpop.permute.xlu0 %11445
        %11449 = vset.pattern.permute.xlu0 0
        %11450 = vperm.xlu0 %11449, %v11026
        %v11451 = vpop.permute.xlu0 %11450
        %11454 = vset.pattern.permute.xlu0 0
        %11455 = vperm.xlu0 %11454, %v11027
        %v11456 = vpop.permute.xlu0 %11455
        %11459 = vset.pattern.permute.xlu0 0
        %11460 = vperm.xlu0 %11459, %v11028
        %v11461 = vpop.permute.xlu0 %11460
        %11464 = vset.pattern.permute.xlu0 0
        %11465 = vperm.xlu0 %11464, %v11029
        %v11466 = vpop.permute.xlu0 %11465
        %11469 = vset.pattern.permute.xlu0 0
        %11470 = vperm.xlu0 %11469, %v11030
        %v11471 = vpop.permute.xlu0 %11470
        %11474 = vset.pattern.permute.xlu0 0
        %11475 = vperm.xlu0 %11474, %v11031
        %v11476 = vpop.permute.xlu0 %11475
        %11479 = vset.pattern.permute.xlu0 0
        %11480 = vperm.xlu0 %11479, %v11032
        %v11481 = vpop.permute.xlu0 %11480
        %v11483 = vsub.f32 %v10763, %v11036
        %v11484 = vsub.f32 %v10764, %v11041
        %v11485 = vsub.f32 %v10765, %v11046
        %v11486 = vsub.f32 %v10766, %v11051
        %v11487 = vsub.f32 %v10767, %v11056
        %v11488 = vsub.f32 %v10768, %v11061
        %v11489 = vsub.f32 %v10769, %v11066
        %v11490 = vsub.f32 %v10770, %v11071
        %v11491 = vsub.f32 %v10771, %v11076
        %v11492 = vsub.f32 %v10772, %v11081
        %v11493 = vsub.f32 %v10773, %v11086
        %v11494 = vsub.f32 %v10774, %v11091
        %v11495 = vsub.f32 %v10775, %v11096
        %v11496 = vsub.f32 %v10776, %v11101
        %v11497 = vsub.f32 %v10777, %v11106
        %v11498 = vsub.f32 %v10778, %v11111
        %v11499 = vsub.f32 %v10779, %v11116
        %v11500 = vsub.f32 %v10780, %v11121
        %v11501 = vsub.f32 %v10781, %v11126
        %v11502 = vsub.f32 %v10782, %v11131
        %v11503 = vsub.f32 %v10783, %v11136
        %v11504 = vsub.f32 %v10784, %v11141
        %v11505 = vsub.f32 %v10785, %v11146
        %v11506 = vsub.f32 %v10786, %v11151
        %v11507 = vsub.f32 %v10787, %v11156
        %v11508 = vsub.f32 %v10788, %v11161
        %v11509 = vsub.f32 %v10789, %v11166
        %v11510 = vsub.f32 %v10790, %v11171
        %v11511 = vsub.f32 %v10791, %v11176
        %v11512 = vsub.f32 %v10792, %v11181
        %v11513 = vsub.f32 %v10793, %v11186
        %v11514 = vsub.f32 %v10794, %v11191
        %v11515 = vsub.f32 %v10795, %v11196
        %v11516 = vsub.f32 %v10796, %v11201
        %v11517 = vsub.f32 %v10797, %v11206
        %v11518 = vsub.f32 %v10798, %v11211
        %v11519 = vsub.f32 %v10799, %v11216
        %v11520 = vsub.f32 %v10800, %v11221
        %v11521 = vsub.f32 %v10801, %v11226
        %v11522 = vsub.f32 %v10802, %v11231
        %v11523 = vsub.f32 %v10803, %v11236
        %v11524 = vsub.f32 %v10804, %v11241
        %v11525 = vsub.f32 %v10805, %v11246
        %v11526 = vsub.f32 %v10806, %v11251
        %v11527 = vsub.f32 %v10807, %v11256
        %v11528 = vsub.f32 %v10808, %v11261
        %v11529 = vsub.f32 %v10809, %v11266
        %v11530 = vsub.f32 %v10810, %v11271
        %v11531 = vsub.f32 %v10811, %v11276
        %v11532 = vsub.f32 %v10812, %v11281
        %v11533 = vsub.f32 %v10813, %v11286
        %v11534 = vsub.f32 %v10814, %v11291
        %v11535 = vsub.f32 %v10815, %v11296
        %v11536 = vsub.f32 %v10816, %v11301
        %v11537 = vsub.f32 %v10817, %v11306
        %v11538 = vsub.f32 %v10818, %v11311
        %v11539 = vsub.f32 %v10819, %v11316
        %v11540 = vsub.f32 %v10820, %v11321
        %v11541 = vsub.f32 %v10821, %v11326
        %v11542 = vsub.f32 %v10822, %v11331
        %v11543 = vsub.f32 %v10823, %v11336
        %v11544 = vsub.f32 %v10824, %v11341
        %v11545 = vsub.f32 %v10825, %v11346
        %v11546 = vsub.f32 %v10826, %v11351
        %v11547 = vsub.f32 %v10827, %v11356
        %v11548 = vsub.f32 %v10828, %v11361
        %v11549 = vsub.f32 %v10829, %v11366
        %v11550 = vsub.f32 %v10830, %v11371
        %v11551 = vsub.f32 %v10831, %v11376
        %v11552 = vsub.f32 %v10832, %v11381
        %v11553 = vsub.f32 %v10833, %v11386
        %v11554 = vsub.f32 %v10834, %v11391
        %v11555 = vsub.f32 %v10835, %v11396
        %v11556 = vsub.f32 %v10836, %v11401
        %v11557 = vsub.f32 %v10837, %v11406
        %v11558 = vsub.f32 %v10838, %v11411
        %v11559 = vsub.f32 %v10839, %v11416
        %v11560 = vsub.f32 %v10840, %v11421
        %v11561 = vsub.f32 %v10841, %v11426
        %v11562 = vsub.f32 %v10842, %v11431
        %v11563 = vsub.f32 %v10843, %v11436
        %v11564 = vsub.f32 %v10844, %v11441
        %v11565 = vsub.f32 %v10845, %v11446
        %v11566 = vsub.f32 %v10846, %v11451
        %v11567 = vsub.f32 %v10847, %v11456
        %v11568 = vsub.f32 %v10848, %v11461
        %v11569 = vsub.f32 %v10849, %v11466
        %v11570 = vsub.f32 %v10850, %v11471
        %v11571 = vsub.f32 %v10851, %v11476
        %v11572 = vsub.f32 %v10852, %v11481
        %v11573 = vsel %vm8893, %v11483, -inf
        %v11574 = vsel %vm8893, %v11484, -inf
        %v11575 = vsel %vm8893, %v11485, -inf
        %v11576 = vsel %vm8893, %v11486, -inf
        %v11577 = vsel %vm8893, %v11487, -inf
        %v11578 = vmax.f32 %v11573, %v11577
        %v11579 = vsel %vm8893, %v11488, -inf
        %v11580 = vmax.f32 %v11574, %v11579
        %v11581 = vsel %vm8893, %v11489, -inf
        %v11582 = vmax.f32 %v11575, %v11581
        %v11583 = vsel %vm8893, %v11490, -inf
        %v11584 = vmax.f32 %v11576, %v11583
        %v11585 = vsel %vm8893, %v11491, -inf
        %v11586 = vmax.f32 %v11578, %v11585
        %v11587 = vsel %vm8893, %v11492, -inf
        %v11588 = vmax.f32 %v11580, %v11587
        %v11589 = vsel %vm8893, %v11493, -inf
        %v11590 = vmax.f32 %v11582, %v11589
        %v11591 = vsel %vm8893, %v11494, -inf
        %v11592 = vmax.f32 %v11584, %v11591
        %v11593 = vsel %vm8893, %v11495, -inf
        %v11594 = vmax.f32 %v11586, %v11593
        %v11595 = vsel %vm8893, %v11496, -inf
        %v11596 = vmax.f32 %v11588, %v11595
        %v11597 = vsel %vm8893, %v11497, -inf
        %v11598 = vmax.f32 %v11590, %v11597
        %v11599 = vsel %vm8893, %v11498, -inf
        %v11600 = vmax.f32 %v11592, %v11599
        %v11601 = vsel %vm8893, %v11499, -inf
        %v11602 = vmax.f32 %v11594, %v11601
        %v11603 = vsel %vm8893, %v11500, -inf
        %v11604 = vmax.f32 %v11596, %v11603
        %v11605 = vsel %vm8893, %v11501, -inf
        %v11606 = vmax.f32 %v11598, %v11605
        %v11607 = vsel %vm8893, %v11502, -inf
        %v11608 = vmax.f32 %v11600, %v11607
        %v11609 = vsel %vm8893, %v11503, -inf
        %v11610 = vmax.f32 %v11602, %v11609
        %v11611 = vsel %vm8893, %v11504, -inf
        %v11612 = vmax.f32 %v11604, %v11611
        %v11613 = vsel %vm8893, %v11505, -inf
        %v11614 = vmax.f32 %v11606, %v11613
        %v11615 = vsel %vm8893, %v11506, -inf
        %v11616 = vmax.f32 %v11608, %v11615
        %v11617 = vsel %vm8893, %v11507, -inf
        %v11618 = vmax.f32 %v11610, %v11617
        %v11619 = vsel %vm8893, %v11508, -inf
        %v11620 = vmax.f32 %v11612, %v11619
        %v11621 = vsel %vm8893, %v11509, -inf
        %v11622 = vmax.f32 %v11614, %v11621
        %v11623 = vsel %vm8893, %v11510, -inf
        %v11624 = vmax.f32 %v11616, %v11623
        %v11625 = vsel %vm8893, %v11511, -inf
        %v11626 = vmax.f32 %v11618, %v11625
        %v11627 = vsel %vm8893, %v11512, -inf
        %v11628 = vmax.f32 %v11620, %v11627
        %v11629 = vsel %vm8893, %v11513, -inf
        %v11630 = vmax.f32 %v11622, %v11629
        %v11631 = vsel %vm8893, %v11514, -inf
        %v11632 = vmax.f32 %v11624, %v11631
        %v11633 = vsel %vm8893, %v11515, -inf
        %v11634 = vmax.f32 %v11626, %v11633
        %v11635 = vsel %vm8893, %v11516, -inf
        %v11636 = vmax.f32 %v11628, %v11635
        %v11637 = vsel %vm8893, %v11517, -inf
        %v11638 = vmax.f32 %v11630, %v11637
        %v11639 = vsel %vm8893, %v11518, -inf
        %v11640 = vmax.f32 %v11632, %v11639
        %v11641 = vsel %vm8893, %v11519, -inf
        %v11642 = vmax.f32 %v11634, %v11641
        %v11643 = vsel %vm8893, %v11520, -inf
        %v11644 = vmax.f32 %v11636, %v11643
        %v11645 = vsel %vm8893, %v11521, -inf
        %v11646 = vmax.f32 %v11638, %v11645
        %v11647 = vsel %vm8893, %v11522, -inf
        %v11648 = vmax.f32 %v11640, %v11647
        %v11649 = vsel %vm8893, %v11523, -inf
        %v11650 = vmax.f32 %v11642, %v11649
        %v11651 = vsel %vm8893, %v11524, -inf
        %v11652 = vmax.f32 %v11644, %v11651
        %v11653 = vsel %vm8893, %v11525, -inf
        %v11654 = vmax.f32 %v11646, %v11653
        %v11655 = vsel %vm8893, %v11526, -inf
        %v11656 = vmax.f32 %v11648, %v11655
        %v11657 = vsel %vm8893, %v11527, -inf
        %v11658 = vmax.f32 %v11650, %v11657
        %v11659 = vsel %vm8893, %v11528, -inf
        %v11660 = vmax.f32 %v11652, %v11659
        %v11661 = vsel %vm8893, %v11529, -inf
        %v11662 = vmax.f32 %v11654, %v11661
        %v11663 = vsel %vm8893, %v11530, -inf
        %v11664 = vmax.f32 %v11656, %v11663
        %v11665 = vsel %vm8893, %v11531, -inf
        %v11666 = vmax.f32 %v11658, %v11665
        %v11667 = vsel %vm8893, %v11532, -inf
        %v11668 = vmax.f32 %v11660, %v11667
        %v11669 = vsel %vm8893, %v11533, -inf
        %v11670 = vmax.f32 %v11662, %v11669
        %v11671 = vsel %vm8893, %v11534, -inf
        %v11672 = vmax.f32 %v11664, %v11671
        %v11673 = vsel %vm8893, %v11535, -inf
        %v11674 = vmax.f32 %v11666, %v11673
        %v11675 = vsel %vm8893, %v11536, -inf
        %v11676 = vmax.f32 %v11668, %v11675
        %v11677 = vsel %vm8893, %v11537, -inf
        %v11678 = vmax.f32 %v11670, %v11677
        %v11679 = vsel %vm8893, %v11538, -inf
        %v11680 = vmax.f32 %v11672, %v11679
        %v11681 = vsel %vm8893, %v11539, -inf
        %v11682 = vmax.f32 %v11674, %v11681
        %v11683 = vsel %vm8893, %v11540, -inf
        %v11684 = vmax.f32 %v11676, %v11683
        %v11685 = vsel %vm8893, %v11541, -inf
        %v11686 = vmax.f32 %v11678, %v11685
        %v11687 = vsel %vm8893, %v11542, -inf
        %v11688 = vmax.f32 %v11680, %v11687
        %v11689 = vsel %vm8893, %v11543, -inf
        %v11690 = vmax.f32 %v11682, %v11689
        %v11691 = vsel %vm8893, %v11544, -inf
        %v11692 = vmax.f32 %v11684, %v11691
        %v11693 = vsel %vm8893, %v11545, -inf
        %v11694 = vmax.f32 %v11686, %v11693
        %v11695 = vsel %vm8893, %v11546, -inf
        %v11696 = vmax.f32 %v11688, %v11695
        %v11697 = vsel %vm8893, %v11547, -inf
        %v11698 = vmax.f32 %v11690, %v11697
        %v11699 = vsel %vm8893, %v11548, -inf
        %v11700 = vmax.f32 %v11692, %v11699
        %v11701 = vsel %vm8893, %v11549, -inf
        %v11702 = vmax.f32 %v11694, %v11701
        %v11703 = vsel %vm8893, %v11550, -inf
        %v11704 = vmax.f32 %v11696, %v11703
        %v11705 = vsel %vm8893, %v11551, -inf
        %v11706 = vmax.f32 %v11698, %v11705
        %v11707 = vsel %vm8893, %v11552, -inf
        %v11708 = vmax.f32 %v11700, %v11707
        %v11709 = vsel %vm8893, %v11553, -inf
        %v11710 = vmax.f32 %v11702, %v11709
        %v11711 = vsel %vm8893, %v11554, -inf
        %v11712 = vmax.f32 %v11704, %v11711
        %v11713 = vsel %vm8893, %v11555, -inf
        %v11714 = vmax.f32 %v11706, %v11713
        %v11715 = vsel %vm8893, %v11556, -inf
        %v11716 = vmax.f32 %v11708, %v11715
        %v11717 = vsel %vm8893, %v11557, -inf
        %v11718 = vmax.f32 %v11710, %v11717
        %v11719 = vsel %vm8893, %v11558, -inf
        %v11720 = vmax.f32 %v11712, %v11719
        %v11721 = vsel %vm8893, %v11559, -inf
        %v11722 = vmax.f32 %v11714, %v11721
        %v11723 = vsel %vm8893, %v11560, -inf
        %v11724 = vmax.f32 %v11716, %v11723
        %v11725 = vsel %vm8893, %v11561, -inf
        %v11726 = vmax.f32 %v11718, %v11725
        %v11727 = vsel %vm8893, %v11562, -inf
        %v11728 = vmax.f32 %v11720, %v11727
        %v11729 = vsel %vm8893, %v11563, -inf
        %v11730 = vmax.f32 %v11722, %v11729
        %v11731 = vsel %vm8893, %v11564, -inf
        %v11732 = vmax.f32 %v11724, %v11731
        %v11733 = vsel %vm8893, %v11565, -inf
        %v11734 = vmax.f32 %v11726, %v11733
        %v11735 = vsel %vm8893, %v11566, -inf
        %v11736 = vmax.f32 %v11728, %v11735
        %v11737 = vsel %vm8893, %v11567, -inf
        %v11738 = vmax.f32 %v11730, %v11737
        %v11739 = vsel %vm8893, %v11568, -inf
        %v11740 = vmax.f32 %v11732, %v11739
        %v11741 = vsel %vm8893, %v11569, -inf
        %v11742 = vmax.f32 %v11734, %v11741
        %v11743 = vsel %vm8893, %v11570, -inf
        %v11744 = vmax.f32 %v11736, %v11743
        %v11745 = vsel %vm8893, %v11571, -inf
        %v11746 = vmax.f32 %v11738, %v11745
        %vm11747 = vcmask 778240
        %v11748 = vsel %vm11747, %v11572, -inf
        %v11749 = vmax.f32 %v11740, %v11748
        %v11750 = vmax.f32 %v11746, %v11749
        %v11751 = vmax.f32 %v11742, %v11744
        %v11752 = vmax.f32 %v11750, %v11751
        %v11753 = vrot.slane %v11752, 4
        %v11754 = vmax.f32 %v11752, %v11753
        %v11755 = vrot.slane %v11754, 2
        %v11756 = vmax.f32 %v11754, %v11755
        %v11757 = vrot.slane %v11756, 1
        %v11758 = vmax.f32 %v11756, %v11757
        %v11759 = vsub.f32 %v11483, %v11758
        %v11760 = vsub.f32 %v11484, %v11758
        %v11761 = vsub.f32 %v11485, %v11758
        %v11762 = vsub.f32 %v11486, %v11758
        %v11763 = vsub.f32 %v11487, %v11758
        %v11764 = vsub.f32 %v11488, %v11758
        %v11765 = vsub.f32 %v11489, %v11758
        %v11766 = vsub.f32 %v11490, %v11758
        %v11767 = vsub.f32 %v11491, %v11758
        %v11768 = vsub.f32 %v11492, %v11758
        %v11769 = vsub.f32 %v11493, %v11758
        %v11770 = vsub.f32 %v11494, %v11758
        %v11771 = vsub.f32 %v11495, %v11758
        %v11772 = vsub.f32 %v11496, %v11758
        %v11773 = vsub.f32 %v11497, %v11758
        %v11774 = vsub.f32 %v11498, %v11758
        %v11775 = vsub.f32 %v11499, %v11758
        %v11776 = vsub.f32 %v11500, %v11758
        %v11777 = vsub.f32 %v11501, %v11758
        %v11778 = vsub.f32 %v11502, %v11758
        %v11779 = vsub.f32 %v11503, %v11758
        %v11780 = vsub.f32 %v11504, %v11758
        %v11781 = vsub.f32 %v11505, %v11758
        %v11782 = vsub.f32 %v11506, %v11758
        %v11783 = vsub.f32 %v11507, %v11758
        %v11784 = vsub.f32 %v11508, %v11758
        %v11785 = vsub.f32 %v11509, %v11758
        %v11786 = vsub.f32 %v11510, %v11758
        %v11787 = vsub.f32 %v11511, %v11758
        %v11788 = vsub.f32 %v11512, %v11758
        %v11789 = vsub.f32 %v11513, %v11758
        %v11790 = vsub.f32 %v11514, %v11758
        %v11791 = vsub.f32 %v11515, %v11758
        %v11792 = vsub.f32 %v11516, %v11758
        %v11793 = vsub.f32 %v11517, %v11758
        %v11794 = vsub.f32 %v11518, %v11758
        %v11795 = vsub.f32 %v11519, %v11758
        %v11796 = vsub.f32 %v11520, %v11758
        %v11797 = vsub.f32 %v11521, %v11758
        %v11798 = vsub.f32 %v11522, %v11758
        %v11799 = vsub.f32 %v11523, %v11758
        %v11800 = vsub.f32 %v11524, %v11758
        %v11801 = vsub.f32 %v11525, %v11758
        %v11802 = vsub.f32 %v11526, %v11758
        %v11803 = vsub.f32 %v11527, %v11758
        %v11804 = vsub.f32 %v11528, %v11758
        %v11805 = vsub.f32 %v11529, %v11758
        %v11806 = vsub.f32 %v11530, %v11758
        %v11807 = vsub.f32 %v11531, %v11758
        %v11808 = vsub.f32 %v11532, %v11758
        %v11809 = vsub.f32 %v11533, %v11758
        %v11810 = vsub.f32 %v11534, %v11758
        %v11811 = vsub.f32 %v11535, %v11758
        %v11812 = vsub.f32 %v11536, %v11758
        %v11813 = vsub.f32 %v11537, %v11758
        %v11814 = vsub.f32 %v11538, %v11758
        %v11815 = vsub.f32 %v11539, %v11758
        %v11816 = vsub.f32 %v11540, %v11758
        %v11817 = vsub.f32 %v11541, %v11758
        %v11818 = vsub.f32 %v11542, %v11758
        %v11819 = vsub.f32 %v11543, %v11758
        %v11820 = vsub.f32 %v11544, %v11758
        %v11821 = vsub.f32 %v11545, %v11758
        %v11822 = vsub.f32 %v11546, %v11758
        %v11823 = vsub.f32 %v11547, %v11758
        %v11824 = vsub.f32 %v11548, %v11758
        %v11825 = vsub.f32 %v11549, %v11758
        %v11826 = vsub.f32 %v11550, %v11758
        %v11827 = vsub.f32 %v11551, %v11758
        %v11828 = vsub.f32 %v11552, %v11758
        %v11829 = vsub.f32 %v11553, %v11758
        %v11830 = vsub.f32 %v11554, %v11758
        %v11831 = vsub.f32 %v11555, %v11758
        %v11832 = vsub.f32 %v11556, %v11758
        %v11833 = vsub.f32 %v11557, %v11758
        %v11834 = vsub.f32 %v11558, %v11758
        %v11835 = vsub.f32 %v11559, %v11758
        %v11836 = vsub.f32 %v11560, %v11758
        %v11837 = vsub.f32 %v11561, %v11758
        %v11838 = vsub.f32 %v11562, %v11758
        %v11839 = vsub.f32 %v11563, %v11758
        %v11840 = vsub.f32 %v11564, %v11758
        %v11841 = vsub.f32 %v11565, %v11758
        %v11842 = vsub.f32 %v11566, %v11758
        %v11843 = vsub.f32 %v11567, %v11758
        %v11844 = vsub.f32 %v11568, %v11758
        %v11845 = vsub.f32 %v11569, %v11758
        %v11846 = vsub.f32 %v11570, %v11758
        %v11847 = vsub.f32 %v11571, %v11758
        %v11848 = vsub.f32 %v11572, %v11758
        %v11849 = vmul.f32 %v11759, 1.442695
        %v11850 = vpow.pop %v11849
        %v11851 = vmul.f32 %v11760, 1.442695
        %v11852 = vpow.pop %v11851
        %v11853 = vmul.f32 %v11761, 1.442695
        %v11854 = vpow.pop %v11853
        %v11855 = vmul.f32 %v11762, 1.442695
        %v11856 = vpow.pop %v11855
        %v11857 = vmul.f32 %v11763, 1.442695
        %v11858 = vpow.pop %v11857
        %v11859 = vmul.f32 %v11764, 1.442695
        %v11860 = vpow.pop %v11859
        %v11861 = vmul.f32 %v11765, 1.442695
        %v11862 = vpow.pop %v11861
        %v11863 = vmul.f32 %v11766, 1.442695
        %v11864 = vpow.pop %v11863
        %v11865 = vmul.f32 %v11767, 1.442695
        %v11866 = vpow.pop %v11865
        %v11867 = vmul.f32 %v11768, 1.442695
        %v11868 = vpow.pop %v11867
        %v11869 = vmul.f32 %v11769, 1.442695
        %v11870 = vpow.pop %v11869
        %v11871 = vmul.f32 %v11770, 1.442695
        %v11872 = vpow.pop %v11871
        %v11873 = vmul.f32 %v11771, 1.442695
        %v11874 = vpow.pop %v11873
        %v11875 = vmul.f32 %v11772, 1.442695
        %v11876 = vpow.pop %v11875
        %v11877 = vmul.f32 %v11773, 1.442695
        %v11878 = vpow.pop %v11877
        %v11879 = vmul.f32 %v11774, 1.442695
        %v11880 = vpow.pop %v11879
        %v11881 = vmul.f32 %v11775, 1.442695
        %v11882 = vpow.pop %v11881
        %v11883 = vmul.f32 %v11776, 1.442695
        %v11884 = vpow.pop %v11883
        %v11885 = vmul.f32 %v11777, 1.442695
        %v11886 = vpow.pop %v11885
        %v11887 = vmul.f32 %v11778, 1.442695
        %v11888 = vpow.pop %v11887
        %v11889 = vmul.f32 %v11779, 1.442695
        %v11890 = vpow.pop %v11889
        %v11891 = vmul.f32 %v11780, 1.442695
        %v11892 = vpow.pop %v11891
        %v11893 = vmul.f32 %v11781, 1.442695
        %v11894 = vpow.pop %v11893
        %v11895 = vmul.f32 %v11782, 1.442695
        %v11896 = vpow.pop %v11895
        %v11897 = vmul.f32 %v11783, 1.442695
        %v11898 = vpow.pop %v11897
        %v11899 = vmul.f32 %v11784, 1.442695
        %v11900 = vpow.pop %v11899
        %v11901 = vmul.f32 %v11785, 1.442695
        %v11902 = vpow.pop %v11901
        %v11903 = vmul.f32 %v11786, 1.442695
        %v11904 = vpow.pop %v11903
        %v11905 = vmul.f32 %v11787, 1.442695
        %v11906 = vpow.pop %v11905
        %v11907 = vmul.f32 %v11788, 1.442695
        %v11908 = vpow.pop %v11907
        %v11909 = vmul.f32 %v11789, 1.442695
        %v11910 = vpow.pop %v11909
        %v11911 = vmul.f32 %v11790, 1.442695
        %v11912 = vpow.pop %v11911
        %v11913 = vmul.f32 %v11791, 1.442695
        %v11914 = vpow.pop %v11913
        %v11915 = vmul.f32 %v11792, 1.442695
        %v11916 = vpow.pop %v11915
        %v11917 = vmul.f32 %v11793, 1.442695
        %v11918 = vpow.pop %v11917
        %v11919 = vmul.f32 %v11794, 1.442695
        %v11920 = vpow.pop %v11919
        %v11921 = vmul.f32 %v11795, 1.442695
        %v11922 = vpow.pop %v11921
        %v11923 = vmul.f32 %v11796, 1.442695
        %v11924 = vpow.pop %v11923
        %v11925 = vmul.f32 %v11797, 1.442695
        %v11926 = vpow.pop %v11925
        %v11927 = vmul.f32 %v11798, 1.442695
        %v11928 = vpow.pop %v11927
        %v11929 = vmul.f32 %v11799, 1.442695
        %v11930 = vpow.pop %v11929
        %v11931 = vmul.f32 %v11800, 1.442695
        %v11932 = vpow.pop %v11931
        %v11933 = vmul.f32 %v11801, 1.442695
        %v11934 = vpow.pop %v11933
        %v11935 = vmul.f32 %v11802, 1.442695
        %v11936 = vpow.pop %v11935
        %v11937 = vmul.f32 %v11803, 1.442695
        %v11938 = vpow.pop %v11937
        %v11939 = vmul.f32 %v11804, 1.442695
        %v11940 = vpow.pop %v11939
        %v11941 = vmul.f32 %v11805, 1.442695
        %v11942 = vpow.pop %v11941
        %v11943 = vmul.f32 %v11806, 1.442695
        %v11944 = vpow.pop %v11943
        %v11945 = vmul.f32 %v11807, 1.442695
        %v11946 = vpow.pop %v11945
        %v11947 = vmul.f32 %v11808, 1.442695
        %v11948 = vpow.pop %v11947
        %v11949 = vmul.f32 %v11809, 1.442695
        %v11950 = vpow.pop %v11949
        %v11951 = vmul.f32 %v11810, 1.442695
        %v11952 = vpow.pop %v11951
        %v11953 = vmul.f32 %v11811, 1.442695
        %v11954 = vpow.pop %v11953
        %v11955 = vmul.f32 %v11812, 1.442695
        %v11956 = vpow.pop %v11955
        %v11957 = vmul.f32 %v11813, 1.442695
        %v11958 = vpow.pop %v11957
        %v11959 = vmul.f32 %v11814, 1.442695
        %v11960 = vpow.pop %v11959
        %v11961 = vmul.f32 %v11815, 1.442695
        %v11962 = vpow.pop %v11961
        %v11963 = vmul.f32 %v11816, 1.442695
        %v11964 = vpow.pop %v11963
        %v11965 = vmul.f32 %v11817, 1.442695
        %v11966 = vpow.pop %v11965
        %v11967 = vmul.f32 %v11818, 1.442695
        %v11968 = vpow.pop %v11967
        %v11969 = vmul.f32 %v11819, 1.442695
        %v11970 = vpow.pop %v11969
        %v11971 = vmul.f32 %v11820, 1.442695
        %v11972 = vpow.pop %v11971
        %v11973 = vmul.f32 %v11821, 1.442695
        %v11974 = vpow.pop %v11973
        %v11975 = vmul.f32 %v11822, 1.442695
        %v11976 = vpow.pop %v11975
        %v11977 = vmul.f32 %v11823, 1.442695
        %v11978 = vpow.pop %v11977
        %v11979 = vmul.f32 %v11824, 1.442695
        %v11980 = vpow.pop %v11979
        %v11981 = vmul.f32 %v11825, 1.442695
        %v11982 = vpow.pop %v11981
        %v11983 = vmul.f32 %v11826, 1.442695
        %v11984 = vpow.pop %v11983
        %v11985 = vmul.f32 %v11827, 1.442695
        %v11986 = vpow.pop %v11985
        %v11987 = vmul.f32 %v11828, 1.442695
        %v11988 = vpow.pop %v11987
        %v11989 = vmul.f32 %v11829, 1.442695
        %v11990 = vpow.pop %v11989
        %v11991 = vmul.f32 %v11830, 1.442695
        %v11992 = vpow.pop %v11991
        %v11993 = vmul.f32 %v11831, 1.442695
        %v11994 = vpow.pop %v11993
        %v11995 = vmul.f32 %v11832, 1.442695
        %v11996 = vpow.pop %v11995
        %v11997 = vmul.f32 %v11833, 1.442695
        %v11998 = vpow.pop %v11997
        %v11999 = vmul.f32 %v11834, 1.442695
        %v12000 = vpow.pop %v11999
        %v12001 = vmul.f32 %v11835, 1.442695
        %v12002 = vpow.pop %v12001
        %v12003 = vmul.f32 %v11836, 1.442695
        %v12004 = vpow.pop %v12003
        %v12005 = vmul.f32 %v11837, 1.442695
        %v12006 = vpow.pop %v12005
        %v12007 = vmul.f32 %v11838, 1.442695
        %v12008 = vpow.pop %v12007
        %v12009 = vmul.f32 %v11839, 1.442695
        %v12010 = vpow.pop %v12009
        %v12011 = vmul.f32 %v11840, 1.442695
        %v12012 = vpow.pop %v12011
        %v12013 = vmul.f32 %v11841, 1.442695
        %v12014 = vpow.pop %v12013
        %v12015 = vmul.f32 %v11842, 1.442695
        %v12016 = vpow.pop %v12015
        %v12017 = vmul.f32 %v11843, 1.442695
        %v12018 = vpow.pop %v12017
        %v12019 = vmul.f32 %v11844, 1.442695
        %v12020 = vpow.pop %v12019
        %v12021 = vmul.f32 %v11845, 1.442695
        %v12022 = vpow.pop %v12021
        %v12023 = vmul.f32 %v11846, 1.442695
        %v12024 = vpow.pop %v12023
        %v12025 = vmul.f32 %v11847, 1.442695
        %v12026 = vpow.pop %v12025
        %v12027 = vmul.f32 %v11848, 1.442695
        %v12028 = vpow.pop %v12027
        %v12029 = vsel %vm8893, %v11850, 0.0
        %v12030 = vsel %vm8893, %v11852, 0.0
        %v12031 = vadd.f32 %v12029, %v12030
        %v12032 = vsel %vm8893, %v11854, 0.0
        %v12033 = vadd.f32 %v12031, %v12032
        %v12034 = vsel %vm8893, %v11856, 0.0
        %v12035 = vadd.f32 %v12033, %v12034
        %v12036 = vsel %vm8893, %v11858, 0.0
        %v12037 = vadd.f32 %v12035, %v12036
        %v12038 = vsel %vm8893, %v11860, 0.0
        %v12039 = vadd.f32 %v12037, %v12038
        %v12040 = vsel %vm8893, %v11862, 0.0
        %v12041 = vadd.f32 %v12039, %v12040
        %v12042 = vsel %vm8893, %v11864, 0.0
        %v12043 = vadd.f32 %v12041, %v12042
        %v12044 = vsel %vm8893, %v11866, 0.0
        %v12045 = vadd.f32 %v12043, %v12044
        %v12046 = vsel %vm8893, %v11868, 0.0
        %v12047 = vadd.f32 %v12045, %v12046
        %v12048 = vsel %vm8893, %v11870, 0.0
        %v12049 = vadd.f32 %v12047, %v12048
        %v12050 = vsel %vm8893, %v11872, 0.0
        %v12051 = vadd.f32 %v12049, %v12050
        %v12052 = vsel %vm8893, %v11874, 0.0
        %v12053 = vadd.f32 %v12051, %v12052
        %v12054 = vsel %vm8893, %v11876, 0.0
        %v12055 = vadd.f32 %v12053, %v12054
        %v12056 = vsel %vm8893, %v11878, 0.0
        %v12057 = vadd.f32 %v12055, %v12056
        %v12058 = vsel %vm8893, %v11880, 0.0
        %v12059 = vadd.f32 %v12057, %v12058
        %v12060 = vsel %vm8893, %v11882, 0.0
        %v12061 = vadd.f32 %v12059, %v12060
        %v12062 = vsel %vm8893, %v11884, 0.0
        %v12063 = vadd.f32 %v12061, %v12062
        %v12064 = vsel %vm8893, %v11886, 0.0
        %v12065 = vadd.f32 %v12063, %v12064
        %v12066 = vsel %vm8893, %v11888, 0.0
        %v12067 = vadd.f32 %v12065, %v12066
        %v12068 = vsel %vm8893, %v11890, 0.0
        %v12069 = vadd.f32 %v12067, %v12068
        %v12070 = vsel %vm8893, %v11892, 0.0
        %v12071 = vadd.f32 %v12069, %v12070
        %v12072 = vsel %vm8893, %v11894, 0.0
        %v12073 = vadd.f32 %v12071, %v12072
        %v12074 = vsel %vm8893, %v11896, 0.0
        %v12075 = vadd.f32 %v12073, %v12074
        %v12076 = vsel %vm8893, %v11898, 0.0
        %v12077 = vadd.f32 %v12075, %v12076
        %v12078 = vsel %vm8893, %v11900, 0.0
        %v12079 = vadd.f32 %v12077, %v12078
        %v12080 = vsel %vm8893, %v11902, 0.0
        %v12081 = vadd.f32 %v12079, %v12080
        %v12082 = vsel %vm8893, %v11904, 0.0
        %v12083 = vadd.f32 %v12081, %v12082
        %v12084 = vsel %vm8893, %v11906, 0.0
        %v12085 = vadd.f32 %v12083, %v12084
        %v12086 = vsel %vm8893, %v11908, 0.0
        %v12087 = vadd.f32 %v12085, %v12086
        %v12088 = vsel %vm8893, %v11910, 0.0
        %v12089 = vadd.f32 %v12087, %v12088
        %v12090 = vsel %vm8893, %v11912, 0.0
        %v12091 = vadd.f32 %v12089, %v12090
        %v12092 = vsel %vm8893, %v11914, 0.0
        %v12093 = vadd.f32 %v12091, %v12092
        %v12094 = vsel %vm8893, %v11916, 0.0
        %v12095 = vadd.f32 %v12093, %v12094
        %v12096 = vsel %vm8893, %v11918, 0.0
        %v12097 = vadd.f32 %v12095, %v12096
        %v12098 = vsel %vm8893, %v11920, 0.0
        %v12099 = vadd.f32 %v12097, %v12098
        %v12100 = vsel %vm8893, %v11922, 0.0
        %v12101 = vadd.f32 %v12099, %v12100
        %v12102 = vsel %vm8893, %v11924, 0.0
        %v12103 = vadd.f32 %v12101, %v12102
        %v12104 = vsel %vm8893, %v11926, 0.0
        %v12105 = vadd.f32 %v12103, %v12104
        %v12106 = vsel %vm8893, %v11928, 0.0
        %v12107 = vadd.f32 %v12105, %v12106
        %v12108 = vsel %vm8893, %v11930, 0.0
        %v12109 = vadd.f32 %v12107, %v12108
        %v12110 = vsel %vm8893, %v11932, 0.0
        %v12111 = vadd.f32 %v12109, %v12110
        %v12112 = vsel %vm8893, %v11934, 0.0
        %v12113 = vadd.f32 %v12111, %v12112
        %v12114 = vsel %vm8893, %v11936, 0.0
        %v12115 = vadd.f32 %v12113, %v12114
        %v12116 = vsel %vm8893, %v11938, 0.0
        %v12117 = vadd.f32 %v12115, %v12116
        %v12118 = vsel %vm8893, %v11940, 0.0
        %v12119 = vadd.f32 %v12117, %v12118
        %v12120 = vsel %vm8893, %v11942, 0.0
        %v12121 = vadd.f32 %v12119, %v12120
        %v12122 = vsel %vm8893, %v11944, 0.0
        %v12123 = vadd.f32 %v12121, %v12122
        %v12124 = vsel %vm8893, %v11946, 0.0
        %v12125 = vadd.f32 %v12123, %v12124
        %v12126 = vsel %vm8893, %v11948, 0.0
        %v12127 = vadd.f32 %v12125, %v12126
        %v12128 = vsel %vm8893, %v11950, 0.0
        %v12129 = vadd.f32 %v12127, %v12128
        %v12130 = vsel %vm8893, %v11952, 0.0
        %v12131 = vadd.f32 %v12129, %v12130
        %v12132 = vsel %vm8893, %v11954, 0.0
        %v12133 = vadd.f32 %v12131, %v12132
        %v12134 = vsel %vm8893, %v11956, 0.0
        %v12135 = vadd.f32 %v12133, %v12134
        %v12136 = vsel %vm8893, %v11958, 0.0
        %v12137 = vadd.f32 %v12135, %v12136
        %v12138 = vsel %vm8893, %v11960, 0.0
        %v12139 = vadd.f32 %v12137, %v12138
        %v12140 = vsel %vm8893, %v11962, 0.0
        %v12141 = vadd.f32 %v12139, %v12140
        %v12142 = vsel %vm8893, %v11964, 0.0
        %v12143 = vadd.f32 %v12141, %v12142
        %v12144 = vsel %vm8893, %v11966, 0.0
        %v12145 = vadd.f32 %v12143, %v12144
        %v12146 = vsel %vm8893, %v11968, 0.0
        %v12147 = vadd.f32 %v12145, %v12146
        %v12148 = vsel %vm8893, %v11970, 0.0
        %v12149 = vadd.f32 %v12147, %v12148
        %v12150 = vsel %vm8893, %v11972, 0.0
        %v12151 = vadd.f32 %v12149, %v12150
        %v12152 = vsel %vm8893, %v11974, 0.0
        %v12153 = vadd.f32 %v12151, %v12152
        %v12154 = vsel %vm8893, %v11976, 0.0
        %v12155 = vadd.f32 %v12153, %v12154
        %v12156 = vsel %vm8893, %v11978, 0.0
        %v12157 = vadd.f32 %v12155, %v12156
        %v12158 = vsel %vm8893, %v11980, 0.0
        %v12159 = vadd.f32 %v12157, %v12158
        %v12160 = vsel %vm8893, %v11982, 0.0
        %v12161 = vadd.f32 %v12159, %v12160
        %v12162 = vsel %vm8893, %v11984, 0.0
        %v12163 = vadd.f32 %v12161, %v12162
        %v12164 = vsel %vm8893, %v11986, 0.0
        %v12165 = vadd.f32 %v12163, %v12164
        %v12166 = vsel %vm8893, %v11988, 0.0
        %v12167 = vadd.f32 %v12165, %v12166
        %v12168 = vsel %vm8893, %v11990, 0.0
        %v12169 = vadd.f32 %v12167, %v12168
        %v12170 = vsel %vm8893, %v11992, 0.0
        %v12171 = vadd.f32 %v12169, %v12170
        %v12172 = vsel %vm8893, %v11994, 0.0
        %v12173 = vadd.f32 %v12171, %v12172
        %v12174 = vsel %vm8893, %v11996, 0.0
        %v12175 = vadd.f32 %v12173, %v12174
        %v12176 = vsel %vm8893, %v11998, 0.0
        %v12177 = vadd.f32 %v12175, %v12176
        %v12178 = vsel %vm8893, %v12000, 0.0
        %v12179 = vadd.f32 %v12177, %v12178
        %v12180 = vsel %vm8893, %v12002, 0.0
        %v12181 = vadd.f32 %v12179, %v12180
        %v12182 = vsel %vm8893, %v12004, 0.0
        %v12183 = vadd.f32 %v12181, %v12182
        %v12184 = vsel %vm8893, %v12006, 0.0
        %v12185 = vadd.f32 %v12183, %v12184
        %v12186 = vsel %vm8893, %v12008, 0.0
        %v12187 = vadd.f32 %v12185, %v12186
        %v12188 = vsel %vm8893, %v12010, 0.0
        %v12189 = vadd.f32 %v12187, %v12188
        %v12190 = vsel %vm8893, %v12012, 0.0
        %v12191 = vadd.f32 %v12189, %v12190
        %v12192 = vsel %vm8893, %v12014, 0.0
        %v12193 = vadd.f32 %v12191, %v12192
        %v12194 = vsel %vm8893, %v12016, 0.0
        %v12195 = vadd.f32 %v12193, %v12194
        %v12196 = vsel %vm8893, %v12018, 0.0
        %v12197 = vadd.f32 %v12195, %v12196
        %v12198 = vsel %vm8893, %v12020, 0.0
        %v12199 = vadd.f32 %v12197, %v12198
        %v12200 = vsel %vm8893, %v12022, 0.0
        %v12201 = vadd.f32 %v12199, %v12200
        %v12202 = vsel %vm8893, %v12024, 0.0
        %v12203 = vadd.f32 %v12201, %v12202
        %v12204 = vsel %vm8893, %v12026, 0.0
        %v12205 = vadd.f32 %v12203, %v12204
        %v12206 = vsel %vm11747, %v12028, 0.0
        %v12207 = vadd.f32 %v12205, %v12206
        %v12208 = vrot.slane %v12207, 4
        %v12209 = vadd.f32 %v12207, %v12208
        %v12210 = vrot.slane %v12209, 2
        %v12211 = vadd.f32 %v12209, %v12210
        %v12212 = vrot.slane %v12211, 1
        %v12213 = vadd.f32 %v12211, %v12212
        %v12214 = vld [vmem:[%s5] sm:$0xff]
        %v12215 = vld [vmem:[%s5 + $0x8] sm:$0xf]
        %v12218 = vcombine.high %v12214, %v12214
        %v12220 = vunpack.c.l.s4 1983009808
        %v12221 = vunpack.c.0.s8 %v12220
        %v12222 = vlaneseq
        %v12223 = vshrl.u32 %v12222, 7
        %v12224 = vsub.s32 %v12221, %v12223
        %v12225 = vrot.slane %v12214, %v12224
        %v12227 = vunpack.c.l.s4 1983009808
        %v12228 = vunpack.c.0.s8 %v12227
        %v12229 = vlaneseq
        %v12230 = vshrl.u32 %v12229, 7
        %v12231 = vsub.s32 %v12228, %v12230
        %v12232 = vrot.slane %v12218, %v12231
        %v12233 = vcombine.high %v12225, %v12225
        %v12234 = vcombine.high %v12232, %v12232
        %v12236 = vunpack.c.l.s4 1983009808
        %v12237 = vunpack.c.0.s8 %v12236
        %v12238 = vlaneseq
        %v12239 = vshrl.u32 %v12238, 7
        %v12240 = vsub.s32 %v12237, %v12239
        %v12241 = vrot.slane %v12215, %v12240
        %v12242 = vcombine.high %v12241, %v12241
        %vm12248 = vcmask 596992
        %v12249 = vsel %vm12248, %v12242, 0
        %vm12251 = vcmask 1040384
        %v12253 = vsel %vm12251, %v12028, 0
        %12255 = vmatprep.subr.mxu0 0.0
        %12256 = vmatpush1.msra.mxu0 %v11880
        %12257 = vmatprep.subr.mxu0 0.0
        %12258 = vmatpush1.msra.mxu0 %v11878
        %12259 = vmatprep.subr.mxu0 0.0
        %12260 = vmatpush1.msra.mxu0 %v11876
        %12261 = vmatprep.subr.mxu0 0.0
        %12262 = vmatpush1.msra.mxu0 %v11874
        %12263 = vmatprep.subr.mxu0 0.0
        %12264 = vmatpush1.msra.mxu0 %v11872
        %12265 = vmatprep.subr.mxu0 0.0
        %12266 = vmatpush1.msra.mxu0 %v11870
        %12267 = vmatprep.subr.mxu0 0.0
        %12268 = vmatpush1.msra.mxu0 %v11868
        %12269 = vmatprep.subr.mxu0 0.0
        %12270 = vmatpush1.msra.mxu0 %v11866
        %12271 = vmatprep.subr.mxu0 0.0
        %12272 = vmatpush1.msra.mxu0 %v11864
        %12273 = vmatprep.subr.mxu0 0.0
        %12274 = vmatpush1.msra.mxu0 %v11862
        %12275 = vmatprep.subr.mxu0 0.0
        %12276 = vmatpush1.msra.mxu0 %v11860
        %12277 = vmatprep.subr.mxu0 0.0
        %12278 = vmatpush1.msra.mxu0 %v11858
        %12279 = vmatprep.subr.mxu0 0.0
        %12280 = vmatpush1.msra.mxu0 %v11856
        %12281 = vmatprep.subr.mxu0 0.0
        %12282 = vmatpush1.msra.mxu0 %v11854
        %12283 = vmatprep.subr.mxu0 0.0
        %12284 = vmatpush1.msra.mxu0 %v11852
        %12285 = vmatprep.subr.mxu0 0.0
        %12286 = vmatpush1.msra.mxu0 %v11850
        %12287 = vmatprep.subr.mxu0 0.0
        %12288 = vmatpush2.msra.mxu0 %v11912
        %12289 = vmatprep.subr.mxu0 0.0
        %12290 = vmatpush2.msra.mxu0 %v11910
        %12291 = vmatprep.subr.mxu0 0.0
        %12292 = vmatpush2.msra.mxu0 %v11908
        %12293 = vmatprep.subr.mxu0 0.0
        %12294 = vmatpush2.msra.mxu0 %v11906
        %12295 = vmatprep.subr.mxu0 0.0
        %12296 = vmatpush2.msra.mxu0 %v11904
        %12297 = vmatprep.subr.mxu0 0.0
        %12298 = vmatpush2.msra.mxu0 %v11902
        %12299 = vmatprep.subr.mxu0 0.0
        %12300 = vmatpush2.msra.mxu0 %v11900
        %12301 = vmatprep.subr.mxu0 0.0
        %12302 = vmatpush2.msra.mxu0 %v11898
        %12303 = vmatprep.subr.mxu0 0.0
        %12304 = vmatpush2.msra.mxu0 %v11896
        %12305 = vmatprep.subr.mxu0 0.0
        %12306 = vmatpush2.msra.mxu0 %v11894
        %12307 = vmatprep.subr.mxu0 0.0
        %12308 = vmatpush2.msra.mxu0 %v11892
        %12309 = vmatprep.subr.mxu0 0.0
        %12310 = vmatpush2.msra.mxu0 %v11890
        %12311 = vmatprep.subr.mxu0 0.0
        %12312 = vmatpush2.msra.mxu0 %v11888
        %12313 = vmatprep.subr.mxu0 0.0
        %12314 = vmatpush2.msra.mxu0 %v11886
        %12315 = vmatprep.subr.mxu0 0.0
        %12316 = vmatpush2.msra.mxu0 %v11884
        %12317 = vmatprep.subr.mxu0 0.0
        %12318 = vmatpush2.msra.mxu0 %v11882
        %12319 = vmatprep.mubr.f32.mxu0 %v12233
        %12320 = vmatmul.mubr.f32.gmra.mxu0 %v12225
        %v12321 = vpop.f32.mrf.mxu0
        %v12322 = vadd.f32 0.0, %v12321
        %v12323 = vpop.f32.mrf.mxu0
        %12324 = vdwg.mxu0
        %12325 = vmatprep.subr.mxu0 0.0
        %12326 = vmatpush1.msra.mxu0 %v11944
        %12327 = vmatprep.subr.mxu0 0.0
        %12328 = vmatpush1.msra.mxu0 %v11942
        %12329 = vmatprep.subr.mxu0 0.0
        %12330 = vmatpush1.msra.mxu0 %v11940
        %12331 = vmatprep.subr.mxu0 0.0
        %12332 = vmatpush1.msra.mxu0 %v11938
        %12333 = vmatprep.subr.mxu0 0.0
        %12334 = vmatpush1.msra.mxu0 %v11936
        %12335 = vmatprep.subr.mxu0 0.0
        %12336 = vmatpush1.msra.mxu0 %v11934
        %12337 = vmatprep.subr.mxu0 0.0
        %12338 = vmatpush1.msra.mxu0 %v11932
        %12339 = vmatprep.subr.mxu0 0.0
        %12340 = vmatpush1.msra.mxu0 %v11930
        %12341 = vmatprep.subr.mxu0 0.0
        %12342 = vmatpush1.msra.mxu0 %v11928
        %12343 = vmatprep.subr.mxu0 0.0
        %12344 = vmatpush1.msra.mxu0 %v11926
        %12345 = vmatprep.subr.mxu0 0.0
        %12346 = vmatpush1.msra.mxu0 %v11924
        %12347 = vmatprep.subr.mxu0 0.0
        %12348 = vmatpush1.msra.mxu0 %v11922
        %12349 = vmatprep.subr.mxu0 0.0
        %12350 = vmatpush1.msra.mxu0 %v11920
        %12351 = vmatprep.subr.mxu0 0.0
        %12352 = vmatpush1.msra.mxu0 %v11918
        %12353 = vmatprep.subr.mxu0 0.0
        %12354 = vmatpush1.msra.mxu0 %v11916
        %12355 = vmatprep.subr.mxu0 0.0
        %12356 = vmatpush1.msra.mxu0 %v11914
        %12357 = vmatprep.subr.mxu0 0.0
        %12358 = vmatpush2.msra.mxu0 %v11976
        %12359 = vmatprep.subr.mxu0 0.0
        %12360 = vmatpush2.msra.mxu0 %v11974
        %12361 = vmatprep.subr.mxu0 0.0
        %12362 = vmatpush2.msra.mxu0 %v11972
        %12363 = vmatprep.subr.mxu0 0.0
        %12364 = vmatpush2.msra.mxu0 %v11970
        %12365 = vmatprep.subr.mxu0 0.0
        %12366 = vmatpush2.msra.mxu0 %v11968
        %12367 = vmatprep.subr.mxu0 0.0
        %12368 = vmatpush2.msra.mxu0 %v11966
        %12369 = vmatprep.subr.mxu0 0.0
        %12370 = vmatpush2.msra.mxu0 %v11964
        %12371 = vmatprep.subr.mxu0 0.0
        %12372 = vmatpush2.msra.mxu0 %v11962
        %12373 = vmatprep.subr.mxu0 0.0
        %12374 = vmatpush2.msra.mxu0 %v11960
        %12375 = vmatprep.subr.mxu0 0.0
        %12376 = vmatpush2.msra.mxu0 %v11958
        %12377 = vmatprep.subr.mxu0 0.0
        %12378 = vmatpush2.msra.mxu0 %v11956
        %12379 = vmatprep.subr.mxu0 0.0
        %12380 = vmatpush2.msra.mxu0 %v11954
        %12381 = vmatprep.subr.mxu0 0.0
        %12382 = vmatpush2.msra.mxu0 %v11952
        %12383 = vmatprep.subr.mxu0 0.0
        %12384 = vmatpush2.msra.mxu0 %v11950
        %12385 = vmatprep.subr.mxu0 0.0
        %12386 = vmatpush2.msra.mxu0 %v11948
        %12387 = vmatprep.subr.mxu0 0.0
        %12388 = vmatpush2.msra.mxu0 %v11946
        %12389 = vmatprep.mubr.f32.mxu0 %v12234
        %12390 = vmatmul.mubr.f32.gmra.mxu0 %v12232
        %v12391 = vpop.f32.mrf.mxu0
        %v12392 = vadd.f32 %v12322, %v12391
        %v12393 = vpop.f32.mrf.mxu0
        %12394 = vdwg.mxu0
        %12395 = vmatprep.subr.mxu0 0.0
        %12396 = vmatpush1.msra.mxu0 %v12008
        %12397 = vmatprep.subr.mxu0 0.0
        %12398 = vmatpush1.msra.mxu0 %v12006
        %12399 = vmatprep.subr.mxu0 0.0
        %12400 = vmatpush1.msra.mxu0 %v12004
        %12401 = vmatprep.subr.mxu0 0.0
        %12402 = vmatpush1.msra.mxu0 %v12002
        %12403 = vmatprep.subr.mxu0 0.0
        %12404 = vmatpush1.msra.mxu0 %v12000
        %12405 = vmatprep.subr.mxu0 0.0
        %12406 = vmatpush1.msra.mxu0 %v11998
        %12407 = vmatprep.subr.mxu0 0.0
        %12408 = vmatpush1.msra.mxu0 %v11996
        %12409 = vmatprep.subr.mxu0 0.0
        %12410 = vmatpush1.msra.mxu0 %v11994
        %12411 = vmatprep.subr.mxu0 0.0
        %12412 = vmatpush1.msra.mxu0 %v11992
        %12413 = vmatprep.subr.mxu0 0.0
        %12414 = vmatpush1.msra.mxu0 %v11990
        %12415 = vmatprep.subr.mxu0 0.0
        %12416 = vmatpush1.msra.mxu0 %v11988
        %12417 = vmatprep.subr.mxu0 0.0
        %12418 = vmatpush1.msra.mxu0 %v11986
        %12419 = vmatprep.subr.mxu0 0.0
        %12420 = vmatpush1.msra.mxu0 %v11984
        %12421 = vmatprep.subr.mxu0 0.0
        %12422 = vmatpush1.msra.mxu0 %v11982
        %12423 = vmatprep.subr.mxu0 0.0
        %12424 = vmatpush1.msra.mxu0 %v11980
        %12425 = vmatprep.subr.mxu0 0.0
        %12426 = vmatpush1.msra.mxu0 %v11978
        %12427 = vmatprep.subr.mxu0 0.0
        %12428 = vmatpush2.msra.mxu0 0.0
        %12429 = vmatprep.subr.mxu0 0.0
        %12430 = vmatpush2.msra.mxu0 0.0
        %12431 = vmatprep.subr.mxu0 0.0
        %12432 = vmatpush2.msra.mxu0 0.0
        %12433 = vmatprep.subr.mxu0 0.0
        %12434 = vmatpush2.msra.mxu0 0.0
        %12435 = vmatprep.subr.mxu0 0.0
        %12436 = vmatpush2.msra.mxu0 0.0
        %12437 = vmatprep.subr.mxu0 0.0
        %12438 = vmatpush2.msra.mxu0 0.0
        %12439 = vmatprep.subr.mxu0 0.0
        %12440 = vmatpush2.msra.mxu0 %v12253
        %12441 = vmatprep.subr.mxu0 0.0
        %12442 = vmatpush2.msra.mxu0 %v12026
        %12443 = vmatprep.subr.mxu0 0.0
        %12444 = vmatpush2.msra.mxu0 %v12024
        %12445 = vmatprep.subr.mxu0 0.0
        %12446 = vmatpush2.msra.mxu0 %v12022
        %12447 = vmatprep.subr.mxu0 0.0
        %12448 = vmatpush2.msra.mxu0 %v12020
        %12449 = vmatprep.subr.mxu0 0.0
        %12450 = vmatpush2.msra.mxu0 %v12018
        %12451 = vmatprep.subr.mxu0 0.0
        %12452 = vmatpush2.msra.mxu0 %v12016
        %12453 = vmatprep.subr.mxu0 0.0
        %12454 = vmatpush2.msra.mxu0 %v12014
        %12455 = vmatprep.subr.mxu0 0.0
        %12456 = vmatpush2.msra.mxu0 %v12012
        %12457 = vmatprep.subr.mxu0 0.0
        %12458 = vmatpush2.msra.mxu0 %v12010
        %12459 = vmatprep.mubr.f32.mxu0 %v12249
        %12460 = vmatmul.mubr.f32.gmra.mxu0 %v12241
        %v12461 = vpop.f32.mrf.mxu0
        %v12462 = vadd.f32 %v12392, %v12461
        %v12463 = vpop.f32.mrf.mxu0
        %12464 = vdwg.mxu0
        %v12465 = vrcp.pop %v12213
        %v12466 = vmul.f32 %v12462, %v12465
        %v12467 = vld [vmem:[%s7] sm:$0xff]
        %v12468 = vld [vmem:[%s7 + $0x8] sm:$0xff]
        %v12469 = vld [vmem:[%s7 + $0x10] sm:$0xff]
        %v12470 = vld [vmem:[%s7 + $0x18] sm:$0xff]
        %v12471 = vld [vmem:[%s7 + $0x20] sm:$0xff]
        %v12472 = vld [vmem:[%s7 + $0x28] sm:$0xff]
        %v12473 = vld [vmem:[%s7 + $0x30] sm:$0xff]
        %v12474 = vld [vmem:[%s7 + $0x38] sm:$0xff]
        %v12475 = vld [vmem:[%s7 + $0x40] sm:$0xff]
        %v12476 = vld [vmem:[%s7 + $0x48] sm:$0xff]
        %v12477 = vld [vmem:[%s7 + $0x50] sm:$0xff]
        %v12478 = vld [vmem:[%s7 + $0x58] sm:$0xff]
        %v12479 = vld [vmem:[%s7 + $0x60] sm:$0xff]
        %v12480 = vld [vmem:[%s7 + $0x68] sm:$0xff]
        %v12481 = vld [vmem:[%s7 + $0x70] sm:$0xff]
        %v12482 = vld [vmem:[%s7 + $0x78] sm:$0xff]
        %v12483 = vld [vmem:[%s7 + $0x80] sm:$0xff]
        %v12484 = vld [vmem:[%s7 + $0x88] sm:$0xff]
        %v12485 = vld [vmem:[%s7 + $0x90] sm:$0xff]
        %v12486 = vld [vmem:[%s7 + $0x98] sm:$0xff]
        %v12487 = vld [vmem:[%s7 + $0xa0] sm:$0xff]
        %v12488 = vld [vmem:[%s7 + $0xa8] sm:$0xff]
        %v12489 = vld [vmem:[%s7 + $0xb0] sm:$0xff]
        %v12490 = vld [vmem:[%s7 + $0xb8] sm:$0xff]
        %v12492 = vrot.slane %v12466, 1
        %v12493 = vsel %vm8893, %v12492, 0
        %12495 = vmatprep.subr.mxu0 0.0
        %12496 = vmatpush1.msra.mxu0 0.0
        %12497 = vmatprep.subr.mxu0 0.0
        %12498 = vmatpush1.msra.mxu0 0.0
        %12499 = vmatprep.subr.mxu0 0.0
        %12500 = vmatpush1.msra.mxu0 0.0
        %12501 = vmatprep.subr.mxu0 0.0
        %12502 = vmatpush1.msra.mxu0 0.0
        %12503 = vmatprep.subr.mxu0 0.0
        %12504 = vmatpush1.msra.mxu0 %v12490
        %12505 = vmatprep.subr.mxu0 0.0
        %12506 = vmatpush1.msra.mxu0 %v12489
        %12507 = vmatprep.subr.mxu0 0.0
        %12508 = vmatpush1.msra.mxu0 %v12488
        %12509 = vmatprep.subr.mxu0 0.0
        %12510 = vmatpush1.msra.mxu0 %v12487
        %12511 = vmatprep.subr.mxu0 0.0
        %12512 = vmatpush1.msra.mxu0 %v12486
        %12513 = vmatprep.subr.mxu0 0.0
        %12514 = vmatpush1.msra.mxu0 %v12485
        %12515 = vmatprep.subr.mxu0 0.0
        %12516 = vmatpush1.msra.mxu0 %v12484
        %12517 = vmatprep.subr.mxu0 0.0
        %12518 = vmatpush1.msra.mxu0 %v12483
        %12519 = vmatprep.subr.mxu0 0.0
        %12520 = vmatpush1.msra.mxu0 %v12482
        %12521 = vmatprep.subr.mxu0 0.0
        %12522 = vmatpush1.msra.mxu0 %v12481
        %12523 = vmatprep.subr.mxu0 0.0
        %12524 = vmatpush1.msra.mxu0 %v12480
        %12525 = vmatprep.subr.mxu0 0.0
        %12526 = vmatpush1.msra.mxu0 %v12479
        %12527 = vmatprep.subr.mxu0 0.0
        %12528 = vmatpush2.msra.mxu0 0.0
        %12529 = vmatprep.subr.mxu0 0.0
        %12530 = vmatpush2.msra.mxu0 0.0
        %12531 = vmatprep.subr.mxu0 0.0
        %12532 = vmatpush2.msra.mxu0 0.0
        %12533 = vmatprep.subr.mxu0 0.0
        %12534 = vmatpush2.msra.mxu0 0.0
        %12535 = vmatprep.subr.mxu0 0.0
        %12536 = vmatpush2.msra.mxu0 0.0
        %12537 = vmatprep.subr.mxu0 0.0
        %12538 = vmatpush2.msra.mxu0 0.0
        %12539 = vmatprep.subr.mxu0 0.0
        %12540 = vmatpush2.msra.mxu0 0.0
        %12541 = vmatprep.subr.mxu0 0.0
        %12542 = vmatpush2.msra.mxu0 0.0
        %12543 = vmatprep.subr.mxu0 0.0
        %12544 = vmatpush2.msra.mxu0 0.0
        %12545 = vmatprep.subr.mxu0 0.0
        %12546 = vmatpush2.msra.mxu0 0.0
        %12547 = vmatprep.subr.mxu0 0.0
        %12548 = vmatpush2.msra.mxu0 0.0
        %12549 = vmatprep.subr.mxu0 0.0
        %12550 = vmatpush2.msra.mxu0 0.0
        %12551 = vmatprep.subr.mxu0 0.0
        %12552 = vmatpush2.msra.mxu0 0.0
        %12553 = vmatprep.subr.mxu0 0.0
        %12554 = vmatpush2.msra.mxu0 0.0
        %12555 = vmatprep.subr.mxu0 0.0
        %12556 = vmatpush2.msra.mxu0 0.0
        %12557 = vmatprep.subr.mxu0 0.0
        %12558 = vmatpush2.msra.mxu0 0.0
        %12559 = vmatprep.mubr.f32.mxu0 0.0
        %12560 = vmatmul.mubr.f32.gmra.mxu0 %v12493
        %v12561 = vpop.f32.mrf.mxu0
        %v12562 = vadd.f32 0.0, %v12561
        %v12563 = vpop.f32.mrf.mxu0
        %12564 = vdwg.mxu0
        %v12565 = vsel %vm8893, %v12466, 0
        %12567 = vmatprep.subr.mxu0 0.0
        %12568 = vmatpush1.msra.mxu0 0.0
        %12569 = vmatprep.subr.mxu0 0.0
        %12570 = vmatpush1.msra.mxu0 0.0
        %12571 = vmatprep.subr.mxu0 0.0
        %12572 = vmatpush1.msra.mxu0 0.0
        %12573 = vmatprep.subr.mxu0 0.0
        %12574 = vmatpush1.msra.mxu0 0.0
        %12575 = vmatprep.subr.mxu0 0.0
        %12576 = vmatpush1.msra.mxu0 %v12478
        %12577 = vmatprep.subr.mxu0 0.0
        %12578 = vmatpush1.msra.mxu0 %v12477
        %12579 = vmatprep.subr.mxu0 0.0
        %12580 = vmatpush1.msra.mxu0 %v12476
        %12581 = vmatprep.subr.mxu0 0.0
        %12582 = vmatpush1.msra.mxu0 %v12475
        %12583 = vmatprep.subr.mxu0 0.0
        %12584 = vmatpush1.msra.mxu0 %v12474
        %12585 = vmatprep.subr.mxu0 0.0
        %12586 = vmatpush1.msra.mxu0 %v12473
        %12587 = vmatprep.subr.mxu0 0.0
        %12588 = vmatpush1.msra.mxu0 %v12472
        %12589 = vmatprep.subr.mxu0 0.0
        %12590 = vmatpush1.msra.mxu0 %v12471
        %12591 = vmatprep.subr.mxu0 0.0
        %12592 = vmatpush1.msra.mxu0 %v12470
        %12593 = vmatprep.subr.mxu0 0.0
        %12594 = vmatpush1.msra.mxu0 %v12469
        %12595 = vmatprep.subr.mxu0 0.0
        %12596 = vmatpush1.msra.mxu0 %v12468
        %12597 = vmatprep.subr.mxu0 0.0
        %12598 = vmatpush1.msra.mxu0 %v12467
        %12599 = vmatprep.subr.mxu0 0.0
        %12600 = vmatpush2.msra.mxu0 0.0
        %12601 = vmatprep.subr.mxu0 0.0
        %12602 = vmatpush2.msra.mxu0 0.0
        %12603 = vmatprep.subr.mxu0 0.0
        %12604 = vmatpush2.msra.mxu0 0.0
        %12605 = vmatprep.subr.mxu0 0.0
        %12606 = vmatpush2.msra.mxu0 0.0
        %12607 = vmatprep.subr.mxu0 0.0
        %12608 = vmatpush2.msra.mxu0 0.0
        %12609 = vmatprep.subr.mxu0 0.0
        %12610 = vmatpush2.msra.mxu0 0.0
        %12611 = vmatprep.subr.mxu0 0.0
        %12612 = vmatpush2.msra.mxu0 0.0
        %12613 = vmatprep.subr.mxu0 0.0
        %12614 = vmatpush2.msra.mxu0 0.0
        %12615 = vmatprep.subr.mxu0 0.0
        %12616 = vmatpush2.msra.mxu0 0.0
        %12617 = vmatprep.subr.mxu0 0.0
        %12618 = vmatpush2.msra.mxu0 0.0
        %12619 = vmatprep.subr.mxu0 0.0
        %12620 = vmatpush2.msra.mxu0 0.0
        %12621 = vmatprep.subr.mxu0 0.0
        %12622 = vmatpush2.msra.mxu0 0.0
        %12623 = vmatprep.subr.mxu0 0.0
        %12624 = vmatpush2.msra.mxu0 0.0
        %12625 = vmatprep.subr.mxu0 0.0
        %12626 = vmatpush2.msra.mxu0 0.0
        %12627 = vmatprep.subr.mxu0 0.0
        %12628 = vmatpush2.msra.mxu0 0.0
        %12629 = vmatprep.subr.mxu0 0.0
        %12630 = vmatpush2.msra.mxu0 0.0
        %12631 = vmatprep.mubr.f32.mxu0 0.0
        %12632 = vmatmul.mubr.f32.gmra.mxu0 %v12565
        %v12633 = vpop.f32.mrf.mxu0
        %v12634 = vadd.f32 %v12562, %v12633
        %v12635 = vpop.f32.mrf.mxu0
        %12636 = vdwg.mxu0
        %v12637 = vld [vmem:[%s8] sm:$0x1]
        %v12638 = vadd.f32 %v12634, %v12637
        %v12639 = vmax.f32 %v12638, 0.0
        %v12640 = vld [vmem:[%s9] sm:$0xff]
        %v12641 = vld [vmem:[%s9 + $0x8] sm:$0xff]
        %v12642 = vld [vmem:[%s9 + $0x10] sm:$0xff]
        %v12643 = vld [vmem:[%s9 + $0x18] sm:$0xff]
        %v12644 = vld [vmem:[%s9 + $0x20] sm:$0xff]
        %v12645 = vld [vmem:[%s9 + $0x28] sm:$0xff]
        %v12646 = vld [vmem:[%s9 + $0x30] sm:$0xff]
        %v12647 = vld [vmem:[%s9 + $0x38] sm:$0xff]
        %v12648 = vld [vmem:[%s10] sm:$0x1]
        %v12650 = vsel %vm9075, %v12639, 0
        %12652 = vmatprep.subr.mxu0 0.0
        %12653 = vmatpush1.msra.mxu0 0.0
        %12654 = vmatprep.subr.mxu0 0.0
        %12655 = vmatpush1.msra.mxu0 0.0
        %12656 = vmatprep.subr.mxu0 0.0
        %12657 = vmatpush1.msra.mxu0 0.0
        %12658 = vmatprep.subr.mxu0 0.0
        %12659 = vmatpush1.msra.mxu0 0.0
        %12660 = vmatprep.subr.mxu0 0.0
        %12661 = vmatpush1.msra.mxu0 0.0
        %12662 = vmatprep.subr.mxu0 0.0
        %12663 = vmatpush1.msra.mxu0 0.0
        %12664 = vmatprep.subr.mxu0 0.0
        %12665 = vmatpush1.msra.mxu0 0.0
        %12666 = vmatprep.subr.mxu0 0.0
        %12667 = vmatpush1.msra.mxu0 0.0
        %12668 = vmatprep.subr.mxu0 0.0
        %12669 = vmatpush1.msra.mxu0 %v12647
        %12670 = vmatprep.subr.mxu0 0.0
        %12671 = vmatpush1.msra.mxu0 %v12646
        %12672 = vmatprep.subr.mxu0 0.0
        %12673 = vmatpush1.msra.mxu0 %v12645
        %12674 = vmatprep.subr.mxu0 0.0
        %12675 = vmatpush1.msra.mxu0 %v12644
        %12676 = vmatprep.subr.mxu0 0.0
        %12677 = vmatpush1.msra.mxu0 %v12643
        %12678 = vmatprep.subr.mxu0 0.0
        %12679 = vmatpush1.msra.mxu0 %v12642
        %12680 = vmatprep.subr.mxu0 0.0
        %12681 = vmatpush1.msra.mxu0 %v12641
        %12682 = vmatprep.subr.mxu0 0.0
        %12683 = vmatpush1.msra.mxu0 %v12640
        %12684 = vmatprep.subr.mxu0 0.0
        %12685 = vmatpush2.msra.mxu0 0.0
        %12686 = vmatprep.subr.mxu0 0.0
        %12687 = vmatpush2.msra.mxu0 0.0
        %12688 = vmatprep.subr.mxu0 0.0
        %12689 = vmatpush2.msra.mxu0 0.0
        %12690 = vmatprep.subr.mxu0 0.0
        %12691 = vmatpush2.msra.mxu0 0.0
        %12692 = vmatprep.subr.mxu0 0.0
        %12693 = vmatpush2.msra.mxu0 0.0
        %12694 = vmatprep.subr.mxu0 0.0
        %12695 = vmatpush2.msra.mxu0 0.0
        %12696 = vmatprep.subr.mxu0 0.0
        %12697 = vmatpush2.msra.mxu0 0.0
        %12698 = vmatprep.subr.mxu0 0.0
        %12699 = vmatpush2.msra.mxu0 0.0
        %12700 = vmatprep.subr.mxu0 0.0
        %12701 = vmatpush2.msra.mxu0 0.0
        %12702 = vmatprep.subr.mxu0 0.0
        %12703 = vmatpush2.msra.mxu0 0.0
        %12704 = vmatprep.subr.mxu0 0.0
        %12705 = vmatpush2.msra.mxu0 0.0
        %12706 = vmatprep.subr.mxu0 0.0
        %12707 = vmatpush2.msra.mxu0 0.0
        %12708 = vmatprep.subr.mxu0 0.0
        %12709 = vmatpush2.msra.mxu0 0.0
        %12710 = vmatprep.subr.mxu0 0.0
        %12711 = vmatpush2.msra.mxu0 0.0
        %12712 = vmatprep.subr.mxu0 0.0
        %12713 = vmatpush2.msra.mxu0 0.0
        %12714 = vmatprep.subr.mxu0 0.0
        %12715 = vmatpush2.msra.mxu0 0.0
        %12716 = vmatprep.mubr.f32.mxu0 0.0
        %12717 = vmatmul.mubr.f32.gmra.mxu0 %v12650
        %v12718 = vpop.f32.mrf.mxu0
        %v12719 = vadd.f32 %v12648, %v12718
        %v12720 = vpop.f32.mrf.mxu0
        %12721 = vdwg.mxu0
        %12722 = vst [vmem:[%s378] sm:$0x1] %v12719
        %s12723 = sand.u32 %s269, 1
        %s12724 = scalar_lea.sflag [#allocation5], %s12723
        %s12725 = sand.u32 %s269, 1
        %s12726 = scalar_lea.vmem [#allocation4], %s12725
        // Predicated region
        $region65: #{attention2d_forward.1} parent=63 // pred_check
          %p12727 = pneg %p279
        $region66: #{attention2d_forward.1} parent=63 // pred_check_branch
          %12729 = sbr.rel (%p12727) target = $region68
        $region67: #{attention2d_forward.1} parent=63 // pred_region
          %s12731 = ssub.s32 16, 16
          %12732 = vsyncadd %s12724, %s12731
          %s12733 = smul.addr %s25, 16
          %s12734 = scalar_lea.hbm %s11, %s12733
          %s12736 = sshll.u32 %s12726, 4
          %s12737 = int_to_ptr.vmem [resolvable:$true] %s12736
          %12739 = dma.vmem_to_hbm [thread:$0]  %s12737, 16, %s12734, %s12724
        $region68: #{attention2d_forward.1} parent=63 // pred_fallthru
          _
      $region64: #{attention2d_forward.1} parent=5 // pred_fallthru
        _
      %p12740 = scmp.le.s32.totalorder 2, %s20
      // Predicated region
      $region69: #{attention2d_forward.1} parent=5 // pred_check
        %p12741 = pneg %p12740
      $region70: #{attention2d_forward.1} parent=5 // pred_check_branch
        %12743 = sbr.rel (%p12741) target = $region72
      $region71: #{attention2d_forward.1} parent=5 // pred_region
        %s12744 = ssub.s32 %s20, 2
        // Predicated region
        $region73: #{attention2d_forward.1} parent=71 // pred_check
          %p12745 = pneg %p285
        $region74: #{attention2d_forward.1} parent=71 // pred_check_branch
          %12747 = sbr.rel (%p12745) target = $region76
        $region75: #{attention2d_forward.1} parent=71 // pred_region
          %s12748 = sand.u32 %s270, 1
          %s12749 = scalar_lea.sflag [#allocation5], %s12748
          %s12750 = sand.u32 %s270, 1
          %s12751 = scalar_lea.vmem [#allocation4], %s12750
          %12752 = dma.done %s12749, 16
        $region76: #{attention2d_forward.1} parent=71 // pred_fallthru
          _
      $region72: #{attention2d_forward.1} parent=5 // pred_fallthru
        _
    $region6: #{attention2d_forward.1} parent=1 // loop_footer
      %s24 = sadd.s32 1, %s20
    $region7: #{attention2d_forward.1} parent=1 // loop_footer_branch
      %19 = sbr.rel target = $region3
    $region8: #{attention2d_forward.1} parent=1 // loop_exit
      _
    %12753 = vsyncpa [#allocation5], 1
    %s12754 = scalar_lea.sflag [#allocation5], 1
    %12755 = vsyncpa %s12754, 1

</llo_original>
